<compile_context>
chip_gen: v7x
topology: tpu7x:2x2x1
jax: 0.10.0
libtpu: 0.0.40
codegen_flags: <defaults>
</compile_context>

<pallas_src>
import functools

import jax
import jax.numpy as jnp
from jax.experimental import pallas as pl
from jax.experimental.pallas import tpu as pltpu

BN_EPS = 1e-5
LRELU_SLOPE = 0.2
TM_CAP = 1024          # row-tile cap (512 vs 1024 measured ~equal vs roofline)


def _vmem_capacity_bytes():
    try:
        return int(pltpu.get_tpu_info().vmem_capacity_bytes)
    except Exception:
        return 64 * 1024 * 1024


# Generation-aware scoped-VMEM limit: ~3/4 of physical
# (96 MiB on v5e/v6e's 128 MiB, 48 MiB on v7x's 64 MiB).
VMEM_LIMIT = min(_vmem_capacity_bytes() * 3 // 4, 112 * 1024 * 1024)


def _cparams(sem):
    return pltpu.CompilerParams(dimension_semantics=sem,
                                vmem_limit_bytes=VMEM_LIMIT)


def _pick_tm(m, k, cout, extra_bytes=0):
    """Largest row tile whose double-buffered working set fits the budget."""
    per_row = 2 * (k * 2) + 2 * (cout * 2)      # bf16 x tile + bf16 out tile (x2 buffers)
    fixed = 2 * (k * cout * 2) + extra_bytes    # bf16 weight (x2 buffers) + scratch
    # TODO(synk): single-buffer the resident weight block via
    # pipeline_mode=pl.Buffered(1) on v7x to reclaim half of `fixed`.
    budget = int(VMEM_LIMIT * 0.8) - fixed
    tm = max(8, min(budget // max(per_row, 1), TM_CAP))
    if m <= tm:
        return m                                 # one full-extent tile
    return (tm // 8) * 8


def _pad_rows(x, mp):
    m = x.shape[0]
    return x if mp == m else jnp.pad(x, ((0, mp - m), (0, 0)))


# ---------------------------------------------------------------------------
# Kernels.
# ---------------------------------------------------------------------------
def _conv_bias_lrelu_kernel(x_ref, w_ref, b_ref, o_ref):
    y = jnp.dot(x_ref[...], w_ref[...], preferred_element_type=jnp.float32)
    y = y + b_ref[...]
    o_ref[...] = jnp.where(y >= 0, y, LRELU_SLOPE * y).astype(o_ref.dtype)


def _conv_bn_lrelu_kernel(x_ref, w_ref, g_ref, b_ref, o_ref,
                          y_scr, sum_scr, ssq_scr, *, inv_m, tm):
    # Phase 0: row-tiled matmul; f32 conv output + per-channel sum / sumsq
    #          accumulate in VMEM scratch (no HBM round trip).
    # Phase 1: exact batch statistics -> scale/shift + leaky-relu -> bf16 out.
    p = pl.program_id(0)
    i = pl.program_id(1)
    row0 = pl.multiple_of(i * tm, 8)

    @pl.when(p == 0)
    def _matmul_and_stats():
        @pl.when(i == 0)
        def _init():
            sum_scr[...] = jnp.zeros_like(sum_scr)
            ssq_scr[...] = jnp.zeros_like(ssq_scr)

        y = jnp.dot(x_ref[...], w_ref[...], preferred_element_type=jnp.float32)
        y_scr[pl.ds(row0, tm), :] = y
        sum_scr[...] += jnp.sum(y, axis=0, keepdims=True)
        ssq_scr[...] += jnp.sum(y * y, axis=0, keepdims=True)

    @pl.when(p == 1)
    def _bn_apply():
        # E[x^2]-E[x]^2 in f32: fine for this use; Welford if |mean| >> std.
        mean = sum_scr[...] * inv_m
        var = jnp.maximum(ssq_scr[...] * inv_m - mean * mean, 0.0)
        inv_std = jax.lax.rsqrt(var + BN_EPS)
        scale = g_ref[...] * inv_std
        shift = b_ref[...] - mean * scale
        z = y_scr[pl.ds(row0, tm), :] * scale + shift
        o_ref[...] = jnp.where(z >= 0, z, LRELU_SLOPE * z).astype(o_ref.dtype)


def _conv_bn_lrelu_head_kernel(x_ref, w_ref, g_ref, b_ref, w5_ref, b5_ref,
                               h_ref, *, inv_m, n_batch):
    # conv4 matmul, exact batch statistics, BN + leaky-relu, then conv5
    # (4x4 valid conv on the 4x4 map == per-sample dot) + sigmoid — all on the
    # VMEM-resident block; conv4's activation never reaches HBM.
    y = jnp.dot(x_ref[...], w_ref[...], preferred_element_type=jnp.float32)
    mean = jnp.sum(y, axis=0, keepdims=True) * inv_m
    var = jnp.maximum(jnp.sum(y * y, axis=0, keepdims=True) * inv_m
                      - mean * mean, 0.0)
    inv_std = jax.lax.rsqrt(var + BN_EPS)
    scale = g_ref[...] * inv_std
    shift = b_ref[...] - mean * scale
    z = y * scale + shift
    act = jnp.where(z >= 0, z, LRELU_SLOPE * z)             # (n*16, C4) f32
    a3 = act.reshape(n_batch, 16, act.shape[1])             # layout-preserving
    t = jnp.sum(a3 * w5_ref[...][None, :, :], axis=2)       # (n, 16)
    logit = jnp.sum(t, axis=1, keepdims=True) + b5_ref[...]  # (n, 1)
    h_ref[...] = jax.nn.sigmoid(logit)


# ---------------------------------------------------------------------------
# Tiled pallas_call wrappers.
# ---------------------------------------------------------------------------
def _conv_lrelu(x_cols, w_mat, bias):
    # conv1 -> lrelu.  At the real d=128 the Cout=128 output is lane-dense;
    # the toy d=16 run accepts the masked stores.
    m, k = x_cols.shape
    cout = w_mat.shape[1]
    tm = _pick_tm(m, k, cout)
    mp = m if tm >= m else -(-m // tm) * tm
    grid_m = mp // tm
    xb = _pad_rows(x_cols, mp)
    out = pl.pallas_call(
        _conv_bias_lrelu_kernel,
        out_shape=jax.ShapeDtypeStruct((mp, cout), jnp.bfloat16),
        grid=(grid_m,),
        in_specs=[
            pl.BlockSpec((tm, k), lambda i: (i, 0)),
            pl.BlockSpec((k, cout), lambda i: (0, 0)),
            pl.BlockSpec((1, cout), lambda i: (0, 0)),
        ],
        out_specs=pl.BlockSpec((tm, cout), lambda i: (i, 0)),
        compiler_params=_cparams(("parallel",)),
        cost_estimate=pl.CostEstimate(
            flops=2 * mp * k * cout, transcendentals=0,
            bytes_accessed=2 * mp * k + 2 * k * cout + 2 * mp * cout),
    )(xb, w_mat.astype(jnp.bfloat16),
      bias.reshape(1, cout).astype(jnp.float32))
    return out[:m]


def _conv_bn_lrelu(x_cols, w_mat, gamma, beta):
    m, k = x_cols.shape
    cout = w_mat.shape[1]
    # The full f32 conv output stays resident in a VMEM scratch across the two
    # phases; budget for it when picking the row tile.
    # TODO(synk): re-materialize / spill if m*cout*4 ever outgrows VMEM
    # (not the case at these batch sizes).
    tm = _pick_tm(m, k, cout, extra_bytes=(-(-m // 8) * 8) * cout * 4)
    mp = m if tm >= m else -(-m // tm) * tm
    grid_m = mp // tm
    xb = _pad_rows(x_cols, mp)     # zero rows contribute 0 to sum / sumsq
    kern = functools.partial(_conv_bn_lrelu_kernel, inv_m=1.0 / m, tm=tm)
    out = pl.pallas_call(
        kern,
        out_shape=jax.ShapeDtypeStruct((mp, cout), jnp.bfloat16),
        grid=(2, grid_m),          # (phase, row tile)
        in_specs=[
            pl.BlockSpec((tm, k), lambda p, i: (i * (1 - p), 0)),
            pl.BlockSpec((k, cout), lambda p, i: (0, 0)),
            pl.BlockSpec((1, cout), lambda p, i: (0, 0)),
            pl.BlockSpec((1, cout), lambda p, i: (0, 0)),
        ],
        out_specs=pl.BlockSpec((tm, cout), lambda p, i: (i, 0)),
        scratch_shapes=[
            pltpu.VMEM((mp, cout), jnp.float32),   # resident f32 conv output
            pltpu.VMEM((1, cout), jnp.float32),    # per-channel sum
            pltpu.VMEM((1, cout), jnp.float32),    # per-channel sum of squares
        ],
        # TODO(synk): split Cout into a second "parallel" grid axis so v7x's
        # second TensorCore is used when the row grid collapses to 1.
        compiler_params=_cparams(("arbitrary", "arbitrary")),
        cost_estimate=pl.CostEstimate(
            flops=2 * mp * k * cout + 8 * mp * cout, transcendentals=0,
            bytes_accessed=2 * mp * k + 2 * k * cout + 2 * mp * cout),
    )(xb, w_mat.astype(jnp.bfloat16),
      gamma.reshape(1, cout).astype(jnp.float32),
      beta.reshape(1, cout).astype(jnp.float32))
    return out[:m]


def _conv_bn_lrelu_head(x_cols, w_mat, gamma, beta, w5r, b5):
    # conv4 + BN + lrelu + conv5 + sigmoid in one grid step.  Requires the
    # whole (n*16, K) cols block to fit in VMEM (true for small batches).
    m, k = x_cols.shape
    cout = w_mat.shape[1]
    n_batch = m // 16
    kern = functools.partial(_conv_bn_lrelu_head_kernel,
                             inv_m=1.0 / m, n_batch=n_batch)
    return pl.pallas_call(
        kern,
        out_shape=jax.ShapeDtypeStruct((n_batch, 1), jnp.float32),
        grid=(1,),
        in_specs=[
            pl.BlockSpec((m, k), lambda i: (0, 0)),
            pl.BlockSpec((k, cout), lambda i: (0, 0)),
            pl.BlockSpec((1, cout), lambda i: (0, 0)),
            pl.BlockSpec((1, cout), lambda i: (0, 0)),
            pl.BlockSpec((16, cout), lambda i: (0, 0)),
            pl.BlockSpec((1, 1), lambda i: (0, 0)),
        ],
        out_specs=pl.BlockSpec((n_batch, 1), lambda i: (0, 0)),
        compiler_params=_cparams(("arbitrary",)),
        cost_estimate=pl.CostEstimate(
            flops=2 * m * k * cout + 4 * m * cout,
            transcendentals=n_batch,
            bytes_accessed=2 * m * k + 2 * k * cout + 4 * n_batch),
    )(x_cols, w_mat.astype(jnp.bfloat16),
      gamma.reshape(1, cout).astype(jnp.float32),
      beta.reshape(1, cout).astype(jnp.float32),
      w5r.astype(jnp.float32), b5.reshape(1, 1).astype(jnp.float32))


# ---------------------------------------------------------------------------
# Glue: NHWC im2col (channels stay on the lane axis) + weight layout.
# ---------------------------------------------------------------------------
def _im2col_nhwc(x, kh, kw, stride, pad):
    # x: (N, H, W, C) bf16 -> (N*Ho*Wo, kh*kw*C), column order (i, j, c).
    # TODO(synk): move this gather into the kernels (strided VMEM reads) to
    # avoid materializing the cols matrix in XLA.
    n, h, w, c = x.shape
    xp = jnp.pad(x, ((0, 0), (pad, pad), (pad, pad), (0, 0)))
    ho = (h + 2 * pad - kh) // stride + 1
    wo = (w + 2 * pad - kw) // stride + 1
    cols = []
    for i in range(kh):
        for j in range(kw):
            cols.append(xp[:, i:i + stride * ho:stride, j:j + stride * wo:stride, :])
    p = jnp.stack(cols, axis=3)                    # (N, Ho, Wo, kh*kw, C)
    return p.reshape(n * ho * wo, kh * kw * c), ho, wo


def _weight_matrix(w):
    # PyTorch (Cout, Cin, kh, kw) -> (kh*kw*Cin, Cout), matching (i, j, c) cols.
    cout, cin, kh, kw = w.shape
    return jnp.transpose(w, (2, 3, 1, 0)).reshape(kh * kw * cin, cout)


# ---------------------------------------------------------------------------
# Discriminator forward.
# ---------------------------------------------------------------------------
def discriminator_forward(x_nchw, params):
    n = x_nchw.shape[0]
    # Single NCHW->NHWC transpose; cast to bf16 once so every im2col and every
    # matmul operand is half-width (f32 accumulation stays inside the kernels).
    x = jnp.transpose(x_nchw, (0, 2, 3, 1)).astype(jnp.bfloat16)

    # conv1 -> lrelu
    w = params["conv1_w"]
    cols, ho, wo = _im2col_nhwc(x, 4, 4, 2, 1)
    y = _conv_lrelu(cols, _weight_matrix(w), params["conv1_b"])
    x = y.reshape(n, ho, wo, w.shape[0])

    # conv2, conv3: conv -> BN (training batch stats) -> lrelu, one call each.
    # Conv bias is dropped (exactly cancelled by the BN mean subtraction).
    for idx in (2, 3):
        w = params[f"conv{idx}_w"]
        cols, ho, wo = _im2col_nhwc(x, 4, 4, 2, 1)
        y = _conv_bn_lrelu(cols, _weight_matrix(w),
                           params[f"bn{idx}_g"], params[f"bn{idx}_b"])
        x = y.reshape(n, ho, wo, w.shape[0])

    # conv4 -> BN -> lrelu fused with conv5 -> sigmoid (single pallas_call).
    w4 = params["conv4_w"]
    cols, ho, wo = _im2col_nhwc(x, 4, 4, 2, 1)
    assert (ho, wo) == (4, 4), (ho, wo)
    w5r = jnp.transpose(params["conv5_w"], (2, 3, 1, 0))[..., 0]
    w5r = w5r.reshape(16, w4.shape[0])             # (kh*kw, 8d), (i, j, c) order
    out = _conv_bn_lrelu_head(cols, _weight_matrix(w4),
                              params["bn4_g"], params["bn4_b"],
                              w5r, params["conv5_b"])
    return out.reshape(n, 1, 1, 1)                 # (N, 1, 1, 1), NCHW


# ---------------------------------------------------------------------------
# Deterministic parameter init (matches normal_init(mean=0, std=0.02);
# conv biases zero; BatchNorm gamma=1, beta=0).
# ---------------------------------------------------------------------------
def init_params(key, d):
    shapes = {
        "conv1_w": (d, 1, 4, 4),
        "conv2_w": (2 * d, d, 4, 4),
        "conv3_w": (4 * d, 2 * d, 4, 4),
        "conv4_w": (8 * d, 4 * d, 4, 4),
        "conv5_w": (1, 8 * d, 4, 4),
    }
    params = {}
    keys = jax.random.split(key, len(shapes))
    for k, (name, shp) in zip(keys, sorted(shapes.items())):
        params[name] = 0.02 * jax.random.normal(k, shp, dtype=jnp.float32)
        params[name.replace("_w", "_b")] = jnp.zeros((shp[0],), jnp.float32)
    for i, c in zip((2, 3, 4), (2 * d, 4 * d, 8 * d)):
        params[f"bn{i}_g"] = jnp.ones((c,), jnp.float32)
        params[f"bn{i}_b"] = jnp.zeros((c,), jnp.float32)
    return params


# ---------------------------------------------------------------------------
# Pure-JAX (XLA) f32 reference, mirroring the PyTorch forward exactly.
# ---------------------------------------------------------------------------
def _reference_forward(x, params):
    def conv(v, w, b, stride, pad):
        y = jax.lax.conv_general_dilated(
            v, w, (stride, stride), [(pad, pad), (pad, pad)],
            dimension_numbers=("NCHW", "OIHW", "NCHW"))
        return y + b.reshape(1, -1, 1, 1)

    def bn(y, g, b):
        mean = jnp.mean(y, axis=(0, 2, 3), keepdims=True)
        var = jnp.mean((y - mean) ** 2, axis=(0, 2, 3), keepdims=True)
        return ((y - mean) * jax.lax.rsqrt(var + BN_EPS) * g.reshape(1, -1, 1, 1)
                + b.reshape(1, -1, 1, 1))

    lrelu = lambda v: jnp.where(v >= 0, v, LRELU_SLOPE * v)
    y = lrelu(conv(x, params["conv1_w"], params["conv1_b"], 2, 1))
    y = lrelu(bn(conv(y, params["conv2_w"], params["conv2_b"], 2, 1),
                 params["bn2_g"], params["bn2_b"]))
    y = lrelu(bn(conv(y, params["conv3_w"], params["conv3_b"], 2, 1),
                 params["bn3_g"], params["bn3_b"]))
    y = lrelu(bn(conv(y, params["conv4_w"], params["conv4_b"], 2, 1),
                 params["bn4_g"], params["bn4_b"]))
    return jax.nn.sigmoid(conv(y, params["conv5_w"], params["conv5_b"], 1, 0))


if __name__ == "__main__":
    d = 16          # small feature width (module default is 128)
    n = 2           # batch
    key = jax.random.PRNGKey(0)
    kp, kx = jax.random.split(key)
    params = init_params(kp, d)
    x = jax.random.normal(kx, (n, 1, 64, 64), dtype=jnp.float32)

    fwd = jax.jit(functools.partial(discriminator_forward, params=params))
    out = jax.block_until_ready(fwd(x))

    assert out.shape == (n, 1, 1, 1), out.shape
    assert bool(jnp.all(jnp.isfinite(out)))
    assert bool(jnp.all((out >= 0.0) & (out <= 1.0)))

    ref = _reference_forward(x, params)
    max_err = float(jnp.max(jnp.abs(out - ref)))
    assert max_err < 5e-2, f"mismatch vs reference: {max_err}"

    print("KERNEL_OK")
</pallas_src>

<mosaic_0001>
module attributes {stable_mosaic.version = 11 : i64} {
  func.func @_conv_bias_lrelu_kernel(%arg0: i32, %arg1: memref<1024x16xbf16, #tpu.memory_space<vmem>>, %arg2: memref<16x16xbf16, #tpu.memory_space<vmem>>, %arg3: memref<1x16xf32, #tpu.memory_space<vmem>>, %arg4: memref<1024x16xbf16, #tpu.memory_space<vmem>>) attributes {dimension_semantics = [#tpu.dimension_semantics<parallel>], iteration_bounds = array<i64: 2>, scalar_prefetch = 0 : i64, scratch_operands = 0 : i64, tpu.core_type = #tpu.core_type<tc>, window_params = [{transform_indices = @transform_0, window_bounds = array<i64: 1024, 16>}, {pipeline_mode = #tpu.pipeline_mode<synchronous>, transform_indices = @transform_1, window_bounds = array<i64: 16, 16>}, {pipeline_mode = #tpu.pipeline_mode<synchronous>, transform_indices = @transform_2, window_bounds = array<i64: 1, 16>}, {transform_indices = @transform_3, window_bounds = array<i64: 1024, 16>}]} {
    %c0 = arith.constant 0 : index
    %c0_0 = arith.constant 0 : index
    %0 = vector.load %arg1[%c0, %c0_0] : memref<1024x16xbf16, #tpu.memory_space<vmem>>, vector<1024x16xbf16>
    %c0_1 = arith.constant 0 : index
    %c0_2 = arith.constant 0 : index
    %1 = vector.load %arg2[%c0_1, %c0_2] : memref<16x16xbf16, #tpu.memory_space<vmem>>, vector<16x16xbf16>
    %cst = arith.constant dense<0.000000e+00> : vector<1024x16xf32>
    %2 = tpu.matmul %0, %1, %cst {dimension_numbers = #tpu.dot_dimension_numbers<[1], [0], [0], [1], [0, 0, 1, 1], [], []>} : vector<1024x16xbf16>, vector<16x16xbf16>, vector<1024x16xf32> -> vector<1024x16xf32>
    %c0_3 = arith.constant 0 : index
    %c0_4 = arith.constant 0 : index
    %3 = vector.load %arg3[%c0_3, %c0_4] : memref<1x16xf32, #tpu.memory_space<vmem>>, vector<1x16xf32>
    %4 = vector.broadcast %3 : vector<1x16xf32> to vector<1024x16xf32>
    %5 = arith.addf %2, %4 : vector<1024x16xf32>
    %cst_5 = arith.constant 0.000000e+00 : f32
    %6 = vector.broadcast %cst_5 : f32 to vector<1024x16xf32>
    %7 = arith.cmpf oge, %5, %6 : vector<1024x16xf32>
    %cst_6 = arith.constant 2.000000e-01 : f32
    %8 = vector.broadcast %cst_6 : f32 to vector<1024x16xf32>
    %9 = arith.mulf %8, %5 : vector<1024x16xf32>
    %10 = arith.select %7, %5, %9 : vector<1024x16xi1>, vector<1024x16xf32>
    %11 = arith.truncf %10 : vector<1024x16xf32> to vector<1024x16xbf16>
    %c0_7 = arith.constant 0 : index
    %c0_8 = arith.constant 0 : index
    %12 = vector.load %arg4[%c0_7, %c0_8] : memref<1024x16xbf16, #tpu.memory_space<vmem>>, vector<1024x16xbf16>
    tpu.vector_store %arg4[%c0_7, %c0_8], %11 {strides = array<i32>} : memref<1024x16xbf16, #tpu.memory_space<vmem>>, vector<1024x16xbf16>,
    return
  }
  func.func @transform_0(%arg0: i32) -> (i32, i32) {
    %c0_i32 = arith.constant 0 : i32
    %c0_i32_0 = arith.constant 0 : i32
    return %arg0, %c0_i32 : i32, i32
  }
  func.func @transform_1(%arg0: i32) -> (i32, i32) {
    %c0_i32 = arith.constant 0 : i32
    %c0_i32_0 = arith.constant 0 : i32
    %c0_i32_1 = arith.constant 0 : i32
    return %c0_i32, %c0_i32_0 : i32, i32
  }
  func.func @transform_2(%arg0: i32) -> (i32, i32) {
    %c0_i32 = arith.constant 0 : i32
    %c0_i32_0 = arith.constant 0 : i32
    %c0_i32_1 = arith.constant 0 : i32
    return %c0_i32, %c0_i32_0 : i32, i32
  }
  func.func @transform_3(%arg0: i32) -> (i32, i32) {
    %c0_i32 = arith.constant 0 : i32
    %c0_i32_0 = arith.constant 0 : i32
    return %arg0, %c0_i32 : i32, i32
  }
}

module attributes {stable_mosaic.version = 11 : i64} {
  func.func @_conv_bn_lrelu_kernel(%arg0: i32, %arg1: i32, %arg2: memref<512x256xbf16, #tpu.memory_space<vmem>>, %arg3: memref<256x32xbf16, #tpu.memory_space<vmem>>, %arg4: memref<1x32xf32, #tpu.memory_space<vmem>>, %arg5: memref<1x32xf32, #tpu.memory_space<vmem>>, %arg6: memref<512x32xbf16, #tpu.memory_space<vmem>>, %arg7: memref<512x32xf32, #tpu.memory_space<vmem>>, %arg8: memref<1x32xf32, #tpu.memory_space<vmem>>, %arg9: memref<1x32xf32, #tpu.memory_space<vmem>>) attributes {dimension_semantics = [#tpu.dimension_semantics<arbitrary>, #tpu.dimension_semantics<arbitrary>], iteration_bounds = array<i64: 2, 1>, scalar_prefetch = 0 : i64, scratch_operands = 3 : i64, tpu.core_type = #tpu.core_type<tc>, window_params = [{transform_indices = @transform_0, window_bounds = array<i64: 512, 256>}, {pipeline_mode = #tpu.pipeline_mode<synchronous>, transform_indices = @transform_1, window_bounds = array<i64: 256, 32>}, {pipeline_mode = #tpu.pipeline_mode<synchronous>, transform_indices = @transform_2, window_bounds = array<i64: 1, 32>}, {pipeline_mode = #tpu.pipeline_mode<synchronous>, transform_indices = @transform_3, window_bounds = array<i64: 1, 32>}, {transform_indices = @transform_4, window_bounds = array<i64: 512, 32>}]} {
    %c512_i32 = arith.constant 512 : i32
    %0 = arith.muli %arg1, %c512_i32 : i32
    %1 = tpu.assume_multiple %0, 8 : i32
    %c0_i32 = arith.constant 0 : i32
    %2 = arith.cmpi eq, %arg0, %c0_i32 : i32
    %3 = arith.extui %2 : i1 to i32
    %c0_i32_0 = arith.constant 0 : i32
    %4 = arith.cmpi ne, %3, %c0_i32_0 : i32
    scf.if %4 {
      %c0_i32_2 = arith.constant 0 : i32
      %8 = arith.cmpi eq, %arg1, %c0_i32_2 : i32
      %9 = arith.extui %8 : i1 to i32
      %c0_i32_3 = arith.constant 0 : i32
      %10 = arith.cmpi ne, %9, %c0_i32_3 : i32
      scf.if %10 {
        %cst_18 = arith.constant 0.000000e+00 : f32
        %27 = vector.broadcast %cst_18 : f32 to vector<1x32xf32>
        %c0_19 = arith.constant 0 : index
        %c0_20 = arith.constant 0 : index
        %28 = vector.load %arg8[%c0_19, %c0_20] : memref<1x32xf32, #tpu.memory_space<vmem>>, vector<1x32xf32>
        tpu.vector_store %arg8[%c0_19, %c0_20], %27 {strides = array<i32>} : memref<1x32xf32, #tpu.memory_space<vmem>>, vector<1x32xf32>,
        %cst_21 = arith.constant 0.000000e+00 : f32
        %29 = vector.broadcast %cst_21 : f32 to vector<1x32xf32>
        %c0_22 = arith.constant 0 : index
        %c0_23 = arith.constant 0 : index
        %30 = vector.load %arg9[%c0_22, %c0_23] : memref<1x32xf32, #tpu.memory_space<vmem>>, vector<1x32xf32>
        tpu.vector_store %arg9[%c0_22, %c0_23], %29 {strides = array<i32>} : memref<1x32xf32, #tpu.memory_space<vmem>>, vector<1x32xf32>,
      } else {
      }
      %c0 = arith.constant 0 : index
      %c0_4 = arith.constant 0 : index
      %11 = vector.load %arg2[%c0, %c0_4] : memref<512x256xbf16, #tpu.memory_space<vmem>>, vector<512x256xbf16>
      %c0_5 = arith.constant 0 : index
      %c0_6 = arith.constant 0 : index
      %12 = vector.load %arg3[%c0_5, %c0_6] : memref<256x32xbf16, #tpu.memory_space<vmem>>, vector<256x32xbf16>
      %cst = arith.constant dense<0.000000e+00> : vector<512x32xf32>
      %13 = tpu.matmul %11, %12, %cst {dimension_numbers = #tpu.dot_dimension_numbers<[1], [0], [0], [1], [0, 0, 1, 1], [], []>} : vector<512x256xbf16>, vector<256x32xbf16>, vector<512x32xf32> -> vector<512x32xf32>
      %14 = arith.index_cast %1 : i32 to index
      %c0_7 = arith.constant 0 : index
      %15 = vector.load %arg7[%14, %c0_7] : memref<512x32xf32, #tpu.memory_space<vmem>>, vector<512x32xf32>
      tpu.vector_store %arg7[%14, %c0_7], %13 {strides = array<i32>} : memref<512x32xf32, #tpu.memory_space<vmem>>, vector<512x32xf32>,
      %c0_8 = arith.constant 0 : index
      %c0_9 = arith.constant 0 : index
      %16 = vector.load %arg8[%c0_8, %c0_9] : memref<1x32xf32, #tpu.memory_space<vmem>>, vector<1x32xf32>
      %cst_10 = arith.constant dense<0.000000e+00> : vector<32xf32>
      %17 = vector.multi_reduction <add>, %13, %cst_10 [0] : vector<512x32xf32> to vector<32xf32>
      %18 = vector.shape_cast %17 : vector<32xf32> to vector<1x32xf32>
      %19 = arith.addf %16, %18 : vector<1x32xf32>
      %c0_11 = arith.constant 0 : index
      %c0_12 = arith.constant 0 : index
      %20 = vector.load %arg8[%c0_11, %c0_12] : memref<1x32xf32, #tpu.memory_space<vmem>>, vector<1x32xf32>
      tpu.vector_store %arg8[%c0_11, %c0_12], %19 {strides = array<i32>} : memref<1x32xf32, #tpu.memory_space<vmem>>, vector<1x32xf32>,
      %c0_13 = arith.constant 0 : index
      %c0_14 = arith.constant 0 : index
      %21 = vector.load %arg9[%c0_13, %c0_14] : memref<1x32xf32, #tpu.memory_space<vmem>>, vector<1x32xf32>
      %22 = arith.mulf %13, %13 : vector<512x32xf32>
      %cst_15 = arith.constant dense<0.000000e+00> : vector<32xf32>
      %23 = vector.multi_reduction <add>, %22, %cst_15 [0] : vector<512x32xf32> to vector<32xf32>
      %24 = vector.shape_cast %23 : vector<32xf32> to vector<1x32xf32>
      %25 = arith.addf %21, %24 : vector<1x32xf32>
      %c0_16 = arith.constant 0 : index
      %c0_17 = arith.constant 0 : index
      %26 = vector.load %arg9[%c0_16, %c0_17] : memref<1x32xf32, #tpu.memory_space<vmem>>, vector<1x32xf32>
      tpu.vector_store %arg9[%c0_16, %c0_17], %25 {strides = array<i32>} : memref<1x32xf32, #tpu.memory_space<vmem>>, vector<1x32xf32>,
    } else {
    }
    %c1_i32 = arith.constant 1 : i32
    %5 = arith.cmpi eq, %arg0, %c1_i32 : i32
    %6 = arith.extui %5 : i1 to i32
    %c0_i32_1 = arith.constant 0 : i32
    %7 = arith.cmpi ne, %6, %c0_i32_1 : i32
    scf.if %7 {
      %c0 = arith.constant 0 : index
      %c0_2 = arith.constant 0 : index
      %8 = vector.load %arg8[%c0, %c0_2] : memref<1x32xf32, #tpu.memory_space<vmem>>, vector<1x32xf32>
      %cst = arith.constant 0.001953125 : f32
      %9 = vector.broadcast %cst : f32 to vector<1x32xf32>
      %10 = arith.mulf %8, %9 : vector<1x32xf32>
      %c0_3 = arith.constant 0 : index
      %c0_4 = arith.constant 0 : index
      %11 = vector.load %arg9[%c0_3, %c0_4] : memref<1x32xf32, #tpu.memory_space<vmem>>, vector<1x32xf32>
      %cst_5 = arith.constant 0.001953125 : f32
      %12 = vector.broadcast %cst_5 : f32 to vector<1x32xf32>
      %13 = arith.mulf %11, %12 : vector<1x32xf32>
      %14 = arith.mulf %10, %10 : vector<1x32xf32>
      %15 = arith.subf %13, %14 : vector<1x32xf32>
      %cst_6 = arith.constant 0.000000e+00 : f32
      %16 = vector.broadcast %cst_6 : f32 to vector<1x32xf32>
      %17 = arith.maximumf %15, %16 : vector<1x32xf32>
      %cst_7 = arith.constant 9.99999974E-6 : f32
      %18 = vector.broadcast %cst_7 : f32 to vector<1x32xf32>
      %19 = arith.addf %17, %18 : vector<1x32xf32>
      %20 = math.rsqrt %19 : vector<1x32xf32>
      %c0_8 = arith.constant 0 : index
      %c0_9 = arith.constant 0 : index
      %21 = vector.load %arg4[%c0_8, %c0_9] : memref<1x32xf32, #tpu.memory_space<vmem>>, vector<1x32xf32>
      %22 = arith.mulf %21, %20 : vector<1x32xf32>
      %c0_10 = arith.constant 0 : index
      %c0_11 = arith.constant 0 : index
      %23 = vector.load %arg5[%c0_10, %c0_11] : memref<1x32xf32, #tpu.memory_space<vmem>>, vector<1x32xf32>
      %24 = arith.mulf %10, %22 : vector<1x32xf32>
      %25 = arith.subf %23, %24 : vector<1x32xf32>
      %26 = arith.index_cast %1 : i32 to index
      %c0_12 = arith.constant 0 : index
      %27 = vector.load %arg7[%26, %c0_12] : memref<512x32xf32, #tpu.memory_space<vmem>>, vector<512x32xf32>
      %28 = vector.broadcast %22 : vector<1x32xf32> to vector<512x32xf32>
      %29 = arith.mulf %27, %28 : vector<512x32xf32>
      %30 = vector.broadcast %25 : vector<1x32xf32> to vector<512x32xf32>
      %31 = arith.addf %29, %30 : vector<512x32xf32>
      %cst_13 = arith.constant 0.000000e+00 : f32
      %32 = vector.broadcast %cst_13 : f32 to vector<512x32xf32>
      %33 = arith.cmpf oge, %31, %32 : vector<512x32xf32>
      %cst_14 = arith.constant 2.000000e-01 : f32
      %34 = vector.broadcast %cst_14 : f32 to vector<512x32xf32>
      %35 = arith.mulf %34, %31 : vector<512x32xf32>
      %36 = arith.select %33, %31, %35 : vector<512x32xi1>, vector<512x32xf32>
      %37 = arith.truncf %36 : vector<512x32xf32> to vector<512x32xbf16>
      %c0_15 = arith.constant 0 : index
      %c0_16 = arith.constant 0 : index
      %38 = vector.load %arg6[%c0_15, %c0_16] : memref<512x32xbf16, #tpu.memory_space<vmem>>, vector<512x32xbf16>
      tpu.vector_store %arg6[%c0_15, %c0_16], %37 {strides = array<i32>} : memref<512x32xbf16, #tpu.memory_space<vmem>>, vector<512x32xbf16>,
    } else {
    }
    return
  }
  func.func @transform_0(%arg0: i32, %arg1: i32) -> (i32, i32) {
    %c1_i32 = arith.constant 1 : i32
    %0 = arith.subi %c1_i32, %arg0 : i32
    %1 = arith.muli %arg1, %0 : i32
    %c0_i32 = arith.constant 0 : i32
    %c0_i32_0 = arith.constant 0 : i32
    return %1, %c0_i32 : i32, i32
  }
  func.func @transform_1(%arg0: i32, %arg1: i32) -> (i32, i32) {
    %c0_i32 = arith.constant 0 : i32
    %c0_i32_0 = arith.constant 0 : i32
    %c0_i32_1 = arith.constant 0 : i32
    return %c0_i32, %c0_i32_0 : i32, i32
  }
  func.func @transform_2(%arg0: i32, %arg1: i32) -> (i32, i32) {
    %c0_i32 = arith.constant 0 : i32
    %c0_i32_0 = arith.constant 0 : i32
    %c0_i32_1 = arith.constant 0 : i32
    return %c0_i32, %c0_i32_0 : i32, i32
  }
  func.func @transform_3(%arg0: i32, %arg1: i32) -> (i32, i32) {
    %c0_i32 = arith.constant 0 : i32
    %c0_i32_0 = arith.constant 0 : i32
    %c0_i32_1 = arith.constant 0 : i32
    return %c0_i32, %c0_i32_0 : i32, i32
  }
  func.func @transform_4(%arg0: i32, %arg1: i32) -> (i32, i32) {
    %c0_i32 = arith.constant 0 : i32
    %c0_i32_0 = arith.constant 0 : i32
    return %arg1, %c0_i32 : i32, i32
  }
}

module attributes {stable_mosaic.version = 11 : i64} {
  func.func @_conv_bn_lrelu_kernel(%arg0: i32, %arg1: i32, %arg2: memref<128x512xbf16, #tpu.memory_space<vmem>>, %arg3: memref<512x64xbf16, #tpu.memory_space<vmem>>, %arg4: memref<1x64xf32, #tpu.memory_space<vmem>>, %arg5: memref<1x64xf32, #tpu.memory_space<vmem>>, %arg6: memref<128x64xbf16, #tpu.memory_space<vmem>>, %arg7: memref<128x64xf32, #tpu.memory_space<vmem>>, %arg8: memref<1x64xf32, #tpu.memory_space<vmem>>, %arg9: memref<1x64xf32, #tpu.memory_space<vmem>>) attributes {dimension_semantics = [#tpu.dimension_semantics<arbitrary>, #tpu.dimension_semantics<arbitrary>], iteration_bounds = array<i64: 2, 1>, scalar_prefetch = 0 : i64, scratch_operands = 3 : i64, tpu.core_type = #tpu.core_type<tc>, window_params = [{transform_indices = @transform_0, window_bounds = array<i64: 128, 512>}, {pipeline_mode = #tpu.pipeline_mode<synchronous>, transform_indices = @transform_1, window_bounds = array<i64: 512, 64>}, {pipeline_mode = #tpu.pipeline_mode<synchronous>, transform_indices = @transform_2, window_bounds = array<i64: 1, 64>}, {pipeline_mode = #tpu.pipeline_mode<synchronous>, transform_indices = @transform_3, window_bounds = array<i64: 1, 64>}, {transform_indices = @transform_4, window_bounds = array<i64: 128, 64>}]} {
    %c128_i32 = arith.constant 128 : i32
    %0 = arith.muli %arg1, %c128_i32 : i32
    %1 = tpu.assume_multiple %0, 8 : i32
    %c0_i32 = arith.constant 0 : i32
    %2 = arith.cmpi eq, %arg0, %c0_i32 : i32
    %3 = arith.extui %2 : i1 to i32
    %c0_i32_0 = arith.constant 0 : i32
    %4 = arith.cmpi ne, %3, %c0_i32_0 : i32
    scf.if %4 {
      %c0_i32_2 = arith.constant 0 : i32
      %8 = arith.cmpi eq, %arg1, %c0_i32_2 : i32
      %9 = arith.extui %8 : i1 to i32
      %c0_i32_3 = arith.constant 0 : i32
      %10 = arith.cmpi ne, %9, %c0_i32_3 : i32
      scf.if %10 {
        %cst_18 = arith.constant 0.000000e+00 : f32
        %27 = vector.broadcast %cst_18 : f32 to vector<1x64xf32>
        %c0_19 = arith.constant 0 : index
        %c0_20 = arith.constant 0 : index
        %28 = vector.load %arg8[%c0_19, %c0_20] : memref<1x64xf32, #tpu.memory_space<vmem>>, vector<1x64xf32>
        tpu.vector_store %arg8[%c0_19, %c0_20], %27 {strides = array<i32>} : memref<1x64xf32, #tpu.memory_space<vmem>>, vector<1x64xf32>,
        %cst_21 = arith.constant 0.000000e+00 : f32
        %29 = vector.broadcast %cst_21 : f32 to vector<1x64xf32>
        %c0_22 = arith.constant 0 : index
        %c0_23 = arith.constant 0 : index
        %30 = vector.load %arg9[%c0_22, %c0_23] : memref<1x64xf32, #tpu.memory_space<vmem>>, vector<1x64xf32>
        tpu.vector_store %arg9[%c0_22, %c0_23], %29 {strides = array<i32>} : memref<1x64xf32, #tpu.memory_space<vmem>>, vector<1x64xf32>,
      } else {
      }
      %c0 = arith.constant 0 : index
      %c0_4 = arith.constant 0 : index
      %11 = vector.load %arg2[%c0, %c0_4] : memref<128x512xbf16, #tpu.memory_space<vmem>>, vector<128x512xbf16>
      %c0_5 = arith.constant 0 : index
      %c0_6 = arith.constant 0 : index
      %12 = vector.load %arg3[%c0_5, %c0_6] : memref<512x64xbf16, #tpu.memory_space<vmem>>, vector<512x64xbf16>
      %cst = arith.constant dense<0.000000e+00> : vector<128x64xf32>
      %13 = tpu.matmul %11, %12, %cst {dimension_numbers = #tpu.dot_dimension_numbers<[1], [0], [0], [1], [0, 0, 1, 1], [], []>} : vector<128x512xbf16>, vector<512x64xbf16>, vector<128x64xf32> -> vector<128x64xf32>
      %14 = arith.index_cast %1 : i32 to index
      %c0_7 = arith.constant 0 : index
      %15 = vector.load %arg7[%14, %c0_7] : memref<128x64xf32, #tpu.memory_space<vmem>>, vector<128x64xf32>
      tpu.vector_store %arg7[%14, %c0_7], %13 {strides = array<i32>} : memref<128x64xf32, #tpu.memory_space<vmem>>, vector<128x64xf32>,
      %c0_8 = arith.constant 0 : index
      %c0_9 = arith.constant 0 : index
      %16 = vector.load %arg8[%c0_8, %c0_9] : memref<1x64xf32, #tpu.memory_space<vmem>>, vector<1x64xf32>
      %cst_10 = arith.constant dense<0.000000e+00> : vector<64xf32>
      %17 = vector.multi_reduction <add>, %13, %cst_10 [0] : vector<128x64xf32> to vector<64xf32>
      %18 = vector.shape_cast %17 : vector<64xf32> to vector<1x64xf32>
      %19 = arith.addf %16, %18 : vector<1x64xf32>
      %c0_11 = arith.constant 0 : index
      %c0_12 = arith.constant 0 : index
      %20 = vector.load %arg8[%c0_11, %c0_12] : memref<1x64xf32, #tpu.memory_space<vmem>>, vector<1x64xf32>
      tpu.vector_store %arg8[%c0_11, %c0_12], %19 {strides = array<i32>} : memref<1x64xf32, #tpu.memory_space<vmem>>, vector<1x64xf32>,
      %c0_13 = arith.constant 0 : index
      %c0_14 = arith.constant 0 : index
      %21 = vector.load %arg9[%c0_13, %c0_14] : memref<1x64xf32, #tpu.memory_space<vmem>>, vector<1x64xf32>
      %22 = arith.mulf %13, %13 : vector<128x64xf32>
      %cst_15 = arith.constant dense<0.000000e+00> : vector<64xf32>
      %23 = vector.multi_reduction <add>, %22, %cst_15 [0] : vector<128x64xf32> to vector<64xf32>
      %24 = vector.shape_cast %23 : vector<64xf32> to vector<1x64xf32>
      %25 = arith.addf %21, %24 : vector<1x64xf32>
      %c0_16 = arith.constant 0 : index
      %c0_17 = arith.constant 0 : index
      %26 = vector.load %arg9[%c0_16, %c0_17] : memref<1x64xf32, #tpu.memory_space<vmem>>, vector<1x64xf32>
      tpu.vector_store %arg9[%c0_16, %c0_17], %25 {strides = array<i32>} : memref<1x64xf32, #tpu.memory_space<vmem>>, vector<1x64xf32>,
    } else {
    }
    %c1_i32 = arith.constant 1 : i32
    %5 = arith.cmpi eq, %arg0, %c1_i32 : i32
    %6 = arith.extui %5 : i1 to i32
    %c0_i32_1 = arith.constant 0 : i32
    %7 = arith.cmpi ne, %6, %c0_i32_1 : i32
    scf.if %7 {
      %c0 = arith.constant 0 : index
      %c0_2 = arith.constant 0 : index
      %8 = vector.load %arg8[%c0, %c0_2] : memref<1x64xf32, #tpu.memory_space<vmem>>, vector<1x64xf32>
      %cst = arith.constant 7.812500e-03 : f32
      %9 = vector.broadcast %cst : f32 to vector<1x64xf32>
      %10 = arith.mulf %8, %9 : vector<1x64xf32>
      %c0_3 = arith.constant 0 : index
      %c0_4 = arith.constant 0 : index
      %11 = vector.load %arg9[%c0_3, %c0_4] : memref<1x64xf32, #tpu.memory_space<vmem>>, vector<1x64xf32>
      %cst_5 = arith.constant 7.812500e-03 : f32
      %12 = vector.broadcast %cst_5 : f32 to vector<1x64xf32>
      %13 = arith.mulf %11, %12 : vector<1x64xf32>
      %14 = arith.mulf %10, %10 : vector<1x64xf32>
      %15 = arith.subf %13, %14 : vector<1x64xf32>
      %cst_6 = arith.constant 0.000000e+00 : f32
      %16 = vector.broadcast %cst_6 : f32 to vector<1x64xf32>
      %17 = arith.maximumf %15, %16 : vector<1x64xf32>
      %cst_7 = arith.constant 9.99999974E-6 : f32
      %18 = vector.broadcast %cst_7 : f32 to vector<1x64xf32>
      %19 = arith.addf %17, %18 : vector<1x64xf32>
      %20 = math.rsqrt %19 : vector<1x64xf32>
      %c0_8 = arith.constant 0 : index
      %c0_9 = arith.constant 0 : index
      %21 = vector.load %arg4[%c0_8, %c0_9] : memref<1x64xf32, #tpu.memory_space<vmem>>, vector<1x64xf32>
      %22 = arith.mulf %21, %20 : vector<1x64xf32>
      %c0_10 = arith.constant 0 : index
      %c0_11 = arith.constant 0 : index
      %23 = vector.load %arg5[%c0_10, %c0_11] : memref<1x64xf32, #tpu.memory_space<vmem>>, vector<1x64xf32>
      %24 = arith.mulf %10, %22 : vector<1x64xf32>
      %25 = arith.subf %23, %24 : vector<1x64xf32>
      %26 = arith.index_cast %1 : i32 to index
      %c0_12 = arith.constant 0 : index
      %27 = vector.load %arg7[%26, %c0_12] : memref<128x64xf32, #tpu.memory_space<vmem>>, vector<128x64xf32>
      %28 = vector.broadcast %22 : vector<1x64xf32> to vector<128x64xf32>
      %29 = arith.mulf %27, %28 : vector<128x64xf32>
      %30 = vector.broadcast %25 : vector<1x64xf32> to vector<128x64xf32>
      %31 = arith.addf %29, %30 : vector<128x64xf32>
      %cst_13 = arith.constant 0.000000e+00 : f32
      %32 = vector.broadcast %cst_13 : f32 to vector<128x64xf32>
      %33 = arith.cmpf oge, %31, %32 : vector<128x64xf32>
      %cst_14 = arith.constant 2.000000e-01 : f32
      %34 = vector.broadcast %cst_14 : f32 to vector<128x64xf32>
      %35 = arith.mulf %34, %31 : vector<128x64xf32>
      %36 = arith.select %33, %31, %35 : vector<128x64xi1>, vector<128x64xf32>
      %37 = arith.truncf %36 : vector<128x64xf32> to vector<128x64xbf16>
      %c0_15 = arith.constant 0 : index
      %c0_16 = arith.constant 0 : index
      %38 = vector.load %arg6[%c0_15, %c0_16] : memref<128x64xbf16, #tpu.memory_space<vmem>>, vector<128x64xbf16>
      tpu.vector_store %arg6[%c0_15, %c0_16], %37 {strides = array<i32>} : memref<128x64xbf16, #tpu.memory_space<vmem>>, vector<128x64xbf16>,
    } else {
    }
    return
  }
  func.func @transform_0(%arg0: i32, %arg1: i32) -> (i32, i32) {
    %c1_i32 = arith.constant 1 : i32
    %0 = arith.subi %c1_i32, %arg0 : i32
    %1 = arith.muli %arg1, %0 : i32
    %c0_i32 = arith.constant 0 : i32
    %c0_i32_0 = arith.constant 0 : i32
    return %1, %c0_i32 : i32, i32
  }
  func.func @transform_1(%arg0: i32, %arg1: i32) -> (i32, i32) {
    %c0_i32 = arith.constant 0 : i32
    %c0_i32_0 = arith.constant 0 : i32
    %c0_i32_1 = arith.constant 0 : i32
    return %c0_i32, %c0_i32_0 : i32, i32
  }
  func.func @transform_2(%arg0: i32, %arg1: i32) -> (i32, i32) {
    %c0_i32 = arith.constant 0 : i32
    %c0_i32_0 = arith.constant 0 : i32
    %c0_i32_1 = arith.constant 0 : i32
    return %c0_i32, %c0_i32_0 : i32, i32
  }
  func.func @transform_3(%arg0: i32, %arg1: i32) -> (i32, i32) {
    %c0_i32 = arith.constant 0 : i32
    %c0_i32_0 = arith.constant 0 : i32
    %c0_i32_1 = arith.constant 0 : i32
    return %c0_i32, %c0_i32_0 : i32, i32
  }
  func.func @transform_4(%arg0: i32, %arg1: i32) -> (i32, i32) {
    %c0_i32 = arith.constant 0 : i32
    %c0_i32_0 = arith.constant 0 : i32
    return %arg1, %c0_i32 : i32, i32
  }
}

module attributes {stable_mosaic.version = 11 : i64} {
  func.func @_conv_bn_lrelu_head_kernel(%arg0: i32, %arg1: memref<32x1024xbf16, #tpu.memory_space<vmem>>, %arg2: memref<1024x128xbf16, #tpu.memory_space<vmem>>, %arg3: memref<1x128xf32, #tpu.memory_space<vmem>>, %arg4: memref<1x128xf32, #tpu.memory_space<vmem>>, %arg5: memref<16x128xf32, #tpu.memory_space<vmem>>, %arg6: memref<1x1xf32, #tpu.memory_space<vmem>>, %arg7: memref<2x1xf32, #tpu.memory_space<vmem>>) attributes {dimension_semantics = [#tpu.dimension_semantics<arbitrary>], iteration_bounds = array<i64: 1>, scalar_prefetch = 0 : i64, scratch_operands = 0 : i64, tpu.core_type = #tpu.core_type<tc>, window_params = [{pipeline_mode = #tpu.pipeline_mode<synchronous>, transform_indices = @transform_0, window_bounds = array<i64: 32, 1024>}, {pipeline_mode = #tpu.pipeline_mode<synchronous>, transform_indices = @transform_1, window_bounds = array<i64: 1024, 128>}, {pipeline_mode = #tpu.pipeline_mode<synchronous>, transform_indices = @transform_2, window_bounds = array<i64: 1, 128>}, {pipeline_mode = #tpu.pipeline_mode<synchronous>, transform_indices = @transform_3, window_bounds = array<i64: 1, 128>}, {pipeline_mode = #tpu.pipeline_mode<synchronous>, transform_indices = @transform_4, window_bounds = array<i64: 16, 128>}, {pipeline_mode = #tpu.pipeline_mode<synchronous>, transform_indices = @transform_5, window_bounds = array<i64: 1, 1>}, {pipeline_mode = #tpu.pipeline_mode<synchronous>, transform_indices = @transform_6, window_bounds = array<i64: 2, 1>}]} {
    %c0 = arith.constant 0 : index
    %c0_0 = arith.constant 0 : index
    %0 = vector.load %arg1[%c0, %c0_0] : memref<32x1024xbf16, #tpu.memory_space<vmem>>, vector<32x1024xbf16>
    %c0_1 = arith.constant 0 : index
    %c0_2 = arith.constant 0 : index
    %1 = vector.load %arg2[%c0_1, %c0_2] : memref<1024x128xbf16, #tpu.memory_space<vmem>>, vector<1024x128xbf16>
    %cst = arith.constant dense<0.000000e+00> : vector<32x128xf32>
    %2 = tpu.matmul %0, %1, %cst {dimension_numbers = #tpu.dot_dimension_numbers<[1], [0], [0], [1], [0, 0, 1, 1], [], []>} : vector<32x1024xbf16>, vector<1024x128xbf16>, vector<32x128xf32> -> vector<32x128xf32>
    %cst_3 = arith.constant dense<0.000000e+00> : vector<128xf32>
    %3 = vector.multi_reduction <add>, %2, %cst_3 [0] : vector<32x128xf32> to vector<128xf32>
    %4 = vector.shape_cast %3 : vector<128xf32> to vector<1x128xf32>
    %cst_4 = arith.constant 3.125000e-02 : f32
    %5 = vector.broadcast %cst_4 : f32 to vector<1x128xf32>
    %6 = arith.mulf %4, %5 : vector<1x128xf32>
    %7 = arith.mulf %2, %2 : vector<32x128xf32>
    %cst_5 = arith.constant dense<0.000000e+00> : vector<128xf32>
    %8 = vector.multi_reduction <add>, %7, %cst_5 [0] : vector<32x128xf32> to vector<128xf32>
    %9 = vector.shape_cast %8 : vector<128xf32> to vector<1x128xf32>
    %cst_6 = arith.constant 3.125000e-02 : f32
    %10 = vector.broadcast %cst_6 : f32 to vector<1x128xf32>
    %11 = arith.mulf %9, %10 : vector<1x128xf32>
    %12 = arith.mulf %6, %6 : vector<1x128xf32>
    %13 = arith.subf %11, %12 : vector<1x128xf32>
    %cst_7 = arith.constant 0.000000e+00 : f32
    %14 = vector.broadcast %cst_7 : f32 to vector<1x128xf32>
    %15 = arith.maximumf %13, %14 : vector<1x128xf32>
    %cst_8 = arith.constant 9.99999974E-6 : f32
    %16 = vector.broadcast %cst_8 : f32 to vector<1x128xf32>
    %17 = arith.addf %15, %16 : vector<1x128xf32>
    %18 = math.rsqrt %17 : vector<1x128xf32>
    %c0_9 = arith.constant 0 : index
    %c0_10 = arith.constant 0 : index
    %19 = vector.load %arg3[%c0_9, %c0_10] : memref<1x128xf32, #tpu.memory_space<vmem>>, vector<1x128xf32>
    %20 = arith.mulf %19, %18 : vector<1x128xf32>
    %c0_11 = arith.constant 0 : index
    %c0_12 = arith.constant 0 : index
    %21 = vector.load %arg4[%c0_11, %c0_12] : memref<1x128xf32, #tpu.memory_space<vmem>>, vector<1x128xf32>
    %22 = arith.mulf %6, %20 : vector<1x128xf32>
    %23 = arith.subf %21, %22 : vector<1x128xf32>
    %24 = vector.broadcast %20 : vector<1x128xf32> to vector<32x128xf32>
    %25 = arith.mulf %2, %24 : vector<32x128xf32>
    %26 = vector.broadcast %23 : vector<1x128xf32> to vector<32x128xf32>
    %27 = arith.addf %25, %26 : vector<32x128xf32>
    %cst_13 = arith.constant 0.000000e+00 : f32
    %28 = vector.broadcast %cst_13 : f32 to vector<32x128xf32>
    %29 = arith.cmpf oge, %27, %28 : vector<32x128xf32>
    %cst_14 = arith.constant 2.000000e-01 : f32
    %30 = vector.broadcast %cst_14 : f32 to vector<32x128xf32>
    %31 = arith.mulf %30, %27 : vector<32x128xf32>
    %32 = arith.select %29, %27, %31 : vector<32x128xi1>, vector<32x128xf32>
    %33 = vector.shape_cast %32 : vector<32x128xf32> to vector<2x16x128xf32>
    %c0_15 = arith.constant 0 : index
    %c0_16 = arith.constant 0 : index
    %34 = vector.load %arg5[%c0_15, %c0_16] : memref<16x128xf32, #tpu.memory_space<vmem>>, vector<16x128xf32>
    %35 = vector.shape_cast %34 : vector<16x128xf32> to vector<1x16x128xf32>
    %36 = vector.broadcast %35 : vector<1x16x128xf32> to vector<2x16x128xf32>
    %37 = arith.mulf %33, %36 : vector<2x16x128xf32>
    %cst_17 = arith.constant dense<0.000000e+00> : vector<2x16xf32>
    %38 = vector.multi_reduction <add>, %37, %cst_17 [2] : vector<2x16x128xf32> to vector<2x16xf32>
    %cst_18 = arith.constant dense<0.000000e+00> : vector<2xf32>
    %39 = vector.multi_reduction <add>, %38, %cst_18 [1] : vector<2x16xf32> to vector<2xf32>
    %40 = vector.shape_cast %39 : vector<2xf32> to vector<2x1xf32>
    %c0_19 = arith.constant 0 : index
    %c0_20 = arith.constant 0 : index
    %41 = vector.load %arg6[%c0_19, %c0_20] : memref<1x1xf32, #tpu.memory_space<vmem>>, vector<1x1xf32>
    %42 = vector.broadcast %41 : vector<1x1xf32> to vector<2x1xf32>
    %43 = arith.addf %40, %42 : vector<2x1xf32>
    %44 = arith.negf %43 : vector<2x1xf32>
    %45 = math.exp %44 : vector<2x1xf32>
    %cst_21 = arith.constant 1.000000e+00 : f32
    %46 = vector.broadcast %cst_21 : f32 to vector<2x1xf32>
    %47 = arith.addf %46, %45 : vector<2x1xf32>
    %48 = arith.divf %46, %47 : vector<2x1xf32>
    %c0_22 = arith.constant 0 : index
    %c0_23 = arith.constant 0 : index
    %49 = vector.load %arg7[%c0_22, %c0_23] : memref<2x1xf32, #tpu.memory_space<vmem>>, vector<2x1xf32>
    tpu.vector_store %arg7[%c0_22, %c0_23], %48 {strides = array<i32>} : memref<2x1xf32, #tpu.memory_space<vmem>>, vector<2x1xf32>,
    return
  }
  func.func @transform_0(%arg0: i32) -> (i32, i32) {
    %c0_i32 = arith.constant 0 : i32
    %c0_i32_0 = arith.constant 0 : i32
    %c0_i32_1 = arith.constant 0 : i32
    return %c0_i32, %c0_i32_0 : i32, i32
  }
  func.func @transform_1(%arg0: i32) -> (i32, i32) {
    %c0_i32 = arith.constant 0 : i32
    %c0_i32_0 = arith.constant 0 : i32
    %c0_i32_1 = arith.constant 0 : i32
    return %c0_i32, %c0_i32_0 : i32, i32
  }
  func.func @transform_2(%arg0: i32) -> (i32, i32) {
    %c0_i32 = arith.constant 0 : i32
    %c0_i32_0 = arith.constant 0 : i32
    %c0_i32_1 = arith.constant 0 : i32
    return %c0_i32, %c0_i32_0 : i32, i32
  }
  func.func @transform_3(%arg0: i32) -> (i32, i32) {
    %c0_i32 = arith.constant 0 : i32
    %c0_i32_0 = arith.constant 0 : i32
    %c0_i32_1 = arith.constant 0 : i32
    return %c0_i32, %c0_i32_0 : i32, i32
  }
  func.func @transform_4(%arg0: i32) -> (i32, i32) {
    %c0_i32 = arith.constant 0 : i32
    %c0_i32_0 = arith.constant 0 : i32
    %c0_i32_1 = arith.constant 0 : i32
    return %c0_i32, %c0_i32_0 : i32, i32
  }
  func.func @transform_5(%arg0: i32) -> (i32, i32) {
    %c0_i32 = arith.constant 0 : i32
    %c0_i32_0 = arith.constant 0 : i32
    %c0_i32_1 = arith.constant 0 : i32
    return %c0_i32, %c0_i32_0 : i32, i32
  }
  func.func @transform_6(%arg0: i32) -> (i32, i32) {
    %c0_i32 = arith.constant 0 : i32
    %c0_i32_0 = arith.constant 0 : i32
    %c0_i32_1 = arith.constant 0 : i32
    return %c0_i32, %c0_i32_0 : i32, i32
  }
}

</mosaic_0001>

<llo_original>
// kernel: discriminator_forward.4
$region0: #{discriminator_forward.4}
  #allocation0 [shape = 'u32[]', space=smem, size = 0x4, offset = 0x4, fixed_abs, tag = 'smem constant byte address 0x4 - core index']
  #allocation1 [shape = 'u32[144,128]{1,0:T(1,128)}', space=vmem, size = 0x12000, scoped, tag = 'internal scratch']
  %s0 = inlined_call_operand.vmem [shape: bf16[2048,16], index: 0, kind: input, shape index: {}]
  %s1 = inlined_call_operand.hbm [shape: bf16[16,16], index: 1, kind: input, shape index: {}]
  %s2 = inlined_call_operand.vmem [shape: f32[1,16], index: 2, kind: input, shape index: {}]
  %s3 = inlined_call_operand.vmem [shape: bf16[2048,16], index: 3, kind: output, shape index: {}]
  %s4 = sld [smem:[#allocation0]]
  $region49: #{discriminator_forward.4} parent=0
    _
  %s6 = ssub.s32 1, %s4
  %s7 = scalar_select 0, %s6, %s4
  $region1: #{discriminator_forward.4} parent=0
    #allocation2 [shape = 'u8[4096]{0}', space=vmem, size = 0x1000, scoped, tag = 'input window, operand 1, single buffered']
    #allocation3 [shape = 's32[2]{0}', space=sflag, size = 0x8, scoped, tag = 'scoped memory for discriminator_forward.4']
    %8 = vsyncpa [#allocation3], 0
    loop: start=0, step=1, limit=4
    $region2: #{discriminator_forward.4} parent=1 // loop_pre_header
      _
    $region3: #{discriminator_forward.4} parent=1 // loop_header
      %s10 = sphi 0, %s14
      %p11 = scmp.ge.s32.totalorder %s10, 4
      %s20 = sphi 0, %s22
      %s23 = sphi 0, %s20
      %s24 = sphi 0, %s23
      %s40 = sphi 0, %s24
      %s44 = sphi 0, %s44
      %s46 = sphi 0, %s44
      %s47 = sphi 0, %s46
      %s61 = sphi 0, %s47
      %s65 = sphi 0, %s65
      %s67 = sphi 0, %s65
      %s68 = sphi 0, %s67
      %s82 = sphi 0, %s68
      %s88 = sphi 0, %s90
      %s91 = sphi 0, %s88
      %s92 = sphi 0, %s91
      %s108 = sphi 0, %s92
    $region4: #{discriminator_forward.4} parent=1 // loop_header_branch
      %13 = sbr.rel (%p11) target = $region8
    $region5: #{discriminator_forward.4} parent=1 // loop_body
      %s15 = ssub.s32 %s10, 1
      %s16 = ssub.s32 %s10, 2
      %s17 = sadd.s32 %s10, 1
      %s18 = ssub.s32 %s10, %s17
      %p19 = scmp.eq.s32.totalorder %s18, 0
      %s21 = sadd.s32 %s20, 1
      %s22 = scalar_select %p19, %s20, %s21
      %p25 = pneg %p19
      %p26 = scmp.eq.s32.totalorder %s10, 1
      %p27 = por %p25, %p26
      %p28 = scmp.ne.s32.totalorder %s20, %s23
      %p29 = scmp.eq.s32.totalorder %s10, 0
      %p30 = por %p28, %p29
      %p31 = scmp.ne.s32.totalorder %s20, %s23
      %p32 = scmp.eq.s32.totalorder %s15, 1
      %p33 = por %p31, %p32
      %p34 = scmp.ne.s32.totalorder %s23, %s24
      %p35 = scmp.eq.s32.totalorder %s15, 0
      %p36 = por %p34, %p35
      %p37 = scmp.ne.s32.totalorder %s23, %s24
      %p38 = scmp.eq.s32.totalorder %s16, 1
      %p39 = por %p37, %p38
      %p41 = scmp.ne.s32.totalorder %s24, %s40
      %p42 = scmp.eq.s32.totalorder %s16, 0
      %p43 = por %p41, %p42
      %s45 = sadd.s32 %s44, 1
      %p48 = scmp.eq.s32.totalorder %s10, 1
      %p49 = scmp.ne.s32.totalorder %s44, %s46
      %p50 = scmp.eq.s32.totalorder %s10, 0
      %p51 = por %p49, %p50
      %p52 = scmp.ne.s32.totalorder %s44, %s46
      %p53 = scmp.eq.s32.totalorder %s15, 1
      %p54 = por %p52, %p53
      %p55 = scmp.ne.s32.totalorder %s46, %s47
      %p56 = scmp.eq.s32.totalorder %s15, 0
      %p57 = por %p55, %p56
      %p58 = scmp.ne.s32.totalorder %s46, %s47
      %p59 = scmp.eq.s32.totalorder %s16, 1
      %p60 = por %p58, %p59
      %p62 = scmp.ne.s32.totalorder %s47, %s61
      %p63 = scmp.eq.s32.totalorder %s16, 0
      %p64 = por %p62, %p63
      %s66 = sadd.s32 %s65, 1
      %p69 = scmp.eq.s32.totalorder %s10, 1
      %p70 = scmp.ne.s32.totalorder %s65, %s67
      %p71 = scmp.eq.s32.totalorder %s10, 0
      %p72 = por %p70, %p71
      %p73 = scmp.ne.s32.totalorder %s65, %s67
      %p74 = scmp.eq.s32.totalorder %s15, 1
      %p75 = por %p73, %p74
      %p76 = scmp.ne.s32.totalorder %s67, %s68
      %p77 = scmp.eq.s32.totalorder %s15, 0
      %p78 = por %p76, %p77
      %p79 = scmp.ne.s32.totalorder %s67, %s68
      %p80 = scmp.eq.s32.totalorder %s16, 1
      %p81 = por %p79, %p80
      %p83 = scmp.ne.s32.totalorder %s68, %s82
      %p84 = scmp.eq.s32.totalorder %s16, 0
      %p85 = por %p83, %p84
      %s86 = ssub.s32 %s10, %s17
      %p87 = scmp.eq.s32.totalorder %s86, 0
      %s89 = sadd.s32 %s88, 1
      %s90 = scalar_select %p87, %s88, %s89
      %p93 = pneg %p87
      %p94 = scmp.eq.s32.totalorder %s10, 1
      %p95 = por %p93, %p94
      %p96 = scmp.ne.s32.totalorder %s88, %s91
      %p97 = scmp.eq.s32.totalorder %s10, 0
      %p98 = por %p96, %p97
      %p99 = scmp.ne.s32.totalorder %s88, %s91
      %p100 = scmp.eq.s32.totalorder %s15, 1
      %p101 = por %p99, %p100
      %p102 = scmp.ne.s32.totalorder %s91, %s92
      %p103 = scmp.eq.s32.totalorder %s15, 0
      %p104 = por %p102, %p103
      %p105 = scmp.ne.s32.totalorder %s91, %s92
      %p106 = scmp.eq.s32.totalorder %s16, 1
      %p107 = por %p105, %p106
      %p109 = scmp.ne.s32.totalorder %s92, %s108
      %p110 = scmp.eq.s32.totalorder %s16, 0
      %p111 = por %p109, %p110
      %p112 = scmp.le.s32.totalorder 1, %s10
      %p113 = scmp.lt.s32.totalorder %s10, 3
      %p114 = pnand %p112, %p113
      %p115 = pneg %p114
      // Predicated region
      $region9: #{discriminator_forward.4} parent=5 // pred_check
        _
      $region10: #{discriminator_forward.4} parent=5 // pred_check_branch
        %117 = sbr.rel (%p114) target = $region12
      $region11: #{discriminator_forward.4} parent=5 // pred_region
        %s118 = ssub.s32 %s10, 1
        // Predicated region
        $region13: #{discriminator_forward.4} parent=11 // pred_check
          %p119 = pneg %p57
        $region14: #{discriminator_forward.4} parent=11 // pred_check_branch
          %121 = sbr.rel (%p119) target = $region16
        $region15: #{discriminator_forward.4} parent=11 // pred_region
          %s123 = ssub.s32 128, 128
          %124 = vsyncadd [#allocation3], %s123
          %s125 = sshll.u32 [#allocation2], 4
          %s126 = int_to_ptr.vmem [resolvable:$true] %s125
          %131 = dma.hbm_to_vmem [thread:$0]  %s1, 128, %s126, [#allocation3], 64, 64, 4
        $region16: #{discriminator_forward.4} parent=11 // pred_fallthru
          _
        // Predicated region
        $region17: #{discriminator_forward.4} parent=11 // pred_check
          %p132 = pneg %p78
        $region18: #{discriminator_forward.4} parent=11 // pred_check_branch
          %134 = sbr.rel (%p132) target = $region20
        $region19: #{discriminator_forward.4} parent=11 // pred_region
          _
        $region20: #{discriminator_forward.4} parent=11 // pred_fallthru
          _
      $region12: #{discriminator_forward.4} parent=5 // pred_fallthru
        _
      %p135 = scmp.lt.s32.totalorder %s10, 2
      // Predicated region
      $region21: #{discriminator_forward.4} parent=5 // pred_check
        %p136 = pneg %p135
      $region22: #{discriminator_forward.4} parent=5 // pred_check_branch
        %138 = sbr.rel (%p136) target = $region24
      $region23: #{discriminator_forward.4} parent=5 // pred_region
        // Predicated region
        $region25: #{discriminator_forward.4} parent=23 // pred_check
          %p139 = pneg %p30
        $region26: #{discriminator_forward.4} parent=23 // pred_check_branch
          %141 = sbr.rel (%p139) target = $region28
        $region27: #{discriminator_forward.4} parent=23 // pred_region
          %s142 = smul.u32 128, %s10
          %p143 = scmp.lt.s32.totalorder %s142, 255
          %s144 = scalar_select %p143, %s142, 255
          %s145 = smul.addr %s144, 4
          %s146 = scalar_lea.vmem %s0, %s145
          %s147 = smul.u32 128, %s10
        $region28: #{discriminator_forward.4} parent=23 // pred_fallthru
          _
      $region24: #{discriminator_forward.4} parent=5 // pred_fallthru
        _
      %p148 = scmp.le.s32.totalorder 1, %s10
      %p149 = scmp.lt.s32.totalorder %s10, 3
      %p150 = pnand %p148, %p149
      %p151 = pneg %p150
      // Predicated region
      $region29: #{discriminator_forward.4} parent=5 // pred_check
        _
      $region30: #{discriminator_forward.4} parent=5 // pred_check_branch
        %153 = sbr.rel (%p150) target = $region32
      $region31: #{discriminator_forward.4} parent=5 // pred_region
        %s154 = ssub.s32 %s10, 1
        // Predicated region
        $region33: #{discriminator_forward.4} parent=31 // pred_check
          %p155 = pneg %p57
        $region34: #{discriminator_forward.4} parent=31 // pred_check_branch
          %157 = sbr.rel (%p155) target = $region36
        $region35: #{discriminator_forward.4} parent=31 // pred_region
          %158 = dma.done [#allocation3], 128
        $region36: #{discriminator_forward.4} parent=31 // pred_fallthru
          _
        %s159 = smul.u32 128, %s15
        %p160 = scmp.lt.s32.totalorder %s159, 255
        %s161 = scalar_select %p160, %s159, 255
        %s162 = smul.addr %s161, 4
        %s163 = scalar_lea.vmem %s0, %s162
        %p164 = pneg %p36
        %p165 = pneg %p33
        %p166 = pneg %p57
        %p167 = pneg %p54
        %p168 = pneg %p78
        %p169 = pneg %p75
        %p170 = pneg %p104
        %p171 = pneg %p101
        %s172 = smul.u32 128, %s15
        %p173 = scmp.lt.s32.totalorder %s172, 255
        %s174 = scalar_select %p173, %s172, 255
        %s175 = smul.addr %s174, 4
        %s176 = scalar_lea.vmem %s3, %s175
        %s177 = smul.u32 128, %s15
        %p178 = scmp.lt.s32.totalorder %s177, 255
        %s179 = scalar_select %p178, %s177, 255
        %s180 = smul.addr %s179, 4
        %s181 = scalar_lea.vmem %s0, %s180
        %s182 = smul.u32 128, %s15
        %s183 = smul.u32 128, %s15
        %p184 = scmp.lt.s32.totalorder %s183, 255
        %s185 = scalar_select %p184, %s183, 255
        %s186 = smul.addr %s185, 4
        %s187 = scalar_lea.vmem %s3, %s186
        %s188 = smul.u32 128, %s15
        %v190 = vld [vmem:[%s181] sm:$0xf]
        %v191 = vld [vmem:[%s181 + $0x4] sm:$0xf]
        %v192 = vld [vmem:[%s181 + $0x8] sm:$0xf]
        %v193 = vld [vmem:[%s181 + $0xc] sm:$0xf]
        %v194 = vld [vmem:[%s181 + $0x10] sm:$0xf]
        %v195 = vld [vmem:[%s181 + $0x14] sm:$0xf]
        %v196 = vld [vmem:[%s181 + $0x18] sm:$0xf]
        %v197 = vld [vmem:[%s181 + $0x1c] sm:$0xf]
        %v198 = vld [vmem:[%s181 + $0x20] sm:$0xf]
        %v199 = vld [vmem:[%s181 + $0x24] sm:$0xf]
        %v200 = vld [vmem:[%s181 + $0x28] sm:$0xf]
        %v201 = vld [vmem:[%s181 + $0x2c] sm:$0xf]
        %v202 = vld [vmem:[%s181 + $0x30] sm:$0xf]
        %v203 = vld [vmem:[%s181 + $0x34] sm:$0xf]
        %v204 = vld [vmem:[%s181 + $0x38] sm:$0xf]
        %v205 = vld [vmem:[%s181 + $0x3c] sm:$0xf]
        %v206 = vld [vmem:[%s181 + $0x40] sm:$0xf]
        %v207 = vld [vmem:[%s181 + $0x44] sm:$0xf]
        %v208 = vld [vmem:[%s181 + $0x48] sm:$0xf]
        %v209 = vld [vmem:[%s181 + $0x4c] sm:$0xf]
        %v210 = vld [vmem:[%s181 + $0x50] sm:$0xf]
        %v211 = vld [vmem:[%s181 + $0x54] sm:$0xf]
        %v212 = vld [vmem:[%s181 + $0x58] sm:$0xf]
        %v213 = vld [vmem:[%s181 + $0x5c] sm:$0xf]
        %v214 = vld [vmem:[%s181 + $0x60] sm:$0xf]
        %v215 = vld [vmem:[%s181 + $0x64] sm:$0xf]
        %v216 = vld [vmem:[%s181 + $0x68] sm:$0xf]
        %v217 = vld [vmem:[%s181 + $0x6c] sm:$0xf]
        %v218 = vld [vmem:[%s181 + $0x70] sm:$0xf]
        %v219 = vld [vmem:[%s181 + $0x74] sm:$0xf]
        %v220 = vld [vmem:[%s181 + $0x78] sm:$0xf]
        %v221 = vld [vmem:[%s181 + $0x7c] sm:$0xf]
        %v222 = vld [vmem:[%s181 + $0x80] sm:$0xf]
        %v223 = vld [vmem:[%s181 + $0x84] sm:$0xf]
        %v224 = vld [vmem:[%s181 + $0x88] sm:$0xf]
        %v225 = vld [vmem:[%s181 + $0x8c] sm:$0xf]
        %v226 = vld [vmem:[%s181 + $0x90] sm:$0xf]
        %v227 = vld [vmem:[%s181 + $0x94] sm:$0xf]
        %v228 = vld [vmem:[%s181 + $0x98] sm:$0xf]
        %v229 = vld [vmem:[%s181 + $0x9c] sm:$0xf]
        %v230 = vld [vmem:[%s181 + $0xa0] sm:$0xf]
        %v231 = vld [vmem:[%s181 + $0xa4] sm:$0xf]
        %v232 = vld [vmem:[%s181 + $0xa8] sm:$0xf]
        %v233 = vld [vmem:[%s181 + $0xac] sm:$0xf]
        %v234 = vld [vmem:[%s181 + $0xb0] sm:$0xf]
        %v235 = vld [vmem:[%s181 + $0xb4] sm:$0xf]
        %v236 = vld [vmem:[%s181 + $0xb8] sm:$0xf]
        %v237 = vld [vmem:[%s181 + $0xbc] sm:$0xf]
        %v238 = vld [vmem:[%s181 + $0xc0] sm:$0xf]
        %v239 = vld [vmem:[%s181 + $0xc4] sm:$0xf]
        %v240 = vld [vmem:[%s181 + $0xc8] sm:$0xf]
        %v241 = vld [vmem:[%s181 + $0xcc] sm:$0xf]
        %v242 = vld [vmem:[%s181 + $0xd0] sm:$0xf]
        %v243 = vld [vmem:[%s181 + $0xd4] sm:$0xf]
        %v244 = vld [vmem:[%s181 + $0xd8] sm:$0xf]
        %v245 = vld [vmem:[%s181 + $0xdc] sm:$0xf]
        %v246 = vld [vmem:[%s181 + $0xe0] sm:$0xf]
        %v247 = vld [vmem:[%s181 + $0xe4] sm:$0xf]
        %v248 = vld [vmem:[%s181 + $0xe8] sm:$0xf]
        %v249 = vld [vmem:[%s181 + $0xec] sm:$0xf]
        %v250 = vld [vmem:[%s181 + $0xf0] sm:$0xf]
        %v251 = vld [vmem:[%s181 + $0xf4] sm:$0xf]
        %v252 = vld [vmem:[%s181 + $0xf8] sm:$0xf]
        %v253 = vld [vmem:[%s181 + $0xfc] sm:$0xf]
        %v254 = vld [vmem:[%s181 + $0x100] sm:$0xf]
        %v255 = vld [vmem:[%s181 + $0x104] sm:$0xf]
        %v256 = vld [vmem:[%s181 + $0x108] sm:$0xf]
        %v257 = vld [vmem:[%s181 + $0x10c] sm:$0xf]
        %v258 = vld [vmem:[%s181 + $0x110] sm:$0xf]
        %v259 = vld [vmem:[%s181 + $0x114] sm:$0xf]
        %v260 = vld [vmem:[%s181 + $0x118] sm:$0xf]
        %v261 = vld [vmem:[%s181 + $0x11c] sm:$0xf]
        %v262 = vld [vmem:[%s181 + $0x120] sm:$0xf]
        %v263 = vld [vmem:[%s181 + $0x124] sm:$0xf]
        %v264 = vld [vmem:[%s181 + $0x128] sm:$0xf]
        %v265 = vld [vmem:[%s181 + $0x12c] sm:$0xf]
        %v266 = vld [vmem:[%s181 + $0x130] sm:$0xf]
        %v267 = vld [vmem:[%s181 + $0x134] sm:$0xf]
        %v268 = vld [vmem:[%s181 + $0x138] sm:$0xf]
        %v269 = vld [vmem:[%s181 + $0x13c] sm:$0xf]
        %v270 = vld [vmem:[%s181 + $0x140] sm:$0xf]
        %v271 = vld [vmem:[%s181 + $0x144] sm:$0xf]
        %v272 = vld [vmem:[%s181 + $0x148] sm:$0xf]
        %v273 = vld [vmem:[%s181 + $0x14c] sm:$0xf]
        %v274 = vld [vmem:[%s181 + $0x150] sm:$0xf]
        %v275 = vld [vmem:[%s181 + $0x154] sm:$0xf]
        %v276 = vld [vmem:[%s181 + $0x158] sm:$0xf]
        %v277 = vld [vmem:[%s181 + $0x15c] sm:$0xf]
        %v278 = vld [vmem:[%s181 + $0x160] sm:$0xf]
        %v279 = vld [vmem:[%s181 + $0x164] sm:$0xf]
        %v280 = vld [vmem:[%s181 + $0x168] sm:$0xf]
        %v281 = vld [vmem:[%s181 + $0x16c] sm:$0xf]
        %v282 = vld [vmem:[%s181 + $0x170] sm:$0xf]
        %v283 = vld [vmem:[%s181 + $0x174] sm:$0xf]
        %v284 = vld [vmem:[%s181 + $0x178] sm:$0xf]
        %v285 = vld [vmem:[%s181 + $0x17c] sm:$0xf]
        %v286 = vld [vmem:[%s181 + $0x180] sm:$0xf]
        %v287 = vld [vmem:[%s181 + $0x184] sm:$0xf]
        %v288 = vld [vmem:[%s181 + $0x188] sm:$0xf]
        %v289 = vld [vmem:[%s181 + $0x18c] sm:$0xf]
        %v290 = vld [vmem:[%s181 + $0x190] sm:$0xf]
        %v291 = vld [vmem:[%s181 + $0x194] sm:$0xf]
        %v292 = vld [vmem:[%s181 + $0x198] sm:$0xf]
        %v293 = vld [vmem:[%s181 + $0x19c] sm:$0xf]
        %v294 = vld [vmem:[%s181 + $0x1a0] sm:$0xf]
        %v295 = vld [vmem:[%s181 + $0x1a4] sm:$0xf]
        %v296 = vld [vmem:[%s181 + $0x1a8] sm:$0xf]
        %v297 = vld [vmem:[%s181 + $0x1ac] sm:$0xf]
        %v298 = vld [vmem:[%s181 + $0x1b0] sm:$0xf]
        %v299 = vld [vmem:[%s181 + $0x1b4] sm:$0xf]
        %v300 = vld [vmem:[%s181 + $0x1b8] sm:$0xf]
        %v301 = vld [vmem:[%s181 + $0x1bc] sm:$0xf]
        %v302 = vld [vmem:[%s181 + $0x1c0] sm:$0xf]
        %v303 = vld [vmem:[%s181 + $0x1c4] sm:$0xf]
        %v304 = vld [vmem:[%s181 + $0x1c8] sm:$0xf]
        %v305 = vld [vmem:[%s181 + $0x1cc] sm:$0xf]
        %v306 = vld [vmem:[%s181 + $0x1d0] sm:$0xf]
        %v307 = vld [vmem:[%s181 + $0x1d4] sm:$0xf]
        %v308 = vld [vmem:[%s181 + $0x1d8] sm:$0xf]
        %v309 = vld [vmem:[%s181 + $0x1dc] sm:$0xf]
        %v310 = vld [vmem:[%s181 + $0x1e0] sm:$0xf]
        %v311 = vld [vmem:[%s181 + $0x1e4] sm:$0xf]
        %v312 = vld [vmem:[%s181 + $0x1e8] sm:$0xf]
        %v313 = vld [vmem:[%s181 + $0x1ec] sm:$0xf]
        %v314 = vld [vmem:[%s181 + $0x1f0] sm:$0xf]
        %v315 = vld [vmem:[%s181 + $0x1f4] sm:$0xf]
        %v316 = vld [vmem:[%s181 + $0x1f8] sm:$0xf]
        %v317 = vld [vmem:[%s181 + $0x1fc] sm:$0xf]
        %v318 = vld [vmem:[#allocation2] sm:$0xf]
        %v319 = vld [vmem:[#allocation2 + $0x4] sm:$0xf]
        %v320 = vld [vmem:[%s2] sm:$0x1]
        %v322 = vlaneseq
        %v323 = vshrl.u32 %v322, 7
        %v324 = vsub.s32 0, %v323
        %v325 = vrot.slane %v320, %v324
        %v455 = vunpack.c.l.b16 %v190
        %v456 = vunpack.c.l.b16 %v191
        %v457 = vunpack.c.l.b16 %v192
        %v458 = vunpack.c.l.b16 %v193
        %v459 = vunpack.c.l.b16 %v194
        %v460 = vunpack.c.l.b16 %v195
        %v461 = vunpack.c.l.b16 %v196
        %v462 = vunpack.c.l.b16 %v197
        %v463 = vunpack.c.l.b16 %v198
        %v464 = vunpack.c.l.b16 %v199
        %v465 = vunpack.c.l.b16 %v200
        %v466 = vunpack.c.l.b16 %v201
        %v467 = vunpack.c.l.b16 %v202
        %v468 = vunpack.c.l.b16 %v203
        %v469 = vunpack.c.l.b16 %v204
        %v470 = vunpack.c.l.b16 %v205
        %v471 = vunpack.c.l.b16 %v206
        %v472 = vunpack.c.l.b16 %v207
        %v473 = vunpack.c.l.b16 %v208
        %v474 = vunpack.c.l.b16 %v209
        %v475 = vunpack.c.l.b16 %v210
        %v476 = vunpack.c.l.b16 %v211
        %v477 = vunpack.c.l.b16 %v212
        %v478 = vunpack.c.l.b16 %v213
        %v479 = vunpack.c.l.b16 %v214
        %v480 = vunpack.c.l.b16 %v215
        %v481 = vunpack.c.l.b16 %v216
        %v482 = vunpack.c.l.b16 %v217
        %v483 = vunpack.c.l.b16 %v218
        %v484 = vunpack.c.l.b16 %v219
        %v485 = vunpack.c.l.b16 %v220
        %v486 = vunpack.c.l.b16 %v221
        %v487 = vunpack.c.l.b16 %v222
        %v488 = vunpack.c.l.b16 %v223
        %v489 = vunpack.c.l.b16 %v224
        %v490 = vunpack.c.l.b16 %v225
        %v491 = vunpack.c.l.b16 %v226
        %v492 = vunpack.c.l.b16 %v227
        %v493 = vunpack.c.l.b16 %v228
        %v494 = vunpack.c.l.b16 %v229
        %v495 = vunpack.c.l.b16 %v230
        %v496 = vunpack.c.l.b16 %v231
        %v497 = vunpack.c.l.b16 %v232
        %v498 = vunpack.c.l.b16 %v233
        %v499 = vunpack.c.l.b16 %v234
        %v500 = vunpack.c.l.b16 %v235
        %v501 = vunpack.c.l.b16 %v236
        %v502 = vunpack.c.l.b16 %v237
        %v503 = vunpack.c.l.b16 %v238
        %v504 = vunpack.c.l.b16 %v239
        %v505 = vunpack.c.l.b16 %v240
        %v506 = vunpack.c.l.b16 %v241
        %v507 = vunpack.c.l.b16 %v242
        %v508 = vunpack.c.l.b16 %v243
        %v509 = vunpack.c.l.b16 %v244
        %v510 = vunpack.c.l.b16 %v245
        %v511 = vunpack.c.l.b16 %v246
        %v512 = vunpack.c.l.b16 %v247
        %v513 = vunpack.c.l.b16 %v248
        %v514 = vunpack.c.l.b16 %v249
        %v515 = vunpack.c.l.b16 %v250
        %v516 = vunpack.c.l.b16 %v251
        %v517 = vunpack.c.l.b16 %v252
        %v518 = vunpack.c.l.b16 %v253
        %v519 = vunpack.c.l.b16 %v254
        %v520 = vunpack.c.l.b16 %v255
        %v521 = vunpack.c.l.b16 %v256
        %v522 = vunpack.c.l.b16 %v257
        %v523 = vunpack.c.l.b16 %v258
        %v524 = vunpack.c.l.b16 %v259
        %v525 = vunpack.c.l.b16 %v260
        %v526 = vunpack.c.l.b16 %v261
        %v527 = vunpack.c.l.b16 %v262
        %v528 = vunpack.c.l.b16 %v263
        %v529 = vunpack.c.l.b16 %v264
        %v530 = vunpack.c.l.b16 %v265
        %v531 = vunpack.c.l.b16 %v266
        %v532 = vunpack.c.l.b16 %v267
        %v533 = vunpack.c.l.b16 %v268
        %v534 = vunpack.c.l.b16 %v269
        %v535 = vunpack.c.l.b16 %v270
        %v536 = vunpack.c.l.b16 %v271
        %v537 = vunpack.c.l.b16 %v272
        %v538 = vunpack.c.l.b16 %v273
        %v539 = vunpack.c.l.b16 %v274
        %v540 = vunpack.c.l.b16 %v275
        %v541 = vunpack.c.l.b16 %v276
        %v542 = vunpack.c.l.b16 %v277
        %v543 = vunpack.c.l.b16 %v278
        %v544 = vunpack.c.l.b16 %v279
        %v545 = vunpack.c.l.b16 %v280
        %v546 = vunpack.c.l.b16 %v281
        %v547 = vunpack.c.l.b16 %v282
        %v548 = vunpack.c.l.b16 %v283
        %v549 = vunpack.c.l.b16 %v284
        %v550 = vunpack.c.l.b16 %v285
        %v551 = vunpack.c.l.b16 %v286
        %v552 = vunpack.c.l.b16 %v287
        %v553 = vunpack.c.l.b16 %v288
        %v554 = vunpack.c.l.b16 %v289
        %v555 = vunpack.c.l.b16 %v290
        %v556 = vunpack.c.l.b16 %v291
        %v557 = vunpack.c.l.b16 %v292
        %v558 = vunpack.c.l.b16 %v293
        %v559 = vunpack.c.l.b16 %v294
        %v560 = vunpack.c.l.b16 %v295
        %v561 = vunpack.c.l.b16 %v296
        %v562 = vunpack.c.l.b16 %v297
        %v563 = vunpack.c.l.b16 %v298
        %v564 = vunpack.c.l.b16 %v299
        %v565 = vunpack.c.l.b16 %v300
        %v566 = vunpack.c.l.b16 %v301
        %v567 = vunpack.c.l.b16 %v302
        %v568 = vunpack.c.l.b16 %v303
        %v569 = vunpack.c.l.b16 %v304
        %v570 = vunpack.c.l.b16 %v305
        %v571 = vunpack.c.l.b16 %v306
        %v572 = vunpack.c.l.b16 %v307
        %v573 = vunpack.c.l.b16 %v308
        %v574 = vunpack.c.l.b16 %v309
        %v575 = vunpack.c.l.b16 %v310
        %v576 = vunpack.c.l.b16 %v311
        %v577 = vunpack.c.l.b16 %v312
        %v578 = vunpack.c.l.b16 %v313
        %v579 = vunpack.c.l.b16 %v314
        %v580 = vunpack.c.l.b16 %v315
        %v581 = vunpack.c.l.b16 %v316
        %v582 = vunpack.c.l.b16 %v317
        %v583 = vpack.c.b16 %v456, %v455
        %v584 = vpack.c.b16 %v458, %v457
        %v585 = vpack.c.b16 %v460, %v459
        %v586 = vpack.c.b16 %v462, %v461
        %v587 = vpack.c.b16 %v464, %v463
        %v588 = vpack.c.b16 %v466, %v465
        %v589 = vpack.c.b16 %v468, %v467
        %v590 = vpack.c.b16 %v470, %v469
        %v591 = vpack.c.b16 %v472, %v471
        %v592 = vpack.c.b16 %v474, %v473
        %v593 = vpack.c.b16 %v476, %v475
        %v594 = vpack.c.b16 %v478, %v477
        %v595 = vpack.c.b16 %v480, %v479
        %v596 = vpack.c.b16 %v482, %v481
        %v597 = vpack.c.b16 %v484, %v483
        %v598 = vpack.c.b16 %v486, %v485
        %v599 = vpack.c.b16 %v488, %v487
        %v600 = vpack.c.b16 %v490, %v489
        %v601 = vpack.c.b16 %v492, %v491
        %v602 = vpack.c.b16 %v494, %v493
        %v603 = vpack.c.b16 %v496, %v495
        %v604 = vpack.c.b16 %v498, %v497
        %v605 = vpack.c.b16 %v500, %v499
        %v606 = vpack.c.b16 %v502, %v501
        %v607 = vpack.c.b16 %v504, %v503
        %v608 = vpack.c.b16 %v506, %v505
        %v609 = vpack.c.b16 %v508, %v507
        %v610 = vpack.c.b16 %v510, %v509
        %v611 = vpack.c.b16 %v512, %v511
        %v612 = vpack.c.b16 %v514, %v513
        %v613 = vpack.c.b16 %v516, %v515
        %v614 = vpack.c.b16 %v518, %v517
        %v615 = vpack.c.b16 %v520, %v519
        %v616 = vpack.c.b16 %v522, %v521
        %v617 = vpack.c.b16 %v524, %v523
        %v618 = vpack.c.b16 %v526, %v525
        %v619 = vpack.c.b16 %v528, %v527
        %v620 = vpack.c.b16 %v530, %v529
        %v621 = vpack.c.b16 %v532, %v531
        %v622 = vpack.c.b16 %v534, %v533
        %v623 = vpack.c.b16 %v536, %v535
        %v624 = vpack.c.b16 %v538, %v537
        %v625 = vpack.c.b16 %v540, %v539
        %v626 = vpack.c.b16 %v542, %v541
        %v627 = vpack.c.b16 %v544, %v543
        %v628 = vpack.c.b16 %v546, %v545
        %v629 = vpack.c.b16 %v548, %v547
        %v630 = vpack.c.b16 %v550, %v549
        %v631 = vpack.c.b16 %v552, %v551
        %v632 = vpack.c.b16 %v554, %v553
        %v633 = vpack.c.b16 %v556, %v555
        %v634 = vpack.c.b16 %v558, %v557
        %v635 = vpack.c.b16 %v560, %v559
        %v636 = vpack.c.b16 %v562, %v561
        %v637 = vpack.c.b16 %v564, %v563
        %v638 = vpack.c.b16 %v566, %v565
        %v639 = vpack.c.b16 %v568, %v567
        %v640 = vpack.c.b16 %v570, %v569
        %v641 = vpack.c.b16 %v572, %v571
        %v642 = vpack.c.b16 %v574, %v573
        %v643 = vpack.c.b16 %v576, %v575
        %v644 = vpack.c.b16 %v578, %v577
        %v645 = vpack.c.b16 %v580, %v579
        %v646 = vpack.c.b16 %v582, %v581
        %v649 = vunpack.c.l.b16 %v318
        %v650 = vunpack.c.l.b16 %v319
        %v651 = vpack.c.b16 %v650, %v649
        %vm653 = vcmask 130048
        %v655 = vsel %vm653, %v583, 0
        %v658 = vsel %vm653, %v584, 0
        %v661 = vsel %vm653, %v585, 0
        %v664 = vsel %vm653, %v586, 0
        %v667 = vsel %vm653, %v587, 0
        %v670 = vsel %vm653, %v588, 0
        %v673 = vsel %vm653, %v589, 0
        %v676 = vsel %vm653, %v590, 0
        %v679 = vsel %vm653, %v591, 0
        %v682 = vsel %vm653, %v592, 0
        %v685 = vsel %vm653, %v593, 0
        %v688 = vsel %vm653, %v594, 0
        %v691 = vsel %vm653, %v595, 0
        %v694 = vsel %vm653, %v596, 0
        %v697 = vsel %vm653, %v597, 0
        %v700 = vsel %vm653, %v598, 0
        %v703 = vsel %vm653, %v599, 0
        %v706 = vsel %vm653, %v600, 0
        %v709 = vsel %vm653, %v601, 0
        %v712 = vsel %vm653, %v602, 0
        %v715 = vsel %vm653, %v603, 0
        %v718 = vsel %vm653, %v604, 0
        %v721 = vsel %vm653, %v605, 0
        %v724 = vsel %vm653, %v606, 0
        %v727 = vsel %vm653, %v607, 0
        %v730 = vsel %vm653, %v608, 0
        %v733 = vsel %vm653, %v609, 0
        %v736 = vsel %vm653, %v610, 0
        %v739 = vsel %vm653, %v611, 0
        %v742 = vsel %vm653, %v612, 0
        %v745 = vsel %vm653, %v613, 0
        %v748 = vsel %vm653, %v614, 0
        %v751 = vsel %vm653, %v615, 0
        %v754 = vsel %vm653, %v616, 0
        %v757 = vsel %vm653, %v617, 0
        %v760 = vsel %vm653, %v618, 0
        %v763 = vsel %vm653, %v619, 0
        %v766 = vsel %vm653, %v620, 0
        %v769 = vsel %vm653, %v621, 0
        %v772 = vsel %vm653, %v622, 0
        %v775 = vsel %vm653, %v623, 0
        %v778 = vsel %vm653, %v624, 0
        %v781 = vsel %vm653, %v625, 0
        %v784 = vsel %vm653, %v626, 0
        %v787 = vsel %vm653, %v627, 0
        %v790 = vsel %vm653, %v628, 0
        %v793 = vsel %vm653, %v629, 0
        %v796 = vsel %vm653, %v630, 0
        %v799 = vsel %vm653, %v631, 0
        %v802 = vsel %vm653, %v632, 0
        %v805 = vsel %vm653, %v633, 0
        %v808 = vsel %vm653, %v634, 0
        %v811 = vsel %vm653, %v635, 0
        %v814 = vsel %vm653, %v636, 0
        %v817 = vsel %vm653, %v637, 0
        %v820 = vsel %vm653, %v638, 0
        %v823 = vsel %vm653, %v639, 0
        %v826 = vsel %vm653, %v640, 0
        %v829 = vsel %vm653, %v641, 0
        %v832 = vsel %vm653, %v642, 0
        %v835 = vsel %vm653, %v643, 0
        %v838 = vsel %vm653, %v644, 0
        %v841 = vsel %vm653, %v645, 0
        %v844 = vsel %vm653, %v646, 0
        %846 = vmatprep.subr.bf16.mxu0 0
        %847 = vmatpush1.bf16.msra.mxu0 %v651
        %848 = vmatprep.subr.bf16.mxu0 0
        %849 = vmatpush1.bf16.msra.mxu0 0
        %850 = vmatprep.subr.bf16.mxu0 0
        %851 = vmatpush1.bf16.msra.mxu0 0
        %852 = vmatprep.subr.bf16.mxu0 0
        %853 = vmatpush1.bf16.msra.mxu0 0
        %854 = vmatprep.subr.bf16.mxu0 0
        %855 = vmatpush1.bf16.msra.mxu0 0
        %856 = vmatprep.subr.bf16.mxu0 0
        %857 = vmatpush1.bf16.msra.mxu0 0
        %858 = vmatprep.subr.bf16.mxu0 0
        %859 = vmatpush1.bf16.msra.mxu0 0
        %860 = vmatprep.subr.bf16.mxu0 0
        %861 = vmatpush1.bf16.msra.mxu0 0
        %862 = vmatprep.subr.bf16.mxu0 0
        %863 = vmatpush1.bf16.msra.mxu0 0
        %864 = vmatprep.subr.bf16.mxu0 0
        %865 = vmatpush1.bf16.msra.mxu0 0
        %866 = vmatprep.subr.bf16.mxu0 0
        %867 = vmatpush1.bf16.msra.mxu0 0
        %868 = vmatprep.subr.bf16.mxu0 0
        %869 = vmatpush1.bf16.msra.mxu0 0
        %870 = vmatprep.subr.bf16.mxu0 0
        %871 = vmatpush1.bf16.msra.mxu0 0
        %872 = vmatprep.subr.bf16.mxu0 0
        %873 = vmatpush1.bf16.msra.mxu0 0
        %874 = vmatprep.subr.bf16.mxu0 0
        %875 = vmatpush1.bf16.msra.mxu0 0
        %876 = vmatprep.subr.bf16.mxu0 0
        %877 = vmatpush1.bf16.msra.mxu0 0
        %878 = vmatprep.mubr.bf16.mxu0 0
        %879 = vmatmul.mubr.bf16.gmra.mrb[0].mxu0 %v655
        %v880 = vpop.f32.mrb[0].mxu0
        %v881 = vadd.f32 %v325, %v880
        %v882 = vpop.f32.mrb[0].mxu0
        %v883 = vpop.f32.mrb[0].mxu0
        %v884 = vadd.f32 %v325, %v883
        %v885 = vpop.f32.mrb[0].mxu0
        %886 = vmatprep.mubr.bf16.mxu0 0
        %887 = vmatmul.mubr.bf16.gmra.mrb[0].mxu0 %v658
        %v888 = vpop.f32.mrb[0].mxu0
        %v889 = vadd.f32 %v325, %v888
        %v890 = vpop.f32.mrb[0].mxu0
        %v891 = vpop.f32.mrb[0].mxu0
        %v892 = vadd.f32 %v325, %v891
        %v893 = vpop.f32.mrb[0].mxu0
        %894 = vmatprep.mubr.bf16.mxu0 0
        %895 = vmatmul.mubr.bf16.gmra.mrb[0].mxu0 %v661
        %v896 = vpop.f32.mrb[0].mxu0
        %v897 = vadd.f32 %v325, %v896
        %v898 = vpop.f32.mrb[0].mxu0
        %v899 = vpop.f32.mrb[0].mxu0
        %v900 = vadd.f32 %v325, %v899
        %v901 = vpop.f32.mrb[0].mxu0
        %902 = vmatprep.mubr.bf16.mxu0 0
        %903 = vmatmul.mubr.bf16.gmra.mrb[0].mxu0 %v664
        %v904 = vpop.f32.mrb[0].mxu0
        %v905 = vadd.f32 %v325, %v904
        %v906 = vpop.f32.mrb[0].mxu0
        %v907 = vpop.f32.mrb[0].mxu0
        %v908 = vadd.f32 %v325, %v907
        %v909 = vpop.f32.mrb[0].mxu0
        %910 = vmatprep.mubr.bf16.mxu0 0
        %911 = vmatmul.mubr.bf16.gmra.mrb[0].mxu0 %v667
        %v912 = vpop.f32.mrb[0].mxu0
        %v913 = vadd.f32 %v325, %v912
        %v914 = vpop.f32.mrb[0].mxu0
        %v915 = vpop.f32.mrb[0].mxu0
        %v916 = vadd.f32 %v325, %v915
        %v917 = vpop.f32.mrb[0].mxu0
        %918 = vmatprep.mubr.bf16.mxu0 0
        %919 = vmatmul.mubr.bf16.gmra.mrb[0].mxu0 %v670
        %v920 = vpop.f32.mrb[0].mxu0
        %v921 = vadd.f32 %v325, %v920
        %v922 = vpop.f32.mrb[0].mxu0
        %v923 = vpop.f32.mrb[0].mxu0
        %v924 = vadd.f32 %v325, %v923
        %v925 = vpop.f32.mrb[0].mxu0
        %926 = vmatprep.mubr.bf16.mxu0 0
        %927 = vmatmul.mubr.bf16.gmra.mrb[0].mxu0 %v673
        %v928 = vpop.f32.mrb[0].mxu0
        %v929 = vadd.f32 %v325, %v928
        %v930 = vpop.f32.mrb[0].mxu0
        %v931 = vpop.f32.mrb[0].mxu0
        %v932 = vadd.f32 %v325, %v931
        %v933 = vpop.f32.mrb[0].mxu0
        %934 = vmatprep.mubr.bf16.mxu0 0
        %935 = vmatmul.mubr.bf16.gmra.mrb[0].mxu0 %v676
        %v936 = vpop.f32.mrb[0].mxu0
        %v937 = vadd.f32 %v325, %v936
        %v938 = vpop.f32.mrb[0].mxu0
        %v939 = vpop.f32.mrb[0].mxu0
        %v940 = vadd.f32 %v325, %v939
        %v941 = vpop.f32.mrb[0].mxu0
        %942 = vmatprep.mubr.bf16.mxu0 0
        %943 = vmatmul.mubr.bf16.gmra.mrb[0].mxu0 %v679
        %v944 = vpop.f32.mrb[0].mxu0
        %v945 = vadd.f32 %v325, %v944
        %v946 = vpop.f32.mrb[0].mxu0
        %v947 = vpop.f32.mrb[0].mxu0
        %v948 = vadd.f32 %v325, %v947
        %v949 = vpop.f32.mrb[0].mxu0
        %950 = vmatprep.mubr.bf16.mxu0 0
        %951 = vmatmul.mubr.bf16.gmra.mrb[0].mxu0 %v682
        %v952 = vpop.f32.mrb[0].mxu0
        %v953 = vadd.f32 %v325, %v952
        %v954 = vpop.f32.mrb[0].mxu0
        %v955 = vpop.f32.mrb[0].mxu0
        %v956 = vadd.f32 %v325, %v955
        %v957 = vpop.f32.mrb[0].mxu0
        %958 = vmatprep.mubr.bf16.mxu0 0
        %959 = vmatmul.mubr.bf16.gmra.mrb[0].mxu0 %v685
        %v960 = vpop.f32.mrb[0].mxu0
        %v961 = vadd.f32 %v325, %v960
        %v962 = vpop.f32.mrb[0].mxu0
        %v963 = vpop.f32.mrb[0].mxu0
        %v964 = vadd.f32 %v325, %v963
        %v965 = vpop.f32.mrb[0].mxu0
        %966 = vmatprep.mubr.bf16.mxu0 0
        %967 = vmatmul.mubr.bf16.gmra.mrb[0].mxu0 %v688
        %v968 = vpop.f32.mrb[0].mxu0
        %v969 = vadd.f32 %v325, %v968
        %v970 = vpop.f32.mrb[0].mxu0
        %v971 = vpop.f32.mrb[0].mxu0
        %v972 = vadd.f32 %v325, %v971
        %v973 = vpop.f32.mrb[0].mxu0
        %974 = vmatprep.mubr.bf16.mxu0 0
        %975 = vmatmul.mubr.bf16.gmra.mrb[0].mxu0 %v691
        %v976 = vpop.f32.mrb[0].mxu0
        %v977 = vadd.f32 %v325, %v976
        %v978 = vpop.f32.mrb[0].mxu0
        %v979 = vpop.f32.mrb[0].mxu0
        %v980 = vadd.f32 %v325, %v979
        %v981 = vpop.f32.mrb[0].mxu0
        %982 = vmatprep.mubr.bf16.mxu0 0
        %983 = vmatmul.mubr.bf16.gmra.mrb[0].mxu0 %v694
        %v984 = vpop.f32.mrb[0].mxu0
        %v985 = vadd.f32 %v325, %v984
        %v986 = vpop.f32.mrb[0].mxu0
        %v987 = vpop.f32.mrb[0].mxu0
        %v988 = vadd.f32 %v325, %v987
        %v989 = vpop.f32.mrb[0].mxu0
        %990 = vmatprep.mubr.bf16.mxu0 0
        %991 = vmatmul.mubr.bf16.gmra.mrb[0].mxu0 %v697
        %v992 = vpop.f32.mrb[0].mxu0
        %v993 = vadd.f32 %v325, %v992
        %v994 = vpop.f32.mrb[0].mxu0
        %v995 = vpop.f32.mrb[0].mxu0
        %v996 = vadd.f32 %v325, %v995
        %v997 = vpop.f32.mrb[0].mxu0
        %998 = vmatprep.mubr.bf16.mxu0 0
        %999 = vmatmul.mubr.bf16.gmra.mrb[0].mxu0 %v700
        %v1000 = vpop.f32.mrb[0].mxu0
        %v1001 = vadd.f32 %v325, %v1000
        %v1002 = vpop.f32.mrb[0].mxu0
        %v1003 = vpop.f32.mrb[0].mxu0
        %v1004 = vadd.f32 %v325, %v1003
        %v1005 = vpop.f32.mrb[0].mxu0
        %1006 = vmatprep.mubr.bf16.mxu0 0
        %1007 = vmatmul.mubr.bf16.gmra.mrb[0].mxu0 %v703
        %v1008 = vpop.f32.mrb[0].mxu0
        %v1009 = vadd.f32 %v325, %v1008
        %v1010 = vpop.f32.mrb[0].mxu0
        %v1011 = vpop.f32.mrb[0].mxu0
        %v1012 = vadd.f32 %v325, %v1011
        %v1013 = vpop.f32.mrb[0].mxu0
        %1014 = vmatprep.mubr.bf16.mxu0 0
        %1015 = vmatmul.mubr.bf16.gmra.mrb[0].mxu0 %v706
        %v1016 = vpop.f32.mrb[0].mxu0
        %v1017 = vadd.f32 %v325, %v1016
        %v1018 = vpop.f32.mrb[0].mxu0
        %v1019 = vpop.f32.mrb[0].mxu0
        %v1020 = vadd.f32 %v325, %v1019
        %v1021 = vpop.f32.mrb[0].mxu0
        %1022 = vmatprep.mubr.bf16.mxu0 0
        %1023 = vmatmul.mubr.bf16.gmra.mrb[0].mxu0 %v709
        %v1024 = vpop.f32.mrb[0].mxu0
        %v1025 = vadd.f32 %v325, %v1024
        %v1026 = vpop.f32.mrb[0].mxu0
        %v1027 = vpop.f32.mrb[0].mxu0
        %v1028 = vadd.f32 %v325, %v1027
        %v1029 = vpop.f32.mrb[0].mxu0
        %1030 = vmatprep.mubr.bf16.mxu0 0
        %1031 = vmatmul.mubr.bf16.gmra.mrb[0].mxu0 %v712
        %v1032 = vpop.f32.mrb[0].mxu0
        %v1033 = vadd.f32 %v325, %v1032
        %v1034 = vpop.f32.mrb[0].mxu0
        %v1035 = vpop.f32.mrb[0].mxu0
        %v1036 = vadd.f32 %v325, %v1035
        %v1037 = vpop.f32.mrb[0].mxu0
        %1038 = vmatprep.mubr.bf16.mxu0 0
        %1039 = vmatmul.mubr.bf16.gmra.mrb[0].mxu0 %v715
        %v1040 = vpop.f32.mrb[0].mxu0
        %v1041 = vadd.f32 %v325, %v1040
        %v1042 = vpop.f32.mrb[0].mxu0
        %v1043 = vpop.f32.mrb[0].mxu0
        %v1044 = vadd.f32 %v325, %v1043
        %v1045 = vpop.f32.mrb[0].mxu0
        %1046 = vmatprep.mubr.bf16.mxu0 0
        %1047 = vmatmul.mubr.bf16.gmra.mrb[0].mxu0 %v718
        %v1048 = vpop.f32.mrb[0].mxu0
        %v1049 = vadd.f32 %v325, %v1048
        %v1050 = vpop.f32.mrb[0].mxu0
        %v1051 = vpop.f32.mrb[0].mxu0
        %v1052 = vadd.f32 %v325, %v1051
        %v1053 = vpop.f32.mrb[0].mxu0
        %1054 = vmatprep.mubr.bf16.mxu0 0
        %1055 = vmatmul.mubr.bf16.gmra.mrb[0].mxu0 %v721
        %v1056 = vpop.f32.mrb[0].mxu0
        %v1057 = vadd.f32 %v325, %v1056
        %v1058 = vpop.f32.mrb[0].mxu0
        %v1059 = vpop.f32.mrb[0].mxu0
        %v1060 = vadd.f32 %v325, %v1059
        %v1061 = vpop.f32.mrb[0].mxu0
        %1062 = vmatprep.mubr.bf16.mxu0 0
        %1063 = vmatmul.mubr.bf16.gmra.mrb[0].mxu0 %v724
        %v1064 = vpop.f32.mrb[0].mxu0
        %v1065 = vadd.f32 %v325, %v1064
        %v1066 = vpop.f32.mrb[0].mxu0
        %v1067 = vpop.f32.mrb[0].mxu0
        %v1068 = vadd.f32 %v325, %v1067
        %v1069 = vpop.f32.mrb[0].mxu0
        %1070 = vmatprep.mubr.bf16.mxu0 0
        %1071 = vmatmul.mubr.bf16.gmra.mrb[0].mxu0 %v727
        %v1072 = vpop.f32.mrb[0].mxu0
        %v1073 = vadd.f32 %v325, %v1072
        %v1074 = vpop.f32.mrb[0].mxu0
        %v1075 = vpop.f32.mrb[0].mxu0
        %v1076 = vadd.f32 %v325, %v1075
        %v1077 = vpop.f32.mrb[0].mxu0
        %1078 = vmatprep.mubr.bf16.mxu0 0
        %1079 = vmatmul.mubr.bf16.gmra.mrb[0].mxu0 %v730
        %v1080 = vpop.f32.mrb[0].mxu0
        %v1081 = vadd.f32 %v325, %v1080
        %v1082 = vpop.f32.mrb[0].mxu0
        %v1083 = vpop.f32.mrb[0].mxu0
        %v1084 = vadd.f32 %v325, %v1083
        %v1085 = vpop.f32.mrb[0].mxu0
        %1086 = vmatprep.mubr.bf16.mxu0 0
        %1087 = vmatmul.mubr.bf16.gmra.mrb[0].mxu0 %v733
        %v1088 = vpop.f32.mrb[0].mxu0
        %v1089 = vadd.f32 %v325, %v1088
        %v1090 = vpop.f32.mrb[0].mxu0
        %v1091 = vpop.f32.mrb[0].mxu0
        %v1092 = vadd.f32 %v325, %v1091
        %v1093 = vpop.f32.mrb[0].mxu0
        %1094 = vmatprep.mubr.bf16.mxu0 0
        %1095 = vmatmul.mubr.bf16.gmra.mrb[0].mxu0 %v736
        %v1096 = vpop.f32.mrb[0].mxu0
        %v1097 = vadd.f32 %v325, %v1096
        %v1098 = vpop.f32.mrb[0].mxu0
        %v1099 = vpop.f32.mrb[0].mxu0
        %v1100 = vadd.f32 %v325, %v1099
        %v1101 = vpop.f32.mrb[0].mxu0
        %1102 = vmatprep.mubr.bf16.mxu0 0
        %1103 = vmatmul.mubr.bf16.gmra.mrb[0].mxu0 %v739
        %v1104 = vpop.f32.mrb[0].mxu0
        %v1105 = vadd.f32 %v325, %v1104
        %v1106 = vpop.f32.mrb[0].mxu0
        %v1107 = vpop.f32.mrb[0].mxu0
        %v1108 = vadd.f32 %v325, %v1107
        %v1109 = vpop.f32.mrb[0].mxu0
        %1110 = vmatprep.mubr.bf16.mxu0 0
        %1111 = vmatmul.mubr.bf16.gmra.mrb[0].mxu0 %v742
        %v1112 = vpop.f32.mrb[0].mxu0
        %v1113 = vadd.f32 %v325, %v1112
        %v1114 = vpop.f32.mrb[0].mxu0
        %v1115 = vpop.f32.mrb[0].mxu0
        %v1116 = vadd.f32 %v325, %v1115
        %v1117 = vpop.f32.mrb[0].mxu0
        %1118 = vmatprep.mubr.bf16.mxu0 0
        %1119 = vmatmul.mubr.bf16.gmra.mrb[0].mxu0 %v745
        %v1120 = vpop.f32.mrb[0].mxu0
        %v1121 = vadd.f32 %v325, %v1120
        %v1122 = vpop.f32.mrb[0].mxu0
        %v1123 = vpop.f32.mrb[0].mxu0
        %v1124 = vadd.f32 %v325, %v1123
        %v1125 = vpop.f32.mrb[0].mxu0
        %1126 = vmatprep.mubr.bf16.mxu0 0
        %1127 = vmatmul.mubr.bf16.gmra.mrb[0].mxu0 %v748
        %v1128 = vpop.f32.mrb[0].mxu0
        %v1129 = vadd.f32 %v325, %v1128
        %v1130 = vpop.f32.mrb[0].mxu0
        %v1131 = vpop.f32.mrb[0].mxu0
        %v1132 = vadd.f32 %v325, %v1131
        %v1133 = vpop.f32.mrb[0].mxu0
        %1134 = vmatprep.mubr.bf16.mxu0 0
        %1135 = vmatmul.mubr.bf16.gmra.mrb[0].mxu0 %v751
        %v1136 = vpop.f32.mrb[0].mxu0
        %v1137 = vadd.f32 %v325, %v1136
        %v1138 = vpop.f32.mrb[0].mxu0
        %v1139 = vpop.f32.mrb[0].mxu0
        %v1140 = vadd.f32 %v325, %v1139
        %v1141 = vpop.f32.mrb[0].mxu0
        %1142 = vmatprep.mubr.bf16.mxu0 0
        %1143 = vmatmul.mubr.bf16.gmra.mrb[0].mxu0 %v754
        %v1144 = vpop.f32.mrb[0].mxu0
        %v1145 = vadd.f32 %v325, %v1144
        %v1146 = vpop.f32.mrb[0].mxu0
        %v1147 = vpop.f32.mrb[0].mxu0
        %v1148 = vadd.f32 %v325, %v1147
        %v1149 = vpop.f32.mrb[0].mxu0
        %1150 = vmatprep.mubr.bf16.mxu0 0
        %1151 = vmatmul.mubr.bf16.gmra.mrb[0].mxu0 %v757
        %v1152 = vpop.f32.mrb[0].mxu0
        %v1153 = vadd.f32 %v325, %v1152
        %v1154 = vpop.f32.mrb[0].mxu0
        %v1155 = vpop.f32.mrb[0].mxu0
        %v1156 = vadd.f32 %v325, %v1155
        %v1157 = vpop.f32.mrb[0].mxu0
        %1158 = vmatprep.mubr.bf16.mxu0 0
        %1159 = vmatmul.mubr.bf16.gmra.mrb[0].mxu0 %v760
        %v1160 = vpop.f32.mrb[0].mxu0
        %v1161 = vadd.f32 %v325, %v1160
        %v1162 = vpop.f32.mrb[0].mxu0
        %v1163 = vpop.f32.mrb[0].mxu0
        %v1164 = vadd.f32 %v325, %v1163
        %v1165 = vpop.f32.mrb[0].mxu0
        %1166 = vmatprep.mubr.bf16.mxu0 0
        %1167 = vmatmul.mubr.bf16.gmra.mrb[0].mxu0 %v763
        %v1168 = vpop.f32.mrb[0].mxu0
        %v1169 = vadd.f32 %v325, %v1168
        %v1170 = vpop.f32.mrb[0].mxu0
        %v1171 = vpop.f32.mrb[0].mxu0
        %v1172 = vadd.f32 %v325, %v1171
        %v1173 = vpop.f32.mrb[0].mxu0
        %1174 = vmatprep.mubr.bf16.mxu0 0
        %1175 = vmatmul.mubr.bf16.gmra.mrb[0].mxu0 %v766
        %v1176 = vpop.f32.mrb[0].mxu0
        %v1177 = vadd.f32 %v325, %v1176
        %v1178 = vpop.f32.mrb[0].mxu0
        %v1179 = vpop.f32.mrb[0].mxu0
        %v1180 = vadd.f32 %v325, %v1179
        %v1181 = vpop.f32.mrb[0].mxu0
        %1182 = vmatprep.mubr.bf16.mxu0 0
        %1183 = vmatmul.mubr.bf16.gmra.mrb[0].mxu0 %v769
        %v1184 = vpop.f32.mrb[0].mxu0
        %v1185 = vadd.f32 %v325, %v1184
        %v1186 = vpop.f32.mrb[0].mxu0
        %v1187 = vpop.f32.mrb[0].mxu0
        %v1188 = vadd.f32 %v325, %v1187
        %v1189 = vpop.f32.mrb[0].mxu0
        %1190 = vmatprep.mubr.bf16.mxu0 0
        %1191 = vmatmul.mubr.bf16.gmra.mrb[0].mxu0 %v772
        %v1192 = vpop.f32.mrb[0].mxu0
        %v1193 = vadd.f32 %v325, %v1192
        %v1194 = vpop.f32.mrb[0].mxu0
        %v1195 = vpop.f32.mrb[0].mxu0
        %v1196 = vadd.f32 %v325, %v1195
        %v1197 = vpop.f32.mrb[0].mxu0
        %1198 = vmatprep.mubr.bf16.mxu0 0
        %1199 = vmatmul.mubr.bf16.gmra.mrb[0].mxu0 %v775
        %v1200 = vpop.f32.mrb[0].mxu0
        %v1201 = vadd.f32 %v325, %v1200
        %v1202 = vpop.f32.mrb[0].mxu0
        %v1203 = vpop.f32.mrb[0].mxu0
        %v1204 = vadd.f32 %v325, %v1203
        %v1205 = vpop.f32.mrb[0].mxu0
        %1206 = vmatprep.mubr.bf16.mxu0 0
        %1207 = vmatmul.mubr.bf16.gmra.mrb[0].mxu0 %v778
        %v1208 = vpop.f32.mrb[0].mxu0
        %v1209 = vadd.f32 %v325, %v1208
        %v1210 = vpop.f32.mrb[0].mxu0
        %v1211 = vpop.f32.mrb[0].mxu0
        %v1212 = vadd.f32 %v325, %v1211
        %v1213 = vpop.f32.mrb[0].mxu0
        %1214 = vmatprep.mubr.bf16.mxu0 0
        %1215 = vmatmul.mubr.bf16.gmra.mrb[0].mxu0 %v781
        %v1216 = vpop.f32.mrb[0].mxu0
        %v1217 = vadd.f32 %v325, %v1216
        %v1218 = vpop.f32.mrb[0].mxu0
        %v1219 = vpop.f32.mrb[0].mxu0
        %v1220 = vadd.f32 %v325, %v1219
        %v1221 = vpop.f32.mrb[0].mxu0
        %1222 = vmatprep.mubr.bf16.mxu0 0
        %1223 = vmatmul.mubr.bf16.gmra.mrb[0].mxu0 %v784
        %v1224 = vpop.f32.mrb[0].mxu0
        %v1225 = vadd.f32 %v325, %v1224
        %v1226 = vpop.f32.mrb[0].mxu0
        %v1227 = vpop.f32.mrb[0].mxu0
        %v1228 = vadd.f32 %v325, %v1227
        %v1229 = vpop.f32.mrb[0].mxu0
        %1230 = vmatprep.mubr.bf16.mxu0 0
        %1231 = vmatmul.mubr.bf16.gmra.mrb[0].mxu0 %v787
        %v1232 = vpop.f32.mrb[0].mxu0
        %v1233 = vadd.f32 %v325, %v1232
        %v1234 = vpop.f32.mrb[0].mxu0
        %v1235 = vpop.f32.mrb[0].mxu0
        %v1236 = vadd.f32 %v325, %v1235
        %v1237 = vpop.f32.mrb[0].mxu0
        %1238 = vmatprep.mubr.bf16.mxu0 0
        %1239 = vmatmul.mubr.bf16.gmra.mrb[0].mxu0 %v790
        %v1240 = vpop.f32.mrb[0].mxu0
        %v1241 = vadd.f32 %v325, %v1240
        %v1242 = vpop.f32.mrb[0].mxu0
        %v1243 = vpop.f32.mrb[0].mxu0
        %v1244 = vadd.f32 %v325, %v1243
        %v1245 = vpop.f32.mrb[0].mxu0
        %1246 = vmatprep.mubr.bf16.mxu0 0
        %1247 = vmatmul.mubr.bf16.gmra.mrb[0].mxu0 %v793
        %v1248 = vpop.f32.mrb[0].mxu0
        %v1249 = vadd.f32 %v325, %v1248
        %v1250 = vpop.f32.mrb[0].mxu0
        %v1251 = vpop.f32.mrb[0].mxu0
        %v1252 = vadd.f32 %v325, %v1251
        %v1253 = vpop.f32.mrb[0].mxu0
        %1254 = vmatprep.mubr.bf16.mxu0 0
        %1255 = vmatmul.mubr.bf16.gmra.mrb[0].mxu0 %v796
        %v1256 = vpop.f32.mrb[0].mxu0
        %v1257 = vadd.f32 %v325, %v1256
        %v1258 = vpop.f32.mrb[0].mxu0
        %v1259 = vpop.f32.mrb[0].mxu0
        %v1260 = vadd.f32 %v325, %v1259
        %v1261 = vpop.f32.mrb[0].mxu0
        %1262 = vmatprep.mubr.bf16.mxu0 0
        %1263 = vmatmul.mubr.bf16.gmra.mrb[0].mxu0 %v799
        %v1264 = vpop.f32.mrb[0].mxu0
        %v1265 = vadd.f32 %v325, %v1264
        %v1266 = vpop.f32.mrb[0].mxu0
        %v1267 = vpop.f32.mrb[0].mxu0
        %v1268 = vadd.f32 %v325, %v1267
        %v1269 = vpop.f32.mrb[0].mxu0
        %1270 = vmatprep.mubr.bf16.mxu0 0
        %1271 = vmatmul.mubr.bf16.gmra.mrb[0].mxu0 %v802
        %v1272 = vpop.f32.mrb[0].mxu0
        %v1273 = vadd.f32 %v325, %v1272
        %v1274 = vpop.f32.mrb[0].mxu0
        %v1275 = vpop.f32.mrb[0].mxu0
        %v1276 = vadd.f32 %v325, %v1275
        %v1277 = vpop.f32.mrb[0].mxu0
        %1278 = vmatprep.mubr.bf16.mxu0 0
        %1279 = vmatmul.mubr.bf16.gmra.mrb[0].mxu0 %v805
        %v1280 = vpop.f32.mrb[0].mxu0
        %v1281 = vadd.f32 %v325, %v1280
        %v1282 = vpop.f32.mrb[0].mxu0
        %v1283 = vpop.f32.mrb[0].mxu0
        %v1284 = vadd.f32 %v325, %v1283
        %v1285 = vpop.f32.mrb[0].mxu0
        %1286 = vmatprep.mubr.bf16.mxu0 0
        %1287 = vmatmul.mubr.bf16.gmra.mrb[0].mxu0 %v808
        %v1288 = vpop.f32.mrb[0].mxu0
        %v1289 = vadd.f32 %v325, %v1288
        %v1290 = vpop.f32.mrb[0].mxu0
        %v1291 = vpop.f32.mrb[0].mxu0
        %v1292 = vadd.f32 %v325, %v1291
        %v1293 = vpop.f32.mrb[0].mxu0
        %1294 = vmatprep.mubr.bf16.mxu0 0
        %1295 = vmatmul.mubr.bf16.gmra.mrb[0].mxu0 %v811
        %v1296 = vpop.f32.mrb[0].mxu0
        %v1297 = vadd.f32 %v325, %v1296
        %v1298 = vpop.f32.mrb[0].mxu0
        %v1299 = vpop.f32.mrb[0].mxu0
        %v1300 = vadd.f32 %v325, %v1299
        %v1301 = vpop.f32.mrb[0].mxu0
        %1302 = vmatprep.mubr.bf16.mxu0 0
        %1303 = vmatmul.mubr.bf16.gmra.mrb[0].mxu0 %v814
        %v1304 = vpop.f32.mrb[0].mxu0
        %v1305 = vadd.f32 %v325, %v1304
        %v1306 = vpop.f32.mrb[0].mxu0
        %v1307 = vpop.f32.mrb[0].mxu0
        %v1308 = vadd.f32 %v325, %v1307
        %v1309 = vpop.f32.mrb[0].mxu0
        %1310 = vmatprep.mubr.bf16.mxu0 0
        %1311 = vmatmul.mubr.bf16.gmra.mrb[0].mxu0 %v817
        %v1312 = vpop.f32.mrb[0].mxu0
        %v1313 = vadd.f32 %v325, %v1312
        %v1314 = vpop.f32.mrb[0].mxu0
        %v1315 = vpop.f32.mrb[0].mxu0
        %v1316 = vadd.f32 %v325, %v1315
        %v1317 = vpop.f32.mrb[0].mxu0
        %1318 = vmatprep.mubr.bf16.mxu0 0
        %1319 = vmatmul.mubr.bf16.gmra.mrb[0].mxu0 %v820
        %v1320 = vpop.f32.mrb[0].mxu0
        %v1321 = vadd.f32 %v325, %v1320
        %v1322 = vpop.f32.mrb[0].mxu0
        %v1323 = vpop.f32.mrb[0].mxu0
        %v1324 = vadd.f32 %v325, %v1323
        %v1325 = vpop.f32.mrb[0].mxu0
        %1326 = vmatprep.mubr.bf16.mxu0 0
        %1327 = vmatmul.mubr.bf16.gmra.mrb[0].mxu0 %v823
        %v1328 = vpop.f32.mrb[0].mxu0
        %v1329 = vadd.f32 %v325, %v1328
        %v1330 = vpop.f32.mrb[0].mxu0
        %v1331 = vpop.f32.mrb[0].mxu0
        %v1332 = vadd.f32 %v325, %v1331
        %v1333 = vpop.f32.mrb[0].mxu0
        %1334 = vmatprep.mubr.bf16.mxu0 0
        %1335 = vmatmul.mubr.bf16.gmra.mrb[0].mxu0 %v826
        %v1336 = vpop.f32.mrb[0].mxu0
        %v1337 = vadd.f32 %v325, %v1336
        %v1338 = vpop.f32.mrb[0].mxu0
        %v1339 = vpop.f32.mrb[0].mxu0
        %v1340 = vadd.f32 %v325, %v1339
        %v1341 = vpop.f32.mrb[0].mxu0
        %1342 = vmatprep.mubr.bf16.mxu0 0
        %1343 = vmatmul.mubr.bf16.gmra.mrb[0].mxu0 %v829
        %v1344 = vpop.f32.mrb[0].mxu0
        %v1345 = vadd.f32 %v325, %v1344
        %v1346 = vpop.f32.mrb[0].mxu0
        %v1347 = vpop.f32.mrb[0].mxu0
        %v1348 = vadd.f32 %v325, %v1347
        %v1349 = vpop.f32.mrb[0].mxu0
        %1350 = vmatprep.mubr.bf16.mxu0 0
        %1351 = vmatmul.mubr.bf16.gmra.mrb[0].mxu0 %v832
        %v1352 = vpop.f32.mrb[0].mxu0
        %v1353 = vadd.f32 %v325, %v1352
        %v1354 = vpop.f32.mrb[0].mxu0
        %v1355 = vpop.f32.mrb[0].mxu0
        %v1356 = vadd.f32 %v325, %v1355
        %v1357 = vpop.f32.mrb[0].mxu0
        %1358 = vmatprep.mubr.bf16.mxu0 0
        %1359 = vmatmul.mubr.bf16.gmra.mrb[0].mxu0 %v835
        %v1360 = vpop.f32.mrb[0].mxu0
        %v1361 = vadd.f32 %v325, %v1360
        %v1362 = vpop.f32.mrb[0].mxu0
        %v1363 = vpop.f32.mrb[0].mxu0
        %v1364 = vadd.f32 %v325, %v1363
        %v1365 = vpop.f32.mrb[0].mxu0
        %1366 = vmatprep.mubr.bf16.mxu0 0
        %1367 = vmatmul.mubr.bf16.gmra.mrb[0].mxu0 %v838
        %v1368 = vpop.f32.mrb[0].mxu0
        %v1369 = vadd.f32 %v325, %v1368
        %v1370 = vpop.f32.mrb[0].mxu0
        %v1371 = vpop.f32.mrb[0].mxu0
        %v1372 = vadd.f32 %v325, %v1371
        %v1373 = vpop.f32.mrb[0].mxu0
        %1374 = vmatprep.mubr.bf16.mxu0 0
        %1375 = vmatmul.mubr.bf16.gmra.mrb[0].mxu0 %v841
        %v1376 = vpop.f32.mrb[0].mxu0
        %v1377 = vadd.f32 %v325, %v1376
        %v1378 = vpop.f32.mrb[0].mxu0
        %v1379 = vpop.f32.mrb[0].mxu0
        %v1380 = vadd.f32 %v325, %v1379
        %v1381 = vpop.f32.mrb[0].mxu0
        %1382 = vmatprep.mubr.bf16.mxu0 0
        %1383 = vmatmul.mubr.bf16.gmra.mrb[0].mxu0 %v844
        %v1384 = vpop.f32.mrb[0].mxu0
        %v1385 = vadd.f32 %v325, %v1384
        %v1386 = vpop.f32.mrb[0].mxu0
        %v1387 = vpop.f32.mrb[0].mxu0
        %v1388 = vadd.f32 %v325, %v1387
        %v1389 = vpop.f32.mrb[0].mxu0
        %1390 = vdwg.mxu0
        %vm1391 = vcmp.ge.f32.partialorder %v881, 0.0
        %vm1392 = vcmp.ge.f32.partialorder %v884, 0.0
        %vm1393 = vcmp.ge.f32.partialorder %v889, 0.0
        %vm1394 = vcmp.ge.f32.partialorder %v892, 0.0
        %vm1395 = vcmp.ge.f32.partialorder %v897, 0.0
        %vm1396 = vcmp.ge.f32.partialorder %v900, 0.0
        %vm1397 = vcmp.ge.f32.partialorder %v905, 0.0
        %vm1398 = vcmp.ge.f32.partialorder %v908, 0.0
        %vm1399 = vcmp.ge.f32.partialorder %v913, 0.0
        %vm1400 = vcmp.ge.f32.partialorder %v916, 0.0
        %vm1401 = vcmp.ge.f32.partialorder %v921, 0.0
        %vm1402 = vcmp.ge.f32.partialorder %v924, 0.0
        %vm1403 = vcmp.ge.f32.partialorder %v929, 0.0
        %vm1404 = vcmp.ge.f32.partialorder %v932, 0.0
        %vm1405 = vcmp.ge.f32.partialorder %v937, 0.0
        %vm1406 = vcmp.ge.f32.partialorder %v940, 0.0
        %vm1407 = vcmp.ge.f32.partialorder %v945, 0.0
        %vm1408 = vcmp.ge.f32.partialorder %v948, 0.0
        %vm1409 = vcmp.ge.f32.partialorder %v953, 0.0
        %vm1410 = vcmp.ge.f32.partialorder %v956, 0.0
        %vm1411 = vcmp.ge.f32.partialorder %v961, 0.0
        %vm1412 = vcmp.ge.f32.partialorder %v964, 0.0
        %vm1413 = vcmp.ge.f32.partialorder %v969, 0.0
        %vm1414 = vcmp.ge.f32.partialorder %v972, 0.0
        %vm1415 = vcmp.ge.f32.partialorder %v977, 0.0
        %vm1416 = vcmp.ge.f32.partialorder %v980, 0.0
        %vm1417 = vcmp.ge.f32.partialorder %v985, 0.0
        %vm1418 = vcmp.ge.f32.partialorder %v988, 0.0
        %vm1419 = vcmp.ge.f32.partialorder %v993, 0.0
        %vm1420 = vcmp.ge.f32.partialorder %v996, 0.0
        %vm1421 = vcmp.ge.f32.partialorder %v1001, 0.0
        %vm1422 = vcmp.ge.f32.partialorder %v1004, 0.0
        %vm1423 = vcmp.ge.f32.partialorder %v1009, 0.0
        %vm1424 = vcmp.ge.f32.partialorder %v1012, 0.0
        %vm1425 = vcmp.ge.f32.partialorder %v1017, 0.0
        %vm1426 = vcmp.ge.f32.partialorder %v1020, 0.0
        %vm1427 = vcmp.ge.f32.partialorder %v1025, 0.0
        %vm1428 = vcmp.ge.f32.partialorder %v1028, 0.0
        %vm1429 = vcmp.ge.f32.partialorder %v1033, 0.0
        %vm1430 = vcmp.ge.f32.partialorder %v1036, 0.0
        %vm1431 = vcmp.ge.f32.partialorder %v1041, 0.0
        %vm1432 = vcmp.ge.f32.partialorder %v1044, 0.0
        %vm1433 = vcmp.ge.f32.partialorder %v1049, 0.0
        %vm1434 = vcmp.ge.f32.partialorder %v1052, 0.0
        %vm1435 = vcmp.ge.f32.partialorder %v1057, 0.0
        %vm1436 = vcmp.ge.f32.partialorder %v1060, 0.0
        %vm1437 = vcmp.ge.f32.partialorder %v1065, 0.0
        %vm1438 = vcmp.ge.f32.partialorder %v1068, 0.0
        %vm1439 = vcmp.ge.f32.partialorder %v1073, 0.0
        %vm1440 = vcmp.ge.f32.partialorder %v1076, 0.0
        %vm1441 = vcmp.ge.f32.partialorder %v1081, 0.0
        %vm1442 = vcmp.ge.f32.partialorder %v1084, 0.0
        %vm1443 = vcmp.ge.f32.partialorder %v1089, 0.0
        %vm1444 = vcmp.ge.f32.partialorder %v1092, 0.0
        %vm1445 = vcmp.ge.f32.partialorder %v1097, 0.0
        %vm1446 = vcmp.ge.f32.partialorder %v1100, 0.0
        %vm1447 = vcmp.ge.f32.partialorder %v1105, 0.0
        %vm1448 = vcmp.ge.f32.partialorder %v1108, 0.0
        %vm1449 = vcmp.ge.f32.partialorder %v1113, 0.0
        %vm1450 = vcmp.ge.f32.partialorder %v1116, 0.0
        %vm1451 = vcmp.ge.f32.partialorder %v1121, 0.0
        %vm1452 = vcmp.ge.f32.partialorder %v1124, 0.0
        %vm1453 = vcmp.ge.f32.partialorder %v1129, 0.0
        %vm1454 = vcmp.ge.f32.partialorder %v1132, 0.0
        %vm1455 = vcmp.ge.f32.partialorder %v1137, 0.0
        %vm1456 = vcmp.ge.f32.partialorder %v1140, 0.0
        %vm1457 = vcmp.ge.f32.partialorder %v1145, 0.0
        %vm1458 = vcmp.ge.f32.partialorder %v1148, 0.0
        %vm1459 = vcmp.ge.f32.partialorder %v1153, 0.0
        %vm1460 = vcmp.ge.f32.partialorder %v1156, 0.0
        %vm1461 = vcmp.ge.f32.partialorder %v1161, 0.0
        %vm1462 = vcmp.ge.f32.partialorder %v1164, 0.0
        %vm1463 = vcmp.ge.f32.partialorder %v1169, 0.0
        %vm1464 = vcmp.ge.f32.partialorder %v1172, 0.0
        %vm1465 = vcmp.ge.f32.partialorder %v1177, 0.0
        %vm1466 = vcmp.ge.f32.partialorder %v1180, 0.0
        %vm1467 = vcmp.ge.f32.partialorder %v1185, 0.0
        %vm1468 = vcmp.ge.f32.partialorder %v1188, 0.0
        %vm1469 = vcmp.ge.f32.partialorder %v1193, 0.0
        %vm1470 = vcmp.ge.f32.partialorder %v1196, 0.0
        %vm1471 = vcmp.ge.f32.partialorder %v1201, 0.0
        %vm1472 = vcmp.ge.f32.partialorder %v1204, 0.0
        %vm1473 = vcmp.ge.f32.partialorder %v1209, 0.0
        %vm1474 = vcmp.ge.f32.partialorder %v1212, 0.0
        %vm1475 = vcmp.ge.f32.partialorder %v1217, 0.0
        %vm1476 = vcmp.ge.f32.partialorder %v1220, 0.0
        %vm1477 = vcmp.ge.f32.partialorder %v1225, 0.0
        %vm1478 = vcmp.ge.f32.partialorder %v1228, 0.0
        %vm1479 = vcmp.ge.f32.partialorder %v1233, 0.0
        %vm1480 = vcmp.ge.f32.partialorder %v1236, 0.0
        %vm1481 = vcmp.ge.f32.partialorder %v1241, 0.0
        %vm1482 = vcmp.ge.f32.partialorder %v1244, 0.0
        %vm1483 = vcmp.ge.f32.partialorder %v1249, 0.0
        %vm1484 = vcmp.ge.f32.partialorder %v1252, 0.0
        %vm1485 = vcmp.ge.f32.partialorder %v1257, 0.0
        %vm1486 = vcmp.ge.f32.partialorder %v1260, 0.0
        %vm1487 = vcmp.ge.f32.partialorder %v1265, 0.0
        %vm1488 = vcmp.ge.f32.partialorder %v1268, 0.0
        %vm1489 = vcmp.ge.f32.partialorder %v1273, 0.0
        %vm1490 = vcmp.ge.f32.partialorder %v1276, 0.0
        %vm1491 = vcmp.ge.f32.partialorder %v1281, 0.0
        %vm1492 = vcmp.ge.f32.partialorder %v1284, 0.0
        %vm1493 = vcmp.ge.f32.partialorder %v1289, 0.0
        %vm1494 = vcmp.ge.f32.partialorder %v1292, 0.0
        %vm1495 = vcmp.ge.f32.partialorder %v1297, 0.0
        %vm1496 = vcmp.ge.f32.partialorder %v1300, 0.0
        %vm1497 = vcmp.ge.f32.partialorder %v1305, 0.0
        %vm1498 = vcmp.ge.f32.partialorder %v1308, 0.0
        %vm1499 = vcmp.ge.f32.partialorder %v1313, 0.0
        %vm1500 = vcmp.ge.f32.partialorder %v1316, 0.0
        %vm1501 = vcmp.ge.f32.partialorder %v1321, 0.0
        %vm1502 = vcmp.ge.f32.partialorder %v1324, 0.0
        %vm1503 = vcmp.ge.f32.partialorder %v1329, 0.0
        %vm1504 = vcmp.ge.f32.partialorder %v1332, 0.0
        %vm1505 = vcmp.ge.f32.partialorder %v1337, 0.0
        %vm1506 = vcmp.ge.f32.partialorder %v1340, 0.0
        %vm1507 = vcmp.ge.f32.partialorder %v1345, 0.0
        %vm1508 = vcmp.ge.f32.partialorder %v1348, 0.0
        %vm1509 = vcmp.ge.f32.partialorder %v1353, 0.0
        %vm1510 = vcmp.ge.f32.partialorder %v1356, 0.0
        %vm1511 = vcmp.ge.f32.partialorder %v1361, 0.0
        %vm1512 = vcmp.ge.f32.partialorder %v1364, 0.0
        %vm1513 = vcmp.ge.f32.partialorder %v1369, 0.0
        %vm1514 = vcmp.ge.f32.partialorder %v1372, 0.0
        %vm1515 = vcmp.ge.f32.partialorder %v1377, 0.0
        %vm1516 = vcmp.ge.f32.partialorder %v1380, 0.0
        %vm1517 = vcmp.ge.f32.partialorder %v1385, 0.0
        %vm1518 = vcmp.ge.f32.partialorder %v1388, 0.0
        %v1519 = vmul.f32 %v881, 0.2
        %v1520 = vmul.f32 %v884, 0.2
        %v1521 = vmul.f32 %v889, 0.2
        %v1522 = vmul.f32 %v892, 0.2
        %v1523 = vmul.f32 %v897, 0.2
        %v1524 = vmul.f32 %v900, 0.2
        %v1525 = vmul.f32 %v905, 0.2
        %v1526 = vmul.f32 %v908, 0.2
        %v1527 = vmul.f32 %v913, 0.2
        %v1528 = vmul.f32 %v916, 0.2
        %v1529 = vmul.f32 %v921, 0.2
        %v1530 = vmul.f32 %v924, 0.2
        %v1531 = vmul.f32 %v929, 0.2
        %v1532 = vmul.f32 %v932, 0.2
        %v1533 = vmul.f32 %v937, 0.2
        %v1534 = vmul.f32 %v940, 0.2
        %v1535 = vmul.f32 %v945, 0.2
        %v1536 = vmul.f32 %v948, 0.2
        %v1537 = vmul.f32 %v953, 0.2
        %v1538 = vmul.f32 %v956, 0.2
        %v1539 = vmul.f32 %v961, 0.2
        %v1540 = vmul.f32 %v964, 0.2
        %v1541 = vmul.f32 %v969, 0.2
        %v1542 = vmul.f32 %v972, 0.2
        %v1543 = vmul.f32 %v977, 0.2
        %v1544 = vmul.f32 %v980, 0.2
        %v1545 = vmul.f32 %v985, 0.2
        %v1546 = vmul.f32 %v988, 0.2
        %v1547 = vmul.f32 %v993, 0.2
        %v1548 = vmul.f32 %v996, 0.2
        %v1549 = vmul.f32 %v1001, 0.2
        %v1550 = vmul.f32 %v1004, 0.2
        %v1551 = vmul.f32 %v1009, 0.2
        %v1552 = vmul.f32 %v1012, 0.2
        %v1553 = vmul.f32 %v1017, 0.2
        %v1554 = vmul.f32 %v1020, 0.2
        %v1555 = vmul.f32 %v1025, 0.2
        %v1556 = vmul.f32 %v1028, 0.2
        %v1557 = vmul.f32 %v1033, 0.2
        %v1558 = vmul.f32 %v1036, 0.2
        %v1559 = vmul.f32 %v1041, 0.2
        %v1560 = vmul.f32 %v1044, 0.2
        %v1561 = vmul.f32 %v1049, 0.2
        %v1562 = vmul.f32 %v1052, 0.2
        %v1563 = vmul.f32 %v1057, 0.2
        %v1564 = vmul.f32 %v1060, 0.2
        %v1565 = vmul.f32 %v1065, 0.2
        %v1566 = vmul.f32 %v1068, 0.2
        %v1567 = vmul.f32 %v1073, 0.2
        %v1568 = vmul.f32 %v1076, 0.2
        %v1569 = vmul.f32 %v1081, 0.2
        %v1570 = vmul.f32 %v1084, 0.2
        %v1571 = vmul.f32 %v1089, 0.2
        %v1572 = vmul.f32 %v1092, 0.2
        %v1573 = vmul.f32 %v1097, 0.2
        %v1574 = vmul.f32 %v1100, 0.2
        %v1575 = vmul.f32 %v1105, 0.2
        %v1576 = vmul.f32 %v1108, 0.2
        %v1577 = vmul.f32 %v1113, 0.2
        %v1578 = vmul.f32 %v1116, 0.2
        %v1579 = vmul.f32 %v1121, 0.2
        %v1580 = vmul.f32 %v1124, 0.2
        %v1581 = vmul.f32 %v1129, 0.2
        %v1582 = vmul.f32 %v1132, 0.2
        %v1583 = vmul.f32 %v1137, 0.2
        %v1584 = vmul.f32 %v1140, 0.2
        %v1585 = vmul.f32 %v1145, 0.2
        %v1586 = vmul.f32 %v1148, 0.2
        %v1587 = vmul.f32 %v1153, 0.2
        %v1588 = vmul.f32 %v1156, 0.2
        %v1589 = vmul.f32 %v1161, 0.2
        %v1590 = vmul.f32 %v1164, 0.2
        %v1591 = vmul.f32 %v1169, 0.2
        %v1592 = vmul.f32 %v1172, 0.2
        %v1593 = vmul.f32 %v1177, 0.2
        %v1594 = vmul.f32 %v1180, 0.2
        %v1595 = vmul.f32 %v1185, 0.2
        %v1596 = vmul.f32 %v1188, 0.2
        %v1597 = vmul.f32 %v1193, 0.2
        %v1598 = vmul.f32 %v1196, 0.2
        %v1599 = vmul.f32 %v1201, 0.2
        %v1600 = vmul.f32 %v1204, 0.2
        %v1601 = vmul.f32 %v1209, 0.2
        %v1602 = vmul.f32 %v1212, 0.2
        %v1603 = vmul.f32 %v1217, 0.2
        %v1604 = vmul.f32 %v1220, 0.2
        %v1605 = vmul.f32 %v1225, 0.2
        %v1606 = vmul.f32 %v1228, 0.2
        %v1607 = vmul.f32 %v1233, 0.2
        %v1608 = vmul.f32 %v1236, 0.2
        %v1609 = vmul.f32 %v1241, 0.2
        %v1610 = vmul.f32 %v1244, 0.2
        %v1611 = vmul.f32 %v1249, 0.2
        %v1612 = vmul.f32 %v1252, 0.2
        %v1613 = vmul.f32 %v1257, 0.2
        %v1614 = vmul.f32 %v1260, 0.2
        %v1615 = vmul.f32 %v1265, 0.2
        %v1616 = vmul.f32 %v1268, 0.2
        %v1617 = vmul.f32 %v1273, 0.2
        %v1618 = vmul.f32 %v1276, 0.2
        %v1619 = vmul.f32 %v1281, 0.2
        %v1620 = vmul.f32 %v1284, 0.2
        %v1621 = vmul.f32 %v1289, 0.2
        %v1622 = vmul.f32 %v1292, 0.2
        %v1623 = vmul.f32 %v1297, 0.2
        %v1624 = vmul.f32 %v1300, 0.2
        %v1625 = vmul.f32 %v1305, 0.2
        %v1626 = vmul.f32 %v1308, 0.2
        %v1627 = vmul.f32 %v1313, 0.2
        %v1628 = vmul.f32 %v1316, 0.2
        %v1629 = vmul.f32 %v1321, 0.2
        %v1630 = vmul.f32 %v1324, 0.2
        %v1631 = vmul.f32 %v1329, 0.2
        %v1632 = vmul.f32 %v1332, 0.2
        %v1633 = vmul.f32 %v1337, 0.2
        %v1634 = vmul.f32 %v1340, 0.2
        %v1635 = vmul.f32 %v1345, 0.2
        %v1636 = vmul.f32 %v1348, 0.2
        %v1637 = vmul.f32 %v1353, 0.2
        %v1638 = vmul.f32 %v1356, 0.2
        %v1639 = vmul.f32 %v1361, 0.2
        %v1640 = vmul.f32 %v1364, 0.2
        %v1641 = vmul.f32 %v1369, 0.2
        %v1642 = vmul.f32 %v1372, 0.2
        %v1643 = vmul.f32 %v1377, 0.2
        %v1644 = vmul.f32 %v1380, 0.2
        %v1645 = vmul.f32 %v1385, 0.2
        %v1646 = vmul.f32 %v1388, 0.2
        %v1647 = vsel %vm1391, %v881, %v1519
        %v1648 = vsel %vm1392, %v884, %v1520
        %v1649 = vsel %vm1393, %v889, %v1521
        %v1650 = vsel %vm1394, %v892, %v1522
        %v1651 = vsel %vm1395, %v897, %v1523
        %v1652 = vsel %vm1396, %v900, %v1524
        %v1653 = vsel %vm1397, %v905, %v1525
        %v1654 = vsel %vm1398, %v908, %v1526
        %v1655 = vsel %vm1399, %v913, %v1527
        %v1656 = vsel %vm1400, %v916, %v1528
        %v1657 = vsel %vm1401, %v921, %v1529
        %v1658 = vsel %vm1402, %v924, %v1530
        %v1659 = vsel %vm1403, %v929, %v1531
        %v1660 = vsel %vm1404, %v932, %v1532
        %v1661 = vsel %vm1405, %v937, %v1533
        %v1662 = vsel %vm1406, %v940, %v1534
        %v1663 = vsel %vm1407, %v945, %v1535
        %v1664 = vsel %vm1408, %v948, %v1536
        %v1665 = vsel %vm1409, %v953, %v1537
        %v1666 = vsel %vm1410, %v956, %v1538
        %v1667 = vsel %vm1411, %v961, %v1539
        %v1668 = vsel %vm1412, %v964, %v1540
        %v1669 = vsel %vm1413, %v969, %v1541
        %v1670 = vsel %vm1414, %v972, %v1542
        %v1671 = vsel %vm1415, %v977, %v1543
        %v1672 = vsel %vm1416, %v980, %v1544
        %v1673 = vsel %vm1417, %v985, %v1545
        %v1674 = vsel %vm1418, %v988, %v1546
        %v1675 = vsel %vm1419, %v993, %v1547
        %v1676 = vsel %vm1420, %v996, %v1548
        %v1677 = vsel %vm1421, %v1001, %v1549
        %v1678 = vsel %vm1422, %v1004, %v1550
        %v1679 = vsel %vm1423, %v1009, %v1551
        %v1680 = vsel %vm1424, %v1012, %v1552
        %v1681 = vsel %vm1425, %v1017, %v1553
        %v1682 = vsel %vm1426, %v1020, %v1554
        %v1683 = vsel %vm1427, %v1025, %v1555
        %v1684 = vsel %vm1428, %v1028, %v1556
        %v1685 = vsel %vm1429, %v1033, %v1557
        %v1686 = vsel %vm1430, %v1036, %v1558
        %v1687 = vsel %vm1431, %v1041, %v1559
        %v1688 = vsel %vm1432, %v1044, %v1560
        %v1689 = vsel %vm1433, %v1049, %v1561
        %v1690 = vsel %vm1434, %v1052, %v1562
        %v1691 = vsel %vm1435, %v1057, %v1563
        %v1692 = vsel %vm1436, %v1060, %v1564
        %v1693 = vsel %vm1437, %v1065, %v1565
        %v1694 = vsel %vm1438, %v1068, %v1566
        %v1695 = vsel %vm1439, %v1073, %v1567
        %v1696 = vsel %vm1440, %v1076, %v1568
        %v1697 = vsel %vm1441, %v1081, %v1569
        %v1698 = vsel %vm1442, %v1084, %v1570
        %v1699 = vsel %vm1443, %v1089, %v1571
        %v1700 = vsel %vm1444, %v1092, %v1572
        %v1701 = vsel %vm1445, %v1097, %v1573
        %v1702 = vsel %vm1446, %v1100, %v1574
        %v1703 = vsel %vm1447, %v1105, %v1575
        %v1704 = vsel %vm1448, %v1108, %v1576
        %v1705 = vsel %vm1449, %v1113, %v1577
        %v1706 = vsel %vm1450, %v1116, %v1578
        %v1707 = vsel %vm1451, %v1121, %v1579
        %v1708 = vsel %vm1452, %v1124, %v1580
        %v1709 = vsel %vm1453, %v1129, %v1581
        %v1710 = vsel %vm1454, %v1132, %v1582
        %v1711 = vsel %vm1455, %v1137, %v1583
        %v1712 = vsel %vm1456, %v1140, %v1584
        %v1713 = vsel %vm1457, %v1145, %v1585
        %v1714 = vsel %vm1458, %v1148, %v1586
        %v1715 = vsel %vm1459, %v1153, %v1587
        %v1716 = vsel %vm1460, %v1156, %v1588
        %v1717 = vsel %vm1461, %v1161, %v1589
        %v1718 = vsel %vm1462, %v1164, %v1590
        %v1719 = vsel %vm1463, %v1169, %v1591
        %v1720 = vsel %vm1464, %v1172, %v1592
        %v1721 = vsel %vm1465, %v1177, %v1593
        %v1722 = vsel %vm1466, %v1180, %v1594
        %v1723 = vsel %vm1467, %v1185, %v1595
        %v1724 = vsel %vm1468, %v1188, %v1596
        %v1725 = vsel %vm1469, %v1193, %v1597
        %v1726 = vsel %vm1470, %v1196, %v1598
        %v1727 = vsel %vm1471, %v1201, %v1599
        %v1728 = vsel %vm1472, %v1204, %v1600
        %v1729 = vsel %vm1473, %v1209, %v1601
        %v1730 = vsel %vm1474, %v1212, %v1602
        %v1731 = vsel %vm1475, %v1217, %v1603
        %v1732 = vsel %vm1476, %v1220, %v1604
        %v1733 = vsel %vm1477, %v1225, %v1605
        %v1734 = vsel %vm1478, %v1228, %v1606
        %v1735 = vsel %vm1479, %v1233, %v1607
        %v1736 = vsel %vm1480, %v1236, %v1608
        %v1737 = vsel %vm1481, %v1241, %v1609
        %v1738 = vsel %vm1482, %v1244, %v1610
        %v1739 = vsel %vm1483, %v1249, %v1611
        %v1740 = vsel %vm1484, %v1252, %v1612
        %v1741 = vsel %vm1485, %v1257, %v1613
        %v1742 = vsel %vm1486, %v1260, %v1614
        %v1743 = vsel %vm1487, %v1265, %v1615
        %v1744 = vsel %vm1488, %v1268, %v1616
        %v1745 = vsel %vm1489, %v1273, %v1617
        %v1746 = vsel %vm1490, %v1276, %v1618
        %v1747 = vsel %vm1491, %v1281, %v1619
        %v1748 = vsel %vm1492, %v1284, %v1620
        %v1749 = vsel %vm1493, %v1289, %v1621
        %v1750 = vsel %vm1494, %v1292, %v1622
        %v1751 = vsel %vm1495, %v1297, %v1623
        %v1752 = vsel %vm1496, %v1300, %v1624
        %v1753 = vsel %vm1497, %v1305, %v1625
        %v1754 = vsel %vm1498, %v1308, %v1626
        %v1755 = vsel %vm1499, %v1313, %v1627
        %v1756 = vsel %vm1500, %v1316, %v1628
        %v1757 = vsel %vm1501, %v1321, %v1629
        %v1758 = vsel %vm1502, %v1324, %v1630
        %v1759 = vsel %vm1503, %v1329, %v1631
        %v1760 = vsel %vm1504, %v1332, %v1632
        %v1761 = vsel %vm1505, %v1337, %v1633
        %v1762 = vsel %vm1506, %v1340, %v1634
        %v1763 = vsel %vm1507, %v1345, %v1635
        %v1764 = vsel %vm1508, %v1348, %v1636
        %v1765 = vsel %vm1509, %v1353, %v1637
        %v1766 = vsel %vm1510, %v1356, %v1638
        %v1767 = vsel %vm1511, %v1361, %v1639
        %v1768 = vsel %vm1512, %v1364, %v1640
        %v1769 = vsel %vm1513, %v1369, %v1641
        %v1770 = vsel %vm1514, %v1372, %v1642
        %v1771 = vsel %vm1515, %v1377, %v1643
        %v1772 = vsel %vm1516, %v1380, %v1644
        %v1773 = vsel %vm1517, %v1385, %v1645
        %v1774 = vsel %vm1518, %v1388, %v1646
        %v1775 = vpack.c.bf16 %v1648, %v1647
        %v1776 = vpack.c.bf16 %v1650, %v1649
        %v1777 = vpack.c.bf16 %v1652, %v1651
        %v1778 = vpack.c.bf16 %v1654, %v1653
        %v1779 = vpack.c.bf16 %v1656, %v1655
        %v1780 = vpack.c.bf16 %v1658, %v1657
        %v1781 = vpack.c.bf16 %v1660, %v1659
        %v1782 = vpack.c.bf16 %v1662, %v1661
        %v1783 = vpack.c.bf16 %v1664, %v1663
        %v1784 = vpack.c.bf16 %v1666, %v1665
        %v1785 = vpack.c.bf16 %v1668, %v1667
        %v1786 = vpack.c.bf16 %v1670, %v1669
        %v1787 = vpack.c.bf16 %v1672, %v1671
        %v1788 = vpack.c.bf16 %v1674, %v1673
        %v1789 = vpack.c.bf16 %v1676, %v1675
        %v1790 = vpack.c.bf16 %v1678, %v1677
        %v1791 = vpack.c.bf16 %v1680, %v1679
        %v1792 = vpack.c.bf16 %v1682, %v1681
        %v1793 = vpack.c.bf16 %v1684, %v1683
        %v1794 = vpack.c.bf16 %v1686, %v1685
        %v1795 = vpack.c.bf16 %v1688, %v1687
        %v1796 = vpack.c.bf16 %v1690, %v1689
        %v1797 = vpack.c.bf16 %v1692, %v1691
        %v1798 = vpack.c.bf16 %v1694, %v1693
        %v1799 = vpack.c.bf16 %v1696, %v1695
        %v1800 = vpack.c.bf16 %v1698, %v1697
        %v1801 = vpack.c.bf16 %v1700, %v1699
        %v1802 = vpack.c.bf16 %v1702, %v1701
        %v1803 = vpack.c.bf16 %v1704, %v1703
        %v1804 = vpack.c.bf16 %v1706, %v1705
        %v1805 = vpack.c.bf16 %v1708, %v1707
        %v1806 = vpack.c.bf16 %v1710, %v1709
        %v1807 = vpack.c.bf16 %v1712, %v1711
        %v1808 = vpack.c.bf16 %v1714, %v1713
        %v1809 = vpack.c.bf16 %v1716, %v1715
        %v1810 = vpack.c.bf16 %v1718, %v1717
        %v1811 = vpack.c.bf16 %v1720, %v1719
        %v1812 = vpack.c.bf16 %v1722, %v1721
        %v1813 = vpack.c.bf16 %v1724, %v1723
        %v1814 = vpack.c.bf16 %v1726, %v1725
        %v1815 = vpack.c.bf16 %v1728, %v1727
        %v1816 = vpack.c.bf16 %v1730, %v1729
        %v1817 = vpack.c.bf16 %v1732, %v1731
        %v1818 = vpack.c.bf16 %v1734, %v1733
        %v1819 = vpack.c.bf16 %v1736, %v1735
        %v1820 = vpack.c.bf16 %v1738, %v1737
        %v1821 = vpack.c.bf16 %v1740, %v1739
        %v1822 = vpack.c.bf16 %v1742, %v1741
        %v1823 = vpack.c.bf16 %v1744, %v1743
        %v1824 = vpack.c.bf16 %v1746, %v1745
        %v1825 = vpack.c.bf16 %v1748, %v1747
        %v1826 = vpack.c.bf16 %v1750, %v1749
        %v1827 = vpack.c.bf16 %v1752, %v1751
        %v1828 = vpack.c.bf16 %v1754, %v1753
        %v1829 = vpack.c.bf16 %v1756, %v1755
        %v1830 = vpack.c.bf16 %v1758, %v1757
        %v1831 = vpack.c.bf16 %v1760, %v1759
        %v1832 = vpack.c.bf16 %v1762, %v1761
        %v1833 = vpack.c.bf16 %v1764, %v1763
        %v1834 = vpack.c.bf16 %v1766, %v1765
        %v1835 = vpack.c.bf16 %v1768, %v1767
        %v1836 = vpack.c.bf16 %v1770, %v1769
        %v1837 = vpack.c.bf16 %v1772, %v1771
        %v1838 = vpack.c.bf16 %v1774, %v1773
        %v1903 = vunpack.c.l.b16 %v1775
        %v1904 = vunpack.c.h.b16 %v1775
        %v1905 = vunpack.c.l.b16 %v1776
        %v1906 = vunpack.c.h.b16 %v1776
        %v1907 = vunpack.c.l.b16 %v1777
        %v1908 = vunpack.c.h.b16 %v1777
        %v1909 = vunpack.c.l.b16 %v1778
        %v1910 = vunpack.c.h.b16 %v1778
        %v1911 = vunpack.c.l.b16 %v1779
        %v1912 = vunpack.c.h.b16 %v1779
        %v1913 = vunpack.c.l.b16 %v1780
        %v1914 = vunpack.c.h.b16 %v1780
        %v1915 = vunpack.c.l.b16 %v1781
        %v1916 = vunpack.c.h.b16 %v1781
        %v1917 = vunpack.c.l.b16 %v1782
        %v1918 = vunpack.c.h.b16 %v1782
        %v1919 = vunpack.c.l.b16 %v1783
        %v1920 = vunpack.c.h.b16 %v1783
        %v1921 = vunpack.c.l.b16 %v1784
        %v1922 = vunpack.c.h.b16 %v1784
        %v1923 = vunpack.c.l.b16 %v1785
        %v1924 = vunpack.c.h.b16 %v1785
        %v1925 = vunpack.c.l.b16 %v1786
        %v1926 = vunpack.c.h.b16 %v1786
        %v1927 = vunpack.c.l.b16 %v1787
        %v1928 = vunpack.c.h.b16 %v1787
        %v1929 = vunpack.c.l.b16 %v1788
        %v1930 = vunpack.c.h.b16 %v1788
        %v1931 = vunpack.c.l.b16 %v1789
        %v1932 = vunpack.c.h.b16 %v1789
        %v1933 = vunpack.c.l.b16 %v1790
        %v1934 = vunpack.c.h.b16 %v1790
        %v1935 = vunpack.c.l.b16 %v1791
        %v1936 = vunpack.c.h.b16 %v1791
        %v1937 = vunpack.c.l.b16 %v1792
        %v1938 = vunpack.c.h.b16 %v1792
        %v1939 = vunpack.c.l.b16 %v1793
        %v1940 = vunpack.c.h.b16 %v1793
        %v1941 = vunpack.c.l.b16 %v1794
        %v1942 = vunpack.c.h.b16 %v1794
        %v1943 = vunpack.c.l.b16 %v1795
        %v1944 = vunpack.c.h.b16 %v1795
        %v1945 = vunpack.c.l.b16 %v1796
        %v1946 = vunpack.c.h.b16 %v1796
        %v1947 = vunpack.c.l.b16 %v1797
        %v1948 = vunpack.c.h.b16 %v1797
        %v1949 = vunpack.c.l.b16 %v1798
        %v1950 = vunpack.c.h.b16 %v1798
        %v1951 = vunpack.c.l.b16 %v1799
        %v1952 = vunpack.c.h.b16 %v1799
        %v1953 = vunpack.c.l.b16 %v1800
        %v1954 = vunpack.c.h.b16 %v1800
        %v1955 = vunpack.c.l.b16 %v1801
        %v1956 = vunpack.c.h.b16 %v1801
        %v1957 = vunpack.c.l.b16 %v1802
        %v1958 = vunpack.c.h.b16 %v1802
        %v1959 = vunpack.c.l.b16 %v1803
        %v1960 = vunpack.c.h.b16 %v1803
        %v1961 = vunpack.c.l.b16 %v1804
        %v1962 = vunpack.c.h.b16 %v1804
        %v1963 = vunpack.c.l.b16 %v1805
        %v1964 = vunpack.c.h.b16 %v1805
        %v1965 = vunpack.c.l.b16 %v1806
        %v1966 = vunpack.c.h.b16 %v1806
        %v1967 = vunpack.c.l.b16 %v1807
        %v1968 = vunpack.c.h.b16 %v1807
        %v1969 = vunpack.c.l.b16 %v1808
        %v1970 = vunpack.c.h.b16 %v1808
        %v1971 = vunpack.c.l.b16 %v1809
        %v1972 = vunpack.c.h.b16 %v1809
        %v1973 = vunpack.c.l.b16 %v1810
        %v1974 = vunpack.c.h.b16 %v1810
        %v1975 = vunpack.c.l.b16 %v1811
        %v1976 = vunpack.c.h.b16 %v1811
        %v1977 = vunpack.c.l.b16 %v1812
        %v1978 = vunpack.c.h.b16 %v1812
        %v1979 = vunpack.c.l.b16 %v1813
        %v1980 = vunpack.c.h.b16 %v1813
        %v1981 = vunpack.c.l.b16 %v1814
        %v1982 = vunpack.c.h.b16 %v1814
        %v1983 = vunpack.c.l.b16 %v1815
        %v1984 = vunpack.c.h.b16 %v1815
        %v1985 = vunpack.c.l.b16 %v1816
        %v1986 = vunpack.c.h.b16 %v1816
        %v1987 = vunpack.c.l.b16 %v1817
        %v1988 = vunpack.c.h.b16 %v1817
        %v1989 = vunpack.c.l.b16 %v1818
        %v1990 = vunpack.c.h.b16 %v1818
        %v1991 = vunpack.c.l.b16 %v1819
        %v1992 = vunpack.c.h.b16 %v1819
        %v1993 = vunpack.c.l.b16 %v1820
        %v1994 = vunpack.c.h.b16 %v1820
        %v1995 = vunpack.c.l.b16 %v1821
        %v1996 = vunpack.c.h.b16 %v1821
        %v1997 = vunpack.c.l.b16 %v1822
        %v1998 = vunpack.c.h.b16 %v1822
        %v1999 = vunpack.c.l.b16 %v1823
        %v2000 = vunpack.c.h.b16 %v1823
        %v2001 = vunpack.c.l.b16 %v1824
        %v2002 = vunpack.c.h.b16 %v1824
        %v2003 = vunpack.c.l.b16 %v1825
        %v2004 = vunpack.c.h.b16 %v1825
        %v2005 = vunpack.c.l.b16 %v1826
        %v2006 = vunpack.c.h.b16 %v1826
        %v2007 = vunpack.c.l.b16 %v1827
        %v2008 = vunpack.c.h.b16 %v1827
        %v2009 = vunpack.c.l.b16 %v1828
        %v2010 = vunpack.c.h.b16 %v1828
        %v2011 = vunpack.c.l.b16 %v1829
        %v2012 = vunpack.c.h.b16 %v1829
        %v2013 = vunpack.c.l.b16 %v1830
        %v2014 = vunpack.c.h.b16 %v1830
        %v2015 = vunpack.c.l.b16 %v1831
        %v2016 = vunpack.c.h.b16 %v1831
        %v2017 = vunpack.c.l.b16 %v1832
        %v2018 = vunpack.c.h.b16 %v1832
        %v2019 = vunpack.c.l.b16 %v1833
        %v2020 = vunpack.c.h.b16 %v1833
        %v2021 = vunpack.c.l.b16 %v1834
        %v2022 = vunpack.c.h.b16 %v1834
        %v2023 = vunpack.c.l.b16 %v1835
        %v2024 = vunpack.c.h.b16 %v1835
        %v2025 = vunpack.c.l.b16 %v1836
        %v2026 = vunpack.c.h.b16 %v1836
        %v2027 = vunpack.c.l.b16 %v1837
        %v2028 = vunpack.c.h.b16 %v1837
        %v2029 = vunpack.c.l.b16 %v1838
        %v2030 = vunpack.c.h.b16 %v1838
        %v2031 = vpack.c.b16 %v1903, %v1903
        %v2032 = vpack.c.b16 %v1904, %v1904
        %v2033 = vpack.c.b16 %v1905, %v1905
        %v2034 = vpack.c.b16 %v1906, %v1906
        %v2035 = vpack.c.b16 %v1907, %v1907
        %v2036 = vpack.c.b16 %v1908, %v1908
        %v2037 = vpack.c.b16 %v1909, %v1909
        %v2038 = vpack.c.b16 %v1910, %v1910
        %v2039 = vpack.c.b16 %v1911, %v1911
        %v2040 = vpack.c.b16 %v1912, %v1912
        %v2041 = vpack.c.b16 %v1913, %v1913
        %v2042 = vpack.c.b16 %v1914, %v1914
        %v2043 = vpack.c.b16 %v1915, %v1915
        %v2044 = vpack.c.b16 %v1916, %v1916
        %v2045 = vpack.c.b16 %v1917, %v1917
        %v2046 = vpack.c.b16 %v1918, %v1918
        %v2047 = vpack.c.b16 %v1919, %v1919
        %v2048 = vpack.c.b16 %v1920, %v1920
        %v2049 = vpack.c.b16 %v1921, %v1921
        %v2050 = vpack.c.b16 %v1922, %v1922
        %v2051 = vpack.c.b16 %v1923, %v1923
        %v2052 = vpack.c.b16 %v1924, %v1924
        %v2053 = vpack.c.b16 %v1925, %v1925
        %v2054 = vpack.c.b16 %v1926, %v1926
        %v2055 = vpack.c.b16 %v1927, %v1927
        %v2056 = vpack.c.b16 %v1928, %v1928
        %v2057 = vpack.c.b16 %v1929, %v1929
        %v2058 = vpack.c.b16 %v1930, %v1930
        %v2059 = vpack.c.b16 %v1931, %v1931
        %v2060 = vpack.c.b16 %v1932, %v1932
        %v2061 = vpack.c.b16 %v1933, %v1933
        %v2062 = vpack.c.b16 %v1934, %v1934
        %v2063 = vpack.c.b16 %v1935, %v1935
        %v2064 = vpack.c.b16 %v1936, %v1936
        %v2065 = vpack.c.b16 %v1937, %v1937
        %v2066 = vpack.c.b16 %v1938, %v1938
        %v2067 = vpack.c.b16 %v1939, %v1939
        %v2068 = vpack.c.b16 %v1940, %v1940
        %v2069 = vpack.c.b16 %v1941, %v1941
        %v2070 = vpack.c.b16 %v1942, %v1942
        %v2071 = vpack.c.b16 %v1943, %v1943
        %v2072 = vpack.c.b16 %v1944, %v1944
        %v2073 = vpack.c.b16 %v1945, %v1945
        %v2074 = vpack.c.b16 %v1946, %v1946
        %v2075 = vpack.c.b16 %v1947, %v1947
        %v2076 = vpack.c.b16 %v1948, %v1948
        %v2077 = vpack.c.b16 %v1949, %v1949
        %v2078 = vpack.c.b16 %v1950, %v1950
        %v2079 = vpack.c.b16 %v1951, %v1951
        %v2080 = vpack.c.b16 %v1952, %v1952
        %v2081 = vpack.c.b16 %v1953, %v1953
        %v2082 = vpack.c.b16 %v1954, %v1954
        %v2083 = vpack.c.b16 %v1955, %v1955
        %v2084 = vpack.c.b16 %v1956, %v1956
        %v2085 = vpack.c.b16 %v1957, %v1957
        %v2086 = vpack.c.b16 %v1958, %v1958
        %v2087 = vpack.c.b16 %v1959, %v1959
        %v2088 = vpack.c.b16 %v1960, %v1960
        %v2089 = vpack.c.b16 %v1961, %v1961
        %v2090 = vpack.c.b16 %v1962, %v1962
        %v2091 = vpack.c.b16 %v1963, %v1963
        %v2092 = vpack.c.b16 %v1964, %v1964
        %v2093 = vpack.c.b16 %v1965, %v1965
        %v2094 = vpack.c.b16 %v1966, %v1966
        %v2095 = vpack.c.b16 %v1967, %v1967
        %v2096 = vpack.c.b16 %v1968, %v1968
        %v2097 = vpack.c.b16 %v1969, %v1969
        %v2098 = vpack.c.b16 %v1970, %v1970
        %v2099 = vpack.c.b16 %v1971, %v1971
        %v2100 = vpack.c.b16 %v1972, %v1972
        %v2101 = vpack.c.b16 %v1973, %v1973
        %v2102 = vpack.c.b16 %v1974, %v1974
        %v2103 = vpack.c.b16 %v1975, %v1975
        %v2104 = vpack.c.b16 %v1976, %v1976
        %v2105 = vpack.c.b16 %v1977, %v1977
        %v2106 = vpack.c.b16 %v1978, %v1978
        %v2107 = vpack.c.b16 %v1979, %v1979
        %v2108 = vpack.c.b16 %v1980, %v1980
        %v2109 = vpack.c.b16 %v1981, %v1981
        %v2110 = vpack.c.b16 %v1982, %v1982
        %v2111 = vpack.c.b16 %v1983, %v1983
        %v2112 = vpack.c.b16 %v1984, %v1984
        %v2113 = vpack.c.b16 %v1985, %v1985
        %v2114 = vpack.c.b16 %v1986, %v1986
        %v2115 = vpack.c.b16 %v1987, %v1987
        %v2116 = vpack.c.b16 %v1988, %v1988
        %v2117 = vpack.c.b16 %v1989, %v1989
        %v2118 = vpack.c.b16 %v1990, %v1990
        %v2119 = vpack.c.b16 %v1991, %v1991
        %v2120 = vpack.c.b16 %v1992, %v1992
        %v2121 = vpack.c.b16 %v1993, %v1993
        %v2122 = vpack.c.b16 %v1994, %v1994
        %v2123 = vpack.c.b16 %v1995, %v1995
        %v2124 = vpack.c.b16 %v1996, %v1996
        %v2125 = vpack.c.b16 %v1997, %v1997
        %v2126 = vpack.c.b16 %v1998, %v1998
        %v2127 = vpack.c.b16 %v1999, %v1999
        %v2128 = vpack.c.b16 %v2000, %v2000
        %v2129 = vpack.c.b16 %v2001, %v2001
        %v2130 = vpack.c.b16 %v2002, %v2002
        %v2131 = vpack.c.b16 %v2003, %v2003
        %v2132 = vpack.c.b16 %v2004, %v2004
        %v2133 = vpack.c.b16 %v2005, %v2005
        %v2134 = vpack.c.b16 %v2006, %v2006
        %v2135 = vpack.c.b16 %v2007, %v2007
        %v2136 = vpack.c.b16 %v2008, %v2008
        %v2137 = vpack.c.b16 %v2009, %v2009
        %v2138 = vpack.c.b16 %v2010, %v2010
        %v2139 = vpack.c.b16 %v2011, %v2011
        %v2140 = vpack.c.b16 %v2012, %v2012
        %v2141 = vpack.c.b16 %v2013, %v2013
        %v2142 = vpack.c.b16 %v2014, %v2014
        %v2143 = vpack.c.b16 %v2015, %v2015
        %v2144 = vpack.c.b16 %v2016, %v2016
        %v2145 = vpack.c.b16 %v2017, %v2017
        %v2146 = vpack.c.b16 %v2018, %v2018
        %v2147 = vpack.c.b16 %v2019, %v2019
        %v2148 = vpack.c.b16 %v2020, %v2020
        %v2149 = vpack.c.b16 %v2021, %v2021
        %v2150 = vpack.c.b16 %v2022, %v2022
        %v2151 = vpack.c.b16 %v2023, %v2023
        %v2152 = vpack.c.b16 %v2024, %v2024
        %v2153 = vpack.c.b16 %v2025, %v2025
        %v2154 = vpack.c.b16 %v2026, %v2026
        %v2155 = vpack.c.b16 %v2027, %v2027
        %v2156 = vpack.c.b16 %v2028, %v2028
        %v2157 = vpack.c.b16 %v2029, %v2029
        %v2158 = vpack.c.b16 %v2030, %v2030
        %vm2287 = vcmask 125952
        %2288 = vst.msk [vmem:[%s187] sm:$0xf] %vm2287, %v2031
        %2289 = vst.msk [vmem:[%s187 + $0x4] sm:$0xf] %vm2287, %v2032
        %2290 = vst.msk [vmem:[%s187 + $0x8] sm:$0xf] %vm2287, %v2033
        %2291 = vst.msk [vmem:[%s187 + $0xc] sm:$0xf] %vm2287, %v2034
        %2292 = vst.msk [vmem:[%s187 + $0x10] sm:$0xf] %vm2287, %v2035
        %2293 = vst.msk [vmem:[%s187 + $0x14] sm:$0xf] %vm2287, %v2036
        %2294 = vst.msk [vmem:[%s187 + $0x18] sm:$0xf] %vm2287, %v2037
        %2295 = vst.msk [vmem:[%s187 + $0x1c] sm:$0xf] %vm2287, %v2038
        %2296 = vst.msk [vmem:[%s187 + $0x20] sm:$0xf] %vm2287, %v2039
        %2297 = vst.msk [vmem:[%s187 + $0x24] sm:$0xf] %vm2287, %v2040
        %2298 = vst.msk [vmem:[%s187 + $0x28] sm:$0xf] %vm2287, %v2041
        %2299 = vst.msk [vmem:[%s187 + $0x2c] sm:$0xf] %vm2287, %v2042
        %2300 = vst.msk [vmem:[%s187 + $0x30] sm:$0xf] %vm2287, %v2043
        %2301 = vst.msk [vmem:[%s187 + $0x34] sm:$0xf] %vm2287, %v2044
        %2302 = vst.msk [vmem:[%s187 + $0x38] sm:$0xf] %vm2287, %v2045
        %2303 = vst.msk [vmem:[%s187 + $0x3c] sm:$0xf] %vm2287, %v2046
        %2304 = vst.msk [vmem:[%s187 + $0x40] sm:$0xf] %vm2287, %v2047
        %2305 = vst.msk [vmem:[%s187 + $0x44] sm:$0xf] %vm2287, %v2048
        %2306 = vst.msk [vmem:[%s187 + $0x48] sm:$0xf] %vm2287, %v2049
        %2307 = vst.msk [vmem:[%s187 + $0x4c] sm:$0xf] %vm2287, %v2050
        %2308 = vst.msk [vmem:[%s187 + $0x50] sm:$0xf] %vm2287, %v2051
        %2309 = vst.msk [vmem:[%s187 + $0x54] sm:$0xf] %vm2287, %v2052
        %2310 = vst.msk [vmem:[%s187 + $0x58] sm:$0xf] %vm2287, %v2053
        %2311 = vst.msk [vmem:[%s187 + $0x5c] sm:$0xf] %vm2287, %v2054
        %2312 = vst.msk [vmem:[%s187 + $0x60] sm:$0xf] %vm2287, %v2055
        %2313 = vst.msk [vmem:[%s187 + $0x64] sm:$0xf] %vm2287, %v2056
        %2314 = vst.msk [vmem:[%s187 + $0x68] sm:$0xf] %vm2287, %v2057
        %2315 = vst.msk [vmem:[%s187 + $0x6c] sm:$0xf] %vm2287, %v2058
        %2316 = vst.msk [vmem:[%s187 + $0x70] sm:$0xf] %vm2287, %v2059
        %2317 = vst.msk [vmem:[%s187 + $0x74] sm:$0xf] %vm2287, %v2060
        %2318 = vst.msk [vmem:[%s187 + $0x78] sm:$0xf] %vm2287, %v2061
        %2319 = vst.msk [vmem:[%s187 + $0x7c] sm:$0xf] %vm2287, %v2062
        %2320 = vst.msk [vmem:[%s187 + $0x80] sm:$0xf] %vm2287, %v2063
        %2321 = vst.msk [vmem:[%s187 + $0x84] sm:$0xf] %vm2287, %v2064
        %2322 = vst.msk [vmem:[%s187 + $0x88] sm:$0xf] %vm2287, %v2065
        %2323 = vst.msk [vmem:[%s187 + $0x8c] sm:$0xf] %vm2287, %v2066
        %2324 = vst.msk [vmem:[%s187 + $0x90] sm:$0xf] %vm2287, %v2067
        %2325 = vst.msk [vmem:[%s187 + $0x94] sm:$0xf] %vm2287, %v2068
        %2326 = vst.msk [vmem:[%s187 + $0x98] sm:$0xf] %vm2287, %v2069
        %2327 = vst.msk [vmem:[%s187 + $0x9c] sm:$0xf] %vm2287, %v2070
        %2328 = vst.msk [vmem:[%s187 + $0xa0] sm:$0xf] %vm2287, %v2071
        %2329 = vst.msk [vmem:[%s187 + $0xa4] sm:$0xf] %vm2287, %v2072
        %2330 = vst.msk [vmem:[%s187 + $0xa8] sm:$0xf] %vm2287, %v2073
        %2331 = vst.msk [vmem:[%s187 + $0xac] sm:$0xf] %vm2287, %v2074
        %2332 = vst.msk [vmem:[%s187 + $0xb0] sm:$0xf] %vm2287, %v2075
        %2333 = vst.msk [vmem:[%s187 + $0xb4] sm:$0xf] %vm2287, %v2076
        %2334 = vst.msk [vmem:[%s187 + $0xb8] sm:$0xf] %vm2287, %v2077
        %2335 = vst.msk [vmem:[%s187 + $0xbc] sm:$0xf] %vm2287, %v2078
        %2336 = vst.msk [vmem:[%s187 + $0xc0] sm:$0xf] %vm2287, %v2079
        %2337 = vst.msk [vmem:[%s187 + $0xc4] sm:$0xf] %vm2287, %v2080
        %2338 = vst.msk [vmem:[%s187 + $0xc8] sm:$0xf] %vm2287, %v2081
        %2339 = vst.msk [vmem:[%s187 + $0xcc] sm:$0xf] %vm2287, %v2082
        %2340 = vst.msk [vmem:[%s187 + $0xd0] sm:$0xf] %vm2287, %v2083
        %2341 = vst.msk [vmem:[%s187 + $0xd4] sm:$0xf] %vm2287, %v2084
        %2342 = vst.msk [vmem:[%s187 + $0xd8] sm:$0xf] %vm2287, %v2085
        %2343 = vst.msk [vmem:[%s187 + $0xdc] sm:$0xf] %vm2287, %v2086
        %2344 = vst.msk [vmem:[%s187 + $0xe0] sm:$0xf] %vm2287, %v2087
        %2345 = vst.msk [vmem:[%s187 + $0xe4] sm:$0xf] %vm2287, %v2088
        %2346 = vst.msk [vmem:[%s187 + $0xe8] sm:$0xf] %vm2287, %v2089
        %2347 = vst.msk [vmem:[%s187 + $0xec] sm:$0xf] %vm2287, %v2090
        %2348 = vst.msk [vmem:[%s187 + $0xf0] sm:$0xf] %vm2287, %v2091
        %2349 = vst.msk [vmem:[%s187 + $0xf4] sm:$0xf] %vm2287, %v2092
        %2350 = vst.msk [vmem:[%s187 + $0xf8] sm:$0xf] %vm2287, %v2093
        %2351 = vst.msk [vmem:[%s187 + $0xfc] sm:$0xf] %vm2287, %v2094
        %2352 = vst.msk [vmem:[%s187 + $0x100] sm:$0xf] %vm2287, %v2095
        %2353 = vst.msk [vmem:[%s187 + $0x104] sm:$0xf] %vm2287, %v2096
        %2354 = vst.msk [vmem:[%s187 + $0x108] sm:$0xf] %vm2287, %v2097
        %2355 = vst.msk [vmem:[%s187 + $0x10c] sm:$0xf] %vm2287, %v2098
        %2356 = vst.msk [vmem:[%s187 + $0x110] sm:$0xf] %vm2287, %v2099
        %2357 = vst.msk [vmem:[%s187 + $0x114] sm:$0xf] %vm2287, %v2100
        %2358 = vst.msk [vmem:[%s187 + $0x118] sm:$0xf] %vm2287, %v2101
        %2359 = vst.msk [vmem:[%s187 + $0x11c] sm:$0xf] %vm2287, %v2102
        %2360 = vst.msk [vmem:[%s187 + $0x120] sm:$0xf] %vm2287, %v2103
        %2361 = vst.msk [vmem:[%s187 + $0x124] sm:$0xf] %vm2287, %v2104
        %2362 = vst.msk [vmem:[%s187 + $0x128] sm:$0xf] %vm2287, %v2105
        %2363 = vst.msk [vmem:[%s187 + $0x12c] sm:$0xf] %vm2287, %v2106
        %2364 = vst.msk [vmem:[%s187 + $0x130] sm:$0xf] %vm2287, %v2107
        %2365 = vst.msk [vmem:[%s187 + $0x134] sm:$0xf] %vm2287, %v2108
        %2366 = vst.msk [vmem:[%s187 + $0x138] sm:$0xf] %vm2287, %v2109
        %2367 = vst.msk [vmem:[%s187 + $0x13c] sm:$0xf] %vm2287, %v2110
        %2368 = vst.msk [vmem:[%s187 + $0x140] sm:$0xf] %vm2287, %v2111
        %2369 = vst.msk [vmem:[%s187 + $0x144] sm:$0xf] %vm2287, %v2112
        %2370 = vst.msk [vmem:[%s187 + $0x148] sm:$0xf] %vm2287, %v2113
        %2371 = vst.msk [vmem:[%s187 + $0x14c] sm:$0xf] %vm2287, %v2114
        %2372 = vst.msk [vmem:[%s187 + $0x150] sm:$0xf] %vm2287, %v2115
        %2373 = vst.msk [vmem:[%s187 + $0x154] sm:$0xf] %vm2287, %v2116
        %2374 = vst.msk [vmem:[%s187 + $0x158] sm:$0xf] %vm2287, %v2117
        %2375 = vst.msk [vmem:[%s187 + $0x15c] sm:$0xf] %vm2287, %v2118
        %2376 = vst.msk [vmem:[%s187 + $0x160] sm:$0xf] %vm2287, %v2119
        %2377 = vst.msk [vmem:[%s187 + $0x164] sm:$0xf] %vm2287, %v2120
        %2378 = vst.msk [vmem:[%s187 + $0x168] sm:$0xf] %vm2287, %v2121
        %2379 = vst.msk [vmem:[%s187 + $0x16c] sm:$0xf] %vm2287, %v2122
        %2380 = vst.msk [vmem:[%s187 + $0x170] sm:$0xf] %vm2287, %v2123
        %2381 = vst.msk [vmem:[%s187 + $0x174] sm:$0xf] %vm2287, %v2124
        %2382 = vst.msk [vmem:[%s187 + $0x178] sm:$0xf] %vm2287, %v2125
        %2383 = vst.msk [vmem:[%s187 + $0x17c] sm:$0xf] %vm2287, %v2126
        %2384 = vst.msk [vmem:[%s187 + $0x180] sm:$0xf] %vm2287, %v2127
        %2385 = vst.msk [vmem:[%s187 + $0x184] sm:$0xf] %vm2287, %v2128
        %2386 = vst.msk [vmem:[%s187 + $0x188] sm:$0xf] %vm2287, %v2129
        %2387 = vst.msk [vmem:[%s187 + $0x18c] sm:$0xf] %vm2287, %v2130
        %2388 = vst.msk [vmem:[%s187 + $0x190] sm:$0xf] %vm2287, %v2131
        %2389 = vst.msk [vmem:[%s187 + $0x194] sm:$0xf] %vm2287, %v2132
        %2390 = vst.msk [vmem:[%s187 + $0x198] sm:$0xf] %vm2287, %v2133
        %2391 = vst.msk [vmem:[%s187 + $0x19c] sm:$0xf] %vm2287, %v2134
        %2392 = vst.msk [vmem:[%s187 + $0x1a0] sm:$0xf] %vm2287, %v2135
        %2393 = vst.msk [vmem:[%s187 + $0x1a4] sm:$0xf] %vm2287, %v2136
        %2394 = vst.msk [vmem:[%s187 + $0x1a8] sm:$0xf] %vm2287, %v2137
        %2395 = vst.msk [vmem:[%s187 + $0x1ac] sm:$0xf] %vm2287, %v2138
        %2396 = vst.msk [vmem:[%s187 + $0x1b0] sm:$0xf] %vm2287, %v2139
        %2397 = vst.msk [vmem:[%s187 + $0x1b4] sm:$0xf] %vm2287, %v2140
        %2398 = vst.msk [vmem:[%s187 + $0x1b8] sm:$0xf] %vm2287, %v2141
        %2399 = vst.msk [vmem:[%s187 + $0x1bc] sm:$0xf] %vm2287, %v2142
        %2400 = vst.msk [vmem:[%s187 + $0x1c0] sm:$0xf] %vm2287, %v2143
        %2401 = vst.msk [vmem:[%s187 + $0x1c4] sm:$0xf] %vm2287, %v2144
        %2402 = vst.msk [vmem:[%s187 + $0x1c8] sm:$0xf] %vm2287, %v2145
        %2403 = vst.msk [vmem:[%s187 + $0x1cc] sm:$0xf] %vm2287, %v2146
        %2404 = vst.msk [vmem:[%s187 + $0x1d0] sm:$0xf] %vm2287, %v2147
        %2405 = vst.msk [vmem:[%s187 + $0x1d4] sm:$0xf] %vm2287, %v2148
        %2406 = vst.msk [vmem:[%s187 + $0x1d8] sm:$0xf] %vm2287, %v2149
        %2407 = vst.msk [vmem:[%s187 + $0x1dc] sm:$0xf] %vm2287, %v2150
        %2408 = vst.msk [vmem:[%s187 + $0x1e0] sm:$0xf] %vm2287, %v2151
        %2409 = vst.msk [vmem:[%s187 + $0x1e4] sm:$0xf] %vm2287, %v2152
        %2410 = vst.msk [vmem:[%s187 + $0x1e8] sm:$0xf] %vm2287, %v2153
        %2411 = vst.msk [vmem:[%s187 + $0x1ec] sm:$0xf] %vm2287, %v2154
        %2412 = vst.msk [vmem:[%s187 + $0x1f0] sm:$0xf] %vm2287, %v2155
        %2413 = vst.msk [vmem:[%s187 + $0x1f4] sm:$0xf] %vm2287, %v2156
        %2414 = vst.msk [vmem:[%s187 + $0x1f8] sm:$0xf] %vm2287, %v2157
        %2415 = vst.msk [vmem:[%s187 + $0x1fc] sm:$0xf] %vm2287, %v2158
        %s2416 = smul.u32 128, %s15
        %p2417 = scmp.lt.s32.totalorder %s2416, 255
        %s2418 = scalar_select %p2417, %s2416, 255
        %s2419 = smul.addr %s2418, 4
        %s2420 = scalar_lea.vmem %s3, %s2419
        // Predicated region
        $region37: #{discriminator_forward.4} parent=31 // pred_check
          %p2421 = pneg %p101
        $region38: #{discriminator_forward.4} parent=31 // pred_check_branch
          %2423 = sbr.rel (%p2421) target = $region40
        $region39: #{discriminator_forward.4} parent=31 // pred_region
          %s2424 = smul.u32 128, %s15
        $region40: #{discriminator_forward.4} parent=31 // pred_fallthru
          _
      $region32: #{discriminator_forward.4} parent=5 // pred_fallthru
        _
      %p2425 = scmp.le.s32.totalorder 2, %s10
      // Predicated region
      $region41: #{discriminator_forward.4} parent=5 // pred_check
        %p2426 = pneg %p2425
      $region42: #{discriminator_forward.4} parent=5 // pred_check_branch
        %2428 = sbr.rel (%p2426) target = $region44
      $region43: #{discriminator_forward.4} parent=5 // pred_region
        %s2429 = ssub.s32 %s10, 2
        // Predicated region
        $region45: #{discriminator_forward.4} parent=43 // pred_check
          %p2430 = pneg %p107
        $region46: #{discriminator_forward.4} parent=43 // pred_check_branch
          %2432 = sbr.rel (%p2430) target = $region48
        $region47: #{discriminator_forward.4} parent=43 // pred_region
          %s2433 = smul.u32 128, %s16
          %p2434 = scmp.lt.s32.totalorder %s2433, 255
          %s2435 = scalar_select %p2434, %s2433, 255
          %s2436 = smul.addr %s2435, 4
          %s2437 = scalar_lea.vmem %s3, %s2436
        $region48: #{discriminator_forward.4} parent=43 // pred_fallthru
          _
      $region44: #{discriminator_forward.4} parent=5 // pred_fallthru
        _
    $region6: #{discriminator_forward.4} parent=1 // loop_footer
      %s14 = sadd.s32 1, %s10
    $region7: #{discriminator_forward.4} parent=1 // loop_footer_branch
      %9 = sbr.rel target = $region3
    $region8: #{discriminator_forward.4} parent=1 // loop_exit
      _
    %2438 = vsyncpa [#allocation3], 1
    %s2439 = scalar_lea.sflag [#allocation3], 1
    %2440 = vsyncpa %s2439, 1

// kernel: discriminator_forward.5
$region0: #{discriminator_forward.5}
  #allocation0 [shape = 'u32[]', space=smem, size = 0x4, offset = 0x4, fixed_abs, tag = 'smem constant byte address 0x4 - core index']
  #allocation1 [shape = 'u32[144,128]{1,0:T(1,128)}', space=vmem, size = 0x12000, scoped, tag = 'internal scratch']
  #allocation2 [shape = 'f32[512,32]{1,0:T(8,128)}', space=vmem, size = 0x40000, scoped, tag = 'scratch operand']
  #allocation3 [shape = 'f32[1,32]{1,0:T(1,128)}', space=vmem, size = 0x200, scoped, tag = 'scratch operand']
  #allocation4 [shape = 'f32[1,32]{1,0:T(1,128)}', space=vmem, size = 0x200, scoped, tag = 'scratch operand']
  %s0 = inlined_call_operand.vmem [shape: bf16[512,256], index: 0, kind: input, shape index: {}]
  %s1 = inlined_call_operand.vmem [shape: bf16[256,32], index: 1, kind: input, shape index: {}]
  %s2 = inlined_call_operand.vmem [shape: f32[1,32], index: 2, kind: input, shape index: {}]
  %s3 = inlined_call_operand.vmem [shape: f32[1,32], index: 3, kind: input, shape index: {}]
  %s4 = inlined_call_operand.vmem [shape: bf16[512,32], index: 4, kind: output, shape index: {}]
  %s5 = sld [smem:[#allocation0]]
  $region61: #{discriminator_forward.5} parent=0
    _
  %s7 = ssub.s32 1, %s5
  %s8 = scalar_select 0, %s7, %s5
  loop: start=0, step=1, limit=4
  $region2: #{discriminator_forward.5} parent=0 // loop_pre_header
    _
  $region3: #{discriminator_forward.5} parent=0 // loop_header
    %s10 = sphi 0, %s14
    %p11 = scmp.ge.s32.totalorder %s10, 4
    %s17 = sphi 0, %s29
    %s18 = sphi 0, %s25
    %s19 = sphi 0, %s17
    %s20 = sphi 0, %s18
    %s21 = sphi 0, %s19
    %s22 = sphi 0, %s20
    %s36 = sphi 0, %s38
    %s39 = sphi 0, %s36
    %s40 = sphi 0, %s39
    %s56 = sphi 0, %s40
    %s60 = sphi 0, %s60
    %s62 = sphi 0, %s60
    %s63 = sphi 0, %s62
    %s77 = sphi 0, %s63
    %s81 = sphi 0, %s81
    %s83 = sphi 0, %s81
    %s84 = sphi 0, %s83
    %s98 = sphi 0, %s84
    %s102 = sphi 0, %s102
    %s104 = sphi 0, %s102
    %s105 = sphi 0, %s104
    %s119 = sphi 0, %s105
    %s125 = sphi 0, %s127
    %s128 = sphi 0, %s125
    %s129 = sphi 0, %s128
    %s145 = sphi 0, %s129
  $region4: #{discriminator_forward.5} parent=0 // loop_header_branch
    %13 = sbr.rel (%p11) target = $region8
  $region5: #{discriminator_forward.5} parent=0 // loop_body
    %s15 = ssub.s32 %s10, 1
    %s16 = ssub.s32 %s10, 2
    %s23 = sadd.s32 1, %s18
    %p24 = scmp.ge.s32.totalorder %s23, 1
    %s25 = scalar_select %p24, 0, %s23
    %s26 = sadd.s32 1, %s17
    %s27 = scalar_select %p24, %s26, %s17
    %p28 = scmp.ge.s32.totalorder %s27, 2
    %s29 = scalar_select %p28, 0, %s27
    %s30 = ssub.s32 1, %s17
    %s31 = smul.u32 %s18, %s30
    %s32 = ssub.s32 1, %s29
    %s33 = smul.u32 %s25, %s32
    %s34 = ssub.s32 %s31, %s33
    %p35 = scmp.eq.s32.totalorder %s34, 0
    %s37 = sadd.s32 %s36, 1
    %s38 = scalar_select %p35, %s36, %s37
    %p41 = pneg %p35
    %p42 = scmp.eq.s32.totalorder %s10, 1
    %p43 = por %p41, %p42
    %p44 = scmp.ne.s32.totalorder %s36, %s39
    %p45 = scmp.eq.s32.totalorder %s10, 0
    %p46 = por %p44, %p45
    %p47 = scmp.ne.s32.totalorder %s36, %s39
    %p48 = scmp.eq.s32.totalorder %s15, 1
    %p49 = por %p47, %p48
    %p50 = scmp.ne.s32.totalorder %s39, %s40
    %p51 = scmp.eq.s32.totalorder %s15, 0
    %p52 = por %p50, %p51
    %p53 = scmp.ne.s32.totalorder %s39, %s40
    %p54 = scmp.eq.s32.totalorder %s16, 1
    %p55 = por %p53, %p54
    %p57 = scmp.ne.s32.totalorder %s40, %s56
    %p58 = scmp.eq.s32.totalorder %s16, 0
    %p59 = por %p57, %p58
    %s61 = sadd.s32 %s60, 1
    %p64 = scmp.eq.s32.totalorder %s10, 1
    %p65 = scmp.ne.s32.totalorder %s60, %s62
    %p66 = scmp.eq.s32.totalorder %s10, 0
    %p67 = por %p65, %p66
    %p68 = scmp.ne.s32.totalorder %s60, %s62
    %p69 = scmp.eq.s32.totalorder %s15, 1
    %p70 = por %p68, %p69
    %p71 = scmp.ne.s32.totalorder %s62, %s63
    %p72 = scmp.eq.s32.totalorder %s15, 0
    %p73 = por %p71, %p72
    %p74 = scmp.ne.s32.totalorder %s62, %s63
    %p75 = scmp.eq.s32.totalorder %s16, 1
    %p76 = por %p74, %p75
    %p78 = scmp.ne.s32.totalorder %s63, %s77
    %p79 = scmp.eq.s32.totalorder %s16, 0
    %p80 = por %p78, %p79
    %s82 = sadd.s32 %s81, 1
    %p85 = scmp.eq.s32.totalorder %s10, 1
    %p86 = scmp.ne.s32.totalorder %s81, %s83
    %p87 = scmp.eq.s32.totalorder %s10, 0
    %p88 = por %p86, %p87
    %p89 = scmp.ne.s32.totalorder %s81, %s83
    %p90 = scmp.eq.s32.totalorder %s15, 1
    %p91 = por %p89, %p90
    %p92 = scmp.ne.s32.totalorder %s83, %s84
    %p93 = scmp.eq.s32.totalorder %s15, 0
    %p94 = por %p92, %p93
    %p95 = scmp.ne.s32.totalorder %s83, %s84
    %p96 = scmp.eq.s32.totalorder %s16, 1
    %p97 = por %p95, %p96
    %p99 = scmp.ne.s32.totalorder %s84, %s98
    %p100 = scmp.eq.s32.totalorder %s16, 0
    %p101 = por %p99, %p100
    %s103 = sadd.s32 %s102, 1
    %p106 = scmp.eq.s32.totalorder %s10, 1
    %p107 = scmp.ne.s32.totalorder %s102, %s104
    %p108 = scmp.eq.s32.totalorder %s10, 0
    %p109 = por %p107, %p108
    %p110 = scmp.ne.s32.totalorder %s102, %s104
    %p111 = scmp.eq.s32.totalorder %s15, 1
    %p112 = por %p110, %p111
    %p113 = scmp.ne.s32.totalorder %s104, %s105
    %p114 = scmp.eq.s32.totalorder %s15, 0
    %p115 = por %p113, %p114
    %p116 = scmp.ne.s32.totalorder %s104, %s105
    %p117 = scmp.eq.s32.totalorder %s16, 1
    %p118 = por %p116, %p117
    %p120 = scmp.ne.s32.totalorder %s105, %s119
    %p121 = scmp.eq.s32.totalorder %s16, 0
    %p122 = por %p120, %p121
    %s123 = ssub.s32 %s18, %s25
    %p124 = scmp.eq.s32.totalorder %s123, 0
    %s126 = sadd.s32 %s125, 1
    %s127 = scalar_select %p124, %s125, %s126
    %p130 = pneg %p124
    %p131 = scmp.eq.s32.totalorder %s10, 1
    %p132 = por %p130, %p131
    %p133 = scmp.ne.s32.totalorder %s125, %s128
    %p134 = scmp.eq.s32.totalorder %s10, 0
    %p135 = por %p133, %p134
    %p136 = scmp.ne.s32.totalorder %s125, %s128
    %p137 = scmp.eq.s32.totalorder %s15, 1
    %p138 = por %p136, %p137
    %p139 = scmp.ne.s32.totalorder %s128, %s129
    %p140 = scmp.eq.s32.totalorder %s15, 0
    %p141 = por %p139, %p140
    %p142 = scmp.ne.s32.totalorder %s128, %s129
    %p143 = scmp.eq.s32.totalorder %s16, 1
    %p144 = por %p142, %p143
    %p146 = scmp.ne.s32.totalorder %s129, %s145
    %p147 = scmp.eq.s32.totalorder %s16, 0
    %p148 = por %p146, %p147
    %p149 = scmp.le.s32.totalorder 1, %s10
    %p150 = scmp.lt.s32.totalorder %s10, 3
    %p151 = pnand %p149, %p150
    %p152 = pneg %p151
    // Predicated region
    $region9: #{discriminator_forward.5} parent=5 // pred_check
      _
    $region10: #{discriminator_forward.5} parent=5 // pred_check_branch
      %154 = sbr.rel (%p151) target = $region12
    $region11: #{discriminator_forward.5} parent=5 // pred_region
      %s155 = ssub.s32 %s10, 1
      // Predicated region
      $region13: #{discriminator_forward.5} parent=11 // pred_check
        %p156 = pneg %p73
      $region14: #{discriminator_forward.5} parent=11 // pred_check_branch
        %158 = sbr.rel (%p156) target = $region16
      $region15: #{discriminator_forward.5} parent=11 // pred_region
        _
      $region16: #{discriminator_forward.5} parent=11 // pred_fallthru
        _
      // Predicated region
      $region17: #{discriminator_forward.5} parent=11 // pred_check
        %p159 = pneg %p94
      $region18: #{discriminator_forward.5} parent=11 // pred_check_branch
        %161 = sbr.rel (%p159) target = $region20
      $region19: #{discriminator_forward.5} parent=11 // pred_region
        _
      $region20: #{discriminator_forward.5} parent=11 // pred_fallthru
        _
      // Predicated region
      $region21: #{discriminator_forward.5} parent=11 // pred_check
        %p162 = pneg %p115
      $region22: #{discriminator_forward.5} parent=11 // pred_check_branch
        %164 = sbr.rel (%p162) target = $region24
      $region23: #{discriminator_forward.5} parent=11 // pred_region
        _
      $region24: #{discriminator_forward.5} parent=11 // pred_fallthru
        _
    $region12: #{discriminator_forward.5} parent=5 // pred_fallthru
      _
    %p165 = scmp.lt.s32.totalorder %s10, 2
    // Predicated region
    $region25: #{discriminator_forward.5} parent=5 // pred_check
      %p166 = pneg %p165
    $region26: #{discriminator_forward.5} parent=5 // pred_check_branch
      %168 = sbr.rel (%p166) target = $region28
    $region27: #{discriminator_forward.5} parent=5 // pred_region
      // Predicated region
      $region29: #{discriminator_forward.5} parent=27 // pred_check
        %p169 = pneg %p46
      $region30: #{discriminator_forward.5} parent=27 // pred_check_branch
        %171 = sbr.rel (%p169) target = $region32
      $region31: #{discriminator_forward.5} parent=27 // pred_region
        %s172 = ssub.s32 1, %s17
        %s173 = smul.u32 %s18, %s172
        %s174 = smul.u32 64, %s173
        %p175 = scmp.lt.s32.totalorder %s174, 63
        %s176 = scalar_select %p175, %s174, 63
        %s177 = smul.addr %s176, 2
        %s178 = smul.addr %s177, 4
        %s179 = scalar_lea.vmem %s0, %s178
        %s180 = ssub.s32 1, %s17
        %s181 = smul.u32 %s18, %s180
        %s182 = smul.u32 64, %s181
      $region32: #{discriminator_forward.5} parent=27 // pred_fallthru
        _
    $region28: #{discriminator_forward.5} parent=5 // pred_fallthru
      _
    %p183 = scmp.le.s32.totalorder 1, %s10
    %p184 = scmp.lt.s32.totalorder %s10, 3
    %p185 = pnand %p183, %p184
    %p186 = pneg %p185
    // Predicated region
    $region33: #{discriminator_forward.5} parent=5 // pred_check
      _
    $region34: #{discriminator_forward.5} parent=5 // pred_check_branch
      %188 = sbr.rel (%p185) target = $region36
    $region35: #{discriminator_forward.5} parent=5 // pred_region
      %s189 = ssub.s32 %s10, 1
      %s190 = ssub.s32 1, %s19
      %s191 = smul.u32 %s20, %s190
      %s192 = smul.u32 64, %s191
      %p193 = scmp.lt.s32.totalorder %s192, 63
      %s194 = scalar_select %p193, %s192, 63
      %s195 = smul.addr %s194, 2
      %s196 = smul.addr %s195, 4
      %s197 = scalar_lea.vmem %s0, %s196
      %p198 = pneg %p52
      %p199 = pneg %p49
      %p200 = pneg %p73
      %p201 = pneg %p70
      %p202 = pneg %p94
      %p203 = pneg %p91
      %p204 = pneg %p115
      %p205 = pneg %p112
      %p206 = pneg %p141
      %p207 = pneg %p138
      %s208 = smul.u32 64, %s20
      %p209 = scmp.lt.s32.totalorder %s208, 63
      %s210 = scalar_select %p209, %s208, 63
      %s211 = smul.addr %s210, 4
      %s212 = scalar_lea.vmem %s4, %s211
      %s213 = ssub.s32 1, %s19
      %s214 = smul.u32 %s20, %s213
      %s215 = smul.u32 64, %s214
      %p216 = scmp.lt.s32.totalorder %s215, 63
      %s217 = scalar_select %p216, %s215, 63
      %s218 = smul.addr %s217, 2
      %s219 = smul.addr %s218, 4
      %s220 = scalar_lea.vmem %s0, %s219
      %s221 = ssub.s32 1, %s19
      %s222 = smul.u32 %s20, %s221
      %s223 = smul.u32 64, %s222
      %s224 = smul.u32 64, %s20
      %p225 = scmp.lt.s32.totalorder %s224, 63
      %s226 = scalar_select %p225, %s224, 63
      %s227 = smul.addr %s226, 4
      %s228 = scalar_lea.vmem %s4, %s227
      %s229 = smul.u32 64, %s20
      %s231 = smul.u32 %s20, 512
      %p232 = scmp.eq.s32.totalorder %s19, 0
      // Predicated region
      $region37: #{discriminator_forward.5} parent=35 // pred_check
        %p233 = pneg %p232
      $region38: #{discriminator_forward.5} parent=35 // pred_check_branch
        %235 = sbr.rel (%p233) target = $region40
      $region39: #{discriminator_forward.5} parent=35 // pred_region
        %p236 = scmp.eq.s32.totalorder %s20, 0
        // Predicated region
        $region41: #{discriminator_forward.5} parent=39 // pred_check
          %p237 = pneg %p236
        $region42: #{discriminator_forward.5} parent=39 // pred_check_branch
          %239 = sbr.rel (%p237) target = $region44
        $region43: #{discriminator_forward.5} parent=39 // pred_region
          %vm240 = vcmask 253952
          %241 = vst.msk [vmem:[#allocation3] sm:$0x1] %vm240, 0.0
          %242 = vst.msk [vmem:[#allocation4] sm:$0x1] %vm240, 0.0
        $region44: #{discriminator_forward.5} parent=39 // pred_fallthru
          _
        %v243 = vld [vmem:[%s220] sm:$0xff]
        %v244 = vld [vmem:[%s220 + $0x8] sm:$0xff]
        %v245 = vld [vmem:[%s220 + $0x10] sm:$0xff]
        %v246 = vld [vmem:[%s220 + $0x18] sm:$0xff]
        %v247 = vld [vmem:[%s220 + $0x20] sm:$0xff]
        %v248 = vld [vmem:[%s220 + $0x28] sm:$0xff]
        %v249 = vld [vmem:[%s220 + $0x30] sm:$0xff]
        %v250 = vld [vmem:[%s220 + $0x38] sm:$0xff]
        %v251 = vld [vmem:[%s220 + $0x40] sm:$0xff]
        %v252 = vld [vmem:[%s220 + $0x48] sm:$0xff]
        %v253 = vld [vmem:[%s220 + $0x50] sm:$0xff]
        %v254 = vld [vmem:[%s220 + $0x58] sm:$0xff]
        %v255 = vld [vmem:[%s220 + $0x60] sm:$0xff]
        %v256 = vld [vmem:[%s220 + $0x68] sm:$0xff]
        %v257 = vld [vmem:[%s220 + $0x70] sm:$0xff]
        %v258 = vld [vmem:[%s220 + $0x78] sm:$0xff]
        %v259 = vld [vmem:[%s220 + $0x80] sm:$0xff]
        %v260 = vld [vmem:[%s220 + $0x88] sm:$0xff]
        %v261 = vld [vmem:[%s220 + $0x90] sm:$0xff]
        %v262 = vld [vmem:[%s220 + $0x98] sm:$0xff]
        %v263 = vld [vmem:[%s220 + $0xa0] sm:$0xff]
        %v264 = vld [vmem:[%s220 + $0xa8] sm:$0xff]
        %v265 = vld [vmem:[%s220 + $0xb0] sm:$0xff]
        %v266 = vld [vmem:[%s220 + $0xb8] sm:$0xff]
        %v267 = vld [vmem:[%s220 + $0xc0] sm:$0xff]
        %v268 = vld [vmem:[%s220 + $0xc8] sm:$0xff]
        %v269 = vld [vmem:[%s220 + $0xd0] sm:$0xff]
        %v270 = vld [vmem:[%s220 + $0xd8] sm:$0xff]
        %v271 = vld [vmem:[%s220 + $0xe0] sm:$0xff]
        %v272 = vld [vmem:[%s220 + $0xe8] sm:$0xff]
        %v273 = vld [vmem:[%s220 + $0xf0] sm:$0xff]
        %v274 = vld [vmem:[%s220 + $0xf8] sm:$0xff]
        %v275 = vld [vmem:[%s220 + $0x100] sm:$0xff]
        %v276 = vld [vmem:[%s220 + $0x108] sm:$0xff]
        %v277 = vld [vmem:[%s220 + $0x110] sm:$0xff]
        %v278 = vld [vmem:[%s220 + $0x118] sm:$0xff]
        %v279 = vld [vmem:[%s220 + $0x120] sm:$0xff]
        %v280 = vld [vmem:[%s220 + $0x128] sm:$0xff]
        %v281 = vld [vmem:[%s220 + $0x130] sm:$0xff]
        %v282 = vld [vmem:[%s220 + $0x138] sm:$0xff]
        %v283 = vld [vmem:[%s220 + $0x140] sm:$0xff]
        %v284 = vld [vmem:[%s220 + $0x148] sm:$0xff]
        %v285 = vld [vmem:[%s220 + $0x150] sm:$0xff]
        %v286 = vld [vmem:[%s220 + $0x158] sm:$0xff]
        %v287 = vld [vmem:[%s220 + $0x160] sm:$0xff]
        %v288 = vld [vmem:[%s220 + $0x168] sm:$0xff]
        %v289 = vld [vmem:[%s220 + $0x170] sm:$0xff]
        %v290 = vld [vmem:[%s220 + $0x178] sm:$0xff]
        %v291 = vld [vmem:[%s220 + $0x180] sm:$0xff]
        %v292 = vld [vmem:[%s220 + $0x188] sm:$0xff]
        %v293 = vld [vmem:[%s220 + $0x190] sm:$0xff]
        %v294 = vld [vmem:[%s220 + $0x198] sm:$0xff]
        %v295 = vld [vmem:[%s220 + $0x1a0] sm:$0xff]
        %v296 = vld [vmem:[%s220 + $0x1a8] sm:$0xff]
        %v297 = vld [vmem:[%s220 + $0x1b0] sm:$0xff]
        %v298 = vld [vmem:[%s220 + $0x1b8] sm:$0xff]
        %v299 = vld [vmem:[%s220 + $0x1c0] sm:$0xff]
        %v300 = vld [vmem:[%s220 + $0x1c8] sm:$0xff]
        %v301 = vld [vmem:[%s220 + $0x1d0] sm:$0xff]
        %v302 = vld [vmem:[%s220 + $0x1d8] sm:$0xff]
        %v303 = vld [vmem:[%s220 + $0x1e0] sm:$0xff]
        %v304 = vld [vmem:[%s220 + $0x1e8] sm:$0xff]
        %v305 = vld [vmem:[%s220 + $0x1f0] sm:$0xff]
        %v306 = vld [vmem:[%s220 + $0x1f8] sm:$0xff]
        %v307 = vld [vmem:[%s1] sm:$0xf]
        %v308 = vld [vmem:[%s1 + $0x4] sm:$0xf]
        %v309 = vld [vmem:[%s1 + $0x8] sm:$0xf]
        %v310 = vld [vmem:[%s1 + $0xc] sm:$0xf]
        %v311 = vld [vmem:[%s1 + $0x10] sm:$0xf]
        %v312 = vld [vmem:[%s1 + $0x14] sm:$0xf]
        %v313 = vld [vmem:[%s1 + $0x18] sm:$0xf]
        %v314 = vld [vmem:[%s1 + $0x1c] sm:$0xf]
        %v315 = vld [vmem:[%s1 + $0x20] sm:$0xf]
        %v316 = vld [vmem:[%s1 + $0x24] sm:$0xf]
        %v317 = vld [vmem:[%s1 + $0x28] sm:$0xf]
        %v318 = vld [vmem:[%s1 + $0x2c] sm:$0xf]
        %v319 = vld [vmem:[%s1 + $0x30] sm:$0xf]
        %v320 = vld [vmem:[%s1 + $0x34] sm:$0xf]
        %v321 = vld [vmem:[%s1 + $0x38] sm:$0xf]
        %v322 = vld [vmem:[%s1 + $0x3c] sm:$0xf]
        %v323 = vld [vmem:[%s1 + $0x40] sm:$0xf]
        %v324 = vld [vmem:[%s1 + $0x44] sm:$0xf]
        %v325 = vld [vmem:[%s1 + $0x48] sm:$0xf]
        %v326 = vld [vmem:[%s1 + $0x4c] sm:$0xf]
        %v327 = vld [vmem:[%s1 + $0x50] sm:$0xf]
        %v328 = vld [vmem:[%s1 + $0x54] sm:$0xf]
        %v329 = vld [vmem:[%s1 + $0x58] sm:$0xf]
        %v330 = vld [vmem:[%s1 + $0x5c] sm:$0xf]
        %v331 = vld [vmem:[%s1 + $0x60] sm:$0xf]
        %v332 = vld [vmem:[%s1 + $0x64] sm:$0xf]
        %v333 = vld [vmem:[%s1 + $0x68] sm:$0xf]
        %v334 = vld [vmem:[%s1 + $0x6c] sm:$0xf]
        %v335 = vld [vmem:[%s1 + $0x70] sm:$0xf]
        %v336 = vld [vmem:[%s1 + $0x74] sm:$0xf]
        %v337 = vld [vmem:[%s1 + $0x78] sm:$0xf]
        %v338 = vld [vmem:[%s1 + $0x7c] sm:$0xf]
        %v403 = vunpack.c.l.b16 %v243
        %v404 = vunpack.c.h.b16 %v243
        %v405 = vunpack.c.l.b16 %v244
        %v406 = vunpack.c.h.b16 %v244
        %v407 = vunpack.c.l.b16 %v245
        %v408 = vunpack.c.h.b16 %v245
        %v409 = vunpack.c.l.b16 %v246
        %v410 = vunpack.c.h.b16 %v246
        %v411 = vunpack.c.l.b16 %v247
        %v412 = vunpack.c.h.b16 %v247
        %v413 = vunpack.c.l.b16 %v248
        %v414 = vunpack.c.h.b16 %v248
        %v415 = vunpack.c.l.b16 %v249
        %v416 = vunpack.c.h.b16 %v249
        %v417 = vunpack.c.l.b16 %v250
        %v418 = vunpack.c.h.b16 %v250
        %v419 = vunpack.c.l.b16 %v251
        %v420 = vunpack.c.h.b16 %v251
        %v421 = vunpack.c.l.b16 %v252
        %v422 = vunpack.c.h.b16 %v252
        %v423 = vunpack.c.l.b16 %v253
        %v424 = vunpack.c.h.b16 %v253
        %v425 = vunpack.c.l.b16 %v254
        %v426 = vunpack.c.h.b16 %v254
        %v427 = vunpack.c.l.b16 %v255
        %v428 = vunpack.c.h.b16 %v255
        %v429 = vunpack.c.l.b16 %v256
        %v430 = vunpack.c.h.b16 %v256
        %v431 = vunpack.c.l.b16 %v257
        %v432 = vunpack.c.h.b16 %v257
        %v433 = vunpack.c.l.b16 %v258
        %v434 = vunpack.c.h.b16 %v258
        %v435 = vunpack.c.l.b16 %v259
        %v436 = vunpack.c.h.b16 %v259
        %v437 = vunpack.c.l.b16 %v260
        %v438 = vunpack.c.h.b16 %v260
        %v439 = vunpack.c.l.b16 %v261
        %v440 = vunpack.c.h.b16 %v261
        %v441 = vunpack.c.l.b16 %v262
        %v442 = vunpack.c.h.b16 %v262
        %v443 = vunpack.c.l.b16 %v263
        %v444 = vunpack.c.h.b16 %v263
        %v445 = vunpack.c.l.b16 %v264
        %v446 = vunpack.c.h.b16 %v264
        %v447 = vunpack.c.l.b16 %v265
        %v448 = vunpack.c.h.b16 %v265
        %v449 = vunpack.c.l.b16 %v266
        %v450 = vunpack.c.h.b16 %v266
        %v451 = vunpack.c.l.b16 %v267
        %v452 = vunpack.c.h.b16 %v267
        %v453 = vunpack.c.l.b16 %v268
        %v454 = vunpack.c.h.b16 %v268
        %v455 = vunpack.c.l.b16 %v269
        %v456 = vunpack.c.h.b16 %v269
        %v457 = vunpack.c.l.b16 %v270
        %v458 = vunpack.c.h.b16 %v270
        %v459 = vunpack.c.l.b16 %v271
        %v460 = vunpack.c.h.b16 %v271
        %v461 = vunpack.c.l.b16 %v272
        %v462 = vunpack.c.h.b16 %v272
        %v463 = vunpack.c.l.b16 %v273
        %v464 = vunpack.c.h.b16 %v273
        %v465 = vunpack.c.l.b16 %v274
        %v466 = vunpack.c.h.b16 %v274
        %v467 = vunpack.c.l.b16 %v275
        %v468 = vunpack.c.h.b16 %v275
        %v469 = vunpack.c.l.b16 %v276
        %v470 = vunpack.c.h.b16 %v276
        %v471 = vunpack.c.l.b16 %v277
        %v472 = vunpack.c.h.b16 %v277
        %v473 = vunpack.c.l.b16 %v278
        %v474 = vunpack.c.h.b16 %v278
        %v475 = vunpack.c.l.b16 %v279
        %v476 = vunpack.c.h.b16 %v279
        %v477 = vunpack.c.l.b16 %v280
        %v478 = vunpack.c.h.b16 %v280
        %v479 = vunpack.c.l.b16 %v281
        %v480 = vunpack.c.h.b16 %v281
        %v481 = vunpack.c.l.b16 %v282
        %v482 = vunpack.c.h.b16 %v282
        %v483 = vunpack.c.l.b16 %v283
        %v484 = vunpack.c.h.b16 %v283
        %v485 = vunpack.c.l.b16 %v284
        %v486 = vunpack.c.h.b16 %v284
        %v487 = vunpack.c.l.b16 %v285
        %v488 = vunpack.c.h.b16 %v285
        %v489 = vunpack.c.l.b16 %v286
        %v490 = vunpack.c.h.b16 %v286
        %v491 = vunpack.c.l.b16 %v287
        %v492 = vunpack.c.h.b16 %v287
        %v493 = vunpack.c.l.b16 %v288
        %v494 = vunpack.c.h.b16 %v288
        %v495 = vunpack.c.l.b16 %v289
        %v496 = vunpack.c.h.b16 %v289
        %v497 = vunpack.c.l.b16 %v290
        %v498 = vunpack.c.h.b16 %v290
        %v499 = vunpack.c.l.b16 %v291
        %v500 = vunpack.c.h.b16 %v291
        %v501 = vunpack.c.l.b16 %v292
        %v502 = vunpack.c.h.b16 %v292
        %v503 = vunpack.c.l.b16 %v293
        %v504 = vunpack.c.h.b16 %v293
        %v505 = vunpack.c.l.b16 %v294
        %v506 = vunpack.c.h.b16 %v294
        %v507 = vunpack.c.l.b16 %v295
        %v508 = vunpack.c.h.b16 %v295
        %v509 = vunpack.c.l.b16 %v296
        %v510 = vunpack.c.h.b16 %v296
        %v511 = vunpack.c.l.b16 %v297
        %v512 = vunpack.c.h.b16 %v297
        %v513 = vunpack.c.l.b16 %v298
        %v514 = vunpack.c.h.b16 %v298
        %v515 = vunpack.c.l.b16 %v299
        %v516 = vunpack.c.h.b16 %v299
        %v517 = vunpack.c.l.b16 %v300
        %v518 = vunpack.c.h.b16 %v300
        %v519 = vunpack.c.l.b16 %v301
        %v520 = vunpack.c.h.b16 %v301
        %v521 = vunpack.c.l.b16 %v302
        %v522 = vunpack.c.h.b16 %v302
        %v523 = vunpack.c.l.b16 %v303
        %v524 = vunpack.c.h.b16 %v303
        %v525 = vunpack.c.l.b16 %v304
        %v526 = vunpack.c.h.b16 %v304
        %v527 = vunpack.c.l.b16 %v305
        %v528 = vunpack.c.h.b16 %v305
        %v529 = vunpack.c.l.b16 %v306
        %v530 = vunpack.c.h.b16 %v306
        %v531 = vpack.c.b16 %v405, %v403
        %v532 = vpack.c.b16 %v406, %v404
        %v533 = vpack.c.b16 %v409, %v407
        %v534 = vpack.c.b16 %v410, %v408
        %v535 = vpack.c.b16 %v413, %v411
        %v536 = vpack.c.b16 %v414, %v412
        %v537 = vpack.c.b16 %v417, %v415
        %v538 = vpack.c.b16 %v418, %v416
        %v539 = vpack.c.b16 %v421, %v419
        %v540 = vpack.c.b16 %v422, %v420
        %v541 = vpack.c.b16 %v425, %v423
        %v542 = vpack.c.b16 %v426, %v424
        %v543 = vpack.c.b16 %v429, %v427
        %v544 = vpack.c.b16 %v430, %v428
        %v545 = vpack.c.b16 %v433, %v431
        %v546 = vpack.c.b16 %v434, %v432
        %v547 = vpack.c.b16 %v437, %v435
        %v548 = vpack.c.b16 %v438, %v436
        %v549 = vpack.c.b16 %v441, %v439
        %v550 = vpack.c.b16 %v442, %v440
        %v551 = vpack.c.b16 %v445, %v443
        %v552 = vpack.c.b16 %v446, %v444
        %v553 = vpack.c.b16 %v449, %v447
        %v554 = vpack.c.b16 %v450, %v448
        %v555 = vpack.c.b16 %v453, %v451
        %v556 = vpack.c.b16 %v454, %v452
        %v557 = vpack.c.b16 %v457, %v455
        %v558 = vpack.c.b16 %v458, %v456
        %v559 = vpack.c.b16 %v461, %v459
        %v560 = vpack.c.b16 %v462, %v460
        %v561 = vpack.c.b16 %v465, %v463
        %v562 = vpack.c.b16 %v466, %v464
        %v563 = vpack.c.b16 %v469, %v467
        %v564 = vpack.c.b16 %v470, %v468
        %v565 = vpack.c.b16 %v473, %v471
        %v566 = vpack.c.b16 %v474, %v472
        %v567 = vpack.c.b16 %v477, %v475
        %v568 = vpack.c.b16 %v478, %v476
        %v569 = vpack.c.b16 %v481, %v479
        %v570 = vpack.c.b16 %v482, %v480
        %v571 = vpack.c.b16 %v485, %v483
        %v572 = vpack.c.b16 %v486, %v484
        %v573 = vpack.c.b16 %v489, %v487
        %v574 = vpack.c.b16 %v490, %v488
        %v575 = vpack.c.b16 %v493, %v491
        %v576 = vpack.c.b16 %v494, %v492
        %v577 = vpack.c.b16 %v497, %v495
        %v578 = vpack.c.b16 %v498, %v496
        %v579 = vpack.c.b16 %v501, %v499
        %v580 = vpack.c.b16 %v502, %v500
        %v581 = vpack.c.b16 %v505, %v503
        %v582 = vpack.c.b16 %v506, %v504
        %v583 = vpack.c.b16 %v509, %v507
        %v584 = vpack.c.b16 %v510, %v508
        %v585 = vpack.c.b16 %v513, %v511
        %v586 = vpack.c.b16 %v514, %v512
        %v587 = vpack.c.b16 %v517, %v515
        %v588 = vpack.c.b16 %v518, %v516
        %v589 = vpack.c.b16 %v521, %v519
        %v590 = vpack.c.b16 %v522, %v520
        %v591 = vpack.c.b16 %v525, %v523
        %v592 = vpack.c.b16 %v526, %v524
        %v593 = vpack.c.b16 %v529, %v527
        %v594 = vpack.c.b16 %v530, %v528
        %v691 = vunpack.c.l.b16 %v307
        %v692 = vunpack.c.l.b16 %v308
        %v693 = vunpack.c.l.b16 %v309
        %v694 = vunpack.c.l.b16 %v310
        %v695 = vunpack.c.l.b16 %v311
        %v696 = vunpack.c.l.b16 %v312
        %v697 = vunpack.c.l.b16 %v313
        %v698 = vunpack.c.l.b16 %v314
        %v699 = vunpack.c.l.b16 %v315
        %v700 = vunpack.c.l.b16 %v316
        %v701 = vunpack.c.l.b16 %v317
        %v702 = vunpack.c.l.b16 %v318
        %v703 = vunpack.c.l.b16 %v319
        %v704 = vunpack.c.l.b16 %v320
        %v705 = vunpack.c.l.b16 %v321
        %v706 = vunpack.c.l.b16 %v322
        %v707 = vunpack.c.l.b16 %v323
        %v708 = vunpack.c.l.b16 %v324
        %v709 = vunpack.c.l.b16 %v325
        %v710 = vunpack.c.l.b16 %v326
        %v711 = vunpack.c.l.b16 %v327
        %v712 = vunpack.c.l.b16 %v328
        %v713 = vunpack.c.l.b16 %v329
        %v714 = vunpack.c.l.b16 %v330
        %v715 = vunpack.c.l.b16 %v331
        %v716 = vunpack.c.l.b16 %v332
        %v717 = vunpack.c.l.b16 %v333
        %v718 = vunpack.c.l.b16 %v334
        %v719 = vunpack.c.l.b16 %v335
        %v720 = vunpack.c.l.b16 %v336
        %v721 = vunpack.c.l.b16 %v337
        %v722 = vunpack.c.l.b16 %v338
        %v723 = vpack.c.b16 %v692, %v691
        %v724 = vpack.c.b16 %v694, %v693
        %v725 = vpack.c.b16 %v696, %v695
        %v726 = vpack.c.b16 %v698, %v697
        %v727 = vpack.c.b16 %v700, %v699
        %v728 = vpack.c.b16 %v702, %v701
        %v729 = vpack.c.b16 %v704, %v703
        %v730 = vpack.c.b16 %v706, %v705
        %v731 = vpack.c.b16 %v708, %v707
        %v732 = vpack.c.b16 %v710, %v709
        %v733 = vpack.c.b16 %v712, %v711
        %v734 = vpack.c.b16 %v714, %v713
        %v735 = vpack.c.b16 %v716, %v715
        %v736 = vpack.c.b16 %v718, %v717
        %v737 = vpack.c.b16 %v720, %v719
        %v738 = vpack.c.b16 %v722, %v721
        %755 = vmatprep.subr.bf16.mxu0 0
        %756 = vmatpush1.bf16.msra.mxu0 %v723
        %757 = vmatprep.subr.bf16.mxu0 0
        %758 = vmatpush1.bf16.msra.mxu0 %v724
        %759 = vmatprep.subr.bf16.mxu0 0
        %760 = vmatpush1.bf16.msra.mxu0 %v725
        %761 = vmatprep.subr.bf16.mxu0 0
        %762 = vmatpush1.bf16.msra.mxu0 %v726
        %763 = vmatprep.subr.bf16.mxu0 0
        %764 = vmatpush1.bf16.msra.mxu0 %v727
        %765 = vmatprep.subr.bf16.mxu0 0
        %766 = vmatpush1.bf16.msra.mxu0 %v728
        %767 = vmatprep.subr.bf16.mxu0 0
        %768 = vmatpush1.bf16.msra.mxu0 %v729
        %769 = vmatprep.subr.bf16.mxu0 0
        %770 = vmatpush1.bf16.msra.mxu0 %v730
        %771 = vmatprep.subr.bf16.mxu0 0
        %772 = vmatpush1.bf16.msra.mxu0 %v731
        %773 = vmatprep.subr.bf16.mxu0 0
        %774 = vmatpush1.bf16.msra.mxu0 %v732
        %775 = vmatprep.subr.bf16.mxu0 0
        %776 = vmatpush1.bf16.msra.mxu0 %v733
        %777 = vmatprep.subr.bf16.mxu0 0
        %778 = vmatpush1.bf16.msra.mxu0 %v734
        %779 = vmatprep.subr.bf16.mxu0 0
        %780 = vmatpush1.bf16.msra.mxu0 %v735
        %781 = vmatprep.subr.bf16.mxu0 0
        %782 = vmatpush1.bf16.msra.mxu0 %v736
        %783 = vmatprep.subr.bf16.mxu0 0
        %784 = vmatpush1.bf16.msra.mxu0 %v737
        %785 = vmatprep.subr.bf16.mxu0 0
        %786 = vmatpush1.bf16.msra.mxu0 %v738
        %787 = vmatprep.mubr.bf16.mxu0 %v532
        %788 = vmatmul.mubr.bf16.gmra.mrb[0].mxu0 %v531
        %v789 = vpop.f32.mrb[0].mxu0
        %v790 = vadd.f32 0.0, %v789
        %v791 = vpop.f32.mrb[0].mxu0
        %v792 = vpop.f32.mrb[0].mxu0
        %v793 = vadd.f32 0.0, %v792
        %v794 = vpop.f32.mrb[0].mxu0
        %795 = vmatprep.mubr.bf16.mxu0 %v534
        %796 = vmatmul.mubr.bf16.gmra.mrb[0].mxu0 %v533
        %v797 = vpop.f32.mrb[0].mxu0
        %v798 = vadd.f32 0.0, %v797
        %v799 = vpop.f32.mrb[0].mxu0
        %v800 = vpop.f32.mrb[0].mxu0
        %v801 = vadd.f32 0.0, %v800
        %v802 = vpop.f32.mrb[0].mxu0
        %803 = vmatprep.mubr.bf16.mxu0 %v536
        %804 = vmatmul.mubr.bf16.gmra.mrb[0].mxu0 %v535
        %v805 = vpop.f32.mrb[0].mxu0
        %v806 = vadd.f32 0.0, %v805
        %v807 = vpop.f32.mrb[0].mxu0
        %v808 = vpop.f32.mrb[0].mxu0
        %v809 = vadd.f32 0.0, %v808
        %v810 = vpop.f32.mrb[0].mxu0
        %811 = vmatprep.mubr.bf16.mxu0 %v538
        %812 = vmatmul.mubr.bf16.gmra.mrb[0].mxu0 %v537
        %v813 = vpop.f32.mrb[0].mxu0
        %v814 = vadd.f32 0.0, %v813
        %v815 = vpop.f32.mrb[0].mxu0
        %v816 = vpop.f32.mrb[0].mxu0
        %v817 = vadd.f32 0.0, %v816
        %v818 = vpop.f32.mrb[0].mxu0
        %819 = vmatprep.mubr.bf16.mxu0 %v540
        %820 = vmatmul.mubr.bf16.gmra.mrb[0].mxu0 %v539
        %v821 = vpop.f32.mrb[0].mxu0
        %v822 = vadd.f32 0.0, %v821
        %v823 = vpop.f32.mrb[0].mxu0
        %v824 = vpop.f32.mrb[0].mxu0
        %v825 = vadd.f32 0.0, %v824
        %v826 = vpop.f32.mrb[0].mxu0
        %827 = vmatprep.mubr.bf16.mxu0 %v542
        %828 = vmatmul.mubr.bf16.gmra.mrb[0].mxu0 %v541
        %v829 = vpop.f32.mrb[0].mxu0
        %v830 = vadd.f32 0.0, %v829
        %v831 = vpop.f32.mrb[0].mxu0
        %v832 = vpop.f32.mrb[0].mxu0
        %v833 = vadd.f32 0.0, %v832
        %v834 = vpop.f32.mrb[0].mxu0
        %835 = vmatprep.mubr.bf16.mxu0 %v544
        %836 = vmatmul.mubr.bf16.gmra.mrb[0].mxu0 %v543
        %v837 = vpop.f32.mrb[0].mxu0
        %v838 = vadd.f32 0.0, %v837
        %v839 = vpop.f32.mrb[0].mxu0
        %v840 = vpop.f32.mrb[0].mxu0
        %v841 = vadd.f32 0.0, %v840
        %v842 = vpop.f32.mrb[0].mxu0
        %843 = vmatprep.mubr.bf16.mxu0 %v546
        %844 = vmatmul.mubr.bf16.gmra.mrb[0].mxu0 %v545
        %v845 = vpop.f32.mrb[0].mxu0
        %v846 = vadd.f32 0.0, %v845
        %v847 = vpop.f32.mrb[0].mxu0
        %v848 = vpop.f32.mrb[0].mxu0
        %v849 = vadd.f32 0.0, %v848
        %v850 = vpop.f32.mrb[0].mxu0
        %851 = vmatprep.mubr.bf16.mxu0 %v548
        %852 = vmatmul.mubr.bf16.gmra.mrb[0].mxu0 %v547
        %v853 = vpop.f32.mrb[0].mxu0
        %v854 = vadd.f32 0.0, %v853
        %v855 = vpop.f32.mrb[0].mxu0
        %v856 = vpop.f32.mrb[0].mxu0
        %v857 = vadd.f32 0.0, %v856
        %v858 = vpop.f32.mrb[0].mxu0
        %859 = vmatprep.mubr.bf16.mxu0 %v550
        %860 = vmatmul.mubr.bf16.gmra.mrb[0].mxu0 %v549
        %v861 = vpop.f32.mrb[0].mxu0
        %v862 = vadd.f32 0.0, %v861
        %v863 = vpop.f32.mrb[0].mxu0
        %v864 = vpop.f32.mrb[0].mxu0
        %v865 = vadd.f32 0.0, %v864
        %v866 = vpop.f32.mrb[0].mxu0
        %867 = vmatprep.mubr.bf16.mxu0 %v552
        %868 = vmatmul.mubr.bf16.gmra.mrb[0].mxu0 %v551
        %v869 = vpop.f32.mrb[0].mxu0
        %v870 = vadd.f32 0.0, %v869
        %v871 = vpop.f32.mrb[0].mxu0
        %v872 = vpop.f32.mrb[0].mxu0
        %v873 = vadd.f32 0.0, %v872
        %v874 = vpop.f32.mrb[0].mxu0
        %875 = vmatprep.mubr.bf16.mxu0 %v554
        %876 = vmatmul.mubr.bf16.gmra.mrb[0].mxu0 %v553
        %v877 = vpop.f32.mrb[0].mxu0
        %v878 = vadd.f32 0.0, %v877
        %v879 = vpop.f32.mrb[0].mxu0
        %v880 = vpop.f32.mrb[0].mxu0
        %v881 = vadd.f32 0.0, %v880
        %v882 = vpop.f32.mrb[0].mxu0
        %883 = vmatprep.mubr.bf16.mxu0 %v556
        %884 = vmatmul.mubr.bf16.gmra.mrb[0].mxu0 %v555
        %v885 = vpop.f32.mrb[0].mxu0
        %v886 = vadd.f32 0.0, %v885
        %v887 = vpop.f32.mrb[0].mxu0
        %v888 = vpop.f32.mrb[0].mxu0
        %v889 = vadd.f32 0.0, %v888
        %v890 = vpop.f32.mrb[0].mxu0
        %891 = vmatprep.mubr.bf16.mxu0 %v558
        %892 = vmatmul.mubr.bf16.gmra.mrb[0].mxu0 %v557
        %v893 = vpop.f32.mrb[0].mxu0
        %v894 = vadd.f32 0.0, %v893
        %v895 = vpop.f32.mrb[0].mxu0
        %v896 = vpop.f32.mrb[0].mxu0
        %v897 = vadd.f32 0.0, %v896
        %v898 = vpop.f32.mrb[0].mxu0
        %899 = vmatprep.mubr.bf16.mxu0 %v560
        %900 = vmatmul.mubr.bf16.gmra.mrb[0].mxu0 %v559
        %v901 = vpop.f32.mrb[0].mxu0
        %v902 = vadd.f32 0.0, %v901
        %v903 = vpop.f32.mrb[0].mxu0
        %v904 = vpop.f32.mrb[0].mxu0
        %v905 = vadd.f32 0.0, %v904
        %v906 = vpop.f32.mrb[0].mxu0
        %907 = vmatprep.mubr.bf16.mxu0 %v562
        %908 = vmatmul.mubr.bf16.gmra.mrb[0].mxu0 %v561
        %v909 = vpop.f32.mrb[0].mxu0
        %v910 = vadd.f32 0.0, %v909
        %v911 = vpop.f32.mrb[0].mxu0
        %v912 = vpop.f32.mrb[0].mxu0
        %v913 = vadd.f32 0.0, %v912
        %v914 = vpop.f32.mrb[0].mxu0
        %915 = vmatprep.mubr.bf16.mxu0 %v564
        %916 = vmatmul.mubr.bf16.gmra.mrb[0].mxu0 %v563
        %v917 = vpop.f32.mrb[0].mxu0
        %v918 = vadd.f32 0.0, %v917
        %v919 = vpop.f32.mrb[0].mxu0
        %v920 = vpop.f32.mrb[0].mxu0
        %v921 = vadd.f32 0.0, %v920
        %v922 = vpop.f32.mrb[0].mxu0
        %923 = vmatprep.mubr.bf16.mxu0 %v566
        %924 = vmatmul.mubr.bf16.gmra.mrb[0].mxu0 %v565
        %v925 = vpop.f32.mrb[0].mxu0
        %v926 = vadd.f32 0.0, %v925
        %v927 = vpop.f32.mrb[0].mxu0
        %v928 = vpop.f32.mrb[0].mxu0
        %v929 = vadd.f32 0.0, %v928
        %v930 = vpop.f32.mrb[0].mxu0
        %931 = vmatprep.mubr.bf16.mxu0 %v568
        %932 = vmatmul.mubr.bf16.gmra.mrb[0].mxu0 %v567
        %v933 = vpop.f32.mrb[0].mxu0
        %v934 = vadd.f32 0.0, %v933
        %v935 = vpop.f32.mrb[0].mxu0
        %v936 = vpop.f32.mrb[0].mxu0
        %v937 = vadd.f32 0.0, %v936
        %v938 = vpop.f32.mrb[0].mxu0
        %939 = vmatprep.mubr.bf16.mxu0 %v570
        %940 = vmatmul.mubr.bf16.gmra.mrb[0].mxu0 %v569
        %v941 = vpop.f32.mrb[0].mxu0
        %v942 = vadd.f32 0.0, %v941
        %v943 = vpop.f32.mrb[0].mxu0
        %v944 = vpop.f32.mrb[0].mxu0
        %v945 = vadd.f32 0.0, %v944
        %v946 = vpop.f32.mrb[0].mxu0
        %947 = vmatprep.mubr.bf16.mxu0 %v572
        %948 = vmatmul.mubr.bf16.gmra.mrb[0].mxu0 %v571
        %v949 = vpop.f32.mrb[0].mxu0
        %v950 = vadd.f32 0.0, %v949
        %v951 = vpop.f32.mrb[0].mxu0
        %v952 = vpop.f32.mrb[0].mxu0
        %v953 = vadd.f32 0.0, %v952
        %v954 = vpop.f32.mrb[0].mxu0
        %955 = vmatprep.mubr.bf16.mxu0 %v574
        %956 = vmatmul.mubr.bf16.gmra.mrb[0].mxu0 %v573
        %v957 = vpop.f32.mrb[0].mxu0
        %v958 = vadd.f32 0.0, %v957
        %v959 = vpop.f32.mrb[0].mxu0
        %v960 = vpop.f32.mrb[0].mxu0
        %v961 = vadd.f32 0.0, %v960
        %v962 = vpop.f32.mrb[0].mxu0
        %963 = vmatprep.mubr.bf16.mxu0 %v576
        %964 = vmatmul.mubr.bf16.gmra.mrb[0].mxu0 %v575
        %v965 = vpop.f32.mrb[0].mxu0
        %v966 = vadd.f32 0.0, %v965
        %v967 = vpop.f32.mrb[0].mxu0
        %v968 = vpop.f32.mrb[0].mxu0
        %v969 = vadd.f32 0.0, %v968
        %v970 = vpop.f32.mrb[0].mxu0
        %971 = vmatprep.mubr.bf16.mxu0 %v578
        %972 = vmatmul.mubr.bf16.gmra.mrb[0].mxu0 %v577
        %v973 = vpop.f32.mrb[0].mxu0
        %v974 = vadd.f32 0.0, %v973
        %v975 = vpop.f32.mrb[0].mxu0
        %v976 = vpop.f32.mrb[0].mxu0
        %v977 = vadd.f32 0.0, %v976
        %v978 = vpop.f32.mrb[0].mxu0
        %979 = vmatprep.mubr.bf16.mxu0 %v580
        %980 = vmatmul.mubr.bf16.gmra.mrb[0].mxu0 %v579
        %v981 = vpop.f32.mrb[0].mxu0
        %v982 = vadd.f32 0.0, %v981
        %v983 = vpop.f32.mrb[0].mxu0
        %v984 = vpop.f32.mrb[0].mxu0
        %v985 = vadd.f32 0.0, %v984
        %v986 = vpop.f32.mrb[0].mxu0
        %987 = vmatprep.mubr.bf16.mxu0 %v582
        %988 = vmatmul.mubr.bf16.gmra.mrb[0].mxu0 %v581
        %v989 = vpop.f32.mrb[0].mxu0
        %v990 = vadd.f32 0.0, %v989
        %v991 = vpop.f32.mrb[0].mxu0
        %v992 = vpop.f32.mrb[0].mxu0
        %v993 = vadd.f32 0.0, %v992
        %v994 = vpop.f32.mrb[0].mxu0
        %995 = vmatprep.mubr.bf16.mxu0 %v584
        %996 = vmatmul.mubr.bf16.gmra.mrb[0].mxu0 %v583
        %v997 = vpop.f32.mrb[0].mxu0
        %v998 = vadd.f32 0.0, %v997
        %v999 = vpop.f32.mrb[0].mxu0
        %v1000 = vpop.f32.mrb[0].mxu0
        %v1001 = vadd.f32 0.0, %v1000
        %v1002 = vpop.f32.mrb[0].mxu0
        %1003 = vmatprep.mubr.bf16.mxu0 %v586
        %1004 = vmatmul.mubr.bf16.gmra.mrb[0].mxu0 %v585
        %v1005 = vpop.f32.mrb[0].mxu0
        %v1006 = vadd.f32 0.0, %v1005
        %v1007 = vpop.f32.mrb[0].mxu0
        %v1008 = vpop.f32.mrb[0].mxu0
        %v1009 = vadd.f32 0.0, %v1008
        %v1010 = vpop.f32.mrb[0].mxu0
        %1011 = vmatprep.mubr.bf16.mxu0 %v588
        %1012 = vmatmul.mubr.bf16.gmra.mrb[0].mxu0 %v587
        %v1013 = vpop.f32.mrb[0].mxu0
        %v1014 = vadd.f32 0.0, %v1013
        %v1015 = vpop.f32.mrb[0].mxu0
        %v1016 = vpop.f32.mrb[0].mxu0
        %v1017 = vadd.f32 0.0, %v1016
        %v1018 = vpop.f32.mrb[0].mxu0
        %1019 = vmatprep.mubr.bf16.mxu0 %v590
        %1020 = vmatmul.mubr.bf16.gmra.mrb[0].mxu0 %v589
        %v1021 = vpop.f32.mrb[0].mxu0
        %v1022 = vadd.f32 0.0, %v1021
        %v1023 = vpop.f32.mrb[0].mxu0
        %v1024 = vpop.f32.mrb[0].mxu0
        %v1025 = vadd.f32 0.0, %v1024
        %v1026 = vpop.f32.mrb[0].mxu0
        %1027 = vmatprep.mubr.bf16.mxu0 %v592
        %1028 = vmatmul.mubr.bf16.gmra.mrb[0].mxu0 %v591
        %v1029 = vpop.f32.mrb[0].mxu0
        %v1030 = vadd.f32 0.0, %v1029
        %v1031 = vpop.f32.mrb[0].mxu0
        %v1032 = vpop.f32.mrb[0].mxu0
        %v1033 = vadd.f32 0.0, %v1032
        %v1034 = vpop.f32.mrb[0].mxu0
        %1035 = vmatprep.mubr.bf16.mxu0 %v594
        %1036 = vmatmul.mubr.bf16.gmra.mrb[0].mxu0 %v593
        %v1037 = vpop.f32.mrb[0].mxu0
        %v1038 = vadd.f32 0.0, %v1037
        %v1039 = vpop.f32.mrb[0].mxu0
        %v1040 = vpop.f32.mrb[0].mxu0
        %v1041 = vadd.f32 0.0, %v1040
        %v1042 = vpop.f32.mrb[0].mxu0
        %1043 = vdwg.mxu0
        %s1044 = scalar_lea.vmem [#allocation2], %s231
        %vm1045 = vcmask 261120
        %1046 = vst.msk [vmem:[%s1044] sm:$0xff] %vm1045, %v790
        %1047 = vst.msk [vmem:[%s1044 + $0x8] sm:$0xff] %vm1045, %v793
        %1048 = vst.msk [vmem:[%s1044 + $0x10] sm:$0xff] %vm1045, %v798
        %1049 = vst.msk [vmem:[%s1044 + $0x18] sm:$0xff] %vm1045, %v801
        %1050 = vst.msk [vmem:[%s1044 + $0x20] sm:$0xff] %vm1045, %v806
        %1051 = vst.msk [vmem:[%s1044 + $0x28] sm:$0xff] %vm1045, %v809
        %1052 = vst.msk [vmem:[%s1044 + $0x30] sm:$0xff] %vm1045, %v814
        %1053 = vst.msk [vmem:[%s1044 + $0x38] sm:$0xff] %vm1045, %v817
        %1054 = vst.msk [vmem:[%s1044 + $0x40] sm:$0xff] %vm1045, %v822
        %1055 = vst.msk [vmem:[%s1044 + $0x48] sm:$0xff] %vm1045, %v825
        %1056 = vst.msk [vmem:[%s1044 + $0x50] sm:$0xff] %vm1045, %v830
        %1057 = vst.msk [vmem:[%s1044 + $0x58] sm:$0xff] %vm1045, %v833
        %1058 = vst.msk [vmem:[%s1044 + $0x60] sm:$0xff] %vm1045, %v838
        %1059 = vst.msk [vmem:[%s1044 + $0x68] sm:$0xff] %vm1045, %v841
        %1060 = vst.msk [vmem:[%s1044 + $0x70] sm:$0xff] %vm1045, %v846
        %1061 = vst.msk [vmem:[%s1044 + $0x78] sm:$0xff] %vm1045, %v849
        %1062 = vst.msk [vmem:[%s1044 + $0x80] sm:$0xff] %vm1045, %v854
        %1063 = vst.msk [vmem:[%s1044 + $0x88] sm:$0xff] %vm1045, %v857
        %1064 = vst.msk [vmem:[%s1044 + $0x90] sm:$0xff] %vm1045, %v862
        %1065 = vst.msk [vmem:[%s1044 + $0x98] sm:$0xff] %vm1045, %v865
        %1066 = vst.msk [vmem:[%s1044 + $0xa0] sm:$0xff] %vm1045, %v870
        %1067 = vst.msk [vmem:[%s1044 + $0xa8] sm:$0xff] %vm1045, %v873
        %1068 = vst.msk [vmem:[%s1044 + $0xb0] sm:$0xff] %vm1045, %v878
        %1069 = vst.msk [vmem:[%s1044 + $0xb8] sm:$0xff] %vm1045, %v881
        %1070 = vst.msk [vmem:[%s1044 + $0xc0] sm:$0xff] %vm1045, %v886
        %1071 = vst.msk [vmem:[%s1044 + $0xc8] sm:$0xff] %vm1045, %v889
        %1072 = vst.msk [vmem:[%s1044 + $0xd0] sm:$0xff] %vm1045, %v894
        %1073 = vst.msk [vmem:[%s1044 + $0xd8] sm:$0xff] %vm1045, %v897
        %1074 = vst.msk [vmem:[%s1044 + $0xe0] sm:$0xff] %vm1045, %v902
        %1075 = vst.msk [vmem:[%s1044 + $0xe8] sm:$0xff] %vm1045, %v905
        %1076 = vst.msk [vmem:[%s1044 + $0xf0] sm:$0xff] %vm1045, %v910
        %1077 = vst.msk [vmem:[%s1044 + $0xf8] sm:$0xff] %vm1045, %v913
        %1078 = vst.msk [vmem:[%s1044 + $0x100] sm:$0xff] %vm1045, %v918
        %1079 = vst.msk [vmem:[%s1044 + $0x108] sm:$0xff] %vm1045, %v921
        %1080 = vst.msk [vmem:[%s1044 + $0x110] sm:$0xff] %vm1045, %v926
        %1081 = vst.msk [vmem:[%s1044 + $0x118] sm:$0xff] %vm1045, %v929
        %1082 = vst.msk [vmem:[%s1044 + $0x120] sm:$0xff] %vm1045, %v934
        %1083 = vst.msk [vmem:[%s1044 + $0x128] sm:$0xff] %vm1045, %v937
        %1084 = vst.msk [vmem:[%s1044 + $0x130] sm:$0xff] %vm1045, %v942
        %1085 = vst.msk [vmem:[%s1044 + $0x138] sm:$0xff] %vm1045, %v945
        %1086 = vst.msk [vmem:[%s1044 + $0x140] sm:$0xff] %vm1045, %v950
        %1087 = vst.msk [vmem:[%s1044 + $0x148] sm:$0xff] %vm1045, %v953
        %1088 = vst.msk [vmem:[%s1044 + $0x150] sm:$0xff] %vm1045, %v958
        %1089 = vst.msk [vmem:[%s1044 + $0x158] sm:$0xff] %vm1045, %v961
        %1090 = vst.msk [vmem:[%s1044 + $0x160] sm:$0xff] %vm1045, %v966
        %1091 = vst.msk [vmem:[%s1044 + $0x168] sm:$0xff] %vm1045, %v969
        %1092 = vst.msk [vmem:[%s1044 + $0x170] sm:$0xff] %vm1045, %v974
        %1093 = vst.msk [vmem:[%s1044 + $0x178] sm:$0xff] %vm1045, %v977
        %1094 = vst.msk [vmem:[%s1044 + $0x180] sm:$0xff] %vm1045, %v982
        %1095 = vst.msk [vmem:[%s1044 + $0x188] sm:$0xff] %vm1045, %v985
        %1096 = vst.msk [vmem:[%s1044 + $0x190] sm:$0xff] %vm1045, %v990
        %1097 = vst.msk [vmem:[%s1044 + $0x198] sm:$0xff] %vm1045, %v993
        %1098 = vst.msk [vmem:[%s1044 + $0x1a0] sm:$0xff] %vm1045, %v998
        %1099 = vst.msk [vmem:[%s1044 + $0x1a8] sm:$0xff] %vm1045, %v1001
        %1100 = vst.msk [vmem:[%s1044 + $0x1b0] sm:$0xff] %vm1045, %v1006
        %1101 = vst.msk [vmem:[%s1044 + $0x1b8] sm:$0xff] %vm1045, %v1009
        %1102 = vst.msk [vmem:[%s1044 + $0x1c0] sm:$0xff] %vm1045, %v1014
        %1103 = vst.msk [vmem:[%s1044 + $0x1c8] sm:$0xff] %vm1045, %v1017
        %1104 = vst.msk [vmem:[%s1044 + $0x1d0] sm:$0xff] %vm1045, %v1022
        %1105 = vst.msk [vmem:[%s1044 + $0x1d8] sm:$0xff] %vm1045, %v1025
        %1106 = vst.msk [vmem:[%s1044 + $0x1e0] sm:$0xff] %vm1045, %v1030
        %1107 = vst.msk [vmem:[%s1044 + $0x1e8] sm:$0xff] %vm1045, %v1033
        %1108 = vst.msk [vmem:[%s1044 + $0x1f0] sm:$0xff] %vm1045, %v1038
        %1109 = vst.msk [vmem:[%s1044 + $0x1f8] sm:$0xff] %vm1045, %v1041
        %v1110 = vld [vmem:[#allocation3] sm:$0x1]
        %v1111 = vsel %vm1045, %v790, 0.0
        %v1112 = vsel %vm1045, %v793, 0.0
        %v1113 = vadd.f32 %v1111, %v1112
        %v1114 = vsel %vm1045, %v798, 0.0
        %v1115 = vadd.f32 %v1113, %v1114
        %v1116 = vsel %vm1045, %v801, 0.0
        %v1117 = vadd.f32 %v1115, %v1116
        %v1118 = vsel %vm1045, %v806, 0.0
        %v1119 = vadd.f32 %v1117, %v1118
        %v1120 = vsel %vm1045, %v809, 0.0
        %v1121 = vadd.f32 %v1119, %v1120
        %v1122 = vsel %vm1045, %v814, 0.0
        %v1123 = vadd.f32 %v1121, %v1122
        %v1124 = vsel %vm1045, %v817, 0.0
        %v1125 = vadd.f32 %v1123, %v1124
        %v1126 = vsel %vm1045, %v822, 0.0
        %v1127 = vadd.f32 %v1125, %v1126
        %v1128 = vsel %vm1045, %v825, 0.0
        %v1129 = vadd.f32 %v1127, %v1128
        %v1130 = vsel %vm1045, %v830, 0.0
        %v1131 = vadd.f32 %v1129, %v1130
        %v1132 = vsel %vm1045, %v833, 0.0
        %v1133 = vadd.f32 %v1131, %v1132
        %v1134 = vsel %vm1045, %v838, 0.0
        %v1135 = vadd.f32 %v1133, %v1134
        %v1136 = vsel %vm1045, %v841, 0.0
        %v1137 = vadd.f32 %v1135, %v1136
        %v1138 = vsel %vm1045, %v846, 0.0
        %v1139 = vadd.f32 %v1137, %v1138
        %v1140 = vsel %vm1045, %v849, 0.0
        %v1141 = vadd.f32 %v1139, %v1140
        %v1142 = vsel %vm1045, %v854, 0.0
        %v1143 = vadd.f32 %v1141, %v1142
        %v1144 = vsel %vm1045, %v857, 0.0
        %v1145 = vadd.f32 %v1143, %v1144
        %v1146 = vsel %vm1045, %v862, 0.0
        %v1147 = vadd.f32 %v1145, %v1146
        %v1148 = vsel %vm1045, %v865, 0.0
        %v1149 = vadd.f32 %v1147, %v1148
        %v1150 = vsel %vm1045, %v870, 0.0
        %v1151 = vadd.f32 %v1149, %v1150
        %v1152 = vsel %vm1045, %v873, 0.0
        %v1153 = vadd.f32 %v1151, %v1152
        %v1154 = vsel %vm1045, %v878, 0.0
        %v1155 = vadd.f32 %v1153, %v1154
        %v1156 = vsel %vm1045, %v881, 0.0
        %v1157 = vadd.f32 %v1155, %v1156
        %v1158 = vsel %vm1045, %v886, 0.0
        %v1159 = vadd.f32 %v1157, %v1158
        %v1160 = vsel %vm1045, %v889, 0.0
        %v1161 = vadd.f32 %v1159, %v1160
        %v1162 = vsel %vm1045, %v894, 0.0
        %v1163 = vadd.f32 %v1161, %v1162
        %v1164 = vsel %vm1045, %v897, 0.0
        %v1165 = vadd.f32 %v1163, %v1164
        %v1166 = vsel %vm1045, %v902, 0.0
        %v1167 = vadd.f32 %v1165, %v1166
        %v1168 = vsel %vm1045, %v905, 0.0
        %v1169 = vadd.f32 %v1167, %v1168
        %v1170 = vsel %vm1045, %v910, 0.0
        %v1171 = vadd.f32 %v1169, %v1170
        %v1172 = vsel %vm1045, %v913, 0.0
        %v1173 = vadd.f32 %v1171, %v1172
        %v1174 = vsel %vm1045, %v918, 0.0
        %v1175 = vadd.f32 %v1173, %v1174
        %v1176 = vsel %vm1045, %v921, 0.0
        %v1177 = vadd.f32 %v1175, %v1176
        %v1178 = vsel %vm1045, %v926, 0.0
        %v1179 = vadd.f32 %v1177, %v1178
        %v1180 = vsel %vm1045, %v929, 0.0
        %v1181 = vadd.f32 %v1179, %v1180
        %v1182 = vsel %vm1045, %v934, 0.0
        %v1183 = vadd.f32 %v1181, %v1182
        %v1184 = vsel %vm1045, %v937, 0.0
        %v1185 = vadd.f32 %v1183, %v1184
        %v1186 = vsel %vm1045, %v942, 0.0
        %v1187 = vadd.f32 %v1185, %v1186
        %v1188 = vsel %vm1045, %v945, 0.0
        %v1189 = vadd.f32 %v1187, %v1188
        %v1190 = vsel %vm1045, %v950, 0.0
        %v1191 = vadd.f32 %v1189, %v1190
        %v1192 = vsel %vm1045, %v953, 0.0
        %v1193 = vadd.f32 %v1191, %v1192
        %v1194 = vsel %vm1045, %v958, 0.0
        %v1195 = vadd.f32 %v1193, %v1194
        %v1196 = vsel %vm1045, %v961, 0.0
        %v1197 = vadd.f32 %v1195, %v1196
        %v1198 = vsel %vm1045, %v966, 0.0
        %v1199 = vadd.f32 %v1197, %v1198
        %v1200 = vsel %vm1045, %v969, 0.0
        %v1201 = vadd.f32 %v1199, %v1200
        %v1202 = vsel %vm1045, %v974, 0.0
        %v1203 = vadd.f32 %v1201, %v1202
        %v1204 = vsel %vm1045, %v977, 0.0
        %v1205 = vadd.f32 %v1203, %v1204
        %v1206 = vsel %vm1045, %v982, 0.0
        %v1207 = vadd.f32 %v1205, %v1206
        %v1208 = vsel %vm1045, %v985, 0.0
        %v1209 = vadd.f32 %v1207, %v1208
        %v1210 = vsel %vm1045, %v990, 0.0
        %v1211 = vadd.f32 %v1209, %v1210
        %v1212 = vsel %vm1045, %v993, 0.0
        %v1213 = vadd.f32 %v1211, %v1212
        %v1214 = vsel %vm1045, %v998, 0.0
        %v1215 = vadd.f32 %v1213, %v1214
        %v1216 = vsel %vm1045, %v1001, 0.0
        %v1217 = vadd.f32 %v1215, %v1216
        %v1218 = vsel %vm1045, %v1006, 0.0
        %v1219 = vadd.f32 %v1217, %v1218
        %v1220 = vsel %vm1045, %v1009, 0.0
        %v1221 = vadd.f32 %v1219, %v1220
        %v1222 = vsel %vm1045, %v1014, 0.0
        %v1223 = vadd.f32 %v1221, %v1222
        %v1224 = vsel %vm1045, %v1017, 0.0
        %v1225 = vadd.f32 %v1223, %v1224
        %v1226 = vsel %vm1045, %v1022, 0.0
        %v1227 = vadd.f32 %v1225, %v1226
        %v1228 = vsel %vm1045, %v1025, 0.0
        %v1229 = vadd.f32 %v1227, %v1228
        %v1230 = vsel %vm1045, %v1030, 0.0
        %v1231 = vadd.f32 %v1229, %v1230
        %v1232 = vsel %vm1045, %v1033, 0.0
        %v1233 = vadd.f32 %v1231, %v1232
        %v1234 = vsel %vm1045, %v1038, 0.0
        %v1235 = vadd.f32 %v1233, %v1234
        %v1236 = vsel %vm1045, %v1041, 0.0
        %v1237 = vadd.f32 %v1235, %v1236
        %v1238 = vrot.slane %v1237, 4
        %v1239 = vadd.f32 %v1237, %v1238
        %v1240 = vrot.slane %v1239, 2
        %v1241 = vadd.f32 %v1239, %v1240
        %v1242 = vrot.slane %v1241, 1
        %v1243 = vadd.f32 %v1241, %v1242
        %v1244 = vadd.f32 %v1110, %v1243
        %vm1245 = vcmask 253952
        %1246 = vst.msk [vmem:[#allocation3] sm:$0x1] %vm1245, %v1244
        %v1247 = vld [vmem:[#allocation4] sm:$0x1]
        %v1248 = vmul.f32 %v790, %v790
        %v1249 = vmul.f32 %v793, %v793
        %v1250 = vmul.f32 %v798, %v798
        %v1251 = vmul.f32 %v801, %v801
        %v1252 = vmul.f32 %v806, %v806
        %v1253 = vmul.f32 %v809, %v809
        %v1254 = vmul.f32 %v814, %v814
        %v1255 = vmul.f32 %v817, %v817
        %v1256 = vmul.f32 %v822, %v822
        %v1257 = vmul.f32 %v825, %v825
        %v1258 = vmul.f32 %v830, %v830
        %v1259 = vmul.f32 %v833, %v833
        %v1260 = vmul.f32 %v838, %v838
        %v1261 = vmul.f32 %v841, %v841
        %v1262 = vmul.f32 %v846, %v846
        %v1263 = vmul.f32 %v849, %v849
        %v1264 = vmul.f32 %v854, %v854
        %v1265 = vmul.f32 %v857, %v857
        %v1266 = vmul.f32 %v862, %v862
        %v1267 = vmul.f32 %v865, %v865
        %v1268 = vmul.f32 %v870, %v870
        %v1269 = vmul.f32 %v873, %v873
        %v1270 = vmul.f32 %v878, %v878
        %v1271 = vmul.f32 %v881, %v881
        %v1272 = vmul.f32 %v886, %v886
        %v1273 = vmul.f32 %v889, %v889
        %v1274 = vmul.f32 %v894, %v894
        %v1275 = vmul.f32 %v897, %v897
        %v1276 = vmul.f32 %v902, %v902
        %v1277 = vmul.f32 %v905, %v905
        %v1278 = vmul.f32 %v910, %v910
        %v1279 = vmul.f32 %v913, %v913
        %v1280 = vmul.f32 %v918, %v918
        %v1281 = vmul.f32 %v921, %v921
        %v1282 = vmul.f32 %v926, %v926
        %v1283 = vmul.f32 %v929, %v929
        %v1284 = vmul.f32 %v934, %v934
        %v1285 = vmul.f32 %v937, %v937
        %v1286 = vmul.f32 %v942, %v942
        %v1287 = vmul.f32 %v945, %v945
        %v1288 = vmul.f32 %v950, %v950
        %v1289 = vmul.f32 %v953, %v953
        %v1290 = vmul.f32 %v958, %v958
        %v1291 = vmul.f32 %v961, %v961
        %v1292 = vmul.f32 %v966, %v966
        %v1293 = vmul.f32 %v969, %v969
        %v1294 = vmul.f32 %v974, %v974
        %v1295 = vmul.f32 %v977, %v977
        %v1296 = vmul.f32 %v982, %v982
        %v1297 = vmul.f32 %v985, %v985
        %v1298 = vmul.f32 %v990, %v990
        %v1299 = vmul.f32 %v993, %v993
        %v1300 = vmul.f32 %v998, %v998
        %v1301 = vmul.f32 %v1001, %v1001
        %v1302 = vmul.f32 %v1006, %v1006
        %v1303 = vmul.f32 %v1009, %v1009
        %v1304 = vmul.f32 %v1014, %v1014
        %v1305 = vmul.f32 %v1017, %v1017
        %v1306 = vmul.f32 %v1022, %v1022
        %v1307 = vmul.f32 %v1025, %v1025
        %v1308 = vmul.f32 %v1030, %v1030
        %v1309 = vmul.f32 %v1033, %v1033
        %v1310 = vmul.f32 %v1038, %v1038
        %v1311 = vmul.f32 %v1041, %v1041
        %v1312 = vsel %vm1045, %v1248, 0.0
        %v1313 = vsel %vm1045, %v1249, 0.0
        %v1314 = vadd.f32 %v1312, %v1313
        %v1315 = vsel %vm1045, %v1250, 0.0
        %v1316 = vadd.f32 %v1314, %v1315
        %v1317 = vsel %vm1045, %v1251, 0.0
        %v1318 = vadd.f32 %v1316, %v1317
        %v1319 = vsel %vm1045, %v1252, 0.0
        %v1320 = vadd.f32 %v1318, %v1319
        %v1321 = vsel %vm1045, %v1253, 0.0
        %v1322 = vadd.f32 %v1320, %v1321
        %v1323 = vsel %vm1045, %v1254, 0.0
        %v1324 = vadd.f32 %v1322, %v1323
        %v1325 = vsel %vm1045, %v1255, 0.0
        %v1326 = vadd.f32 %v1324, %v1325
        %v1327 = vsel %vm1045, %v1256, 0.0
        %v1328 = vadd.f32 %v1326, %v1327
        %v1329 = vsel %vm1045, %v1257, 0.0
        %v1330 = vadd.f32 %v1328, %v1329
        %v1331 = vsel %vm1045, %v1258, 0.0
        %v1332 = vadd.f32 %v1330, %v1331
        %v1333 = vsel %vm1045, %v1259, 0.0
        %v1334 = vadd.f32 %v1332, %v1333
        %v1335 = vsel %vm1045, %v1260, 0.0
        %v1336 = vadd.f32 %v1334, %v1335
        %v1337 = vsel %vm1045, %v1261, 0.0
        %v1338 = vadd.f32 %v1336, %v1337
        %v1339 = vsel %vm1045, %v1262, 0.0
        %v1340 = vadd.f32 %v1338, %v1339
        %v1341 = vsel %vm1045, %v1263, 0.0
        %v1342 = vadd.f32 %v1340, %v1341
        %v1343 = vsel %vm1045, %v1264, 0.0
        %v1344 = vadd.f32 %v1342, %v1343
        %v1345 = vsel %vm1045, %v1265, 0.0
        %v1346 = vadd.f32 %v1344, %v1345
        %v1347 = vsel %vm1045, %v1266, 0.0
        %v1348 = vadd.f32 %v1346, %v1347
        %v1349 = vsel %vm1045, %v1267, 0.0
        %v1350 = vadd.f32 %v1348, %v1349
        %v1351 = vsel %vm1045, %v1268, 0.0
        %v1352 = vadd.f32 %v1350, %v1351
        %v1353 = vsel %vm1045, %v1269, 0.0
        %v1354 = vadd.f32 %v1352, %v1353
        %v1355 = vsel %vm1045, %v1270, 0.0
        %v1356 = vadd.f32 %v1354, %v1355
        %v1357 = vsel %vm1045, %v1271, 0.0
        %v1358 = vadd.f32 %v1356, %v1357
        %v1359 = vsel %vm1045, %v1272, 0.0
        %v1360 = vadd.f32 %v1358, %v1359
        %v1361 = vsel %vm1045, %v1273, 0.0
        %v1362 = vadd.f32 %v1360, %v1361
        %v1363 = vsel %vm1045, %v1274, 0.0
        %v1364 = vadd.f32 %v1362, %v1363
        %v1365 = vsel %vm1045, %v1275, 0.0
        %v1366 = vadd.f32 %v1364, %v1365
        %v1367 = vsel %vm1045, %v1276, 0.0
        %v1368 = vadd.f32 %v1366, %v1367
        %v1369 = vsel %vm1045, %v1277, 0.0
        %v1370 = vadd.f32 %v1368, %v1369
        %v1371 = vsel %vm1045, %v1278, 0.0
        %v1372 = vadd.f32 %v1370, %v1371
        %v1373 = vsel %vm1045, %v1279, 0.0
        %v1374 = vadd.f32 %v1372, %v1373
        %v1375 = vsel %vm1045, %v1280, 0.0
        %v1376 = vadd.f32 %v1374, %v1375
        %v1377 = vsel %vm1045, %v1281, 0.0
        %v1378 = vadd.f32 %v1376, %v1377
        %v1379 = vsel %vm1045, %v1282, 0.0
        %v1380 = vadd.f32 %v1378, %v1379
        %v1381 = vsel %vm1045, %v1283, 0.0
        %v1382 = vadd.f32 %v1380, %v1381
        %v1383 = vsel %vm1045, %v1284, 0.0
        %v1384 = vadd.f32 %v1382, %v1383
        %v1385 = vsel %vm1045, %v1285, 0.0
        %v1386 = vadd.f32 %v1384, %v1385
        %v1387 = vsel %vm1045, %v1286, 0.0
        %v1388 = vadd.f32 %v1386, %v1387
        %v1389 = vsel %vm1045, %v1287, 0.0
        %v1390 = vadd.f32 %v1388, %v1389
        %v1391 = vsel %vm1045, %v1288, 0.0
        %v1392 = vadd.f32 %v1390, %v1391
        %v1393 = vsel %vm1045, %v1289, 0.0
        %v1394 = vadd.f32 %v1392, %v1393
        %v1395 = vsel %vm1045, %v1290, 0.0
        %v1396 = vadd.f32 %v1394, %v1395
        %v1397 = vsel %vm1045, %v1291, 0.0
        %v1398 = vadd.f32 %v1396, %v1397
        %v1399 = vsel %vm1045, %v1292, 0.0
        %v1400 = vadd.f32 %v1398, %v1399
        %v1401 = vsel %vm1045, %v1293, 0.0
        %v1402 = vadd.f32 %v1400, %v1401
        %v1403 = vsel %vm1045, %v1294, 0.0
        %v1404 = vadd.f32 %v1402, %v1403
        %v1405 = vsel %vm1045, %v1295, 0.0
        %v1406 = vadd.f32 %v1404, %v1405
        %v1407 = vsel %vm1045, %v1296, 0.0
        %v1408 = vadd.f32 %v1406, %v1407
        %v1409 = vsel %vm1045, %v1297, 0.0
        %v1410 = vadd.f32 %v1408, %v1409
        %v1411 = vsel %vm1045, %v1298, 0.0
        %v1412 = vadd.f32 %v1410, %v1411
        %v1413 = vsel %vm1045, %v1299, 0.0
        %v1414 = vadd.f32 %v1412, %v1413
        %v1415 = vsel %vm1045, %v1300, 0.0
        %v1416 = vadd.f32 %v1414, %v1415
        %v1417 = vsel %vm1045, %v1301, 0.0
        %v1418 = vadd.f32 %v1416, %v1417
        %v1419 = vsel %vm1045, %v1302, 0.0
        %v1420 = vadd.f32 %v1418, %v1419
        %v1421 = vsel %vm1045, %v1303, 0.0
        %v1422 = vadd.f32 %v1420, %v1421
        %v1423 = vsel %vm1045, %v1304, 0.0
        %v1424 = vadd.f32 %v1422, %v1423
        %v1425 = vsel %vm1045, %v1305, 0.0
        %v1426 = vadd.f32 %v1424, %v1425
        %v1427 = vsel %vm1045, %v1306, 0.0
        %v1428 = vadd.f32 %v1426, %v1427
        %v1429 = vsel %vm1045, %v1307, 0.0
        %v1430 = vadd.f32 %v1428, %v1429
        %v1431 = vsel %vm1045, %v1308, 0.0
        %v1432 = vadd.f32 %v1430, %v1431
        %v1433 = vsel %vm1045, %v1309, 0.0
        %v1434 = vadd.f32 %v1432, %v1433
        %v1435 = vsel %vm1045, %v1310, 0.0
        %v1436 = vadd.f32 %v1434, %v1435
        %v1437 = vsel %vm1045, %v1311, 0.0
        %v1438 = vadd.f32 %v1436, %v1437
        %v1439 = vrot.slane %v1438, 4
        %v1440 = vadd.f32 %v1438, %v1439
        %v1441 = vrot.slane %v1440, 2
        %v1442 = vadd.f32 %v1440, %v1441
        %v1443 = vrot.slane %v1442, 1
        %v1444 = vadd.f32 %v1442, %v1443
        %v1445 = vadd.f32 %v1247, %v1444
        %1446 = vst.msk [vmem:[#allocation4] sm:$0x1] %vm1245, %v1445
      $region40: #{discriminator_forward.5} parent=35 // pred_fallthru
        _
      %p1447 = scmp.eq.s32.totalorder %s19, 1
      // Predicated region
      $region45: #{discriminator_forward.5} parent=35 // pred_check
        %p1448 = pneg %p1447
      $region46: #{discriminator_forward.5} parent=35 // pred_check_branch
        %1450 = sbr.rel (%p1448) target = $region48
      $region47: #{discriminator_forward.5} parent=35 // pred_region
        %v1451 = vld [vmem:[#allocation3] sm:$0x1]
        %v1452 = vmul.f32 %v1451, 0.001953125
        %v1453 = vld [vmem:[#allocation4] sm:$0x1]
        %v1454 = vmul.f32 %v1453, 0.001953125
        %v1455 = vmul.f32 %v1452, %v1452
        %v1456 = vsub.f32 %v1454, %v1455
        %v1457 = vmax.f32 %v1456, 0.0
        %v1458 = vadd.f32 %v1457, 1e-05
        %v1459 = vrsqrt.pop %v1458
        %v1460 = vld [vmem:[%s2] sm:$0x1]
        %v1461 = vmul.f32 %v1460, %v1459
        %v1462 = vld [vmem:[%s3] sm:$0x1]
        %v1463 = vmul.f32 %v1452, %v1461
        %v1464 = vsub.f32 %v1462, %v1463
        %s1465 = scalar_lea.vmem [#allocation2], %s231
        %v1466 = vld [vmem:[%s1465] sm:$0xff]
        %v1467 = vld [vmem:[%s1465 + $0x8] sm:$0xff]
        %v1468 = vld [vmem:[%s1465 + $0x10] sm:$0xff]
        %v1469 = vld [vmem:[%s1465 + $0x18] sm:$0xff]
        %v1470 = vld [vmem:[%s1465 + $0x20] sm:$0xff]
        %v1471 = vld [vmem:[%s1465 + $0x28] sm:$0xff]
        %v1472 = vld [vmem:[%s1465 + $0x30] sm:$0xff]
        %v1473 = vld [vmem:[%s1465 + $0x38] sm:$0xff]
        %v1474 = vld [vmem:[%s1465 + $0x40] sm:$0xff]
        %v1475 = vld [vmem:[%s1465 + $0x48] sm:$0xff]
        %v1476 = vld [vmem:[%s1465 + $0x50] sm:$0xff]
        %v1477 = vld [vmem:[%s1465 + $0x58] sm:$0xff]
        %v1478 = vld [vmem:[%s1465 + $0x60] sm:$0xff]
        %v1479 = vld [vmem:[%s1465 + $0x68] sm:$0xff]
        %v1480 = vld [vmem:[%s1465 + $0x70] sm:$0xff]
        %v1481 = vld [vmem:[%s1465 + $0x78] sm:$0xff]
        %v1482 = vld [vmem:[%s1465 + $0x80] sm:$0xff]
        %v1483 = vld [vmem:[%s1465 + $0x88] sm:$0xff]
        %v1484 = vld [vmem:[%s1465 + $0x90] sm:$0xff]
        %v1485 = vld [vmem:[%s1465 + $0x98] sm:$0xff]
        %v1486 = vld [vmem:[%s1465 + $0xa0] sm:$0xff]
        %v1487 = vld [vmem:[%s1465 + $0xa8] sm:$0xff]
        %v1488 = vld [vmem:[%s1465 + $0xb0] sm:$0xff]
        %v1489 = vld [vmem:[%s1465 + $0xb8] sm:$0xff]
        %v1490 = vld [vmem:[%s1465 + $0xc0] sm:$0xff]
        %v1491 = vld [vmem:[%s1465 + $0xc8] sm:$0xff]
        %v1492 = vld [vmem:[%s1465 + $0xd0] sm:$0xff]
        %v1493 = vld [vmem:[%s1465 + $0xd8] sm:$0xff]
        %v1494 = vld [vmem:[%s1465 + $0xe0] sm:$0xff]
        %v1495 = vld [vmem:[%s1465 + $0xe8] sm:$0xff]
        %v1496 = vld [vmem:[%s1465 + $0xf0] sm:$0xff]
        %v1497 = vld [vmem:[%s1465 + $0xf8] sm:$0xff]
        %v1498 = vld [vmem:[%s1465 + $0x100] sm:$0xff]
        %v1499 = vld [vmem:[%s1465 + $0x108] sm:$0xff]
        %v1500 = vld [vmem:[%s1465 + $0x110] sm:$0xff]
        %v1501 = vld [vmem:[%s1465 + $0x118] sm:$0xff]
        %v1502 = vld [vmem:[%s1465 + $0x120] sm:$0xff]
        %v1503 = vld [vmem:[%s1465 + $0x128] sm:$0xff]
        %v1504 = vld [vmem:[%s1465 + $0x130] sm:$0xff]
        %v1505 = vld [vmem:[%s1465 + $0x138] sm:$0xff]
        %v1506 = vld [vmem:[%s1465 + $0x140] sm:$0xff]
        %v1507 = vld [vmem:[%s1465 + $0x148] sm:$0xff]
        %v1508 = vld [vmem:[%s1465 + $0x150] sm:$0xff]
        %v1509 = vld [vmem:[%s1465 + $0x158] sm:$0xff]
        %v1510 = vld [vmem:[%s1465 + $0x160] sm:$0xff]
        %v1511 = vld [vmem:[%s1465 + $0x168] sm:$0xff]
        %v1512 = vld [vmem:[%s1465 + $0x170] sm:$0xff]
        %v1513 = vld [vmem:[%s1465 + $0x178] sm:$0xff]
        %v1514 = vld [vmem:[%s1465 + $0x180] sm:$0xff]
        %v1515 = vld [vmem:[%s1465 + $0x188] sm:$0xff]
        %v1516 = vld [vmem:[%s1465 + $0x190] sm:$0xff]
        %v1517 = vld [vmem:[%s1465 + $0x198] sm:$0xff]
        %v1518 = vld [vmem:[%s1465 + $0x1a0] sm:$0xff]
        %v1519 = vld [vmem:[%s1465 + $0x1a8] sm:$0xff]
        %v1520 = vld [vmem:[%s1465 + $0x1b0] sm:$0xff]
        %v1521 = vld [vmem:[%s1465 + $0x1b8] sm:$0xff]
        %v1522 = vld [vmem:[%s1465 + $0x1c0] sm:$0xff]
        %v1523 = vld [vmem:[%s1465 + $0x1c8] sm:$0xff]
        %v1524 = vld [vmem:[%s1465 + $0x1d0] sm:$0xff]
        %v1525 = vld [vmem:[%s1465 + $0x1d8] sm:$0xff]
        %v1526 = vld [vmem:[%s1465 + $0x1e0] sm:$0xff]
        %v1527 = vld [vmem:[%s1465 + $0x1e8] sm:$0xff]
        %v1528 = vld [vmem:[%s1465 + $0x1f0] sm:$0xff]
        %v1529 = vld [vmem:[%s1465 + $0x1f8] sm:$0xff]
        %v1531 = vlaneseq
        %v1532 = vshrl.u32 %v1531, 7
        %v1533 = vsub.s32 0, %v1532
        %v1534 = vrot.slane %v1461, %v1533
        %v1536 = vmul.f32 %v1466, %v1534
        %v1537 = vmul.f32 %v1467, %v1534
        %v1538 = vmul.f32 %v1468, %v1534
        %v1539 = vmul.f32 %v1469, %v1534
        %v1540 = vmul.f32 %v1470, %v1534
        %v1541 = vmul.f32 %v1471, %v1534
        %v1542 = vmul.f32 %v1472, %v1534
        %v1543 = vmul.f32 %v1473, %v1534
        %v1544 = vmul.f32 %v1474, %v1534
        %v1545 = vmul.f32 %v1475, %v1534
        %v1546 = vmul.f32 %v1476, %v1534
        %v1547 = vmul.f32 %v1477, %v1534
        %v1548 = vmul.f32 %v1478, %v1534
        %v1549 = vmul.f32 %v1479, %v1534
        %v1550 = vmul.f32 %v1480, %v1534
        %v1551 = vmul.f32 %v1481, %v1534
        %v1552 = vmul.f32 %v1482, %v1534
        %v1553 = vmul.f32 %v1483, %v1534
        %v1554 = vmul.f32 %v1484, %v1534
        %v1555 = vmul.f32 %v1485, %v1534
        %v1556 = vmul.f32 %v1486, %v1534
        %v1557 = vmul.f32 %v1487, %v1534
        %v1558 = vmul.f32 %v1488, %v1534
        %v1559 = vmul.f32 %v1489, %v1534
        %v1560 = vmul.f32 %v1490, %v1534
        %v1561 = vmul.f32 %v1491, %v1534
        %v1562 = vmul.f32 %v1492, %v1534
        %v1563 = vmul.f32 %v1493, %v1534
        %v1564 = vmul.f32 %v1494, %v1534
        %v1565 = vmul.f32 %v1495, %v1534
        %v1566 = vmul.f32 %v1496, %v1534
        %v1567 = vmul.f32 %v1497, %v1534
        %v1568 = vmul.f32 %v1498, %v1534
        %v1569 = vmul.f32 %v1499, %v1534
        %v1570 = vmul.f32 %v1500, %v1534
        %v1571 = vmul.f32 %v1501, %v1534
        %v1572 = vmul.f32 %v1502, %v1534
        %v1573 = vmul.f32 %v1503, %v1534
        %v1574 = vmul.f32 %v1504, %v1534
        %v1575 = vmul.f32 %v1505, %v1534
        %v1576 = vmul.f32 %v1506, %v1534
        %v1577 = vmul.f32 %v1507, %v1534
        %v1578 = vmul.f32 %v1508, %v1534
        %v1579 = vmul.f32 %v1509, %v1534
        %v1580 = vmul.f32 %v1510, %v1534
        %v1581 = vmul.f32 %v1511, %v1534
        %v1582 = vmul.f32 %v1512, %v1534
        %v1583 = vmul.f32 %v1513, %v1534
        %v1584 = vmul.f32 %v1514, %v1534
        %v1585 = vmul.f32 %v1515, %v1534
        %v1586 = vmul.f32 %v1516, %v1534
        %v1587 = vmul.f32 %v1517, %v1534
        %v1588 = vmul.f32 %v1518, %v1534
        %v1589 = vmul.f32 %v1519, %v1534
        %v1590 = vmul.f32 %v1520, %v1534
        %v1591 = vmul.f32 %v1521, %v1534
        %v1592 = vmul.f32 %v1522, %v1534
        %v1593 = vmul.f32 %v1523, %v1534
        %v1594 = vmul.f32 %v1524, %v1534
        %v1595 = vmul.f32 %v1525, %v1534
        %v1596 = vmul.f32 %v1526, %v1534
        %v1597 = vmul.f32 %v1527, %v1534
        %v1598 = vmul.f32 %v1528, %v1534
        %v1599 = vmul.f32 %v1529, %v1534
        %v1601 = vlaneseq
        %v1602 = vshrl.u32 %v1601, 7
        %v1603 = vsub.s32 0, %v1602
        %v1604 = vrot.slane %v1464, %v1603
        %v1606 = vadd.f32 %v1536, %v1604
        %v1607 = vadd.f32 %v1537, %v1604
        %v1608 = vadd.f32 %v1538, %v1604
        %v1609 = vadd.f32 %v1539, %v1604
        %v1610 = vadd.f32 %v1540, %v1604
        %v1611 = vadd.f32 %v1541, %v1604
        %v1612 = vadd.f32 %v1542, %v1604
        %v1613 = vadd.f32 %v1543, %v1604
        %v1614 = vadd.f32 %v1544, %v1604
        %v1615 = vadd.f32 %v1545, %v1604
        %v1616 = vadd.f32 %v1546, %v1604
        %v1617 = vadd.f32 %v1547, %v1604
        %v1618 = vadd.f32 %v1548, %v1604
        %v1619 = vadd.f32 %v1549, %v1604
        %v1620 = vadd.f32 %v1550, %v1604
        %v1621 = vadd.f32 %v1551, %v1604
        %v1622 = vadd.f32 %v1552, %v1604
        %v1623 = vadd.f32 %v1553, %v1604
        %v1624 = vadd.f32 %v1554, %v1604
        %v1625 = vadd.f32 %v1555, %v1604
        %v1626 = vadd.f32 %v1556, %v1604
        %v1627 = vadd.f32 %v1557, %v1604
        %v1628 = vadd.f32 %v1558, %v1604
        %v1629 = vadd.f32 %v1559, %v1604
        %v1630 = vadd.f32 %v1560, %v1604
        %v1631 = vadd.f32 %v1561, %v1604
        %v1632 = vadd.f32 %v1562, %v1604
        %v1633 = vadd.f32 %v1563, %v1604
        %v1634 = vadd.f32 %v1564, %v1604
        %v1635 = vadd.f32 %v1565, %v1604
        %v1636 = vadd.f32 %v1566, %v1604
        %v1637 = vadd.f32 %v1567, %v1604
        %v1638 = vadd.f32 %v1568, %v1604
        %v1639 = vadd.f32 %v1569, %v1604
        %v1640 = vadd.f32 %v1570, %v1604
        %v1641 = vadd.f32 %v1571, %v1604
        %v1642 = vadd.f32 %v1572, %v1604
        %v1643 = vadd.f32 %v1573, %v1604
        %v1644 = vadd.f32 %v1574, %v1604
        %v1645 = vadd.f32 %v1575, %v1604
        %v1646 = vadd.f32 %v1576, %v1604
        %v1647 = vadd.f32 %v1577, %v1604
        %v1648 = vadd.f32 %v1578, %v1604
        %v1649 = vadd.f32 %v1579, %v1604
        %v1650 = vadd.f32 %v1580, %v1604
        %v1651 = vadd.f32 %v1581, %v1604
        %v1652 = vadd.f32 %v1582, %v1604
        %v1653 = vadd.f32 %v1583, %v1604
        %v1654 = vadd.f32 %v1584, %v1604
        %v1655 = vadd.f32 %v1585, %v1604
        %v1656 = vadd.f32 %v1586, %v1604
        %v1657 = vadd.f32 %v1587, %v1604
        %v1658 = vadd.f32 %v1588, %v1604
        %v1659 = vadd.f32 %v1589, %v1604
        %v1660 = vadd.f32 %v1590, %v1604
        %v1661 = vadd.f32 %v1591, %v1604
        %v1662 = vadd.f32 %v1592, %v1604
        %v1663 = vadd.f32 %v1593, %v1604
        %v1664 = vadd.f32 %v1594, %v1604
        %v1665 = vadd.f32 %v1595, %v1604
        %v1666 = vadd.f32 %v1596, %v1604
        %v1667 = vadd.f32 %v1597, %v1604
        %v1668 = vadd.f32 %v1598, %v1604
        %v1669 = vadd.f32 %v1599, %v1604
        %vm1670 = vcmp.ge.f32.partialorder %v1606, 0.0
        %vm1671 = vcmp.ge.f32.partialorder %v1607, 0.0
        %vm1672 = vcmp.ge.f32.partialorder %v1608, 0.0
        %vm1673 = vcmp.ge.f32.partialorder %v1609, 0.0
        %vm1674 = vcmp.ge.f32.partialorder %v1610, 0.0
        %vm1675 = vcmp.ge.f32.partialorder %v1611, 0.0
        %vm1676 = vcmp.ge.f32.partialorder %v1612, 0.0
        %vm1677 = vcmp.ge.f32.partialorder %v1613, 0.0
        %vm1678 = vcmp.ge.f32.partialorder %v1614, 0.0
        %vm1679 = vcmp.ge.f32.partialorder %v1615, 0.0
        %vm1680 = vcmp.ge.f32.partialorder %v1616, 0.0
        %vm1681 = vcmp.ge.f32.partialorder %v1617, 0.0
        %vm1682 = vcmp.ge.f32.partialorder %v1618, 0.0
        %vm1683 = vcmp.ge.f32.partialorder %v1619, 0.0
        %vm1684 = vcmp.ge.f32.partialorder %v1620, 0.0
        %vm1685 = vcmp.ge.f32.partialorder %v1621, 0.0
        %vm1686 = vcmp.ge.f32.partialorder %v1622, 0.0
        %vm1687 = vcmp.ge.f32.partialorder %v1623, 0.0
        %vm1688 = vcmp.ge.f32.partialorder %v1624, 0.0
        %vm1689 = vcmp.ge.f32.partialorder %v1625, 0.0
        %vm1690 = vcmp.ge.f32.partialorder %v1626, 0.0
        %vm1691 = vcmp.ge.f32.partialorder %v1627, 0.0
        %vm1692 = vcmp.ge.f32.partialorder %v1628, 0.0
        %vm1693 = vcmp.ge.f32.partialorder %v1629, 0.0
        %vm1694 = vcmp.ge.f32.partialorder %v1630, 0.0
        %vm1695 = vcmp.ge.f32.partialorder %v1631, 0.0
        %vm1696 = vcmp.ge.f32.partialorder %v1632, 0.0
        %vm1697 = vcmp.ge.f32.partialorder %v1633, 0.0
        %vm1698 = vcmp.ge.f32.partialorder %v1634, 0.0
        %vm1699 = vcmp.ge.f32.partialorder %v1635, 0.0
        %vm1700 = vcmp.ge.f32.partialorder %v1636, 0.0
        %vm1701 = vcmp.ge.f32.partialorder %v1637, 0.0
        %vm1702 = vcmp.ge.f32.partialorder %v1638, 0.0
        %vm1703 = vcmp.ge.f32.partialorder %v1639, 0.0
        %vm1704 = vcmp.ge.f32.partialorder %v1640, 0.0
        %vm1705 = vcmp.ge.f32.partialorder %v1641, 0.0
        %vm1706 = vcmp.ge.f32.partialorder %v1642, 0.0
        %vm1707 = vcmp.ge.f32.partialorder %v1643, 0.0
        %vm1708 = vcmp.ge.f32.partialorder %v1644, 0.0
        %vm1709 = vcmp.ge.f32.partialorder %v1645, 0.0
        %vm1710 = vcmp.ge.f32.partialorder %v1646, 0.0
        %vm1711 = vcmp.ge.f32.partialorder %v1647, 0.0
        %vm1712 = vcmp.ge.f32.partialorder %v1648, 0.0
        %vm1713 = vcmp.ge.f32.partialorder %v1649, 0.0
        %vm1714 = vcmp.ge.f32.partialorder %v1650, 0.0
        %vm1715 = vcmp.ge.f32.partialorder %v1651, 0.0
        %vm1716 = vcmp.ge.f32.partialorder %v1652, 0.0
        %vm1717 = vcmp.ge.f32.partialorder %v1653, 0.0
        %vm1718 = vcmp.ge.f32.partialorder %v1654, 0.0
        %vm1719 = vcmp.ge.f32.partialorder %v1655, 0.0
        %vm1720 = vcmp.ge.f32.partialorder %v1656, 0.0
        %vm1721 = vcmp.ge.f32.partialorder %v1657, 0.0
        %vm1722 = vcmp.ge.f32.partialorder %v1658, 0.0
        %vm1723 = vcmp.ge.f32.partialorder %v1659, 0.0
        %vm1724 = vcmp.ge.f32.partialorder %v1660, 0.0
        %vm1725 = vcmp.ge.f32.partialorder %v1661, 0.0
        %vm1726 = vcmp.ge.f32.partialorder %v1662, 0.0
        %vm1727 = vcmp.ge.f32.partialorder %v1663, 0.0
        %vm1728 = vcmp.ge.f32.partialorder %v1664, 0.0
        %vm1729 = vcmp.ge.f32.partialorder %v1665, 0.0
        %vm1730 = vcmp.ge.f32.partialorder %v1666, 0.0
        %vm1731 = vcmp.ge.f32.partialorder %v1667, 0.0
        %vm1732 = vcmp.ge.f32.partialorder %v1668, 0.0
        %vm1733 = vcmp.ge.f32.partialorder %v1669, 0.0
        %v1734 = vmul.f32 %v1606, 0.2
        %v1735 = vmul.f32 %v1607, 0.2
        %v1736 = vmul.f32 %v1608, 0.2
        %v1737 = vmul.f32 %v1609, 0.2
        %v1738 = vmul.f32 %v1610, 0.2
        %v1739 = vmul.f32 %v1611, 0.2
        %v1740 = vmul.f32 %v1612, 0.2
        %v1741 = vmul.f32 %v1613, 0.2
        %v1742 = vmul.f32 %v1614, 0.2
        %v1743 = vmul.f32 %v1615, 0.2
        %v1744 = vmul.f32 %v1616, 0.2
        %v1745 = vmul.f32 %v1617, 0.2
        %v1746 = vmul.f32 %v1618, 0.2
        %v1747 = vmul.f32 %v1619, 0.2
        %v1748 = vmul.f32 %v1620, 0.2
        %v1749 = vmul.f32 %v1621, 0.2
        %v1750 = vmul.f32 %v1622, 0.2
        %v1751 = vmul.f32 %v1623, 0.2
        %v1752 = vmul.f32 %v1624, 0.2
        %v1753 = vmul.f32 %v1625, 0.2
        %v1754 = vmul.f32 %v1626, 0.2
        %v1755 = vmul.f32 %v1627, 0.2
        %v1756 = vmul.f32 %v1628, 0.2
        %v1757 = vmul.f32 %v1629, 0.2
        %v1758 = vmul.f32 %v1630, 0.2
        %v1759 = vmul.f32 %v1631, 0.2
        %v1760 = vmul.f32 %v1632, 0.2
        %v1761 = vmul.f32 %v1633, 0.2
        %v1762 = vmul.f32 %v1634, 0.2
        %v1763 = vmul.f32 %v1635, 0.2
        %v1764 = vmul.f32 %v1636, 0.2
        %v1765 = vmul.f32 %v1637, 0.2
        %v1766 = vmul.f32 %v1638, 0.2
        %v1767 = vmul.f32 %v1639, 0.2
        %v1768 = vmul.f32 %v1640, 0.2
        %v1769 = vmul.f32 %v1641, 0.2
        %v1770 = vmul.f32 %v1642, 0.2
        %v1771 = vmul.f32 %v1643, 0.2
        %v1772 = vmul.f32 %v1644, 0.2
        %v1773 = vmul.f32 %v1645, 0.2
        %v1774 = vmul.f32 %v1646, 0.2
        %v1775 = vmul.f32 %v1647, 0.2
        %v1776 = vmul.f32 %v1648, 0.2
        %v1777 = vmul.f32 %v1649, 0.2
        %v1778 = vmul.f32 %v1650, 0.2
        %v1779 = vmul.f32 %v1651, 0.2
        %v1780 = vmul.f32 %v1652, 0.2
        %v1781 = vmul.f32 %v1653, 0.2
        %v1782 = vmul.f32 %v1654, 0.2
        %v1783 = vmul.f32 %v1655, 0.2
        %v1784 = vmul.f32 %v1656, 0.2
        %v1785 = vmul.f32 %v1657, 0.2
        %v1786 = vmul.f32 %v1658, 0.2
        %v1787 = vmul.f32 %v1659, 0.2
        %v1788 = vmul.f32 %v1660, 0.2
        %v1789 = vmul.f32 %v1661, 0.2
        %v1790 = vmul.f32 %v1662, 0.2
        %v1791 = vmul.f32 %v1663, 0.2
        %v1792 = vmul.f32 %v1664, 0.2
        %v1793 = vmul.f32 %v1665, 0.2
        %v1794 = vmul.f32 %v1666, 0.2
        %v1795 = vmul.f32 %v1667, 0.2
        %v1796 = vmul.f32 %v1668, 0.2
        %v1797 = vmul.f32 %v1669, 0.2
        %v1798 = vsel %vm1670, %v1606, %v1734
        %v1799 = vsel %vm1671, %v1607, %v1735
        %v1800 = vsel %vm1672, %v1608, %v1736
        %v1801 = vsel %vm1673, %v1609, %v1737
        %v1802 = vsel %vm1674, %v1610, %v1738
        %v1803 = vsel %vm1675, %v1611, %v1739
        %v1804 = vsel %vm1676, %v1612, %v1740
        %v1805 = vsel %vm1677, %v1613, %v1741
        %v1806 = vsel %vm1678, %v1614, %v1742
        %v1807 = vsel %vm1679, %v1615, %v1743
        %v1808 = vsel %vm1680, %v1616, %v1744
        %v1809 = vsel %vm1681, %v1617, %v1745
        %v1810 = vsel %vm1682, %v1618, %v1746
        %v1811 = vsel %vm1683, %v1619, %v1747
        %v1812 = vsel %vm1684, %v1620, %v1748
        %v1813 = vsel %vm1685, %v1621, %v1749
        %v1814 = vsel %vm1686, %v1622, %v1750
        %v1815 = vsel %vm1687, %v1623, %v1751
        %v1816 = vsel %vm1688, %v1624, %v1752
        %v1817 = vsel %vm1689, %v1625, %v1753
        %v1818 = vsel %vm1690, %v1626, %v1754
        %v1819 = vsel %vm1691, %v1627, %v1755
        %v1820 = vsel %vm1692, %v1628, %v1756
        %v1821 = vsel %vm1693, %v1629, %v1757
        %v1822 = vsel %vm1694, %v1630, %v1758
        %v1823 = vsel %vm1695, %v1631, %v1759
        %v1824 = vsel %vm1696, %v1632, %v1760
        %v1825 = vsel %vm1697, %v1633, %v1761
        %v1826 = vsel %vm1698, %v1634, %v1762
        %v1827 = vsel %vm1699, %v1635, %v1763
        %v1828 = vsel %vm1700, %v1636, %v1764
        %v1829 = vsel %vm1701, %v1637, %v1765
        %v1830 = vsel %vm1702, %v1638, %v1766
        %v1831 = vsel %vm1703, %v1639, %v1767
        %v1832 = vsel %vm1704, %v1640, %v1768
        %v1833 = vsel %vm1705, %v1641, %v1769
        %v1834 = vsel %vm1706, %v1642, %v1770
        %v1835 = vsel %vm1707, %v1643, %v1771
        %v1836 = vsel %vm1708, %v1644, %v1772
        %v1837 = vsel %vm1709, %v1645, %v1773
        %v1838 = vsel %vm1710, %v1646, %v1774
        %v1839 = vsel %vm1711, %v1647, %v1775
        %v1840 = vsel %vm1712, %v1648, %v1776
        %v1841 = vsel %vm1713, %v1649, %v1777
        %v1842 = vsel %vm1714, %v1650, %v1778
        %v1843 = vsel %vm1715, %v1651, %v1779
        %v1844 = vsel %vm1716, %v1652, %v1780
        %v1845 = vsel %vm1717, %v1653, %v1781
        %v1846 = vsel %vm1718, %v1654, %v1782
        %v1847 = vsel %vm1719, %v1655, %v1783
        %v1848 = vsel %vm1720, %v1656, %v1784
        %v1849 = vsel %vm1721, %v1657, %v1785
        %v1850 = vsel %vm1722, %v1658, %v1786
        %v1851 = vsel %vm1723, %v1659, %v1787
        %v1852 = vsel %vm1724, %v1660, %v1788
        %v1853 = vsel %vm1725, %v1661, %v1789
        %v1854 = vsel %vm1726, %v1662, %v1790
        %v1855 = vsel %vm1727, %v1663, %v1791
        %v1856 = vsel %vm1728, %v1664, %v1792
        %v1857 = vsel %vm1729, %v1665, %v1793
        %v1858 = vsel %vm1730, %v1666, %v1794
        %v1859 = vsel %vm1731, %v1667, %v1795
        %v1860 = vsel %vm1732, %v1668, %v1796
        %v1861 = vsel %vm1733, %v1669, %v1797
        %v1862 = vpack.c.bf16 %v1799, %v1798
        %v1863 = vpack.c.bf16 %v1801, %v1800
        %v1864 = vpack.c.bf16 %v1803, %v1802
        %v1865 = vpack.c.bf16 %v1805, %v1804
        %v1866 = vpack.c.bf16 %v1807, %v1806
        %v1867 = vpack.c.bf16 %v1809, %v1808
        %v1868 = vpack.c.bf16 %v1811, %v1810
        %v1869 = vpack.c.bf16 %v1813, %v1812
        %v1870 = vpack.c.bf16 %v1815, %v1814
        %v1871 = vpack.c.bf16 %v1817, %v1816
        %v1872 = vpack.c.bf16 %v1819, %v1818
        %v1873 = vpack.c.bf16 %v1821, %v1820
        %v1874 = vpack.c.bf16 %v1823, %v1822
        %v1875 = vpack.c.bf16 %v1825, %v1824
        %v1876 = vpack.c.bf16 %v1827, %v1826
        %v1877 = vpack.c.bf16 %v1829, %v1828
        %v1878 = vpack.c.bf16 %v1831, %v1830
        %v1879 = vpack.c.bf16 %v1833, %v1832
        %v1880 = vpack.c.bf16 %v1835, %v1834
        %v1881 = vpack.c.bf16 %v1837, %v1836
        %v1882 = vpack.c.bf16 %v1839, %v1838
        %v1883 = vpack.c.bf16 %v1841, %v1840
        %v1884 = vpack.c.bf16 %v1843, %v1842
        %v1885 = vpack.c.bf16 %v1845, %v1844
        %v1886 = vpack.c.bf16 %v1847, %v1846
        %v1887 = vpack.c.bf16 %v1849, %v1848
        %v1888 = vpack.c.bf16 %v1851, %v1850
        %v1889 = vpack.c.bf16 %v1853, %v1852
        %v1890 = vpack.c.bf16 %v1855, %v1854
        %v1891 = vpack.c.bf16 %v1857, %v1856
        %v1892 = vpack.c.bf16 %v1859, %v1858
        %v1893 = vpack.c.bf16 %v1861, %v1860
        %v1926 = vunpack.c.l.b16 %v1862
        %v1927 = vunpack.c.h.b16 %v1862
        %v1928 = vunpack.c.l.b16 %v1863
        %v1929 = vunpack.c.h.b16 %v1863
        %v1930 = vunpack.c.l.b16 %v1864
        %v1931 = vunpack.c.h.b16 %v1864
        %v1932 = vunpack.c.l.b16 %v1865
        %v1933 = vunpack.c.h.b16 %v1865
        %v1934 = vunpack.c.l.b16 %v1866
        %v1935 = vunpack.c.h.b16 %v1866
        %v1936 = vunpack.c.l.b16 %v1867
        %v1937 = vunpack.c.h.b16 %v1867
        %v1938 = vunpack.c.l.b16 %v1868
        %v1939 = vunpack.c.h.b16 %v1868
        %v1940 = vunpack.c.l.b16 %v1869
        %v1941 = vunpack.c.h.b16 %v1869
        %v1942 = vunpack.c.l.b16 %v1870
        %v1943 = vunpack.c.h.b16 %v1870
        %v1944 = vunpack.c.l.b16 %v1871
        %v1945 = vunpack.c.h.b16 %v1871
        %v1946 = vunpack.c.l.b16 %v1872
        %v1947 = vunpack.c.h.b16 %v1872
        %v1948 = vunpack.c.l.b16 %v1873
        %v1949 = vunpack.c.h.b16 %v1873
        %v1950 = vunpack.c.l.b16 %v1874
        %v1951 = vunpack.c.h.b16 %v1874
        %v1952 = vunpack.c.l.b16 %v1875
        %v1953 = vunpack.c.h.b16 %v1875
        %v1954 = vunpack.c.l.b16 %v1876
        %v1955 = vunpack.c.h.b16 %v1876
        %v1956 = vunpack.c.l.b16 %v1877
        %v1957 = vunpack.c.h.b16 %v1877
        %v1958 = vunpack.c.l.b16 %v1878
        %v1959 = vunpack.c.h.b16 %v1878
        %v1960 = vunpack.c.l.b16 %v1879
        %v1961 = vunpack.c.h.b16 %v1879
        %v1962 = vunpack.c.l.b16 %v1880
        %v1963 = vunpack.c.h.b16 %v1880
        %v1964 = vunpack.c.l.b16 %v1881
        %v1965 = vunpack.c.h.b16 %v1881
        %v1966 = vunpack.c.l.b16 %v1882
        %v1967 = vunpack.c.h.b16 %v1882
        %v1968 = vunpack.c.l.b16 %v1883
        %v1969 = vunpack.c.h.b16 %v1883
        %v1970 = vunpack.c.l.b16 %v1884
        %v1971 = vunpack.c.h.b16 %v1884
        %v1972 = vunpack.c.l.b16 %v1885
        %v1973 = vunpack.c.h.b16 %v1885
        %v1974 = vunpack.c.l.b16 %v1886
        %v1975 = vunpack.c.h.b16 %v1886
        %v1976 = vunpack.c.l.b16 %v1887
        %v1977 = vunpack.c.h.b16 %v1887
        %v1978 = vunpack.c.l.b16 %v1888
        %v1979 = vunpack.c.h.b16 %v1888
        %v1980 = vunpack.c.l.b16 %v1889
        %v1981 = vunpack.c.h.b16 %v1889
        %v1982 = vunpack.c.l.b16 %v1890
        %v1983 = vunpack.c.h.b16 %v1890
        %v1984 = vunpack.c.l.b16 %v1891
        %v1985 = vunpack.c.h.b16 %v1891
        %v1986 = vunpack.c.l.b16 %v1892
        %v1987 = vunpack.c.h.b16 %v1892
        %v1988 = vunpack.c.l.b16 %v1893
        %v1989 = vunpack.c.h.b16 %v1893
        %v1990 = vpack.c.b16 %v1926, %v1926
        %v1991 = vpack.c.b16 %v1927, %v1927
        %v1992 = vpack.c.b16 %v1928, %v1928
        %v1993 = vpack.c.b16 %v1929, %v1929
        %v1994 = vpack.c.b16 %v1930, %v1930
        %v1995 = vpack.c.b16 %v1931, %v1931
        %v1996 = vpack.c.b16 %v1932, %v1932
        %v1997 = vpack.c.b16 %v1933, %v1933
        %v1998 = vpack.c.b16 %v1934, %v1934
        %v1999 = vpack.c.b16 %v1935, %v1935
        %v2000 = vpack.c.b16 %v1936, %v1936
        %v2001 = vpack.c.b16 %v1937, %v1937
        %v2002 = vpack.c.b16 %v1938, %v1938
        %v2003 = vpack.c.b16 %v1939, %v1939
        %v2004 = vpack.c.b16 %v1940, %v1940
        %v2005 = vpack.c.b16 %v1941, %v1941
        %v2006 = vpack.c.b16 %v1942, %v1942
        %v2007 = vpack.c.b16 %v1943, %v1943
        %v2008 = vpack.c.b16 %v1944, %v1944
        %v2009 = vpack.c.b16 %v1945, %v1945
        %v2010 = vpack.c.b16 %v1946, %v1946
        %v2011 = vpack.c.b16 %v1947, %v1947
        %v2012 = vpack.c.b16 %v1948, %v1948
        %v2013 = vpack.c.b16 %v1949, %v1949
        %v2014 = vpack.c.b16 %v1950, %v1950
        %v2015 = vpack.c.b16 %v1951, %v1951
        %v2016 = vpack.c.b16 %v1952, %v1952
        %v2017 = vpack.c.b16 %v1953, %v1953
        %v2018 = vpack.c.b16 %v1954, %v1954
        %v2019 = vpack.c.b16 %v1955, %v1955
        %v2020 = vpack.c.b16 %v1956, %v1956
        %v2021 = vpack.c.b16 %v1957, %v1957
        %v2022 = vpack.c.b16 %v1958, %v1958
        %v2023 = vpack.c.b16 %v1959, %v1959
        %v2024 = vpack.c.b16 %v1960, %v1960
        %v2025 = vpack.c.b16 %v1961, %v1961
        %v2026 = vpack.c.b16 %v1962, %v1962
        %v2027 = vpack.c.b16 %v1963, %v1963
        %v2028 = vpack.c.b16 %v1964, %v1964
        %v2029 = vpack.c.b16 %v1965, %v1965
        %v2030 = vpack.c.b16 %v1966, %v1966
        %v2031 = vpack.c.b16 %v1967, %v1967
        %v2032 = vpack.c.b16 %v1968, %v1968
        %v2033 = vpack.c.b16 %v1969, %v1969
        %v2034 = vpack.c.b16 %v1970, %v1970
        %v2035 = vpack.c.b16 %v1971, %v1971
        %v2036 = vpack.c.b16 %v1972, %v1972
        %v2037 = vpack.c.b16 %v1973, %v1973
        %v2038 = vpack.c.b16 %v1974, %v1974
        %v2039 = vpack.c.b16 %v1975, %v1975
        %v2040 = vpack.c.b16 %v1976, %v1976
        %v2041 = vpack.c.b16 %v1977, %v1977
        %v2042 = vpack.c.b16 %v1978, %v1978
        %v2043 = vpack.c.b16 %v1979, %v1979
        %v2044 = vpack.c.b16 %v1980, %v1980
        %v2045 = vpack.c.b16 %v1981, %v1981
        %v2046 = vpack.c.b16 %v1982, %v1982
        %v2047 = vpack.c.b16 %v1983, %v1983
        %v2048 = vpack.c.b16 %v1984, %v1984
        %v2049 = vpack.c.b16 %v1985, %v1985
        %v2050 = vpack.c.b16 %v1986, %v1986
        %v2051 = vpack.c.b16 %v1987, %v1987
        %v2052 = vpack.c.b16 %v1988, %v1988
        %v2053 = vpack.c.b16 %v1989, %v1989
        %vm2118 = vcmask 257024
        %2119 = vst.msk [vmem:[%s228] sm:$0xf] %vm2118, %v1990
        %2120 = vst.msk [vmem:[%s228 + $0x4] sm:$0xf] %vm2118, %v1991
        %2121 = vst.msk [vmem:[%s228 + $0x8] sm:$0xf] %vm2118, %v1992
        %2122 = vst.msk [vmem:[%s228 + $0xc] sm:$0xf] %vm2118, %v1993
        %2123 = vst.msk [vmem:[%s228 + $0x10] sm:$0xf] %vm2118, %v1994
        %2124 = vst.msk [vmem:[%s228 + $0x14] sm:$0xf] %vm2118, %v1995
        %2125 = vst.msk [vmem:[%s228 + $0x18] sm:$0xf] %vm2118, %v1996
        %2126 = vst.msk [vmem:[%s228 + $0x1c] sm:$0xf] %vm2118, %v1997
        %2127 = vst.msk [vmem:[%s228 + $0x20] sm:$0xf] %vm2118, %v1998
        %2128 = vst.msk [vmem:[%s228 + $0x24] sm:$0xf] %vm2118, %v1999
        %2129 = vst.msk [vmem:[%s228 + $0x28] sm:$0xf] %vm2118, %v2000
        %2130 = vst.msk [vmem:[%s228 + $0x2c] sm:$0xf] %vm2118, %v2001
        %2131 = vst.msk [vmem:[%s228 + $0x30] sm:$0xf] %vm2118, %v2002
        %2132 = vst.msk [vmem:[%s228 + $0x34] sm:$0xf] %vm2118, %v2003
        %2133 = vst.msk [vmem:[%s228 + $0x38] sm:$0xf] %vm2118, %v2004
        %2134 = vst.msk [vmem:[%s228 + $0x3c] sm:$0xf] %vm2118, %v2005
        %2135 = vst.msk [vmem:[%s228 + $0x40] sm:$0xf] %vm2118, %v2006
        %2136 = vst.msk [vmem:[%s228 + $0x44] sm:$0xf] %vm2118, %v2007
        %2137 = vst.msk [vmem:[%s228 + $0x48] sm:$0xf] %vm2118, %v2008
        %2138 = vst.msk [vmem:[%s228 + $0x4c] sm:$0xf] %vm2118, %v2009
        %2139 = vst.msk [vmem:[%s228 + $0x50] sm:$0xf] %vm2118, %v2010
        %2140 = vst.msk [vmem:[%s228 + $0x54] sm:$0xf] %vm2118, %v2011
        %2141 = vst.msk [vmem:[%s228 + $0x58] sm:$0xf] %vm2118, %v2012
        %2142 = vst.msk [vmem:[%s228 + $0x5c] sm:$0xf] %vm2118, %v2013
        %2143 = vst.msk [vmem:[%s228 + $0x60] sm:$0xf] %vm2118, %v2014
        %2144 = vst.msk [vmem:[%s228 + $0x64] sm:$0xf] %vm2118, %v2015
        %2145 = vst.msk [vmem:[%s228 + $0x68] sm:$0xf] %vm2118, %v2016
        %2146 = vst.msk [vmem:[%s228 + $0x6c] sm:$0xf] %vm2118, %v2017
        %2147 = vst.msk [vmem:[%s228 + $0x70] sm:$0xf] %vm2118, %v2018
        %2148 = vst.msk [vmem:[%s228 + $0x74] sm:$0xf] %vm2118, %v2019
        %2149 = vst.msk [vmem:[%s228 + $0x78] sm:$0xf] %vm2118, %v2020
        %2150 = vst.msk [vmem:[%s228 + $0x7c] sm:$0xf] %vm2118, %v2021
        %2151 = vst.msk [vmem:[%s228 + $0x80] sm:$0xf] %vm2118, %v2022
        %2152 = vst.msk [vmem:[%s228 + $0x84] sm:$0xf] %vm2118, %v2023
        %2153 = vst.msk [vmem:[%s228 + $0x88] sm:$0xf] %vm2118, %v2024
        %2154 = vst.msk [vmem:[%s228 + $0x8c] sm:$0xf] %vm2118, %v2025
        %2155 = vst.msk [vmem:[%s228 + $0x90] sm:$0xf] %vm2118, %v2026
        %2156 = vst.msk [vmem:[%s228 + $0x94] sm:$0xf] %vm2118, %v2027
        %2157 = vst.msk [vmem:[%s228 + $0x98] sm:$0xf] %vm2118, %v2028
        %2158 = vst.msk [vmem:[%s228 + $0x9c] sm:$0xf] %vm2118, %v2029
        %2159 = vst.msk [vmem:[%s228 + $0xa0] sm:$0xf] %vm2118, %v2030
        %2160 = vst.msk [vmem:[%s228 + $0xa4] sm:$0xf] %vm2118, %v2031
        %2161 = vst.msk [vmem:[%s228 + $0xa8] sm:$0xf] %vm2118, %v2032
        %2162 = vst.msk [vmem:[%s228 + $0xac] sm:$0xf] %vm2118, %v2033
        %2163 = vst.msk [vmem:[%s228 + $0xb0] sm:$0xf] %vm2118, %v2034
        %2164 = vst.msk [vmem:[%s228 + $0xb4] sm:$0xf] %vm2118, %v2035
        %2165 = vst.msk [vmem:[%s228 + $0xb8] sm:$0xf] %vm2118, %v2036
        %2166 = vst.msk [vmem:[%s228 + $0xbc] sm:$0xf] %vm2118, %v2037
        %2167 = vst.msk [vmem:[%s228 + $0xc0] sm:$0xf] %vm2118, %v2038
        %2168 = vst.msk [vmem:[%s228 + $0xc4] sm:$0xf] %vm2118, %v2039
        %2169 = vst.msk [vmem:[%s228 + $0xc8] sm:$0xf] %vm2118, %v2040
        %2170 = vst.msk [vmem:[%s228 + $0xcc] sm:$0xf] %vm2118, %v2041
        %2171 = vst.msk [vmem:[%s228 + $0xd0] sm:$0xf] %vm2118, %v2042
        %2172 = vst.msk [vmem:[%s228 + $0xd4] sm:$0xf] %vm2118, %v2043
        %2173 = vst.msk [vmem:[%s228 + $0xd8] sm:$0xf] %vm2118, %v2044
        %2174 = vst.msk [vmem:[%s228 + $0xdc] sm:$0xf] %vm2118, %v2045
        %2175 = vst.msk [vmem:[%s228 + $0xe0] sm:$0xf] %vm2118, %v2046
        %2176 = vst.msk [vmem:[%s228 + $0xe4] sm:$0xf] %vm2118, %v2047
        %2177 = vst.msk [vmem:[%s228 + $0xe8] sm:$0xf] %vm2118, %v2048
        %2178 = vst.msk [vmem:[%s228 + $0xec] sm:$0xf] %vm2118, %v2049
        %2179 = vst.msk [vmem:[%s228 + $0xf0] sm:$0xf] %vm2118, %v2050
        %2180 = vst.msk [vmem:[%s228 + $0xf4] sm:$0xf] %vm2118, %v2051
        %2181 = vst.msk [vmem:[%s228 + $0xf8] sm:$0xf] %vm2118, %v2052
        %2182 = vst.msk [vmem:[%s228 + $0xfc] sm:$0xf] %vm2118, %v2053
      $region48: #{discriminator_forward.5} parent=35 // pred_fallthru
        _
      %s2183 = smul.u32 64, %s20
      %p2184 = scmp.lt.s32.totalorder %s2183, 63
      %s2185 = scalar_select %p2184, %s2183, 63
      %s2186 = smul.addr %s2185, 4
      %s2187 = scalar_lea.vmem %s4, %s2186
      // Predicated region
      $region49: #{discriminator_forward.5} parent=35 // pred_check
        %p2188 = pneg %p138
      $region50: #{discriminator_forward.5} parent=35 // pred_check_branch
        %2190 = sbr.rel (%p2188) target = $region52
      $region51: #{discriminator_forward.5} parent=35 // pred_region
        %s2191 = smul.u32 64, %s20
      $region52: #{discriminator_forward.5} parent=35 // pred_fallthru
        _
      // Predicated region
      $region53: #{discriminator_forward.5} parent=35 // pred_check
        %p2192 = pneg %p138
      $region54: #{discriminator_forward.5} parent=35 // pred_check_branch
        %2194 = sbr.rel (%p2192) target = $region56
      $region55: #{discriminator_forward.5} parent=35 // pred_region
        %s2195 = smul.u32 64, %s20
        %p2196 = scmp.lt.s32.totalorder %s2195, 63
        %s2197 = scalar_select %p2196, %s2195, 63
        %s2198 = smul.addr %s2197, 4
        %s2199 = scalar_lea.vmem %s4, %s2198
      $region56: #{discriminator_forward.5} parent=35 // pred_fallthru
        _
    $region36: #{discriminator_forward.5} parent=5 // pred_fallthru
      _
    %p2200 = scmp.le.s32.totalorder 2, %s10
    // Predicated region
    $region57: #{discriminator_forward.5} parent=5 // pred_check
      %p2201 = pneg %p2200
    $region58: #{discriminator_forward.5} parent=5 // pred_check_branch
      %2203 = sbr.rel (%p2201) target = $region60
    $region59: #{discriminator_forward.5} parent=5 // pred_region
      %s2204 = ssub.s32 %s10, 2
    $region60: #{discriminator_forward.5} parent=5 // pred_fallthru
      _
  $region6: #{discriminator_forward.5} parent=0 // loop_footer
    %s14 = sadd.s32 1, %s10
  $region7: #{discriminator_forward.5} parent=0 // loop_footer_branch
    %9 = sbr.rel target = $region3
  $region8: #{discriminator_forward.5} parent=0 // loop_exit
    _

// kernel: discriminator_forward.6
$region0: #{discriminator_forward.6}
  #allocation0 [shape = 'u32[]', space=smem, size = 0x4, offset = 0x4, fixed_abs, tag = 'smem constant byte address 0x4 - core index']
  #allocation1 [shape = 'u32[144,128]{1,0:T(1,128)}', space=vmem, size = 0x12000, scoped, tag = 'internal scratch']
  #allocation2 [shape = 'f32[128,64]{1,0:T(8,128)}', space=vmem, size = 0x10000, scoped, tag = 'scratch operand']
  #allocation3 [shape = 'f32[1,64]{1,0:T(1,128)}', space=vmem, size = 0x200, scoped, tag = 'scratch operand']
  #allocation4 [shape = 'f32[1,64]{1,0:T(1,128)}', space=vmem, size = 0x200, scoped, tag = 'scratch operand']
  %s0 = inlined_call_operand.vmem [shape: bf16[128,512], index: 0, kind: input, shape index: {}]
  %s1 = inlined_call_operand.vmem [shape: bf16[512,64], index: 1, kind: input, shape index: {}]
  %s2 = inlined_call_operand.vmem [shape: f32[1,64], index: 2, kind: input, shape index: {}]
  %s3 = inlined_call_operand.vmem [shape: f32[1,64], index: 3, kind: input, shape index: {}]
  %s4 = inlined_call_operand.vmem [shape: bf16[128,64], index: 4, kind: output, shape index: {}]
  %s5 = sld [smem:[#allocation0]]
  $region61: #{discriminator_forward.6} parent=0
    _
  %s7 = ssub.s32 1, %s5
  %s8 = scalar_select 0, %s7, %s5
  loop: start=0, step=1, limit=4
  $region2: #{discriminator_forward.6} parent=0 // loop_pre_header
    _
  $region3: #{discriminator_forward.6} parent=0 // loop_header
    %s10 = sphi 0, %s14
    %p11 = scmp.ge.s32.totalorder %s10, 4
    %s17 = sphi 0, %s29
    %s18 = sphi 0, %s25
    %s19 = sphi 0, %s17
    %s20 = sphi 0, %s18
    %s21 = sphi 0, %s19
    %s22 = sphi 0, %s20
    %s36 = sphi 0, %s38
    %s39 = sphi 0, %s36
    %s40 = sphi 0, %s39
    %s56 = sphi 0, %s40
    %s60 = sphi 0, %s60
    %s62 = sphi 0, %s60
    %s63 = sphi 0, %s62
    %s77 = sphi 0, %s63
    %s81 = sphi 0, %s81
    %s83 = sphi 0, %s81
    %s84 = sphi 0, %s83
    %s98 = sphi 0, %s84
    %s102 = sphi 0, %s102
    %s104 = sphi 0, %s102
    %s105 = sphi 0, %s104
    %s119 = sphi 0, %s105
    %s125 = sphi 0, %s127
    %s128 = sphi 0, %s125
    %s129 = sphi 0, %s128
    %s145 = sphi 0, %s129
  $region4: #{discriminator_forward.6} parent=0 // loop_header_branch
    %13 = sbr.rel (%p11) target = $region8
  $region5: #{discriminator_forward.6} parent=0 // loop_body
    %s15 = ssub.s32 %s10, 1
    %s16 = ssub.s32 %s10, 2
    %s23 = sadd.s32 1, %s18
    %p24 = scmp.ge.s32.totalorder %s23, 1
    %s25 = scalar_select %p24, 0, %s23
    %s26 = sadd.s32 1, %s17
    %s27 = scalar_select %p24, %s26, %s17
    %p28 = scmp.ge.s32.totalorder %s27, 2
    %s29 = scalar_select %p28, 0, %s27
    %s30 = ssub.s32 1, %s17
    %s31 = smul.u32 %s18, %s30
    %s32 = ssub.s32 1, %s29
    %s33 = smul.u32 %s25, %s32
    %s34 = ssub.s32 %s31, %s33
    %p35 = scmp.eq.s32.totalorder %s34, 0
    %s37 = sadd.s32 %s36, 1
    %s38 = scalar_select %p35, %s36, %s37
    %p41 = pneg %p35
    %p42 = scmp.eq.s32.totalorder %s10, 1
    %p43 = por %p41, %p42
    %p44 = scmp.ne.s32.totalorder %s36, %s39
    %p45 = scmp.eq.s32.totalorder %s10, 0
    %p46 = por %p44, %p45
    %p47 = scmp.ne.s32.totalorder %s36, %s39
    %p48 = scmp.eq.s32.totalorder %s15, 1
    %p49 = por %p47, %p48
    %p50 = scmp.ne.s32.totalorder %s39, %s40
    %p51 = scmp.eq.s32.totalorder %s15, 0
    %p52 = por %p50, %p51
    %p53 = scmp.ne.s32.totalorder %s39, %s40
    %p54 = scmp.eq.s32.totalorder %s16, 1
    %p55 = por %p53, %p54
    %p57 = scmp.ne.s32.totalorder %s40, %s56
    %p58 = scmp.eq.s32.totalorder %s16, 0
    %p59 = por %p57, %p58
    %s61 = sadd.s32 %s60, 1
    %p64 = scmp.eq.s32.totalorder %s10, 1
    %p65 = scmp.ne.s32.totalorder %s60, %s62
    %p66 = scmp.eq.s32.totalorder %s10, 0
    %p67 = por %p65, %p66
    %p68 = scmp.ne.s32.totalorder %s60, %s62
    %p69 = scmp.eq.s32.totalorder %s15, 1
    %p70 = por %p68, %p69
    %p71 = scmp.ne.s32.totalorder %s62, %s63
    %p72 = scmp.eq.s32.totalorder %s15, 0
    %p73 = por %p71, %p72
    %p74 = scmp.ne.s32.totalorder %s62, %s63
    %p75 = scmp.eq.s32.totalorder %s16, 1
    %p76 = por %p74, %p75
    %p78 = scmp.ne.s32.totalorder %s63, %s77
    %p79 = scmp.eq.s32.totalorder %s16, 0
    %p80 = por %p78, %p79
    %s82 = sadd.s32 %s81, 1
    %p85 = scmp.eq.s32.totalorder %s10, 1
    %p86 = scmp.ne.s32.totalorder %s81, %s83
    %p87 = scmp.eq.s32.totalorder %s10, 0
    %p88 = por %p86, %p87
    %p89 = scmp.ne.s32.totalorder %s81, %s83
    %p90 = scmp.eq.s32.totalorder %s15, 1
    %p91 = por %p89, %p90
    %p92 = scmp.ne.s32.totalorder %s83, %s84
    %p93 = scmp.eq.s32.totalorder %s15, 0
    %p94 = por %p92, %p93
    %p95 = scmp.ne.s32.totalorder %s83, %s84
    %p96 = scmp.eq.s32.totalorder %s16, 1
    %p97 = por %p95, %p96
    %p99 = scmp.ne.s32.totalorder %s84, %s98
    %p100 = scmp.eq.s32.totalorder %s16, 0
    %p101 = por %p99, %p100
    %s103 = sadd.s32 %s102, 1
    %p106 = scmp.eq.s32.totalorder %s10, 1
    %p107 = scmp.ne.s32.totalorder %s102, %s104
    %p108 = scmp.eq.s32.totalorder %s10, 0
    %p109 = por %p107, %p108
    %p110 = scmp.ne.s32.totalorder %s102, %s104
    %p111 = scmp.eq.s32.totalorder %s15, 1
    %p112 = por %p110, %p111
    %p113 = scmp.ne.s32.totalorder %s104, %s105
    %p114 = scmp.eq.s32.totalorder %s15, 0
    %p115 = por %p113, %p114
    %p116 = scmp.ne.s32.totalorder %s104, %s105
    %p117 = scmp.eq.s32.totalorder %s16, 1
    %p118 = por %p116, %p117
    %p120 = scmp.ne.s32.totalorder %s105, %s119
    %p121 = scmp.eq.s32.totalorder %s16, 0
    %p122 = por %p120, %p121
    %s123 = ssub.s32 %s18, %s25
    %p124 = scmp.eq.s32.totalorder %s123, 0
    %s126 = sadd.s32 %s125, 1
    %s127 = scalar_select %p124, %s125, %s126
    %p130 = pneg %p124
    %p131 = scmp.eq.s32.totalorder %s10, 1
    %p132 = por %p130, %p131
    %p133 = scmp.ne.s32.totalorder %s125, %s128
    %p134 = scmp.eq.s32.totalorder %s10, 0
    %p135 = por %p133, %p134
    %p136 = scmp.ne.s32.totalorder %s125, %s128
    %p137 = scmp.eq.s32.totalorder %s15, 1
    %p138 = por %p136, %p137
    %p139 = scmp.ne.s32.totalorder %s128, %s129
    %p140 = scmp.eq.s32.totalorder %s15, 0
    %p141 = por %p139, %p140
    %p142 = scmp.ne.s32.totalorder %s128, %s129
    %p143 = scmp.eq.s32.totalorder %s16, 1
    %p144 = por %p142, %p143
    %p146 = scmp.ne.s32.totalorder %s129, %s145
    %p147 = scmp.eq.s32.totalorder %s16, 0
    %p148 = por %p146, %p147
    %p149 = scmp.le.s32.totalorder 1, %s10
    %p150 = scmp.lt.s32.totalorder %s10, 3
    %p151 = pnand %p149, %p150
    %p152 = pneg %p151
    // Predicated region
    $region9: #{discriminator_forward.6} parent=5 // pred_check
      _
    $region10: #{discriminator_forward.6} parent=5 // pred_check_branch
      %154 = sbr.rel (%p151) target = $region12
    $region11: #{discriminator_forward.6} parent=5 // pred_region
      %s155 = ssub.s32 %s10, 1
      // Predicated region
      $region13: #{discriminator_forward.6} parent=11 // pred_check
        %p156 = pneg %p73
      $region14: #{discriminator_forward.6} parent=11 // pred_check_branch
        %158 = sbr.rel (%p156) target = $region16
      $region15: #{discriminator_forward.6} parent=11 // pred_region
        _
      $region16: #{discriminator_forward.6} parent=11 // pred_fallthru
        _
      // Predicated region
      $region17: #{discriminator_forward.6} parent=11 // pred_check
        %p159 = pneg %p94
      $region18: #{discriminator_forward.6} parent=11 // pred_check_branch
        %161 = sbr.rel (%p159) target = $region20
      $region19: #{discriminator_forward.6} parent=11 // pred_region
        _
      $region20: #{discriminator_forward.6} parent=11 // pred_fallthru
        _
      // Predicated region
      $region21: #{discriminator_forward.6} parent=11 // pred_check
        %p162 = pneg %p115
      $region22: #{discriminator_forward.6} parent=11 // pred_check_branch
        %164 = sbr.rel (%p162) target = $region24
      $region23: #{discriminator_forward.6} parent=11 // pred_region
        _
      $region24: #{discriminator_forward.6} parent=11 // pred_fallthru
        _
    $region12: #{discriminator_forward.6} parent=5 // pred_fallthru
      _
    %p165 = scmp.lt.s32.totalorder %s10, 2
    // Predicated region
    $region25: #{discriminator_forward.6} parent=5 // pred_check
      %p166 = pneg %p165
    $region26: #{discriminator_forward.6} parent=5 // pred_check_branch
      %168 = sbr.rel (%p166) target = $region28
    $region27: #{discriminator_forward.6} parent=5 // pred_region
      // Predicated region
      $region29: #{discriminator_forward.6} parent=27 // pred_check
        %p169 = pneg %p46
      $region30: #{discriminator_forward.6} parent=27 // pred_check_branch
        %171 = sbr.rel (%p169) target = $region32
      $region31: #{discriminator_forward.6} parent=27 // pred_region
        %s172 = ssub.s32 1, %s17
        %s173 = smul.u32 %s18, %s172
        %s174 = smul.u32 16, %s173
        %p175 = scmp.lt.s32.totalorder %s174, 15
        %s176 = scalar_select %p175, %s174, 15
        %s177 = smul.addr %s176, 4
        %s178 = smul.addr %s177, 4
        %s179 = scalar_lea.vmem %s0, %s178
        %s180 = ssub.s32 1, %s17
        %s181 = smul.u32 %s18, %s180
        %s182 = smul.u32 16, %s181
      $region32: #{discriminator_forward.6} parent=27 // pred_fallthru
        _
    $region28: #{discriminator_forward.6} parent=5 // pred_fallthru
      _
    %p183 = scmp.le.s32.totalorder 1, %s10
    %p184 = scmp.lt.s32.totalorder %s10, 3
    %p185 = pnand %p183, %p184
    %p186 = pneg %p185
    // Predicated region
    $region33: #{discriminator_forward.6} parent=5 // pred_check
      _
    $region34: #{discriminator_forward.6} parent=5 // pred_check_branch
      %188 = sbr.rel (%p185) target = $region36
    $region35: #{discriminator_forward.6} parent=5 // pred_region
      %s189 = ssub.s32 %s10, 1
      %s190 = ssub.s32 1, %s19
      %s191 = smul.u32 %s20, %s190
      %s192 = smul.u32 16, %s191
      %p193 = scmp.lt.s32.totalorder %s192, 15
      %s194 = scalar_select %p193, %s192, 15
      %s195 = smul.addr %s194, 4
      %s196 = smul.addr %s195, 4
      %s197 = scalar_lea.vmem %s0, %s196
      %p198 = pneg %p52
      %p199 = pneg %p49
      %p200 = pneg %p73
      %p201 = pneg %p70
      %p202 = pneg %p94
      %p203 = pneg %p91
      %p204 = pneg %p115
      %p205 = pneg %p112
      %p206 = pneg %p141
      %p207 = pneg %p138
      %s208 = smul.u32 16, %s20
      %p209 = scmp.lt.s32.totalorder %s208, 15
      %s210 = scalar_select %p209, %s208, 15
      %s211 = smul.addr %s210, 4
      %s212 = scalar_lea.vmem %s4, %s211
      %s213 = ssub.s32 1, %s19
      %s214 = smul.u32 %s20, %s213
      %s215 = smul.u32 16, %s214
      %p216 = scmp.lt.s32.totalorder %s215, 15
      %s217 = scalar_select %p216, %s215, 15
      %s218 = smul.addr %s217, 4
      %s219 = smul.addr %s218, 4
      %s220 = scalar_lea.vmem %s0, %s219
      %s221 = ssub.s32 1, %s19
      %s222 = smul.u32 %s20, %s221
      %s223 = smul.u32 16, %s222
      %s224 = smul.u32 16, %s20
      %p225 = scmp.lt.s32.totalorder %s224, 15
      %s226 = scalar_select %p225, %s224, 15
      %s227 = smul.addr %s226, 4
      %s228 = scalar_lea.vmem %s4, %s227
      %s229 = smul.u32 16, %s20
      %s231 = smul.u32 %s20, 128
      %p232 = scmp.eq.s32.totalorder %s19, 0
      // Predicated region
      $region37: #{discriminator_forward.6} parent=35 // pred_check
        %p233 = pneg %p232
      $region38: #{discriminator_forward.6} parent=35 // pred_check_branch
        %235 = sbr.rel (%p233) target = $region40
      $region39: #{discriminator_forward.6} parent=35 // pred_region
        %p236 = scmp.eq.s32.totalorder %s20, 0
        // Predicated region
        $region41: #{discriminator_forward.6} parent=39 // pred_check
          %p237 = pneg %p236
        $region42: #{discriminator_forward.6} parent=39 // pred_check_branch
          %239 = sbr.rel (%p237) target = $region44
        $region43: #{discriminator_forward.6} parent=39 // pred_region
          %vm240 = vcmask 516096
          %241 = vst.msk [vmem:[#allocation3] sm:$0x1] %vm240, 0.0
          %242 = vst.msk [vmem:[#allocation4] sm:$0x1] %vm240, 0.0
        $region44: #{discriminator_forward.6} parent=39 // pred_fallthru
          _
        %v243 = vld [vmem:[%s220] sm:$0xff]
        %v244 = vld [vmem:[%s220 + $0x8] sm:$0xff]
        %v245 = vld [vmem:[%s220 + $0x10] sm:$0xff]
        %v246 = vld [vmem:[%s220 + $0x18] sm:$0xff]
        %v247 = vld [vmem:[%s220 + $0x20] sm:$0xff]
        %v248 = vld [vmem:[%s220 + $0x28] sm:$0xff]
        %v249 = vld [vmem:[%s220 + $0x30] sm:$0xff]
        %v250 = vld [vmem:[%s220 + $0x38] sm:$0xff]
        %v251 = vld [vmem:[%s220 + $0x40] sm:$0xff]
        %v252 = vld [vmem:[%s220 + $0x48] sm:$0xff]
        %v253 = vld [vmem:[%s220 + $0x50] sm:$0xff]
        %v254 = vld [vmem:[%s220 + $0x58] sm:$0xff]
        %v255 = vld [vmem:[%s220 + $0x60] sm:$0xff]
        %v256 = vld [vmem:[%s220 + $0x68] sm:$0xff]
        %v257 = vld [vmem:[%s220 + $0x70] sm:$0xff]
        %v258 = vld [vmem:[%s220 + $0x78] sm:$0xff]
        %v259 = vld [vmem:[%s220 + $0x80] sm:$0xff]
        %v260 = vld [vmem:[%s220 + $0x88] sm:$0xff]
        %v261 = vld [vmem:[%s220 + $0x90] sm:$0xff]
        %v262 = vld [vmem:[%s220 + $0x98] sm:$0xff]
        %v263 = vld [vmem:[%s220 + $0xa0] sm:$0xff]
        %v264 = vld [vmem:[%s220 + $0xa8] sm:$0xff]
        %v265 = vld [vmem:[%s220 + $0xb0] sm:$0xff]
        %v266 = vld [vmem:[%s220 + $0xb8] sm:$0xff]
        %v267 = vld [vmem:[%s220 + $0xc0] sm:$0xff]
        %v268 = vld [vmem:[%s220 + $0xc8] sm:$0xff]
        %v269 = vld [vmem:[%s220 + $0xd0] sm:$0xff]
        %v270 = vld [vmem:[%s220 + $0xd8] sm:$0xff]
        %v271 = vld [vmem:[%s220 + $0xe0] sm:$0xff]
        %v272 = vld [vmem:[%s220 + $0xe8] sm:$0xff]
        %v273 = vld [vmem:[%s220 + $0xf0] sm:$0xff]
        %v274 = vld [vmem:[%s220 + $0xf8] sm:$0xff]
        %v275 = vld [vmem:[%s1] sm:$0xf]
        %v276 = vld [vmem:[%s1 + $0x4] sm:$0xf]
        %v277 = vld [vmem:[%s1 + $0x8] sm:$0xf]
        %v278 = vld [vmem:[%s1 + $0xc] sm:$0xf]
        %v279 = vld [vmem:[%s1 + $0x10] sm:$0xf]
        %v280 = vld [vmem:[%s1 + $0x14] sm:$0xf]
        %v281 = vld [vmem:[%s1 + $0x18] sm:$0xf]
        %v282 = vld [vmem:[%s1 + $0x1c] sm:$0xf]
        %v283 = vld [vmem:[%s1 + $0x20] sm:$0xf]
        %v284 = vld [vmem:[%s1 + $0x24] sm:$0xf]
        %v285 = vld [vmem:[%s1 + $0x28] sm:$0xf]
        %v286 = vld [vmem:[%s1 + $0x2c] sm:$0xf]
        %v287 = vld [vmem:[%s1 + $0x30] sm:$0xf]
        %v288 = vld [vmem:[%s1 + $0x34] sm:$0xf]
        %v289 = vld [vmem:[%s1 + $0x38] sm:$0xf]
        %v290 = vld [vmem:[%s1 + $0x3c] sm:$0xf]
        %v291 = vld [vmem:[%s1 + $0x40] sm:$0xf]
        %v292 = vld [vmem:[%s1 + $0x44] sm:$0xf]
        %v293 = vld [vmem:[%s1 + $0x48] sm:$0xf]
        %v294 = vld [vmem:[%s1 + $0x4c] sm:$0xf]
        %v295 = vld [vmem:[%s1 + $0x50] sm:$0xf]
        %v296 = vld [vmem:[%s1 + $0x54] sm:$0xf]
        %v297 = vld [vmem:[%s1 + $0x58] sm:$0xf]
        %v298 = vld [vmem:[%s1 + $0x5c] sm:$0xf]
        %v299 = vld [vmem:[%s1 + $0x60] sm:$0xf]
        %v300 = vld [vmem:[%s1 + $0x64] sm:$0xf]
        %v301 = vld [vmem:[%s1 + $0x68] sm:$0xf]
        %v302 = vld [vmem:[%s1 + $0x6c] sm:$0xf]
        %v303 = vld [vmem:[%s1 + $0x70] sm:$0xf]
        %v304 = vld [vmem:[%s1 + $0x74] sm:$0xf]
        %v305 = vld [vmem:[%s1 + $0x78] sm:$0xf]
        %v306 = vld [vmem:[%s1 + $0x7c] sm:$0xf]
        %v307 = vld [vmem:[%s1 + $0x80] sm:$0xf]
        %v308 = vld [vmem:[%s1 + $0x84] sm:$0xf]
        %v309 = vld [vmem:[%s1 + $0x88] sm:$0xf]
        %v310 = vld [vmem:[%s1 + $0x8c] sm:$0xf]
        %v311 = vld [vmem:[%s1 + $0x90] sm:$0xf]
        %v312 = vld [vmem:[%s1 + $0x94] sm:$0xf]
        %v313 = vld [vmem:[%s1 + $0x98] sm:$0xf]
        %v314 = vld [vmem:[%s1 + $0x9c] sm:$0xf]
        %v315 = vld [vmem:[%s1 + $0xa0] sm:$0xf]
        %v316 = vld [vmem:[%s1 + $0xa4] sm:$0xf]
        %v317 = vld [vmem:[%s1 + $0xa8] sm:$0xf]
        %v318 = vld [vmem:[%s1 + $0xac] sm:$0xf]
        %v319 = vld [vmem:[%s1 + $0xb0] sm:$0xf]
        %v320 = vld [vmem:[%s1 + $0xb4] sm:$0xf]
        %v321 = vld [vmem:[%s1 + $0xb8] sm:$0xf]
        %v322 = vld [vmem:[%s1 + $0xbc] sm:$0xf]
        %v323 = vld [vmem:[%s1 + $0xc0] sm:$0xf]
        %v324 = vld [vmem:[%s1 + $0xc4] sm:$0xf]
        %v325 = vld [vmem:[%s1 + $0xc8] sm:$0xf]
        %v326 = vld [vmem:[%s1 + $0xcc] sm:$0xf]
        %v327 = vld [vmem:[%s1 + $0xd0] sm:$0xf]
        %v328 = vld [vmem:[%s1 + $0xd4] sm:$0xf]
        %v329 = vld [vmem:[%s1 + $0xd8] sm:$0xf]
        %v330 = vld [vmem:[%s1 + $0xdc] sm:$0xf]
        %v331 = vld [vmem:[%s1 + $0xe0] sm:$0xf]
        %v332 = vld [vmem:[%s1 + $0xe4] sm:$0xf]
        %v333 = vld [vmem:[%s1 + $0xe8] sm:$0xf]
        %v334 = vld [vmem:[%s1 + $0xec] sm:$0xf]
        %v335 = vld [vmem:[%s1 + $0xf0] sm:$0xf]
        %v336 = vld [vmem:[%s1 + $0xf4] sm:$0xf]
        %v337 = vld [vmem:[%s1 + $0xf8] sm:$0xf]
        %v338 = vld [vmem:[%s1 + $0xfc] sm:$0xf]
        %v371 = vunpack.c.l.b16 %v243
        %v372 = vunpack.c.h.b16 %v243
        %v373 = vunpack.c.l.b16 %v244
        %v374 = vunpack.c.h.b16 %v244
        %v375 = vunpack.c.l.b16 %v245
        %v376 = vunpack.c.h.b16 %v245
        %v377 = vunpack.c.l.b16 %v246
        %v378 = vunpack.c.h.b16 %v246
        %v379 = vunpack.c.l.b16 %v247
        %v380 = vunpack.c.h.b16 %v247
        %v381 = vunpack.c.l.b16 %v248
        %v382 = vunpack.c.h.b16 %v248
        %v383 = vunpack.c.l.b16 %v249
        %v384 = vunpack.c.h.b16 %v249
        %v385 = vunpack.c.l.b16 %v250
        %v386 = vunpack.c.h.b16 %v250
        %v387 = vunpack.c.l.b16 %v251
        %v388 = vunpack.c.h.b16 %v251
        %v389 = vunpack.c.l.b16 %v252
        %v390 = vunpack.c.h.b16 %v252
        %v391 = vunpack.c.l.b16 %v253
        %v392 = vunpack.c.h.b16 %v253
        %v393 = vunpack.c.l.b16 %v254
        %v394 = vunpack.c.h.b16 %v254
        %v395 = vunpack.c.l.b16 %v255
        %v396 = vunpack.c.h.b16 %v255
        %v397 = vunpack.c.l.b16 %v256
        %v398 = vunpack.c.h.b16 %v256
        %v399 = vunpack.c.l.b16 %v257
        %v400 = vunpack.c.h.b16 %v257
        %v401 = vunpack.c.l.b16 %v258
        %v402 = vunpack.c.h.b16 %v258
        %v403 = vunpack.c.l.b16 %v259
        %v404 = vunpack.c.h.b16 %v259
        %v405 = vunpack.c.l.b16 %v260
        %v406 = vunpack.c.h.b16 %v260
        %v407 = vunpack.c.l.b16 %v261
        %v408 = vunpack.c.h.b16 %v261
        %v409 = vunpack.c.l.b16 %v262
        %v410 = vunpack.c.h.b16 %v262
        %v411 = vunpack.c.l.b16 %v263
        %v412 = vunpack.c.h.b16 %v263
        %v413 = vunpack.c.l.b16 %v264
        %v414 = vunpack.c.h.b16 %v264
        %v415 = vunpack.c.l.b16 %v265
        %v416 = vunpack.c.h.b16 %v265
        %v417 = vunpack.c.l.b16 %v266
        %v418 = vunpack.c.h.b16 %v266
        %v419 = vunpack.c.l.b16 %v267
        %v420 = vunpack.c.h.b16 %v267
        %v421 = vunpack.c.l.b16 %v268
        %v422 = vunpack.c.h.b16 %v268
        %v423 = vunpack.c.l.b16 %v269
        %v424 = vunpack.c.h.b16 %v269
        %v425 = vunpack.c.l.b16 %v270
        %v426 = vunpack.c.h.b16 %v270
        %v427 = vunpack.c.l.b16 %v271
        %v428 = vunpack.c.h.b16 %v271
        %v429 = vunpack.c.l.b16 %v272
        %v430 = vunpack.c.h.b16 %v272
        %v431 = vunpack.c.l.b16 %v273
        %v432 = vunpack.c.h.b16 %v273
        %v433 = vunpack.c.l.b16 %v274
        %v434 = vunpack.c.h.b16 %v274
        %v435 = vpack.c.b16 %v375, %v371
        %v436 = vpack.c.b16 %v376, %v372
        %v437 = vpack.c.b16 %v377, %v373
        %v438 = vpack.c.b16 %v378, %v374
        %v439 = vpack.c.b16 %v383, %v379
        %v440 = vpack.c.b16 %v384, %v380
        %v441 = vpack.c.b16 %v385, %v381
        %v442 = vpack.c.b16 %v386, %v382
        %v443 = vpack.c.b16 %v391, %v387
        %v444 = vpack.c.b16 %v392, %v388
        %v445 = vpack.c.b16 %v393, %v389
        %v446 = vpack.c.b16 %v394, %v390
        %v447 = vpack.c.b16 %v399, %v395
        %v448 = vpack.c.b16 %v400, %v396
        %v449 = vpack.c.b16 %v401, %v397
        %v450 = vpack.c.b16 %v402, %v398
        %v451 = vpack.c.b16 %v407, %v403
        %v452 = vpack.c.b16 %v408, %v404
        %v453 = vpack.c.b16 %v409, %v405
        %v454 = vpack.c.b16 %v410, %v406
        %v455 = vpack.c.b16 %v415, %v411
        %v456 = vpack.c.b16 %v416, %v412
        %v457 = vpack.c.b16 %v417, %v413
        %v458 = vpack.c.b16 %v418, %v414
        %v459 = vpack.c.b16 %v423, %v419
        %v460 = vpack.c.b16 %v424, %v420
        %v461 = vpack.c.b16 %v425, %v421
        %v462 = vpack.c.b16 %v426, %v422
        %v463 = vpack.c.b16 %v431, %v427
        %v464 = vpack.c.b16 %v432, %v428
        %v465 = vpack.c.b16 %v433, %v429
        %v466 = vpack.c.b16 %v434, %v430
        %v563 = vunpack.c.l.b16 %v275
        %v564 = vunpack.c.l.b16 %v276
        %v565 = vunpack.c.l.b16 %v277
        %v566 = vunpack.c.l.b16 %v278
        %v567 = vunpack.c.l.b16 %v279
        %v568 = vunpack.c.l.b16 %v280
        %v569 = vunpack.c.l.b16 %v281
        %v570 = vunpack.c.l.b16 %v282
        %v571 = vunpack.c.l.b16 %v283
        %v572 = vunpack.c.l.b16 %v284
        %v573 = vunpack.c.l.b16 %v285
        %v574 = vunpack.c.l.b16 %v286
        %v575 = vunpack.c.l.b16 %v287
        %v576 = vunpack.c.l.b16 %v288
        %v577 = vunpack.c.l.b16 %v289
        %v578 = vunpack.c.l.b16 %v290
        %v579 = vunpack.c.l.b16 %v291
        %v580 = vunpack.c.l.b16 %v292
        %v581 = vunpack.c.l.b16 %v293
        %v582 = vunpack.c.l.b16 %v294
        %v583 = vunpack.c.l.b16 %v295
        %v584 = vunpack.c.l.b16 %v296
        %v585 = vunpack.c.l.b16 %v297
        %v586 = vunpack.c.l.b16 %v298
        %v587 = vunpack.c.l.b16 %v299
        %v588 = vunpack.c.l.b16 %v300
        %v589 = vunpack.c.l.b16 %v301
        %v590 = vunpack.c.l.b16 %v302
        %v591 = vunpack.c.l.b16 %v303
        %v592 = vunpack.c.l.b16 %v304
        %v593 = vunpack.c.l.b16 %v305
        %v594 = vunpack.c.l.b16 %v306
        %v595 = vunpack.c.l.b16 %v307
        %v596 = vunpack.c.l.b16 %v308
        %v597 = vunpack.c.l.b16 %v309
        %v598 = vunpack.c.l.b16 %v310
        %v599 = vunpack.c.l.b16 %v311
        %v600 = vunpack.c.l.b16 %v312
        %v601 = vunpack.c.l.b16 %v313
        %v602 = vunpack.c.l.b16 %v314
        %v603 = vunpack.c.l.b16 %v315
        %v604 = vunpack.c.l.b16 %v316
        %v605 = vunpack.c.l.b16 %v317
        %v606 = vunpack.c.l.b16 %v318
        %v607 = vunpack.c.l.b16 %v319
        %v608 = vunpack.c.l.b16 %v320
        %v609 = vunpack.c.l.b16 %v321
        %v610 = vunpack.c.l.b16 %v322
        %v611 = vunpack.c.l.b16 %v323
        %v612 = vunpack.c.l.b16 %v324
        %v613 = vunpack.c.l.b16 %v325
        %v614 = vunpack.c.l.b16 %v326
        %v615 = vunpack.c.l.b16 %v327
        %v616 = vunpack.c.l.b16 %v328
        %v617 = vunpack.c.l.b16 %v329
        %v618 = vunpack.c.l.b16 %v330
        %v619 = vunpack.c.l.b16 %v331
        %v620 = vunpack.c.l.b16 %v332
        %v621 = vunpack.c.l.b16 %v333
        %v622 = vunpack.c.l.b16 %v334
        %v623 = vunpack.c.l.b16 %v335
        %v624 = vunpack.c.l.b16 %v336
        %v625 = vunpack.c.l.b16 %v337
        %v626 = vunpack.c.l.b16 %v338
        %v627 = vpack.c.b16 %v564, %v563
        %v628 = vpack.c.b16 %v566, %v565
        %v629 = vpack.c.b16 %v568, %v567
        %v630 = vpack.c.b16 %v570, %v569
        %v631 = vpack.c.b16 %v572, %v571
        %v632 = vpack.c.b16 %v574, %v573
        %v633 = vpack.c.b16 %v576, %v575
        %v634 = vpack.c.b16 %v578, %v577
        %v635 = vpack.c.b16 %v580, %v579
        %v636 = vpack.c.b16 %v582, %v581
        %v637 = vpack.c.b16 %v584, %v583
        %v638 = vpack.c.b16 %v586, %v585
        %v639 = vpack.c.b16 %v588, %v587
        %v640 = vpack.c.b16 %v590, %v589
        %v641 = vpack.c.b16 %v592, %v591
        %v642 = vpack.c.b16 %v594, %v593
        %v643 = vpack.c.b16 %v596, %v595
        %v644 = vpack.c.b16 %v598, %v597
        %v645 = vpack.c.b16 %v600, %v599
        %v646 = vpack.c.b16 %v602, %v601
        %v647 = vpack.c.b16 %v604, %v603
        %v648 = vpack.c.b16 %v606, %v605
        %v649 = vpack.c.b16 %v608, %v607
        %v650 = vpack.c.b16 %v610, %v609
        %v651 = vpack.c.b16 %v612, %v611
        %v652 = vpack.c.b16 %v614, %v613
        %v653 = vpack.c.b16 %v616, %v615
        %v654 = vpack.c.b16 %v618, %v617
        %v655 = vpack.c.b16 %v620, %v619
        %v656 = vpack.c.b16 %v622, %v621
        %v657 = vpack.c.b16 %v624, %v623
        %v658 = vpack.c.b16 %v626, %v625
        %691 = vmatprep.subr.bf16.mxu0 0
        %692 = vmatpush1.bf16.msra.mxu0 %v627
        %693 = vmatprep.subr.bf16.mxu0 0
        %694 = vmatpush1.bf16.msra.mxu0 %v628
        %695 = vmatprep.subr.bf16.mxu0 0
        %696 = vmatpush1.bf16.msra.mxu0 %v629
        %697 = vmatprep.subr.bf16.mxu0 0
        %698 = vmatpush1.bf16.msra.mxu0 %v630
        %699 = vmatprep.subr.bf16.mxu0 0
        %700 = vmatpush1.bf16.msra.mxu0 %v631
        %701 = vmatprep.subr.bf16.mxu0 0
        %702 = vmatpush1.bf16.msra.mxu0 %v632
        %703 = vmatprep.subr.bf16.mxu0 0
        %704 = vmatpush1.bf16.msra.mxu0 %v633
        %705 = vmatprep.subr.bf16.mxu0 0
        %706 = vmatpush1.bf16.msra.mxu0 %v634
        %707 = vmatprep.subr.bf16.mxu0 0
        %708 = vmatpush1.bf16.msra.mxu0 %v635
        %709 = vmatprep.subr.bf16.mxu0 0
        %710 = vmatpush1.bf16.msra.mxu0 %v636
        %711 = vmatprep.subr.bf16.mxu0 0
        %712 = vmatpush1.bf16.msra.mxu0 %v637
        %713 = vmatprep.subr.bf16.mxu0 0
        %714 = vmatpush1.bf16.msra.mxu0 %v638
        %715 = vmatprep.subr.bf16.mxu0 0
        %716 = vmatpush1.bf16.msra.mxu0 %v639
        %717 = vmatprep.subr.bf16.mxu0 0
        %718 = vmatpush1.bf16.msra.mxu0 %v640
        %719 = vmatprep.subr.bf16.mxu0 0
        %720 = vmatpush1.bf16.msra.mxu0 %v641
        %721 = vmatprep.subr.bf16.mxu0 0
        %722 = vmatpush1.bf16.msra.mxu0 %v642
        %723 = vmatprep.mubr.bf16.mxu0 %v436
        %724 = vmatmul.mubr.bf16.gmra.mrb[0].mxu0 %v435
        %v725 = vpop.f32.mrb[0].mxu0
        %v726 = vadd.f32 0.0, %v725
        %v727 = vpop.f32.mrb[0].mxu0
        %v728 = vpop.f32.mrb[0].mxu0
        %v729 = vadd.f32 0.0, %v728
        %v730 = vpop.f32.mrb[0].mxu0
        %731 = vmatprep.mubr.bf16.mxu0 %v440
        %732 = vmatmul.mubr.bf16.gmra.mrb[0].mxu0 %v439
        %v733 = vpop.f32.mrb[0].mxu0
        %v734 = vadd.f32 0.0, %v733
        %v735 = vpop.f32.mrb[0].mxu0
        %v736 = vpop.f32.mrb[0].mxu0
        %v737 = vadd.f32 0.0, %v736
        %v738 = vpop.f32.mrb[0].mxu0
        %739 = vmatprep.mubr.bf16.mxu0 %v444
        %740 = vmatmul.mubr.bf16.gmra.mrb[0].mxu0 %v443
        %v741 = vpop.f32.mrb[0].mxu0
        %v742 = vadd.f32 0.0, %v741
        %v743 = vpop.f32.mrb[0].mxu0
        %v744 = vpop.f32.mrb[0].mxu0
        %v745 = vadd.f32 0.0, %v744
        %v746 = vpop.f32.mrb[0].mxu0
        %747 = vmatprep.mubr.bf16.mxu0 %v448
        %748 = vmatmul.mubr.bf16.gmra.mrb[0].mxu0 %v447
        %v749 = vpop.f32.mrb[0].mxu0
        %v750 = vadd.f32 0.0, %v749
        %v751 = vpop.f32.mrb[0].mxu0
        %v752 = vpop.f32.mrb[0].mxu0
        %v753 = vadd.f32 0.0, %v752
        %v754 = vpop.f32.mrb[0].mxu0
        %755 = vmatprep.mubr.bf16.mxu0 %v452
        %756 = vmatmul.mubr.bf16.gmra.mrb[0].mxu0 %v451
        %v757 = vpop.f32.mrb[0].mxu0
        %v758 = vadd.f32 0.0, %v757
        %v759 = vpop.f32.mrb[0].mxu0
        %v760 = vpop.f32.mrb[0].mxu0
        %v761 = vadd.f32 0.0, %v760
        %v762 = vpop.f32.mrb[0].mxu0
        %763 = vmatprep.mubr.bf16.mxu0 %v456
        %764 = vmatmul.mubr.bf16.gmra.mrb[0].mxu0 %v455
        %v765 = vpop.f32.mrb[0].mxu0
        %v766 = vadd.f32 0.0, %v765
        %v767 = vpop.f32.mrb[0].mxu0
        %v768 = vpop.f32.mrb[0].mxu0
        %v769 = vadd.f32 0.0, %v768
        %v770 = vpop.f32.mrb[0].mxu0
        %771 = vmatprep.mubr.bf16.mxu0 %v460
        %772 = vmatmul.mubr.bf16.gmra.mrb[0].mxu0 %v459
        %v773 = vpop.f32.mrb[0].mxu0
        %v774 = vadd.f32 0.0, %v773
        %v775 = vpop.f32.mrb[0].mxu0
        %v776 = vpop.f32.mrb[0].mxu0
        %v777 = vadd.f32 0.0, %v776
        %v778 = vpop.f32.mrb[0].mxu0
        %779 = vmatprep.mubr.bf16.mxu0 %v464
        %780 = vmatmul.mubr.bf16.gmra.mrb[0].mxu0 %v463
        %v781 = vpop.f32.mrb[0].mxu0
        %v782 = vadd.f32 0.0, %v781
        %v783 = vpop.f32.mrb[0].mxu0
        %v784 = vpop.f32.mrb[0].mxu0
        %v785 = vadd.f32 0.0, %v784
        %v786 = vpop.f32.mrb[0].mxu0
        %787 = vdwg.mxu0
        %788 = vmatprep.subr.bf16.mxu0 0
        %789 = vmatpush1.bf16.msra.mxu0 %v643
        %790 = vmatprep.subr.bf16.mxu0 0
        %791 = vmatpush1.bf16.msra.mxu0 %v644
        %792 = vmatprep.subr.bf16.mxu0 0
        %793 = vmatpush1.bf16.msra.mxu0 %v645
        %794 = vmatprep.subr.bf16.mxu0 0
        %795 = vmatpush1.bf16.msra.mxu0 %v646
        %796 = vmatprep.subr.bf16.mxu0 0
        %797 = vmatpush1.bf16.msra.mxu0 %v647
        %798 = vmatprep.subr.bf16.mxu0 0
        %799 = vmatpush1.bf16.msra.mxu0 %v648
        %800 = vmatprep.subr.bf16.mxu0 0
        %801 = vmatpush1.bf16.msra.mxu0 %v649
        %802 = vmatprep.subr.bf16.mxu0 0
        %803 = vmatpush1.bf16.msra.mxu0 %v650
        %804 = vmatprep.subr.bf16.mxu0 0
        %805 = vmatpush1.bf16.msra.mxu0 %v651
        %806 = vmatprep.subr.bf16.mxu0 0
        %807 = vmatpush1.bf16.msra.mxu0 %v652
        %808 = vmatprep.subr.bf16.mxu0 0
        %809 = vmatpush1.bf16.msra.mxu0 %v653
        %810 = vmatprep.subr.bf16.mxu0 0
        %811 = vmatpush1.bf16.msra.mxu0 %v654
        %812 = vmatprep.subr.bf16.mxu0 0
        %813 = vmatpush1.bf16.msra.mxu0 %v655
        %814 = vmatprep.subr.bf16.mxu0 0
        %815 = vmatpush1.bf16.msra.mxu0 %v656
        %816 = vmatprep.subr.bf16.mxu0 0
        %817 = vmatpush1.bf16.msra.mxu0 %v657
        %818 = vmatprep.subr.bf16.mxu0 0
        %819 = vmatpush1.bf16.msra.mxu0 %v658
        %820 = vmatprep.mubr.bf16.mxu0 %v438
        %821 = vmatmul.mubr.bf16.gmra.mrb[0].mxu0 %v437
        %v822 = vpop.f32.mrb[0].mxu0
        %v823 = vadd.f32 %v726, %v822
        %v824 = vpop.f32.mrb[0].mxu0
        %v825 = vpop.f32.mrb[0].mxu0
        %v826 = vadd.f32 %v729, %v825
        %v827 = vpop.f32.mrb[0].mxu0
        %828 = vmatprep.mubr.bf16.mxu0 %v442
        %829 = vmatmul.mubr.bf16.gmra.mrb[0].mxu0 %v441
        %v830 = vpop.f32.mrb[0].mxu0
        %v831 = vadd.f32 %v734, %v830
        %v832 = vpop.f32.mrb[0].mxu0
        %v833 = vpop.f32.mrb[0].mxu0
        %v834 = vadd.f32 %v737, %v833
        %v835 = vpop.f32.mrb[0].mxu0
        %836 = vmatprep.mubr.bf16.mxu0 %v446
        %837 = vmatmul.mubr.bf16.gmra.mrb[0].mxu0 %v445
        %v838 = vpop.f32.mrb[0].mxu0
        %v839 = vadd.f32 %v742, %v838
        %v840 = vpop.f32.mrb[0].mxu0
        %v841 = vpop.f32.mrb[0].mxu0
        %v842 = vadd.f32 %v745, %v841
        %v843 = vpop.f32.mrb[0].mxu0
        %844 = vmatprep.mubr.bf16.mxu0 %v450
        %845 = vmatmul.mubr.bf16.gmra.mrb[0].mxu0 %v449
        %v846 = vpop.f32.mrb[0].mxu0
        %v847 = vadd.f32 %v750, %v846
        %v848 = vpop.f32.mrb[0].mxu0
        %v849 = vpop.f32.mrb[0].mxu0
        %v850 = vadd.f32 %v753, %v849
        %v851 = vpop.f32.mrb[0].mxu0
        %852 = vmatprep.mubr.bf16.mxu0 %v454
        %853 = vmatmul.mubr.bf16.gmra.mrb[0].mxu0 %v453
        %v854 = vpop.f32.mrb[0].mxu0
        %v855 = vadd.f32 %v758, %v854
        %v856 = vpop.f32.mrb[0].mxu0
        %v857 = vpop.f32.mrb[0].mxu0
        %v858 = vadd.f32 %v761, %v857
        %v859 = vpop.f32.mrb[0].mxu0
        %860 = vmatprep.mubr.bf16.mxu0 %v458
        %861 = vmatmul.mubr.bf16.gmra.mrb[0].mxu0 %v457
        %v862 = vpop.f32.mrb[0].mxu0
        %v863 = vadd.f32 %v766, %v862
        %v864 = vpop.f32.mrb[0].mxu0
        %v865 = vpop.f32.mrb[0].mxu0
        %v866 = vadd.f32 %v769, %v865
        %v867 = vpop.f32.mrb[0].mxu0
        %868 = vmatprep.mubr.bf16.mxu0 %v462
        %869 = vmatmul.mubr.bf16.gmra.mrb[0].mxu0 %v461
        %v870 = vpop.f32.mrb[0].mxu0
        %v871 = vadd.f32 %v774, %v870
        %v872 = vpop.f32.mrb[0].mxu0
        %v873 = vpop.f32.mrb[0].mxu0
        %v874 = vadd.f32 %v777, %v873
        %v875 = vpop.f32.mrb[0].mxu0
        %876 = vmatprep.mubr.bf16.mxu0 %v466
        %877 = vmatmul.mubr.bf16.gmra.mrb[0].mxu0 %v465
        %v878 = vpop.f32.mrb[0].mxu0
        %v879 = vadd.f32 %v782, %v878
        %v880 = vpop.f32.mrb[0].mxu0
        %v881 = vpop.f32.mrb[0].mxu0
        %v882 = vadd.f32 %v785, %v881
        %v883 = vpop.f32.mrb[0].mxu0
        %884 = vdwg.mxu0
        %s885 = scalar_lea.vmem [#allocation2], %s231
        %vm886 = vcmask 523264
        %887 = vst.msk [vmem:[%s885] sm:$0xff] %vm886, %v823
        %888 = vst.msk [vmem:[%s885 + $0x8] sm:$0xff] %vm886, %v826
        %889 = vst.msk [vmem:[%s885 + $0x10] sm:$0xff] %vm886, %v831
        %890 = vst.msk [vmem:[%s885 + $0x18] sm:$0xff] %vm886, %v834
        %891 = vst.msk [vmem:[%s885 + $0x20] sm:$0xff] %vm886, %v839
        %892 = vst.msk [vmem:[%s885 + $0x28] sm:$0xff] %vm886, %v842
        %893 = vst.msk [vmem:[%s885 + $0x30] sm:$0xff] %vm886, %v847
        %894 = vst.msk [vmem:[%s885 + $0x38] sm:$0xff] %vm886, %v850
        %895 = vst.msk [vmem:[%s885 + $0x40] sm:$0xff] %vm886, %v855
        %896 = vst.msk [vmem:[%s885 + $0x48] sm:$0xff] %vm886, %v858
        %897 = vst.msk [vmem:[%s885 + $0x50] sm:$0xff] %vm886, %v863
        %898 = vst.msk [vmem:[%s885 + $0x58] sm:$0xff] %vm886, %v866
        %899 = vst.msk [vmem:[%s885 + $0x60] sm:$0xff] %vm886, %v871
        %900 = vst.msk [vmem:[%s885 + $0x68] sm:$0xff] %vm886, %v874
        %901 = vst.msk [vmem:[%s885 + $0x70] sm:$0xff] %vm886, %v879
        %902 = vst.msk [vmem:[%s885 + $0x78] sm:$0xff] %vm886, %v882
        %v903 = vld [vmem:[#allocation3] sm:$0x1]
        %v904 = vsel %vm886, %v823, 0.0
        %v905 = vsel %vm886, %v826, 0.0
        %v906 = vadd.f32 %v904, %v905
        %v907 = vsel %vm886, %v831, 0.0
        %v908 = vadd.f32 %v906, %v907
        %v909 = vsel %vm886, %v834, 0.0
        %v910 = vadd.f32 %v908, %v909
        %v911 = vsel %vm886, %v839, 0.0
        %v912 = vadd.f32 %v910, %v911
        %v913 = vsel %vm886, %v842, 0.0
        %v914 = vadd.f32 %v912, %v913
        %v915 = vsel %vm886, %v847, 0.0
        %v916 = vadd.f32 %v914, %v915
        %v917 = vsel %vm886, %v850, 0.0
        %v918 = vadd.f32 %v916, %v917
        %v919 = vsel %vm886, %v855, 0.0
        %v920 = vadd.f32 %v918, %v919
        %v921 = vsel %vm886, %v858, 0.0
        %v922 = vadd.f32 %v920, %v921
        %v923 = vsel %vm886, %v863, 0.0
        %v924 = vadd.f32 %v922, %v923
        %v925 = vsel %vm886, %v866, 0.0
        %v926 = vadd.f32 %v924, %v925
        %v927 = vsel %vm886, %v871, 0.0
        %v928 = vadd.f32 %v926, %v927
        %v929 = vsel %vm886, %v874, 0.0
        %v930 = vadd.f32 %v928, %v929
        %v931 = vsel %vm886, %v879, 0.0
        %v932 = vadd.f32 %v930, %v931
        %v933 = vsel %vm886, %v882, 0.0
        %v934 = vadd.f32 %v932, %v933
        %v935 = vrot.slane %v934, 4
        %v936 = vadd.f32 %v934, %v935
        %v937 = vrot.slane %v936, 2
        %v938 = vadd.f32 %v936, %v937
        %v939 = vrot.slane %v938, 1
        %v940 = vadd.f32 %v938, %v939
        %v941 = vadd.f32 %v903, %v940
        %vm942 = vcmask 516096
        %943 = vst.msk [vmem:[#allocation3] sm:$0x1] %vm942, %v941
        %v944 = vld [vmem:[#allocation4] sm:$0x1]
        %v945 = vmul.f32 %v823, %v823
        %v946 = vmul.f32 %v826, %v826
        %v947 = vmul.f32 %v831, %v831
        %v948 = vmul.f32 %v834, %v834
        %v949 = vmul.f32 %v839, %v839
        %v950 = vmul.f32 %v842, %v842
        %v951 = vmul.f32 %v847, %v847
        %v952 = vmul.f32 %v850, %v850
        %v953 = vmul.f32 %v855, %v855
        %v954 = vmul.f32 %v858, %v858
        %v955 = vmul.f32 %v863, %v863
        %v956 = vmul.f32 %v866, %v866
        %v957 = vmul.f32 %v871, %v871
        %v958 = vmul.f32 %v874, %v874
        %v959 = vmul.f32 %v879, %v879
        %v960 = vmul.f32 %v882, %v882
        %v961 = vsel %vm886, %v945, 0.0
        %v962 = vsel %vm886, %v946, 0.0
        %v963 = vadd.f32 %v961, %v962
        %v964 = vsel %vm886, %v947, 0.0
        %v965 = vadd.f32 %v963, %v964
        %v966 = vsel %vm886, %v948, 0.0
        %v967 = vadd.f32 %v965, %v966
        %v968 = vsel %vm886, %v949, 0.0
        %v969 = vadd.f32 %v967, %v968
        %v970 = vsel %vm886, %v950, 0.0
        %v971 = vadd.f32 %v969, %v970
        %v972 = vsel %vm886, %v951, 0.0
        %v973 = vadd.f32 %v971, %v972
        %v974 = vsel %vm886, %v952, 0.0
        %v975 = vadd.f32 %v973, %v974
        %v976 = vsel %vm886, %v953, 0.0
        %v977 = vadd.f32 %v975, %v976
        %v978 = vsel %vm886, %v954, 0.0
        %v979 = vadd.f32 %v977, %v978
        %v980 = vsel %vm886, %v955, 0.0
        %v981 = vadd.f32 %v979, %v980
        %v982 = vsel %vm886, %v956, 0.0
        %v983 = vadd.f32 %v981, %v982
        %v984 = vsel %vm886, %v957, 0.0
        %v985 = vadd.f32 %v983, %v984
        %v986 = vsel %vm886, %v958, 0.0
        %v987 = vadd.f32 %v985, %v986
        %v988 = vsel %vm886, %v959, 0.0
        %v989 = vadd.f32 %v987, %v988
        %v990 = vsel %vm886, %v960, 0.0
        %v991 = vadd.f32 %v989, %v990
        %v992 = vrot.slane %v991, 4
        %v993 = vadd.f32 %v991, %v992
        %v994 = vrot.slane %v993, 2
        %v995 = vadd.f32 %v993, %v994
        %v996 = vrot.slane %v995, 1
        %v997 = vadd.f32 %v995, %v996
        %v998 = vadd.f32 %v944, %v997
        %999 = vst.msk [vmem:[#allocation4] sm:$0x1] %vm942, %v998
      $region40: #{discriminator_forward.6} parent=35 // pred_fallthru
        _
      %p1000 = scmp.eq.s32.totalorder %s19, 1
      // Predicated region
      $region45: #{discriminator_forward.6} parent=35 // pred_check
        %p1001 = pneg %p1000
      $region46: #{discriminator_forward.6} parent=35 // pred_check_branch
        %1003 = sbr.rel (%p1001) target = $region48
      $region47: #{discriminator_forward.6} parent=35 // pred_region
        %v1004 = vld [vmem:[#allocation3] sm:$0x1]
        %v1005 = vmul.f32 %v1004, 0.0078125
        %v1006 = vld [vmem:[#allocation4] sm:$0x1]
        %v1007 = vmul.f32 %v1006, 0.0078125
        %v1008 = vmul.f32 %v1005, %v1005
        %v1009 = vsub.f32 %v1007, %v1008
        %v1010 = vmax.f32 %v1009, 0.0
        %v1011 = vadd.f32 %v1010, 1e-05
        %v1012 = vrsqrt.pop %v1011
        %v1013 = vld [vmem:[%s2] sm:$0x1]
        %v1014 = vmul.f32 %v1013, %v1012
        %v1015 = vld [vmem:[%s3] sm:$0x1]
        %v1016 = vmul.f32 %v1005, %v1014
        %v1017 = vsub.f32 %v1015, %v1016
        %s1018 = scalar_lea.vmem [#allocation2], %s231
        %v1019 = vld [vmem:[%s1018] sm:$0xff]
        %v1020 = vld [vmem:[%s1018 + $0x8] sm:$0xff]
        %v1021 = vld [vmem:[%s1018 + $0x10] sm:$0xff]
        %v1022 = vld [vmem:[%s1018 + $0x18] sm:$0xff]
        %v1023 = vld [vmem:[%s1018 + $0x20] sm:$0xff]
        %v1024 = vld [vmem:[%s1018 + $0x28] sm:$0xff]
        %v1025 = vld [vmem:[%s1018 + $0x30] sm:$0xff]
        %v1026 = vld [vmem:[%s1018 + $0x38] sm:$0xff]
        %v1027 = vld [vmem:[%s1018 + $0x40] sm:$0xff]
        %v1028 = vld [vmem:[%s1018 + $0x48] sm:$0xff]
        %v1029 = vld [vmem:[%s1018 + $0x50] sm:$0xff]
        %v1030 = vld [vmem:[%s1018 + $0x58] sm:$0xff]
        %v1031 = vld [vmem:[%s1018 + $0x60] sm:$0xff]
        %v1032 = vld [vmem:[%s1018 + $0x68] sm:$0xff]
        %v1033 = vld [vmem:[%s1018 + $0x70] sm:$0xff]
        %v1034 = vld [vmem:[%s1018 + $0x78] sm:$0xff]
        %v1036 = vlaneseq
        %v1037 = vshrl.u32 %v1036, 7
        %v1038 = vsub.s32 0, %v1037
        %v1039 = vrot.slane %v1014, %v1038
        %v1041 = vmul.f32 %v1019, %v1039
        %v1042 = vmul.f32 %v1020, %v1039
        %v1043 = vmul.f32 %v1021, %v1039
        %v1044 = vmul.f32 %v1022, %v1039
        %v1045 = vmul.f32 %v1023, %v1039
        %v1046 = vmul.f32 %v1024, %v1039
        %v1047 = vmul.f32 %v1025, %v1039
        %v1048 = vmul.f32 %v1026, %v1039
        %v1049 = vmul.f32 %v1027, %v1039
        %v1050 = vmul.f32 %v1028, %v1039
        %v1051 = vmul.f32 %v1029, %v1039
        %v1052 = vmul.f32 %v1030, %v1039
        %v1053 = vmul.f32 %v1031, %v1039
        %v1054 = vmul.f32 %v1032, %v1039
        %v1055 = vmul.f32 %v1033, %v1039
        %v1056 = vmul.f32 %v1034, %v1039
        %v1058 = vlaneseq
        %v1059 = vshrl.u32 %v1058, 7
        %v1060 = vsub.s32 0, %v1059
        %v1061 = vrot.slane %v1017, %v1060
        %v1063 = vadd.f32 %v1041, %v1061
        %v1064 = vadd.f32 %v1042, %v1061
        %v1065 = vadd.f32 %v1043, %v1061
        %v1066 = vadd.f32 %v1044, %v1061
        %v1067 = vadd.f32 %v1045, %v1061
        %v1068 = vadd.f32 %v1046, %v1061
        %v1069 = vadd.f32 %v1047, %v1061
        %v1070 = vadd.f32 %v1048, %v1061
        %v1071 = vadd.f32 %v1049, %v1061
        %v1072 = vadd.f32 %v1050, %v1061
        %v1073 = vadd.f32 %v1051, %v1061
        %v1074 = vadd.f32 %v1052, %v1061
        %v1075 = vadd.f32 %v1053, %v1061
        %v1076 = vadd.f32 %v1054, %v1061
        %v1077 = vadd.f32 %v1055, %v1061
        %v1078 = vadd.f32 %v1056, %v1061
        %vm1079 = vcmp.ge.f32.partialorder %v1063, 0.0
        %vm1080 = vcmp.ge.f32.partialorder %v1064, 0.0
        %vm1081 = vcmp.ge.f32.partialorder %v1065, 0.0
        %vm1082 = vcmp.ge.f32.partialorder %v1066, 0.0
        %vm1083 = vcmp.ge.f32.partialorder %v1067, 0.0
        %vm1084 = vcmp.ge.f32.partialorder %v1068, 0.0
        %vm1085 = vcmp.ge.f32.partialorder %v1069, 0.0
        %vm1086 = vcmp.ge.f32.partialorder %v1070, 0.0
        %vm1087 = vcmp.ge.f32.partialorder %v1071, 0.0
        %vm1088 = vcmp.ge.f32.partialorder %v1072, 0.0
        %vm1089 = vcmp.ge.f32.partialorder %v1073, 0.0
        %vm1090 = vcmp.ge.f32.partialorder %v1074, 0.0
        %vm1091 = vcmp.ge.f32.partialorder %v1075, 0.0
        %vm1092 = vcmp.ge.f32.partialorder %v1076, 0.0
        %vm1093 = vcmp.ge.f32.partialorder %v1077, 0.0
        %vm1094 = vcmp.ge.f32.partialorder %v1078, 0.0
        %v1095 = vmul.f32 %v1063, 0.2
        %v1096 = vmul.f32 %v1064, 0.2
        %v1097 = vmul.f32 %v1065, 0.2
        %v1098 = vmul.f32 %v1066, 0.2
        %v1099 = vmul.f32 %v1067, 0.2
        %v1100 = vmul.f32 %v1068, 0.2
        %v1101 = vmul.f32 %v1069, 0.2
        %v1102 = vmul.f32 %v1070, 0.2
        %v1103 = vmul.f32 %v1071, 0.2
        %v1104 = vmul.f32 %v1072, 0.2
        %v1105 = vmul.f32 %v1073, 0.2
        %v1106 = vmul.f32 %v1074, 0.2
        %v1107 = vmul.f32 %v1075, 0.2
        %v1108 = vmul.f32 %v1076, 0.2
        %v1109 = vmul.f32 %v1077, 0.2
        %v1110 = vmul.f32 %v1078, 0.2
        %v1111 = vsel %vm1079, %v1063, %v1095
        %v1112 = vsel %vm1080, %v1064, %v1096
        %v1113 = vsel %vm1081, %v1065, %v1097
        %v1114 = vsel %vm1082, %v1066, %v1098
        %v1115 = vsel %vm1083, %v1067, %v1099
        %v1116 = vsel %vm1084, %v1068, %v1100
        %v1117 = vsel %vm1085, %v1069, %v1101
        %v1118 = vsel %vm1086, %v1070, %v1102
        %v1119 = vsel %vm1087, %v1071, %v1103
        %v1120 = vsel %vm1088, %v1072, %v1104
        %v1121 = vsel %vm1089, %v1073, %v1105
        %v1122 = vsel %vm1090, %v1074, %v1106
        %v1123 = vsel %vm1091, %v1075, %v1107
        %v1124 = vsel %vm1092, %v1076, %v1108
        %v1125 = vsel %vm1093, %v1077, %v1109
        %v1126 = vsel %vm1094, %v1078, %v1110
        %v1127 = vpack.c.bf16 %v1112, %v1111
        %v1128 = vpack.c.bf16 %v1114, %v1113
        %v1129 = vpack.c.bf16 %v1116, %v1115
        %v1130 = vpack.c.bf16 %v1118, %v1117
        %v1131 = vpack.c.bf16 %v1120, %v1119
        %v1132 = vpack.c.bf16 %v1122, %v1121
        %v1133 = vpack.c.bf16 %v1124, %v1123
        %v1134 = vpack.c.bf16 %v1126, %v1125
        %v1143 = vunpack.c.l.b16 %v1127
        %v1144 = vunpack.c.h.b16 %v1127
        %v1145 = vunpack.c.l.b16 %v1128
        %v1146 = vunpack.c.h.b16 %v1128
        %v1147 = vunpack.c.l.b16 %v1129
        %v1148 = vunpack.c.h.b16 %v1129
        %v1149 = vunpack.c.l.b16 %v1130
        %v1150 = vunpack.c.h.b16 %v1130
        %v1151 = vunpack.c.l.b16 %v1131
        %v1152 = vunpack.c.h.b16 %v1131
        %v1153 = vunpack.c.l.b16 %v1132
        %v1154 = vunpack.c.h.b16 %v1132
        %v1155 = vunpack.c.l.b16 %v1133
        %v1156 = vunpack.c.h.b16 %v1133
        %v1157 = vunpack.c.l.b16 %v1134
        %v1158 = vunpack.c.h.b16 %v1134
        %v1159 = vpack.c.b16 %v1143, %v1143
        %v1160 = vpack.c.b16 %v1144, %v1144
        %v1161 = vpack.c.b16 %v1145, %v1145
        %v1162 = vpack.c.b16 %v1146, %v1146
        %v1163 = vpack.c.b16 %v1147, %v1147
        %v1164 = vpack.c.b16 %v1148, %v1148
        %v1165 = vpack.c.b16 %v1149, %v1149
        %v1166 = vpack.c.b16 %v1150, %v1150
        %v1167 = vpack.c.b16 %v1151, %v1151
        %v1168 = vpack.c.b16 %v1152, %v1152
        %v1169 = vpack.c.b16 %v1153, %v1153
        %v1170 = vpack.c.b16 %v1154, %v1154
        %v1171 = vpack.c.b16 %v1155, %v1155
        %v1172 = vpack.c.b16 %v1156, %v1156
        %v1173 = vpack.c.b16 %v1157, %v1157
        %v1174 = vpack.c.b16 %v1158, %v1158
        %vm1191 = vcmask 519168
        %1192 = vst.msk [vmem:[%s228] sm:$0xf] %vm1191, %v1159
        %1193 = vst.msk [vmem:[%s228 + $0x4] sm:$0xf] %vm1191, %v1160
        %1194 = vst.msk [vmem:[%s228 + $0x8] sm:$0xf] %vm1191, %v1161
        %1195 = vst.msk [vmem:[%s228 + $0xc] sm:$0xf] %vm1191, %v1162
        %1196 = vst.msk [vmem:[%s228 + $0x10] sm:$0xf] %vm1191, %v1163
        %1197 = vst.msk [vmem:[%s228 + $0x14] sm:$0xf] %vm1191, %v1164
        %1198 = vst.msk [vmem:[%s228 + $0x18] sm:$0xf] %vm1191, %v1165
        %1199 = vst.msk [vmem:[%s228 + $0x1c] sm:$0xf] %vm1191, %v1166
        %1200 = vst.msk [vmem:[%s228 + $0x20] sm:$0xf] %vm1191, %v1167
        %1201 = vst.msk [vmem:[%s228 + $0x24] sm:$0xf] %vm1191, %v1168
        %1202 = vst.msk [vmem:[%s228 + $0x28] sm:$0xf] %vm1191, %v1169
        %1203 = vst.msk [vmem:[%s228 + $0x2c] sm:$0xf] %vm1191, %v1170
        %1204 = vst.msk [vmem:[%s228 + $0x30] sm:$0xf] %vm1191, %v1171
        %1205 = vst.msk [vmem:[%s228 + $0x34] sm:$0xf] %vm1191, %v1172
        %1206 = vst.msk [vmem:[%s228 + $0x38] sm:$0xf] %vm1191, %v1173
        %1207 = vst.msk [vmem:[%s228 + $0x3c] sm:$0xf] %vm1191, %v1174
      $region48: #{discriminator_forward.6} parent=35 // pred_fallthru
        _
      %s1208 = smul.u32 16, %s20
      %p1209 = scmp.lt.s32.totalorder %s1208, 15
      %s1210 = scalar_select %p1209, %s1208, 15
      %s1211 = smul.addr %s1210, 4
      %s1212 = scalar_lea.vmem %s4, %s1211
      // Predicated region
      $region49: #{discriminator_forward.6} parent=35 // pred_check
        %p1213 = pneg %p138
      $region50: #{discriminator_forward.6} parent=35 // pred_check_branch
        %1215 = sbr.rel (%p1213) target = $region52
      $region51: #{discriminator_forward.6} parent=35 // pred_region
        %s1216 = smul.u32 16, %s20
      $region52: #{discriminator_forward.6} parent=35 // pred_fallthru
        _
      // Predicated region
      $region53: #{discriminator_forward.6} parent=35 // pred_check
        %p1217 = pneg %p138
      $region54: #{discriminator_forward.6} parent=35 // pred_check_branch
        %1219 = sbr.rel (%p1217) target = $region56
      $region55: #{discriminator_forward.6} parent=35 // pred_region
        %s1220 = smul.u32 16, %s20
        %p1221 = scmp.lt.s32.totalorder %s1220, 15
        %s1222 = scalar_select %p1221, %s1220, 15
        %s1223 = smul.addr %s1222, 4
        %s1224 = scalar_lea.vmem %s4, %s1223
      $region56: #{discriminator_forward.6} parent=35 // pred_fallthru
        _
    $region36: #{discriminator_forward.6} parent=5 // pred_fallthru
      _
    %p1225 = scmp.le.s32.totalorder 2, %s10
    // Predicated region
    $region57: #{discriminator_forward.6} parent=5 // pred_check
      %p1226 = pneg %p1225
    $region58: #{discriminator_forward.6} parent=5 // pred_check_branch
      %1228 = sbr.rel (%p1226) target = $region60
    $region59: #{discriminator_forward.6} parent=5 // pred_region
      %s1229 = ssub.s32 %s10, 2
    $region60: #{discriminator_forward.6} parent=5 // pred_fallthru
      _
  $region6: #{discriminator_forward.6} parent=0 // loop_footer
    %s14 = sadd.s32 1, %s10
  $region7: #{discriminator_forward.6} parent=0 // loop_footer_branch
    %9 = sbr.rel target = $region3
  $region8: #{discriminator_forward.6} parent=0 // loop_exit
    _

// kernel: discriminator_forward.7
$region0: #{discriminator_forward.7}
  #allocation0 [shape = 'u32[]', space=smem, size = 0x4, offset = 0x4, fixed_abs, tag = 'smem constant byte address 0x4 - core index']
  #allocation1 [shape = 'u32[144,128]{1,0:T(1,128)}', space=vmem, size = 0x12000, scoped, tag = 'internal scratch']
  #allocation2 [shape = 'f32[1,1]{1,0:T(1,128)S(1)}', space=vmem, size = 0x200, scoped, tag = 'scoped memory for discriminator_forward.7']
  %s0 = inlined_call_operand.vmem [shape: bf16[32,1024], index: 0, kind: input, shape index: {}]
  %s1 = inlined_call_operand.vmem [shape: bf16[1024,128], index: 1, kind: input, shape index: {}]
  %s2 = inlined_call_operand.vmem [shape: f32[1,128], index: 2, kind: input, shape index: {}]
  %s3 = inlined_call_operand.vmem [shape: f32[1,128], index: 3, kind: input, shape index: {}]
  %s4 = inlined_call_operand.vmem [shape: f32[16,128], index: 4, kind: input, shape index: {}]
  %s5 = inlined_call_operand.<no memory space> [shape: f32[1,1], index: 5, kind: input, shape index: {}]
  %s6 = inlined_call_operand.vmem [shape: f32[2,1], index: 6, kind: output, shape index: {}]
  %s7 = sld [smem:[#allocation0]]
  $region34: #{discriminator_forward.7} parent=0
    _
  %s9 = ssub.s32 1, %s7
  %s10 = scalar_select 0, %s9, %s7
  %v11 = vstv %s5
  %12 = vst [vmem:[#allocation2] sm:$0x1] %v11
  // Predicated region
  $region2: #{discriminator_forward.7} parent=0 // pred_check
    _
  $region3: #{discriminator_forward.7} parent=0 // pred_check_branch
    %14 = sbr.rel (0) target = $region5
  $region4: #{discriminator_forward.7} parent=0 // pred_region
    _
  $region5: #{discriminator_forward.7} parent=0 // pred_fallthru
    _
  // Predicated region
  $region6: #{discriminator_forward.7} parent=0 // pred_check
    _
  $region7: #{discriminator_forward.7} parent=0 // pred_check_branch
    %16 = sbr.rel (0) target = $region9
  $region8: #{discriminator_forward.7} parent=0 // pred_region
    _
  $region9: #{discriminator_forward.7} parent=0 // pred_fallthru
    _
  // Predicated region
  $region10: #{discriminator_forward.7} parent=0 // pred_check
    _
  $region11: #{discriminator_forward.7} parent=0 // pred_check_branch
    %18 = sbr.rel (0) target = $region13
  $region12: #{discriminator_forward.7} parent=0 // pred_region
    _
  $region13: #{discriminator_forward.7} parent=0 // pred_fallthru
    _
  // Predicated region
  $region14: #{discriminator_forward.7} parent=0 // pred_check
    _
  $region15: #{discriminator_forward.7} parent=0 // pred_check_branch
    %20 = sbr.rel (0) target = $region17
  $region16: #{discriminator_forward.7} parent=0 // pred_region
    _
  $region17: #{discriminator_forward.7} parent=0 // pred_fallthru
    _
  // Predicated region
  $region18: #{discriminator_forward.7} parent=0 // pred_check
    _
  $region19: #{discriminator_forward.7} parent=0 // pred_check_branch
    %22 = sbr.rel (0) target = $region21
  $region20: #{discriminator_forward.7} parent=0 // pred_region
    _
  $region21: #{discriminator_forward.7} parent=0 // pred_fallthru
    _
  // Predicated region
  $region22: #{discriminator_forward.7} parent=0 // pred_check
    _
  $region23: #{discriminator_forward.7} parent=0 // pred_check_branch
    %24 = sbr.rel (0) target = $region25
  $region24: #{discriminator_forward.7} parent=0 // pred_region
    _
  $region25: #{discriminator_forward.7} parent=0 // pred_fallthru
    _
  %v26 = vld [vmem:[%s0] sm:$0xff]
  %v27 = vld [vmem:[%s0 + $0x8] sm:$0xff]
  %v28 = vld [vmem:[%s0 + $0x10] sm:$0xff]
  %v29 = vld [vmem:[%s0 + $0x18] sm:$0xff]
  %v30 = vld [vmem:[%s0 + $0x20] sm:$0xff]
  %v31 = vld [vmem:[%s0 + $0x28] sm:$0xff]
  %v32 = vld [vmem:[%s0 + $0x30] sm:$0xff]
  %v33 = vld [vmem:[%s0 + $0x38] sm:$0xff]
  %v34 = vld [vmem:[%s0 + $0x40] sm:$0xff]
  %v35 = vld [vmem:[%s0 + $0x48] sm:$0xff]
  %v36 = vld [vmem:[%s0 + $0x50] sm:$0xff]
  %v37 = vld [vmem:[%s0 + $0x58] sm:$0xff]
  %v38 = vld [vmem:[%s0 + $0x60] sm:$0xff]
  %v39 = vld [vmem:[%s0 + $0x68] sm:$0xff]
  %v40 = vld [vmem:[%s0 + $0x70] sm:$0xff]
  %v41 = vld [vmem:[%s0 + $0x78] sm:$0xff]
  %v42 = vld [vmem:[%s1] sm:$0xf]
  %v43 = vld [vmem:[%s1 + $0x4] sm:$0xf]
  %v44 = vld [vmem:[%s1 + $0x8] sm:$0xf]
  %v45 = vld [vmem:[%s1 + $0xc] sm:$0xf]
  %v46 = vld [vmem:[%s1 + $0x10] sm:$0xf]
  %v47 = vld [vmem:[%s1 + $0x14] sm:$0xf]
  %v48 = vld [vmem:[%s1 + $0x18] sm:$0xf]
  %v49 = vld [vmem:[%s1 + $0x1c] sm:$0xf]
  %v50 = vld [vmem:[%s1 + $0x20] sm:$0xf]
  %v51 = vld [vmem:[%s1 + $0x24] sm:$0xf]
  %v52 = vld [vmem:[%s1 + $0x28] sm:$0xf]
  %v53 = vld [vmem:[%s1 + $0x2c] sm:$0xf]
  %v54 = vld [vmem:[%s1 + $0x30] sm:$0xf]
  %v55 = vld [vmem:[%s1 + $0x34] sm:$0xf]
  %v56 = vld [vmem:[%s1 + $0x38] sm:$0xf]
  %v57 = vld [vmem:[%s1 + $0x3c] sm:$0xf]
  %v58 = vld [vmem:[%s1 + $0x40] sm:$0xf]
  %v59 = vld [vmem:[%s1 + $0x44] sm:$0xf]
  %v60 = vld [vmem:[%s1 + $0x48] sm:$0xf]
  %v61 = vld [vmem:[%s1 + $0x4c] sm:$0xf]
  %v62 = vld [vmem:[%s1 + $0x50] sm:$0xf]
  %v63 = vld [vmem:[%s1 + $0x54] sm:$0xf]
  %v64 = vld [vmem:[%s1 + $0x58] sm:$0xf]
  %v65 = vld [vmem:[%s1 + $0x5c] sm:$0xf]
  %v66 = vld [vmem:[%s1 + $0x60] sm:$0xf]
  %v67 = vld [vmem:[%s1 + $0x64] sm:$0xf]
  %v68 = vld [vmem:[%s1 + $0x68] sm:$0xf]
  %v69 = vld [vmem:[%s1 + $0x6c] sm:$0xf]
  %v70 = vld [vmem:[%s1 + $0x70] sm:$0xf]
  %v71 = vld [vmem:[%s1 + $0x74] sm:$0xf]
  %v72 = vld [vmem:[%s1 + $0x78] sm:$0xf]
  %v73 = vld [vmem:[%s1 + $0x7c] sm:$0xf]
  %v74 = vld [vmem:[%s1 + $0x80] sm:$0xf]
  %v75 = vld [vmem:[%s1 + $0x84] sm:$0xf]
  %v76 = vld [vmem:[%s1 + $0x88] sm:$0xf]
  %v77 = vld [vmem:[%s1 + $0x8c] sm:$0xf]
  %v78 = vld [vmem:[%s1 + $0x90] sm:$0xf]
  %v79 = vld [vmem:[%s1 + $0x94] sm:$0xf]
  %v80 = vld [vmem:[%s1 + $0x98] sm:$0xf]
  %v81 = vld [vmem:[%s1 + $0x9c] sm:$0xf]
  %v82 = vld [vmem:[%s1 + $0xa0] sm:$0xf]
  %v83 = vld [vmem:[%s1 + $0xa4] sm:$0xf]
  %v84 = vld [vmem:[%s1 + $0xa8] sm:$0xf]
  %v85 = vld [vmem:[%s1 + $0xac] sm:$0xf]
  %v86 = vld [vmem:[%s1 + $0xb0] sm:$0xf]
  %v87 = vld [vmem:[%s1 + $0xb4] sm:$0xf]
  %v88 = vld [vmem:[%s1 + $0xb8] sm:$0xf]
  %v89 = vld [vmem:[%s1 + $0xbc] sm:$0xf]
  %v90 = vld [vmem:[%s1 + $0xc0] sm:$0xf]
  %v91 = vld [vmem:[%s1 + $0xc4] sm:$0xf]
  %v92 = vld [vmem:[%s1 + $0xc8] sm:$0xf]
  %v93 = vld [vmem:[%s1 + $0xcc] sm:$0xf]
  %v94 = vld [vmem:[%s1 + $0xd0] sm:$0xf]
  %v95 = vld [vmem:[%s1 + $0xd4] sm:$0xf]
  %v96 = vld [vmem:[%s1 + $0xd8] sm:$0xf]
  %v97 = vld [vmem:[%s1 + $0xdc] sm:$0xf]
  %v98 = vld [vmem:[%s1 + $0xe0] sm:$0xf]
  %v99 = vld [vmem:[%s1 + $0xe4] sm:$0xf]
  %v100 = vld [vmem:[%s1 + $0xe8] sm:$0xf]
  %v101 = vld [vmem:[%s1 + $0xec] sm:$0xf]
  %v102 = vld [vmem:[%s1 + $0xf0] sm:$0xf]
  %v103 = vld [vmem:[%s1 + $0xf4] sm:$0xf]
  %v104 = vld [vmem:[%s1 + $0xf8] sm:$0xf]
  %v105 = vld [vmem:[%s1 + $0xfc] sm:$0xf]
  %v106 = vld [vmem:[%s1 + $0x100] sm:$0xf]
  %v107 = vld [vmem:[%s1 + $0x104] sm:$0xf]
  %v108 = vld [vmem:[%s1 + $0x108] sm:$0xf]
  %v109 = vld [vmem:[%s1 + $0x10c] sm:$0xf]
  %v110 = vld [vmem:[%s1 + $0x110] sm:$0xf]
  %v111 = vld [vmem:[%s1 + $0x114] sm:$0xf]
  %v112 = vld [vmem:[%s1 + $0x118] sm:$0xf]
  %v113 = vld [vmem:[%s1 + $0x11c] sm:$0xf]
  %v114 = vld [vmem:[%s1 + $0x120] sm:$0xf]
  %v115 = vld [vmem:[%s1 + $0x124] sm:$0xf]
  %v116 = vld [vmem:[%s1 + $0x128] sm:$0xf]
  %v117 = vld [vmem:[%s1 + $0x12c] sm:$0xf]
  %v118 = vld [vmem:[%s1 + $0x130] sm:$0xf]
  %v119 = vld [vmem:[%s1 + $0x134] sm:$0xf]
  %v120 = vld [vmem:[%s1 + $0x138] sm:$0xf]
  %v121 = vld [vmem:[%s1 + $0x13c] sm:$0xf]
  %v122 = vld [vmem:[%s1 + $0x140] sm:$0xf]
  %v123 = vld [vmem:[%s1 + $0x144] sm:$0xf]
  %v124 = vld [vmem:[%s1 + $0x148] sm:$0xf]
  %v125 = vld [vmem:[%s1 + $0x14c] sm:$0xf]
  %v126 = vld [vmem:[%s1 + $0x150] sm:$0xf]
  %v127 = vld [vmem:[%s1 + $0x154] sm:$0xf]
  %v128 = vld [vmem:[%s1 + $0x158] sm:$0xf]
  %v129 = vld [vmem:[%s1 + $0x15c] sm:$0xf]
  %v130 = vld [vmem:[%s1 + $0x160] sm:$0xf]
  %v131 = vld [vmem:[%s1 + $0x164] sm:$0xf]
  %v132 = vld [vmem:[%s1 + $0x168] sm:$0xf]
  %v133 = vld [vmem:[%s1 + $0x16c] sm:$0xf]
  %v134 = vld [vmem:[%s1 + $0x170] sm:$0xf]
  %v135 = vld [vmem:[%s1 + $0x174] sm:$0xf]
  %v136 = vld [vmem:[%s1 + $0x178] sm:$0xf]
  %v137 = vld [vmem:[%s1 + $0x17c] sm:$0xf]
  %v138 = vld [vmem:[%s1 + $0x180] sm:$0xf]
  %v139 = vld [vmem:[%s1 + $0x184] sm:$0xf]
  %v140 = vld [vmem:[%s1 + $0x188] sm:$0xf]
  %v141 = vld [vmem:[%s1 + $0x18c] sm:$0xf]
  %v142 = vld [vmem:[%s1 + $0x190] sm:$0xf]
  %v143 = vld [vmem:[%s1 + $0x194] sm:$0xf]
  %v144 = vld [vmem:[%s1 + $0x198] sm:$0xf]
  %v145 = vld [vmem:[%s1 + $0x19c] sm:$0xf]
  %v146 = vld [vmem:[%s1 + $0x1a0] sm:$0xf]
  %v147 = vld [vmem:[%s1 + $0x1a4] sm:$0xf]
  %v148 = vld [vmem:[%s1 + $0x1a8] sm:$0xf]
  %v149 = vld [vmem:[%s1 + $0x1ac] sm:$0xf]
  %v150 = vld [vmem:[%s1 + $0x1b0] sm:$0xf]
  %v151 = vld [vmem:[%s1 + $0x1b4] sm:$0xf]
  %v152 = vld [vmem:[%s1 + $0x1b8] sm:$0xf]
  %v153 = vld [vmem:[%s1 + $0x1bc] sm:$0xf]
  %v154 = vld [vmem:[%s1 + $0x1c0] sm:$0xf]
  %v155 = vld [vmem:[%s1 + $0x1c4] sm:$0xf]
  %v156 = vld [vmem:[%s1 + $0x1c8] sm:$0xf]
  %v157 = vld [vmem:[%s1 + $0x1cc] sm:$0xf]
  %v158 = vld [vmem:[%s1 + $0x1d0] sm:$0xf]
  %v159 = vld [vmem:[%s1 + $0x1d4] sm:$0xf]
  %v160 = vld [vmem:[%s1 + $0x1d8] sm:$0xf]
  %v161 = vld [vmem:[%s1 + $0x1dc] sm:$0xf]
  %v162 = vld [vmem:[%s1 + $0x1e0] sm:$0xf]
  %v163 = vld [vmem:[%s1 + $0x1e4] sm:$0xf]
  %v164 = vld [vmem:[%s1 + $0x1e8] sm:$0xf]
  %v165 = vld [vmem:[%s1 + $0x1ec] sm:$0xf]
  %v166 = vld [vmem:[%s1 + $0x1f0] sm:$0xf]
  %v167 = vld [vmem:[%s1 + $0x1f4] sm:$0xf]
  %v168 = vld [vmem:[%s1 + $0x1f8] sm:$0xf]
  %v169 = vld [vmem:[%s1 + $0x1fc] sm:$0xf]
  %v186 = vunpack.c.l.b16 %v26
  %v187 = vunpack.c.h.b16 %v26
  %v188 = vunpack.c.l.b16 %v27
  %v189 = vunpack.c.h.b16 %v27
  %v190 = vunpack.c.l.b16 %v28
  %v191 = vunpack.c.h.b16 %v28
  %v192 = vunpack.c.l.b16 %v29
  %v193 = vunpack.c.h.b16 %v29
  %v194 = vunpack.c.l.b16 %v30
  %v195 = vunpack.c.h.b16 %v30
  %v196 = vunpack.c.l.b16 %v31
  %v197 = vunpack.c.h.b16 %v31
  %v198 = vunpack.c.l.b16 %v32
  %v199 = vunpack.c.h.b16 %v32
  %v200 = vunpack.c.l.b16 %v33
  %v201 = vunpack.c.h.b16 %v33
  %v202 = vunpack.c.l.b16 %v34
  %v203 = vunpack.c.h.b16 %v34
  %v204 = vunpack.c.l.b16 %v35
  %v205 = vunpack.c.h.b16 %v35
  %v206 = vunpack.c.l.b16 %v36
  %v207 = vunpack.c.h.b16 %v36
  %v208 = vunpack.c.l.b16 %v37
  %v209 = vunpack.c.h.b16 %v37
  %v210 = vunpack.c.l.b16 %v38
  %v211 = vunpack.c.h.b16 %v38
  %v212 = vunpack.c.l.b16 %v39
  %v213 = vunpack.c.h.b16 %v39
  %v214 = vunpack.c.l.b16 %v40
  %v215 = vunpack.c.h.b16 %v40
  %v216 = vunpack.c.l.b16 %v41
  %v217 = vunpack.c.h.b16 %v41
  %v218 = vpack.c.b16 %v194, %v186
  %v219 = vpack.c.b16 %v195, %v187
  %v220 = vpack.c.b16 %v196, %v188
  %v221 = vpack.c.b16 %v197, %v189
  %v222 = vpack.c.b16 %v198, %v190
  %v223 = vpack.c.b16 %v199, %v191
  %v224 = vpack.c.b16 %v200, %v192
  %v225 = vpack.c.b16 %v201, %v193
  %v226 = vpack.c.b16 %v210, %v202
  %v227 = vpack.c.b16 %v211, %v203
  %v228 = vpack.c.b16 %v212, %v204
  %v229 = vpack.c.b16 %v213, %v205
  %v230 = vpack.c.b16 %v214, %v206
  %v231 = vpack.c.b16 %v215, %v207
  %v232 = vpack.c.b16 %v216, %v208
  %v233 = vpack.c.b16 %v217, %v209
  %v378 = vunpack.c.l.b16 %v42
  %v379 = vunpack.c.l.b16 %v43
  %v380 = vunpack.c.l.b16 %v44
  %v381 = vunpack.c.l.b16 %v45
  %v382 = vunpack.c.l.b16 %v46
  %v383 = vunpack.c.l.b16 %v47
  %v384 = vunpack.c.l.b16 %v48
  %v385 = vunpack.c.l.b16 %v49
  %v386 = vunpack.c.l.b16 %v50
  %v387 = vunpack.c.l.b16 %v51
  %v388 = vunpack.c.l.b16 %v52
  %v389 = vunpack.c.l.b16 %v53
  %v390 = vunpack.c.l.b16 %v54
  %v391 = vunpack.c.l.b16 %v55
  %v392 = vunpack.c.l.b16 %v56
  %v393 = vunpack.c.l.b16 %v57
  %v394 = vunpack.c.l.b16 %v58
  %v395 = vunpack.c.l.b16 %v59
  %v396 = vunpack.c.l.b16 %v60
  %v397 = vunpack.c.l.b16 %v61
  %v398 = vunpack.c.l.b16 %v62
  %v399 = vunpack.c.l.b16 %v63
  %v400 = vunpack.c.l.b16 %v64
  %v401 = vunpack.c.l.b16 %v65
  %v402 = vunpack.c.l.b16 %v66
  %v403 = vunpack.c.l.b16 %v67
  %v404 = vunpack.c.l.b16 %v68
  %v405 = vunpack.c.l.b16 %v69
  %v406 = vunpack.c.l.b16 %v70
  %v407 = vunpack.c.l.b16 %v71
  %v408 = vunpack.c.l.b16 %v72
  %v409 = vunpack.c.l.b16 %v73
  %v410 = vunpack.c.l.b16 %v74
  %v411 = vunpack.c.l.b16 %v75
  %v412 = vunpack.c.l.b16 %v76
  %v413 = vunpack.c.l.b16 %v77
  %v414 = vunpack.c.l.b16 %v78
  %v415 = vunpack.c.l.b16 %v79
  %v416 = vunpack.c.l.b16 %v80
  %v417 = vunpack.c.l.b16 %v81
  %v418 = vunpack.c.l.b16 %v82
  %v419 = vunpack.c.l.b16 %v83
  %v420 = vunpack.c.l.b16 %v84
  %v421 = vunpack.c.l.b16 %v85
  %v422 = vunpack.c.l.b16 %v86
  %v423 = vunpack.c.l.b16 %v87
  %v424 = vunpack.c.l.b16 %v88
  %v425 = vunpack.c.l.b16 %v89
  %v426 = vunpack.c.l.b16 %v90
  %v427 = vunpack.c.l.b16 %v91
  %v428 = vunpack.c.l.b16 %v92
  %v429 = vunpack.c.l.b16 %v93
  %v430 = vunpack.c.l.b16 %v94
  %v431 = vunpack.c.l.b16 %v95
  %v432 = vunpack.c.l.b16 %v96
  %v433 = vunpack.c.l.b16 %v97
  %v434 = vunpack.c.l.b16 %v98
  %v435 = vunpack.c.l.b16 %v99
  %v436 = vunpack.c.l.b16 %v100
  %v437 = vunpack.c.l.b16 %v101
  %v438 = vunpack.c.l.b16 %v102
  %v439 = vunpack.c.l.b16 %v103
  %v440 = vunpack.c.l.b16 %v104
  %v441 = vunpack.c.l.b16 %v105
  %v442 = vunpack.c.l.b16 %v106
  %v443 = vunpack.c.l.b16 %v107
  %v444 = vunpack.c.l.b16 %v108
  %v445 = vunpack.c.l.b16 %v109
  %v446 = vunpack.c.l.b16 %v110
  %v447 = vunpack.c.l.b16 %v111
  %v448 = vunpack.c.l.b16 %v112
  %v449 = vunpack.c.l.b16 %v113
  %v450 = vunpack.c.l.b16 %v114
  %v451 = vunpack.c.l.b16 %v115
  %v452 = vunpack.c.l.b16 %v116
  %v453 = vunpack.c.l.b16 %v117
  %v454 = vunpack.c.l.b16 %v118
  %v455 = vunpack.c.l.b16 %v119
  %v456 = vunpack.c.l.b16 %v120
  %v457 = vunpack.c.l.b16 %v121
  %v458 = vunpack.c.l.b16 %v122
  %v459 = vunpack.c.l.b16 %v123
  %v460 = vunpack.c.l.b16 %v124
  %v461 = vunpack.c.l.b16 %v125
  %v462 = vunpack.c.l.b16 %v126
  %v463 = vunpack.c.l.b16 %v127
  %v464 = vunpack.c.l.b16 %v128
  %v465 = vunpack.c.l.b16 %v129
  %v466 = vunpack.c.l.b16 %v130
  %v467 = vunpack.c.l.b16 %v131
  %v468 = vunpack.c.l.b16 %v132
  %v469 = vunpack.c.l.b16 %v133
  %v470 = vunpack.c.l.b16 %v134
  %v471 = vunpack.c.l.b16 %v135
  %v472 = vunpack.c.l.b16 %v136
  %v473 = vunpack.c.l.b16 %v137
  %v474 = vunpack.c.l.b16 %v138
  %v475 = vunpack.c.l.b16 %v139
  %v476 = vunpack.c.l.b16 %v140
  %v477 = vunpack.c.l.b16 %v141
  %v478 = vunpack.c.l.b16 %v142
  %v479 = vunpack.c.l.b16 %v143
  %v480 = vunpack.c.l.b16 %v144
  %v481 = vunpack.c.l.b16 %v145
  %v482 = vunpack.c.l.b16 %v146
  %v483 = vunpack.c.l.b16 %v147
  %v484 = vunpack.c.l.b16 %v148
  %v485 = vunpack.c.l.b16 %v149
  %v486 = vunpack.c.l.b16 %v150
  %v487 = vunpack.c.l.b16 %v151
  %v488 = vunpack.c.l.b16 %v152
  %v489 = vunpack.c.l.b16 %v153
  %v490 = vunpack.c.l.b16 %v154
  %v491 = vunpack.c.l.b16 %v155
  %v492 = vunpack.c.l.b16 %v156
  %v493 = vunpack.c.l.b16 %v157
  %v494 = vunpack.c.l.b16 %v158
  %v495 = vunpack.c.l.b16 %v159
  %v496 = vunpack.c.l.b16 %v160
  %v497 = vunpack.c.l.b16 %v161
  %v498 = vunpack.c.l.b16 %v162
  %v499 = vunpack.c.l.b16 %v163
  %v500 = vunpack.c.l.b16 %v164
  %v501 = vunpack.c.l.b16 %v165
  %v502 = vunpack.c.l.b16 %v166
  %v503 = vunpack.c.l.b16 %v167
  %v504 = vunpack.c.l.b16 %v168
  %v505 = vunpack.c.l.b16 %v169
  %v506 = vpack.c.b16 %v379, %v378
  %v507 = vpack.c.b16 %v381, %v380
  %v508 = vpack.c.b16 %v383, %v382
  %v509 = vpack.c.b16 %v385, %v384
  %v510 = vpack.c.b16 %v387, %v386
  %v511 = vpack.c.b16 %v389, %v388
  %v512 = vpack.c.b16 %v391, %v390
  %v513 = vpack.c.b16 %v393, %v392
  %v514 = vpack.c.b16 %v395, %v394
  %v515 = vpack.c.b16 %v397, %v396
  %v516 = vpack.c.b16 %v399, %v398
  %v517 = vpack.c.b16 %v401, %v400
  %v518 = vpack.c.b16 %v403, %v402
  %v519 = vpack.c.b16 %v405, %v404
  %v520 = vpack.c.b16 %v407, %v406
  %v521 = vpack.c.b16 %v409, %v408
  %v522 = vpack.c.b16 %v411, %v410
  %v523 = vpack.c.b16 %v413, %v412
  %v524 = vpack.c.b16 %v415, %v414
  %v525 = vpack.c.b16 %v417, %v416
  %v526 = vpack.c.b16 %v419, %v418
  %v527 = vpack.c.b16 %v421, %v420
  %v528 = vpack.c.b16 %v423, %v422
  %v529 = vpack.c.b16 %v425, %v424
  %v530 = vpack.c.b16 %v427, %v426
  %v531 = vpack.c.b16 %v429, %v428
  %v532 = vpack.c.b16 %v431, %v430
  %v533 = vpack.c.b16 %v433, %v432
  %v534 = vpack.c.b16 %v435, %v434
  %v535 = vpack.c.b16 %v437, %v436
  %v536 = vpack.c.b16 %v439, %v438
  %v537 = vpack.c.b16 %v441, %v440
  %v538 = vpack.c.b16 %v443, %v442
  %v539 = vpack.c.b16 %v445, %v444
  %v540 = vpack.c.b16 %v447, %v446
  %v541 = vpack.c.b16 %v449, %v448
  %v542 = vpack.c.b16 %v451, %v450
  %v543 = vpack.c.b16 %v453, %v452
  %v544 = vpack.c.b16 %v455, %v454
  %v545 = vpack.c.b16 %v457, %v456
  %v546 = vpack.c.b16 %v459, %v458
  %v547 = vpack.c.b16 %v461, %v460
  %v548 = vpack.c.b16 %v463, %v462
  %v549 = vpack.c.b16 %v465, %v464
  %v550 = vpack.c.b16 %v467, %v466
  %v551 = vpack.c.b16 %v469, %v468
  %v552 = vpack.c.b16 %v471, %v470
  %v553 = vpack.c.b16 %v473, %v472
  %v554 = vpack.c.b16 %v475, %v474
  %v555 = vpack.c.b16 %v477, %v476
  %v556 = vpack.c.b16 %v479, %v478
  %v557 = vpack.c.b16 %v481, %v480
  %v558 = vpack.c.b16 %v483, %v482
  %v559 = vpack.c.b16 %v485, %v484
  %v560 = vpack.c.b16 %v487, %v486
  %v561 = vpack.c.b16 %v489, %v488
  %v562 = vpack.c.b16 %v491, %v490
  %v563 = vpack.c.b16 %v493, %v492
  %v564 = vpack.c.b16 %v495, %v494
  %v565 = vpack.c.b16 %v497, %v496
  %v566 = vpack.c.b16 %v499, %v498
  %v567 = vpack.c.b16 %v501, %v500
  %v568 = vpack.c.b16 %v503, %v502
  %v569 = vpack.c.b16 %v505, %v504
  %634 = vmatprep.subr.bf16.mxu0 0
  %635 = vmatpush1.bf16.msra.mxu0 %v506
  %636 = vmatprep.subr.bf16.mxu0 0
  %637 = vmatpush1.bf16.msra.mxu0 %v507
  %638 = vmatprep.subr.bf16.mxu0 0
  %639 = vmatpush1.bf16.msra.mxu0 %v508
  %640 = vmatprep.subr.bf16.mxu0 0
  %641 = vmatpush1.bf16.msra.mxu0 %v509
  %642 = vmatprep.subr.bf16.mxu0 0
  %643 = vmatpush1.bf16.msra.mxu0 %v510
  %644 = vmatprep.subr.bf16.mxu0 0
  %645 = vmatpush1.bf16.msra.mxu0 %v511
  %646 = vmatprep.subr.bf16.mxu0 0
  %647 = vmatpush1.bf16.msra.mxu0 %v512
  %648 = vmatprep.subr.bf16.mxu0 0
  %649 = vmatpush1.bf16.msra.mxu0 %v513
  %650 = vmatprep.subr.bf16.mxu0 0
  %651 = vmatpush1.bf16.msra.mxu0 %v514
  %652 = vmatprep.subr.bf16.mxu0 0
  %653 = vmatpush1.bf16.msra.mxu0 %v515
  %654 = vmatprep.subr.bf16.mxu0 0
  %655 = vmatpush1.bf16.msra.mxu0 %v516
  %656 = vmatprep.subr.bf16.mxu0 0
  %657 = vmatpush1.bf16.msra.mxu0 %v517
  %658 = vmatprep.subr.bf16.mxu0 0
  %659 = vmatpush1.bf16.msra.mxu0 %v518
  %660 = vmatprep.subr.bf16.mxu0 0
  %661 = vmatpush1.bf16.msra.mxu0 %v519
  %662 = vmatprep.subr.bf16.mxu0 0
  %663 = vmatpush1.bf16.msra.mxu0 %v520
  %664 = vmatprep.subr.bf16.mxu0 0
  %665 = vmatpush1.bf16.msra.mxu0 %v521
  %666 = vmatprep.mubr.bf16.mxu0 %v219
  %667 = vmatmul.mubr.bf16.gmra.mrb[0].mxu0 %v218
  %v668 = vpop.f32.mrb[0].mxu0
  %v669 = vadd.f32 0.0, %v668
  %v670 = vpop.f32.mrb[0].mxu0
  %v671 = vpop.f32.mrb[0].mxu0
  %v672 = vadd.f32 0.0, %v671
  %v673 = vpop.f32.mrb[0].mxu0
  %674 = vmatprep.mubr.bf16.mxu0 %v227
  %675 = vmatmul.mubr.bf16.gmra.mrb[0].mxu0 %v226
  %v676 = vpop.f32.mrb[0].mxu0
  %v677 = vadd.f32 0.0, %v676
  %v678 = vpop.f32.mrb[0].mxu0
  %v679 = vpop.f32.mrb[0].mxu0
  %v680 = vadd.f32 0.0, %v679
  %v681 = vpop.f32.mrb[0].mxu0
  %682 = vdwg.mxu0
  %683 = vmatprep.subr.bf16.mxu0 0
  %684 = vmatpush1.bf16.msra.mxu0 %v522
  %685 = vmatprep.subr.bf16.mxu0 0
  %686 = vmatpush1.bf16.msra.mxu0 %v523
  %687 = vmatprep.subr.bf16.mxu0 0
  %688 = vmatpush1.bf16.msra.mxu0 %v524
  %689 = vmatprep.subr.bf16.mxu0 0
  %690 = vmatpush1.bf16.msra.mxu0 %v525
  %691 = vmatprep.subr.bf16.mxu0 0
  %692 = vmatpush1.bf16.msra.mxu0 %v526
  %693 = vmatprep.subr.bf16.mxu0 0
  %694 = vmatpush1.bf16.msra.mxu0 %v527
  %695 = vmatprep.subr.bf16.mxu0 0
  %696 = vmatpush1.bf16.msra.mxu0 %v528
  %697 = vmatprep.subr.bf16.mxu0 0
  %698 = vmatpush1.bf16.msra.mxu0 %v529
  %699 = vmatprep.subr.bf16.mxu0 0
  %700 = vmatpush1.bf16.msra.mxu0 %v530
  %701 = vmatprep.subr.bf16.mxu0 0
  %702 = vmatpush1.bf16.msra.mxu0 %v531
  %703 = vmatprep.subr.bf16.mxu0 0
  %704 = vmatpush1.bf16.msra.mxu0 %v532
  %705 = vmatprep.subr.bf16.mxu0 0
  %706 = vmatpush1.bf16.msra.mxu0 %v533
  %707 = vmatprep.subr.bf16.mxu0 0
  %708 = vmatpush1.bf16.msra.mxu0 %v534
  %709 = vmatprep.subr.bf16.mxu0 0
  %710 = vmatpush1.bf16.msra.mxu0 %v535
  %711 = vmatprep.subr.bf16.mxu0 0
  %712 = vmatpush1.bf16.msra.mxu0 %v536
  %713 = vmatprep.subr.bf16.mxu0 0
  %714 = vmatpush1.bf16.msra.mxu0 %v537
  %715 = vmatprep.mubr.bf16.mxu0 %v221
  %716 = vmatmul.mubr.bf16.gmra.mrb[0].mxu0 %v220
  %v717 = vpop.f32.mrb[0].mxu0
  %v718 = vadd.f32 %v669, %v717
  %v719 = vpop.f32.mrb[0].mxu0
  %v720 = vpop.f32.mrb[0].mxu0
  %v721 = vadd.f32 %v672, %v720
  %v722 = vpop.f32.mrb[0].mxu0
  %723 = vmatprep.mubr.bf16.mxu0 %v229
  %724 = vmatmul.mubr.bf16.gmra.mrb[0].mxu0 %v228
  %v725 = vpop.f32.mrb[0].mxu0
  %v726 = vadd.f32 %v677, %v725
  %v727 = vpop.f32.mrb[0].mxu0
  %v728 = vpop.f32.mrb[0].mxu0
  %v729 = vadd.f32 %v680, %v728
  %v730 = vpop.f32.mrb[0].mxu0
  %731 = vdwg.mxu0
  %732 = vmatprep.subr.bf16.mxu0 0
  %733 = vmatpush1.bf16.msra.mxu0 %v538
  %734 = vmatprep.subr.bf16.mxu0 0
  %735 = vmatpush1.bf16.msra.mxu0 %v539
  %736 = vmatprep.subr.bf16.mxu0 0
  %737 = vmatpush1.bf16.msra.mxu0 %v540
  %738 = vmatprep.subr.bf16.mxu0 0
  %739 = vmatpush1.bf16.msra.mxu0 %v541
  %740 = vmatprep.subr.bf16.mxu0 0
  %741 = vmatpush1.bf16.msra.mxu0 %v542
  %742 = vmatprep.subr.bf16.mxu0 0
  %743 = vmatpush1.bf16.msra.mxu0 %v543
  %744 = vmatprep.subr.bf16.mxu0 0
  %745 = vmatpush1.bf16.msra.mxu0 %v544
  %746 = vmatprep.subr.bf16.mxu0 0
  %747 = vmatpush1.bf16.msra.mxu0 %v545
  %748 = vmatprep.subr.bf16.mxu0 0
  %749 = vmatpush1.bf16.msra.mxu0 %v546
  %750 = vmatprep.subr.bf16.mxu0 0
  %751 = vmatpush1.bf16.msra.mxu0 %v547
  %752 = vmatprep.subr.bf16.mxu0 0
  %753 = vmatpush1.bf16.msra.mxu0 %v548
  %754 = vmatprep.subr.bf16.mxu0 0
  %755 = vmatpush1.bf16.msra.mxu0 %v549
  %756 = vmatprep.subr.bf16.mxu0 0
  %757 = vmatpush1.bf16.msra.mxu0 %v550
  %758 = vmatprep.subr.bf16.mxu0 0
  %759 = vmatpush1.bf16.msra.mxu0 %v551
  %760 = vmatprep.subr.bf16.mxu0 0
  %761 = vmatpush1.bf16.msra.mxu0 %v552
  %762 = vmatprep.subr.bf16.mxu0 0
  %763 = vmatpush1.bf16.msra.mxu0 %v553
  %764 = vmatprep.mubr.bf16.mxu0 %v223
  %765 = vmatmul.mubr.bf16.gmra.mrb[0].mxu0 %v222
  %v766 = vpop.f32.mrb[0].mxu0
  %v767 = vadd.f32 %v718, %v766
  %v768 = vpop.f32.mrb[0].mxu0
  %v769 = vpop.f32.mrb[0].mxu0
  %v770 = vadd.f32 %v721, %v769
  %v771 = vpop.f32.mrb[0].mxu0
  %772 = vmatprep.mubr.bf16.mxu0 %v231
  %773 = vmatmul.mubr.bf16.gmra.mrb[0].mxu0 %v230
  %v774 = vpop.f32.mrb[0].mxu0
  %v775 = vadd.f32 %v726, %v774
  %v776 = vpop.f32.mrb[0].mxu0
  %v777 = vpop.f32.mrb[0].mxu0
  %v778 = vadd.f32 %v729, %v777
  %v779 = vpop.f32.mrb[0].mxu0
  %780 = vdwg.mxu0
  %781 = vmatprep.subr.bf16.mxu0 0
  %782 = vmatpush1.bf16.msra.mxu0 %v554
  %783 = vmatprep.subr.bf16.mxu0 0
  %784 = vmatpush1.bf16.msra.mxu0 %v555
  %785 = vmatprep.subr.bf16.mxu0 0
  %786 = vmatpush1.bf16.msra.mxu0 %v556
  %787 = vmatprep.subr.bf16.mxu0 0
  %788 = vmatpush1.bf16.msra.mxu0 %v557
  %789 = vmatprep.subr.bf16.mxu0 0
  %790 = vmatpush1.bf16.msra.mxu0 %v558
  %791 = vmatprep.subr.bf16.mxu0 0
  %792 = vmatpush1.bf16.msra.mxu0 %v559
  %793 = vmatprep.subr.bf16.mxu0 0
  %794 = vmatpush1.bf16.msra.mxu0 %v560
  %795 = vmatprep.subr.bf16.mxu0 0
  %796 = vmatpush1.bf16.msra.mxu0 %v561
  %797 = vmatprep.subr.bf16.mxu0 0
  %798 = vmatpush1.bf16.msra.mxu0 %v562
  %799 = vmatprep.subr.bf16.mxu0 0
  %800 = vmatpush1.bf16.msra.mxu0 %v563
  %801 = vmatprep.subr.bf16.mxu0 0
  %802 = vmatpush1.bf16.msra.mxu0 %v564
  %803 = vmatprep.subr.bf16.mxu0 0
  %804 = vmatpush1.bf16.msra.mxu0 %v565
  %805 = vmatprep.subr.bf16.mxu0 0
  %806 = vmatpush1.bf16.msra.mxu0 %v566
  %807 = vmatprep.subr.bf16.mxu0 0
  %808 = vmatpush1.bf16.msra.mxu0 %v567
  %809 = vmatprep.subr.bf16.mxu0 0
  %810 = vmatpush1.bf16.msra.mxu0 %v568
  %811 = vmatprep.subr.bf16.mxu0 0
  %812 = vmatpush1.bf16.msra.mxu0 %v569
  %813 = vmatprep.mubr.bf16.mxu0 %v225
  %814 = vmatmul.mubr.bf16.gmra.mrb[0].mxu0 %v224
  %v815 = vpop.f32.mrb[0].mxu0
  %v816 = vadd.f32 %v767, %v815
  %v817 = vpop.f32.mrb[0].mxu0
  %v818 = vpop.f32.mrb[0].mxu0
  %v819 = vadd.f32 %v770, %v818
  %v820 = vpop.f32.mrb[0].mxu0
  %821 = vmatprep.mubr.bf16.mxu0 %v233
  %822 = vmatmul.mubr.bf16.gmra.mrb[0].mxu0 %v232
  %v823 = vpop.f32.mrb[0].mxu0
  %v824 = vadd.f32 %v775, %v823
  %v825 = vpop.f32.mrb[0].mxu0
  %v826 = vpop.f32.mrb[0].mxu0
  %v827 = vadd.f32 %v778, %v826
  %v828 = vpop.f32.mrb[0].mxu0
  %829 = vdwg.mxu0
  %v830 = vadd.f32 %v816, %v819
  %v831 = vadd.f32 %v830, %v824
  %v832 = vadd.f32 %v831, %v827
  %v833 = vrot.slane %v832, 4
  %v834 = vadd.f32 %v832, %v833
  %v835 = vrot.slane %v834, 2
  %v836 = vadd.f32 %v834, %v835
  %v837 = vrot.slane %v836, 1
  %v838 = vadd.f32 %v836, %v837
  %v839 = vmul.f32 %v838, 0.03125
  %v840 = vmul.f32 %v816, %v816
  %v841 = vmul.f32 %v819, %v819
  %v842 = vmul.f32 %v824, %v824
  %v843 = vmul.f32 %v827, %v827
  %v844 = vadd.f32 %v840, %v841
  %v845 = vadd.f32 %v844, %v842
  %v846 = vadd.f32 %v845, %v843
  %v847 = vrot.slane %v846, 4
  %v848 = vadd.f32 %v846, %v847
  %v849 = vrot.slane %v848, 2
  %v850 = vadd.f32 %v848, %v849
  %v851 = vrot.slane %v850, 1
  %v852 = vadd.f32 %v850, %v851
  %v853 = vmul.f32 %v852, 0.03125
  %v854 = vmul.f32 %v839, %v839
  %v855 = vsub.f32 %v853, %v854
  %v856 = vmax.f32 %v855, 0.0
  %v857 = vadd.f32 %v856, 1e-05
  %v858 = vrsqrt.pop %v857
  %v859 = vld [vmem:[%s2] sm:$0x1]
  %v860 = vmul.f32 %v859, %v858
  %v861 = vld [vmem:[%s3] sm:$0x1]
  %v862 = vmul.f32 %v839, %v860
  %v863 = vsub.f32 %v861, %v862
  %v865 = vlaneseq
  %v866 = vshrl.u32 %v865, 7
  %v867 = vsub.s32 0, %v866
  %v868 = vrot.slane %v860, %v867
  %v870 = vmul.f32 %v816, %v868
  %v871 = vmul.f32 %v819, %v868
  %v872 = vmul.f32 %v824, %v868
  %v873 = vmul.f32 %v827, %v868
  %v875 = vlaneseq
  %v876 = vshrl.u32 %v875, 7
  %v877 = vsub.s32 0, %v876
  %v878 = vrot.slane %v863, %v877
  %v880 = vadd.f32 %v870, %v878
  %v881 = vadd.f32 %v871, %v878
  %v882 = vadd.f32 %v872, %v878
  %v883 = vadd.f32 %v873, %v878
  %vm884 = vcmp.ge.f32.partialorder %v880, 0.0
  %vm885 = vcmp.ge.f32.partialorder %v881, 0.0
  %vm886 = vcmp.ge.f32.partialorder %v882, 0.0
  %vm887 = vcmp.ge.f32.partialorder %v883, 0.0
  %v888 = vmul.f32 %v880, 0.2
  %v889 = vmul.f32 %v881, 0.2
  %v890 = vmul.f32 %v882, 0.2
  %v891 = vmul.f32 %v883, 0.2
  %v892 = vsel %vm884, %v880, %v888
  %v893 = vsel %vm885, %v881, %v889
  %v894 = vsel %vm886, %v882, %v890
  %v895 = vsel %vm887, %v883, %v891
  %v896 = vld [vmem:[%s4] sm:$0xff]
  %v897 = vld [vmem:[%s4 + $0x8] sm:$0xff]
  %v898 = vmul.f32 %v892, %v896
  %v899 = vmul.f32 %v893, %v897
  %v900 = vmul.f32 %v894, %v896
  %v901 = vmul.f32 %v895, %v897
  %902 = vadd.xlane.f32.xlu0 %v898
  %v903 = vpop.xlane.xlu0 %902
  %904 = vadd.xlane.f32.xlu0 %v899
  %v905 = vpop.xlane.xlu0 %904
  %906 = vadd.xlane.f32.xlu0 %v900
  %v907 = vpop.xlane.xlu0 %906
  %908 = vadd.xlane.f32.xlu0 %v901
  %v909 = vpop.xlane.xlu0 %908
  %v914 = vlaneseq
  %v915 = vand.u32 %v914, 127
  %v916 = vlaneseq
  %v917 = vshrl.u32 %v916, 7
  %v918 = vsub.s32 %v915, %v917
  %v919 = vrot.slane %v903, %v918
  %v920 = vadd.s32 %v915, 4294967288
  %v921 = vlaneseq
  %v922 = vshrl.u32 %v921, 7
  %v923 = vsub.s32 %v920, %v922
  %v924 = vrot.slane %v905, %v923
  %vm925 = vcmask 130112
  %v926 = vsel %vm925, %v924, %v919
  %v927 = vlaneseq
  %v928 = vshrl.u32 %v927, 7
  %v929 = vsub.s32 %v915, %v928
  %v930 = vrot.slane %v907, %v929
  %v931 = vlaneseq
  %v932 = vshrl.u32 %v931, 7
  %v933 = vsub.s32 %v920, %v932
  %v934 = vrot.slane %v909, %v933
  %v935 = vsel %vm925, %v934, %v930
  %vm936 = vcmask 1041409
  %v937 = vsel %vm936, %v935, %v926
  %vm939 = vcmask 123904
  %v940 = vsel %vm939, %v937, 0.0
  %941 = vadd.xlane.f32.xlu0 %v940
  %v942 = vpop.xlane.xlu0 %941
  %v943 = vld [vmem:[#allocation2] sm:$0x1]
  %v945 = vlaneseq
  %v946 = vshrl.u32 %v945, 7
  %v947 = vsub.s32 0, %v946
  %v948 = vrot.slane %v943, %v947
  %v950 = vadd.f32 %v942, %v948
  %v951 = vxor.u32 %v950, 2147483648
  %v952 = vmul.f32 %v951, 1.442695
  %v953 = vpow.pop %v952
  %v954 = vadd.f32 %v953, 1.0
  %v955 = vrcp.pop %v954
  %v956 = vmul.f32 1.0, %v955
  %vm957 = vcmask 1024
  %958 = vst.msk [vmem:[%s6] sm:$0x3] %vm957, %v956
  // Predicated region
  $region26: #{discriminator_forward.7} parent=0 // pred_check
    _
  $region27: #{discriminator_forward.7} parent=0 // pred_check_branch
    %960 = sbr.rel (0) target = $region29
  $region28: #{discriminator_forward.7} parent=0 // pred_region
    _
  $region29: #{discriminator_forward.7} parent=0 // pred_fallthru
    _
  // Predicated region
  $region30: #{discriminator_forward.7} parent=0 // pred_check
    _
  $region31: #{discriminator_forward.7} parent=0 // pred_check_branch
    %962 = sbr.rel (0) target = $region33
  $region32: #{discriminator_forward.7} parent=0 // pred_region
    _
  $region33: #{discriminator_forward.7} parent=0 // pred_fallthru
    _

</llo_original>
